<compile_context>
chip_gen: v6e
topology: v6e:2x2x1
jax: 0.10.0
libtpu: 0.0.40
codegen_flags: <defaults>
</compile_context>

<pallas_src>
import functools

import jax
import jax.numpy as jnp
from jax import lax
from jax.experimental import pallas as pl
from jax.experimental.pallas import tpu as pltpu

BN_EPS = 1e-5

# Static geometry for the 28x28 single-channel input implied by `_to_linear = 4*4*128`.
H1, W1, C1 = 28, 28, 32          # layer-1 conv spatial / out-channels
H2, W2, C2 = 14, 14, 64          # layer-2
H3, W3, C3 = 7, 7, 128           # layer-3
HP1, WP1 = H1 + 2, W1 + 2
HP2, WP2 = H2 + 2, W2 + 2
HP3, WP3 = H3 + 2, W3 + 2
LW1 = (H1 - 1) * WP1 + W1        # 838: flattened span covering all valid conv outputs
LW2 = (H2 - 1) * WP2 + W2        # 222
LW3 = (H3 - 1) * WP3 + W3        # 61
BAND1 = 6 * WP1 + W1             # 208: one 7-output-row band of layer 1
OFF3 = 16                        # zero-prefix rows (>= WP3+1) realizing MaxPool padding=1
HO, WO = 4, 4                    # final pooled spatial size


def _encoder_kernel(x_ref, w1_ref, b1_ref, w2_ref, b2_ref, w3_ref, b3_ref,
                    o_ref, z1_ref, a2_ref, z2_ref, a3_ref, z3_ref, *, blk):
    """Fully fused Encoder forward for a block of `blk` images.

    x_ref : (blk, HP1*WP1, 1) f32  zero-padded 30x30 input, flattened row-major.
    w1_ref: (9, 32) f32            layer-1 weights (BN scale folded), row = (dy,dx).
    w2_ref: (288, 64) bf16         layer-2 weights, rows ordered (dy, dx, cin).
    w3_ref: (576, 128) bf16        layer-3 weights, rows ordered (dy, dx, cin).
    b*_ref: (1, C) f32             conv bias + BN shift folded.
    o_ref : (blk, 16, 128) f32     pooled layer-3 output, row = ho*4+wo, lanes = cout.
    z1_ref: (LW1, 32) f32          layer-1 pre-pool activations / vertical max.
    a2_ref: (HP2*WP2, 32) f32      zero-padded layer-2 input (pooled layer 1).
    z2_ref: (LW2-WP2, 64) f32      layer-2 vertical max.
    a3_ref: (HP3*WP3, 64) f32      zero-padded layer-3 input (pooled layer 2).
    z3_ref: (OFF3+LW3, 128) f32    layer-3 pre-pool / vertical max, with zero prefix.
    """
    # Re-zero the padded borders and the MaxPool(pad=1) prefix every grid step
    # (~45 vreg stores, negligible).  Doing it per step (not at program_id==0) keeps
    # the kernel correct when the "parallel" grid axis is split across TensorCores.
    a2_ref[...] = jnp.zeros(a2_ref.shape, jnp.float32)
    a3_ref[...] = jnp.zeros(a3_ref.shape, jnp.float32)
    z3_ref[pl.ds(0, OFF3), :] = jnp.zeros((OFF3, C3), jnp.float32)

    b1 = b1_ref[...]
    b2 = b2_ref[...]
    b3 = b3_ref[...]
    w1 = w1_ref[...]                                   # (9, 32): 2 vregs, kept live

    for b in range(blk):
        # ----- layer 1: Conv3x3(1->32) + BN + ReLU on the VPU (Cin=1 starves the MXU).
        # Register accumulation in 4 bands of 7 output rows: no per-tap VMEM RMW,
        # a single store per band (helps v5e's single vst slot most).
        for t in range(4):
            r0 = t * 7 * WP1
            acc = jnp.broadcast_to(b1, (BAND1, C1))
            for dy in range(3):
                for dx in range(3):
                    xs = x_ref[b, pl.ds(r0 + dy * WP1 + dx, BAND1), :]   # (BAND1, 1)
                    k = dy * 3 + dx
                    acc = acc + xs * w1[k:k + 1, :]                      # broadcast MAC
            z1_ref[pl.ds(r0, BAND1), :] = jnp.maximum(acc, 0.0)

        # MaxPool 2x2/2: one full-slab vertical max, then 2 strided taps per row.
        vert = jnp.maximum(z1_ref[pl.ds(0, LW1 - WP1), :],
                           z1_ref[pl.ds(WP1, LW1 - WP1), :])
        z1_ref[pl.ds(0, LW1 - WP1), :] = vert
        for ho in range(H2):
            r = 2 * ho * WP1
            row = jnp.maximum(z1_ref[pl.ds(r, W2, stride=2), :],
                              z1_ref[pl.ds(r + 1, W2, stride=2), :])
            a2_ref[pl.ds((ho + 1) * WP2 + 1, W2), :] = row   # interior of padded buffer

        # ----- layer 2: Conv3x3(32->64) + BN + ReLU as ONE im2col MXU matmul (K=288).
        cols = jnp.concatenate(
            [a2_ref[pl.ds(dy * WP2 + dx, LW2), :].astype(jnp.bfloat16)
             for dy in range(3) for dx in range(3)], axis=-1)            # (LW2, 288)
        z2 = jnp.dot(cols, w2_ref[...], preferred_element_type=jnp.float32)
        z2 = jnp.maximum(z2 + b2, 0.0)                                   # (LW2, 64)
        vert = jnp.maximum(z2[:LW2 - WP2], z2[WP2:])     # WP2=16 -> vreg-aligned slices
        z2_ref[pl.ds(0, LW2 - WP2), :] = vert
        for ho in range(H3):
            r = 2 * ho * WP2
            row = jnp.maximum(z2_ref[pl.ds(r, W3, stride=2), :],
                              z2_ref[pl.ds(r + 1, W3, stride=2), :])
            a3_ref[pl.ds((ho + 1) * WP3 + 1, W3), :] = row

        # ----- layer 3: Conv3x3(64->128) + BN + ReLU (one im2col matmul, K=576), then
        # MaxPool 2x2/2 with padding=1 (post-ReLU values >= 0, so 0 pad == -inf pad).
        cols = jnp.concatenate(
            [a3_ref[pl.ds(dy * WP3 + dx, LW3), :].astype(jnp.bfloat16)
             for dy in range(3) for dx in range(3)], axis=-1)            # (LW3, 576)
        z3 = jnp.dot(cols, w3_ref[...], preferred_element_type=jnp.float32)
        z3 = jnp.maximum(z3 + b3, 0.0)                                   # (LW3, 128)
        # Zero the wrap-around junk columns (w >= W3) so padded pool taps read 0.
        colw = lax.broadcasted_iota(jnp.int32, (LW3, 1), 0) % WP3
        z3 = jnp.where(colw < W3, z3, 0.0)
        z3_ref[pl.ds(OFF3, LW3), :] = z3
        vert = jnp.maximum(z3_ref[pl.ds(OFF3 - WP3, LW3), :],            # rows h-1 (pad=0)
                           z3_ref[pl.ds(OFF3, LW3), :])
        z3_ref[pl.ds(OFF3, LW3), :] = vert
        for ho in range(HO):
            r = OFF3 + 2 * ho * WP3
            row = jnp.maximum(z3_ref[pl.ds(r - 1, WO, stride=2), :],
                              z3_ref[pl.ds(r, WO, stride=2), :])
            o_ref[b, pl.ds(ho * WO, WO), :] = row                        # lane-dense (4,128)


def _pick_block(n):
    """Images per grid step: amortize per-step overhead for large batches while keeping
    at least 2 grid steps so both v7x TensorCores get work."""
    for blk in (8, 4, 2):
        if n % blk == 0 and n // blk >= 2:
            return blk
    return 1


def fold_params(params):
    """Fold inference BatchNorm into the conv weights / bias and cast the MXU weights
    to bf16.  Done ONCE at parameter-load time (hoisted out of the forward pass)."""
    folded = {}
    for i, name in enumerate(("layer1", "layer2", "layer3"), start=1):
        w, b, gamma, beta, mean, var = params[name]          # w is HWIO (3,3,cin,cout)
        cin, cout = w.shape[2], w.shape[3]
        scale = gamma / jnp.sqrt(var + BN_EPS)
        wf = (w * scale).reshape(9 * cin, cout)              # rows ordered (dy, dx, cin)
        bf = ((b - mean) * scale + beta).reshape(1, cout).astype(jnp.float32)
        folded[f"w{i}"] = wf.astype(jnp.float32 if i == 1 else jnp.bfloat16)
        folded[f"b{i}"] = bf
    return folded


def encoder_forward(folded, x_nchw):
    """Inference forward of the Encoder.  `folded` comes from fold_params()."""
    n = x_nchw.shape[0]
    assert x_nchw.shape[1:] == (1, H1, W1), x_nchw.shape
    blk = _pick_block(n)

    # The only wrapper-side prep: pad once and flatten (h, w) row-major with the single
    # input channel on the lane dim (tiny: 2*900*N elements).
    xp = jnp.pad(x_nchw.reshape(n, H1, W1), ((0, 0), (1, 1), (1, 1)))
    xp = xp.reshape(n, HP1 * WP1, 1).astype(jnp.float32)

    out = pl.pallas_call(
        functools.partial(_encoder_kernel, blk=blk),
        out_shape=jax.ShapeDtypeStruct((n, HO * WO, C3), jnp.float32),
        grid=(n // blk,),
        in_specs=[
            pl.BlockSpec((blk, HP1 * WP1, 1), lambda i: (i, 0, 0)),
            pl.BlockSpec((9, C1), lambda i: (0, 0)),
            pl.BlockSpec((1, C1), lambda i: (0, 0)),
            pl.BlockSpec((9 * C1, C2), lambda i: (0, 0)),
            pl.BlockSpec((1, C2), lambda i: (0, 0)),
            pl.BlockSpec((9 * C2, C3), lambda i: (0, 0)),
            pl.BlockSpec((1, C3), lambda i: (0, 0)),
        ],
        out_specs=pl.BlockSpec((blk, HO * WO, C3), lambda i: (i, 0, 0)),
        scratch_shapes=[
            pltpu.VMEM((LW1, C1), jnp.float32),          # layer-1 pre-pool / vert
            pltpu.VMEM((HP2 * WP2, C1), jnp.float32),    # padded layer-2 input
            pltpu.VMEM((LW2 - WP2, C2), jnp.float32),    # layer-2 vert
            pltpu.VMEM((HP3 * WP3, C2), jnp.float32),    # padded layer-3 input
            pltpu.VMEM((OFF3 + LW3, C3), jnp.float32),   # layer-3 pre-pool / vert (+prefix)
        ],
        compiler_params=pltpu.CompilerParams(
            dimension_semantics=("parallel",)),
    )(xp, folded["w1"], folded["b1"], folded["w2"], folded["b2"],
      folded["w3"], folded["b3"])

    # Match PyTorch's x.view(N, -1) on an NCHW tensor (channel-major flatten).
    return jnp.transpose(out, (0, 2, 1)).reshape(n, C3 * HO * WO)


def init_params(key):
    def layer(k, cin, cout):
        ks = jax.random.split(k, 6)
        w = 0.1 * jax.random.normal(ks[0], (3, 3, cin, cout), jnp.float32)   # HWIO
        b = 0.1 * jax.random.normal(ks[1], (cout,), jnp.float32)
        gamma = 1.0 + 0.1 * jax.random.normal(ks[2], (cout,), jnp.float32)
        beta = 0.1 * jax.random.normal(ks[3], (cout,), jnp.float32)
        mean = 0.1 * jax.random.normal(ks[4], (cout,), jnp.float32)
        var = jax.random.uniform(ks[5], (cout,), jnp.float32, 0.5, 1.5)
        return (w, b, gamma, beta, mean, var)

    k1, k2, k3 = jax.random.split(key, 3)
    return {
        "layer1": layer(k1, 1, C1),
        "layer2": layer(k2, C1, C2),
        "layer3": layer(k3, C2, C3),
    }


# ----- pure-JAX reference (correctness check) -----
def _ref_layer(x, w, b, gamma, beta, mean, var, pool_pad):
    y = lax.conv_general_dilated(
        x, w, (1, 1), ((1, 1), (1, 1)),
        dimension_numbers=("NHWC", "HWIO", "NHWC"),
        precision=lax.Precision.HIGHEST) + b
    y = (y - mean) / jnp.sqrt(var + BN_EPS) * gamma + beta
    y = jnp.maximum(y, 0.0)
    y = lax.reduce_window(
        y, -jnp.inf, lax.max, (1, 2, 2, 1), (1, 2, 2, 1),
        ((0, 0), (pool_pad, pool_pad), (pool_pad, pool_pad), (0, 0)))
    return y


def ref_forward(params, x_nchw):
    x = jnp.transpose(x_nchw, (0, 2, 3, 1))
    x = _ref_layer(x, *params["layer1"], 0)
    x = _ref_layer(x, *params["layer2"], 0)
    x = _ref_layer(x, *params["layer3"], 1)
    x = jnp.transpose(x, (0, 3, 1, 2))
    return x.reshape(x.shape[0], -1)


if __name__ == "__main__":
    key = jax.random.PRNGKey(0)
    pkey, xkey = jax.random.split(key)
    params = init_params(pkey)
    folded = fold_params(params)     # BN fold hoisted: done once, not per forward
    # Input implied by self._to_linear = 4*4*128: (N, 1, 28, 28) NCHW (MNIST-like).
    x = jax.random.normal(xkey, (2, 1, 28, 28), jnp.float32)

    out = jax.jit(encoder_forward)(folded, x)
    out = jax.block_until_ready(out)
    assert out.shape == (2, 4 * 4 * 128), out.shape

    ref = ref_forward(params, x)
    err = float(jnp.max(jnp.abs(out - ref)))
    rel = err / (float(jnp.max(jnp.abs(ref))) + 1e-6)
    # Layers 2/3 use bf16 MXU operands (f32 accumulate) -> small relative error.
    assert rel < 5e-2, f"max abs err {err}, rel {rel}"

    print("KERNEL_OK")
</pallas_src>

<mosaic_0001>
module attributes {stable_mosaic.version = 11 : i64} {
  func.func @_encoder_kernel(%arg0: i32, %arg1: memref<1x900x1xf32, #tpu.memory_space<vmem>>, %arg2: memref<9x32xf32, #tpu.memory_space<vmem>>, %arg3: memref<1x32xf32, #tpu.memory_space<vmem>>, %arg4: memref<288x64xbf16, #tpu.memory_space<vmem>>, %arg5: memref<1x64xf32, #tpu.memory_space<vmem>>, %arg6: memref<576x128xbf16, #tpu.memory_space<vmem>>, %arg7: memref<1x128xf32, #tpu.memory_space<vmem>>, %arg8: memref<1x16x128xf32, #tpu.memory_space<vmem>>, %arg9: memref<838x32xf32, #tpu.memory_space<vmem>>, %arg10: memref<256x32xf32, #tpu.memory_space<vmem>>, %arg11: memref<206x64xf32, #tpu.memory_space<vmem>>, %arg12: memref<81x64xf32, #tpu.memory_space<vmem>>, %arg13: memref<77x128xf32, #tpu.memory_space<vmem>>) attributes {dimension_semantics = [#tpu.dimension_semantics<parallel>], iteration_bounds = array<i64: 2>, scalar_prefetch = 0 : i64, scratch_operands = 5 : i64, tpu.core_type = #tpu.core_type<tc>, window_params = [{transform_indices = @transform_0, window_bounds = array<i64: 1, 900, 1>}, {pipeline_mode = #tpu.pipeline_mode<synchronous>, transform_indices = @transform_1, window_bounds = array<i64: 9, 32>}, {pipeline_mode = #tpu.pipeline_mode<synchronous>, transform_indices = @transform_2, window_bounds = array<i64: 1, 32>}, {pipeline_mode = #tpu.pipeline_mode<synchronous>, transform_indices = @transform_3, window_bounds = array<i64: 288, 64>}, {pipeline_mode = #tpu.pipeline_mode<synchronous>, transform_indices = @transform_4, window_bounds = array<i64: 1, 64>}, {pipeline_mode = #tpu.pipeline_mode<synchronous>, transform_indices = @transform_5, window_bounds = array<i64: 576, 128>}, {pipeline_mode = #tpu.pipeline_mode<synchronous>, transform_indices = @transform_6, window_bounds = array<i64: 1, 128>}, {transform_indices = @transform_7, window_bounds = array<i64: 1, 16, 128>}]} {
    %cst = arith.constant 0.000000e+00 : f32
    %0 = vector.broadcast %cst : f32 to vector<256x32xf32>
    %c0 = arith.constant 0 : index
    %c0_0 = arith.constant 0 : index
    %1 = vector.load %arg10[%c0, %c0_0] : memref<256x32xf32, #tpu.memory_space<vmem>>, vector<256x32xf32>
    tpu.vector_store %arg10[%c0, %c0_0], %0 {strides = array<i32>} : memref<256x32xf32, #tpu.memory_space<vmem>>, vector<256x32xf32>,
    %cst_1 = arith.constant 0.000000e+00 : f32
    %2 = vector.broadcast %cst_1 : f32 to vector<81x64xf32>
    %c0_2 = arith.constant 0 : index
    %c0_3 = arith.constant 0 : index
    %3 = vector.load %arg12[%c0_2, %c0_3] : memref<81x64xf32, #tpu.memory_space<vmem>>, vector<81x64xf32>
    tpu.vector_store %arg12[%c0_2, %c0_3], %2 {strides = array<i32>} : memref<81x64xf32, #tpu.memory_space<vmem>>, vector<81x64xf32>,
    %cst_4 = arith.constant 0.000000e+00 : f32
    %4 = vector.broadcast %cst_4 : f32 to vector<16x128xf32>
    %c0_5 = arith.constant 0 : index
    %c0_6 = arith.constant 0 : index
    %5 = vector.load %arg13[%c0_5, %c0_6] : memref<77x128xf32, #tpu.memory_space<vmem>>, vector<16x128xf32>
    tpu.vector_store %arg13[%c0_5, %c0_6], %4 {strides = array<i32>} : memref<77x128xf32, #tpu.memory_space<vmem>>, vector<16x128xf32>,
    %c0_7 = arith.constant 0 : index
    %c0_8 = arith.constant 0 : index
    %6 = vector.load %arg3[%c0_7, %c0_8] : memref<1x32xf32, #tpu.memory_space<vmem>>, vector<1x32xf32>
    %c0_9 = arith.constant 0 : index
    %c0_10 = arith.constant 0 : index
    %7 = vector.load %arg5[%c0_9, %c0_10] : memref<1x64xf32, #tpu.memory_space<vmem>>, vector<1x64xf32>
    %c0_11 = arith.constant 0 : index
    %c0_12 = arith.constant 0 : index
    %8 = vector.load %arg7[%c0_11, %c0_12] : memref<1x128xf32, #tpu.memory_space<vmem>>, vector<1x128xf32>
    %c0_13 = arith.constant 0 : index
    %c0_14 = arith.constant 0 : index
    %9 = vector.load %arg2[%c0_13, %c0_14] : memref<9x32xf32, #tpu.memory_space<vmem>>, vector<9x32xf32>
    %10 = vector.shape_cast %6 : vector<1x32xf32> to vector<1x32xf32>
    %11 = vector.broadcast %10 : vector<1x32xf32> to vector<208x32xf32>
    %c0_15 = arith.constant 0 : index
    %c0_16 = arith.constant 0 : index
    %c0_17 = arith.constant 0 : index
    %12 = vector.load %arg1[%c0_15, %c0_16, %c0_17] : memref<1x900x1xf32, #tpu.memory_space<vmem>>, vector<1x208x1xf32>
    %13 = vector.shape_cast %12 : vector<1x208x1xf32> to vector<208x1xf32>
    %14 = vector.extract_strided_slice %9 {offsets = [0, 0], sizes = [1, 32], strides = [1, 1]} : vector<9x32xf32> to vector<1x32xf32>
    %15 = vector.broadcast %13 : vector<208x1xf32> to vector<208x32xf32>
    %16 = vector.broadcast %14 : vector<1x32xf32> to vector<208x32xf32>
    %17 = arith.mulf %15, %16 : vector<208x32xf32>
    %18 = arith.addf %11, %17 : vector<208x32xf32>
    %c0_18 = arith.constant 0 : index
    %c1 = arith.constant 1 : index
    %c0_19 = arith.constant 0 : index
    %19 = vector.load %arg1[%c0_18, %c1, %c0_19] : memref<1x900x1xf32, #tpu.memory_space<vmem>>, vector<1x208x1xf32>
    %20 = vector.shape_cast %19 : vector<1x208x1xf32> to vector<208x1xf32>
    %21 = vector.extract_strided_slice %9 {offsets = [1, 0], sizes = [1, 32], strides = [1, 1]} : vector<9x32xf32> to vector<1x32xf32>
    %22 = vector.broadcast %20 : vector<208x1xf32> to vector<208x32xf32>
    %23 = vector.broadcast %21 : vector<1x32xf32> to vector<208x32xf32>
    %24 = arith.mulf %22, %23 : vector<208x32xf32>
    %25 = arith.addf %18, %24 : vector<208x32xf32>
    %c0_20 = arith.constant 0 : index
    %c2 = arith.constant 2 : index
    %c0_21 = arith.constant 0 : index
    %26 = vector.load %arg1[%c0_20, %c2, %c0_21] : memref<1x900x1xf32, #tpu.memory_space<vmem>>, vector<1x208x1xf32>
    %27 = vector.shape_cast %26 : vector<1x208x1xf32> to vector<208x1xf32>
    %28 = vector.extract_strided_slice %9 {offsets = [2, 0], sizes = [1, 32], strides = [1, 1]} : vector<9x32xf32> to vector<1x32xf32>
    %29 = vector.broadcast %27 : vector<208x1xf32> to vector<208x32xf32>
    %30 = vector.broadcast %28 : vector<1x32xf32> to vector<208x32xf32>
    %31 = arith.mulf %29, %30 : vector<208x32xf32>
    %32 = arith.addf %25, %31 : vector<208x32xf32>
    %c0_22 = arith.constant 0 : index
    %c30 = arith.constant 30 : index
    %c0_23 = arith.constant 0 : index
    %33 = vector.load %arg1[%c0_22, %c30, %c0_23] : memref<1x900x1xf32, #tpu.memory_space<vmem>>, vector<1x208x1xf32>
    %34 = vector.shape_cast %33 : vector<1x208x1xf32> to vector<208x1xf32>
    %35 = vector.extract_strided_slice %9 {offsets = [3, 0], sizes = [1, 32], strides = [1, 1]} : vector<9x32xf32> to vector<1x32xf32>
    %36 = vector.broadcast %34 : vector<208x1xf32> to vector<208x32xf32>
    %37 = vector.broadcast %35 : vector<1x32xf32> to vector<208x32xf32>
    %38 = arith.mulf %36, %37 : vector<208x32xf32>
    %39 = arith.addf %32, %38 : vector<208x32xf32>
    %c0_24 = arith.constant 0 : index
    %c31 = arith.constant 31 : index
    %c0_25 = arith.constant 0 : index
    %40 = vector.load %arg1[%c0_24, %c31, %c0_25] : memref<1x900x1xf32, #tpu.memory_space<vmem>>, vector<1x208x1xf32>
    %41 = vector.shape_cast %40 : vector<1x208x1xf32> to vector<208x1xf32>
    %42 = vector.extract_strided_slice %9 {offsets = [4, 0], sizes = [1, 32], strides = [1, 1]} : vector<9x32xf32> to vector<1x32xf32>
    %43 = vector.broadcast %41 : vector<208x1xf32> to vector<208x32xf32>
    %44 = vector.broadcast %42 : vector<1x32xf32> to vector<208x32xf32>
    %45 = arith.mulf %43, %44 : vector<208x32xf32>
    %46 = arith.addf %39, %45 : vector<208x32xf32>
    %c0_26 = arith.constant 0 : index
    %c32 = arith.constant 32 : index
    %c0_27 = arith.constant 0 : index
    %47 = vector.load %arg1[%c0_26, %c32, %c0_27] : memref<1x900x1xf32, #tpu.memory_space<vmem>>, vector<1x208x1xf32>
    %48 = vector.shape_cast %47 : vector<1x208x1xf32> to vector<208x1xf32>
    %49 = vector.extract_strided_slice %9 {offsets = [5, 0], sizes = [1, 32], strides = [1, 1]} : vector<9x32xf32> to vector<1x32xf32>
    %50 = vector.broadcast %48 : vector<208x1xf32> to vector<208x32xf32>
    %51 = vector.broadcast %49 : vector<1x32xf32> to vector<208x32xf32>
    %52 = arith.mulf %50, %51 : vector<208x32xf32>
    %53 = arith.addf %46, %52 : vector<208x32xf32>
    %c0_28 = arith.constant 0 : index
    %c60 = arith.constant 60 : index
    %c0_29 = arith.constant 0 : index
    %54 = vector.load %arg1[%c0_28, %c60, %c0_29] : memref<1x900x1xf32, #tpu.memory_space<vmem>>, vector<1x208x1xf32>
    %55 = vector.shape_cast %54 : vector<1x208x1xf32> to vector<208x1xf32>
    %56 = vector.extract_strided_slice %9 {offsets = [6, 0], sizes = [1, 32], strides = [1, 1]} : vector<9x32xf32> to vector<1x32xf32>
    %57 = vector.broadcast %55 : vector<208x1xf32> to vector<208x32xf32>
    %58 = vector.broadcast %56 : vector<1x32xf32> to vector<208x32xf32>
    %59 = arith.mulf %57, %58 : vector<208x32xf32>
    %60 = arith.addf %53, %59 : vector<208x32xf32>
    %c0_30 = arith.constant 0 : index
    %c61 = arith.constant 61 : index
    %c0_31 = arith.constant 0 : index
    %61 = vector.load %arg1[%c0_30, %c61, %c0_31] : memref<1x900x1xf32, #tpu.memory_space<vmem>>, vector<1x208x1xf32>
    %62 = vector.shape_cast %61 : vector<1x208x1xf32> to vector<208x1xf32>
    %63 = vector.extract_strided_slice %9 {offsets = [7, 0], sizes = [1, 32], strides = [1, 1]} : vector<9x32xf32> to vector<1x32xf32>
    %64 = vector.broadcast %62 : vector<208x1xf32> to vector<208x32xf32>
    %65 = vector.broadcast %63 : vector<1x32xf32> to vector<208x32xf32>
    %66 = arith.mulf %64, %65 : vector<208x32xf32>
    %67 = arith.addf %60, %66 : vector<208x32xf32>
    %c0_32 = arith.constant 0 : index
    %c62 = arith.constant 62 : index
    %c0_33 = arith.constant 0 : index
    %68 = vector.load %arg1[%c0_32, %c62, %c0_33] : memref<1x900x1xf32, #tpu.memory_space<vmem>>, vector<1x208x1xf32>
    %69 = vector.shape_cast %68 : vector<1x208x1xf32> to vector<208x1xf32>
    %70 = vector.extract_strided_slice %9 {offsets = [8, 0], sizes = [1, 32], strides = [1, 1]} : vector<9x32xf32> to vector<1x32xf32>
    %71 = vector.broadcast %69 : vector<208x1xf32> to vector<208x32xf32>
    %72 = vector.broadcast %70 : vector<1x32xf32> to vector<208x32xf32>
    %73 = arith.mulf %71, %72 : vector<208x32xf32>
    %74 = arith.addf %67, %73 : vector<208x32xf32>
    %cst_34 = arith.constant 0.000000e+00 : f32
    %75 = vector.broadcast %cst_34 : f32 to vector<208x32xf32>
    %76 = arith.maximumf %74, %75 : vector<208x32xf32>
    %c0_35 = arith.constant 0 : index
    %c0_36 = arith.constant 0 : index
    %77 = vector.load %arg9[%c0_35, %c0_36] : memref<838x32xf32, #tpu.memory_space<vmem>>, vector<208x32xf32>
    tpu.vector_store %arg9[%c0_35, %c0_36], %76 {strides = array<i32>} : memref<838x32xf32, #tpu.memory_space<vmem>>, vector<208x32xf32>,
    %78 = vector.shape_cast %6 : vector<1x32xf32> to vector<1x32xf32>
    %79 = vector.broadcast %78 : vector<1x32xf32> to vector<208x32xf32>
    %c0_37 = arith.constant 0 : index
    %c210 = arith.constant 210 : index
    %c0_38 = arith.constant 0 : index
    %80 = vector.load %arg1[%c0_37, %c210, %c0_38] : memref<1x900x1xf32, #tpu.memory_space<vmem>>, vector<1x208x1xf32>
    %81 = vector.shape_cast %80 : vector<1x208x1xf32> to vector<208x1xf32>
    %82 = vector.extract_strided_slice %9 {offsets = [0, 0], sizes = [1, 32], strides = [1, 1]} : vector<9x32xf32> to vector<1x32xf32>
    %83 = vector.broadcast %81 : vector<208x1xf32> to vector<208x32xf32>
    %84 = vector.broadcast %82 : vector<1x32xf32> to vector<208x32xf32>
    %85 = arith.mulf %83, %84 : vector<208x32xf32>
    %86 = arith.addf %79, %85 : vector<208x32xf32>
    %c0_39 = arith.constant 0 : index
    %c211 = arith.constant 211 : index
    %c0_40 = arith.constant 0 : index
    %87 = vector.load %arg1[%c0_39, %c211, %c0_40] : memref<1x900x1xf32, #tpu.memory_space<vmem>>, vector<1x208x1xf32>
    %88 = vector.shape_cast %87 : vector<1x208x1xf32> to vector<208x1xf32>
    %89 = vector.extract_strided_slice %9 {offsets = [1, 0], sizes = [1, 32], strides = [1, 1]} : vector<9x32xf32> to vector<1x32xf32>
    %90 = vector.broadcast %88 : vector<208x1xf32> to vector<208x32xf32>
    %91 = vector.broadcast %89 : vector<1x32xf32> to vector<208x32xf32>
    %92 = arith.mulf %90, %91 : vector<208x32xf32>
    %93 = arith.addf %86, %92 : vector<208x32xf32>
    %c0_41 = arith.constant 0 : index
    %c212 = arith.constant 212 : index
    %c0_42 = arith.constant 0 : index
    %94 = vector.load %arg1[%c0_41, %c212, %c0_42] : memref<1x900x1xf32, #tpu.memory_space<vmem>>, vector<1x208x1xf32>
    %95 = vector.shape_cast %94 : vector<1x208x1xf32> to vector<208x1xf32>
    %96 = vector.extract_strided_slice %9 {offsets = [2, 0], sizes = [1, 32], strides = [1, 1]} : vector<9x32xf32> to vector<1x32xf32>
    %97 = vector.broadcast %95 : vector<208x1xf32> to vector<208x32xf32>
    %98 = vector.broadcast %96 : vector<1x32xf32> to vector<208x32xf32>
    %99 = arith.mulf %97, %98 : vector<208x32xf32>
    %100 = arith.addf %93, %99 : vector<208x32xf32>
    %c0_43 = arith.constant 0 : index
    %c240 = arith.constant 240 : index
    %c0_44 = arith.constant 0 : index
    %101 = vector.load %arg1[%c0_43, %c240, %c0_44] : memref<1x900x1xf32, #tpu.memory_space<vmem>>, vector<1x208x1xf32>
    %102 = vector.shape_cast %101 : vector<1x208x1xf32> to vector<208x1xf32>
    %103 = vector.extract_strided_slice %9 {offsets = [3, 0], sizes = [1, 32], strides = [1, 1]} : vector<9x32xf32> to vector<1x32xf32>
    %104 = vector.broadcast %102 : vector<208x1xf32> to vector<208x32xf32>
    %105 = vector.broadcast %103 : vector<1x32xf32> to vector<208x32xf32>
    %106 = arith.mulf %104, %105 : vector<208x32xf32>
    %107 = arith.addf %100, %106 : vector<208x32xf32>
    %c0_45 = arith.constant 0 : index
    %c241 = arith.constant 241 : index
    %c0_46 = arith.constant 0 : index
    %108 = vector.load %arg1[%c0_45, %c241, %c0_46] : memref<1x900x1xf32, #tpu.memory_space<vmem>>, vector<1x208x1xf32>
    %109 = vector.shape_cast %108 : vector<1x208x1xf32> to vector<208x1xf32>
    %110 = vector.extract_strided_slice %9 {offsets = [4, 0], sizes = [1, 32], strides = [1, 1]} : vector<9x32xf32> to vector<1x32xf32>
    %111 = vector.broadcast %109 : vector<208x1xf32> to vector<208x32xf32>
    %112 = vector.broadcast %110 : vector<1x32xf32> to vector<208x32xf32>
    %113 = arith.mulf %111, %112 : vector<208x32xf32>
    %114 = arith.addf %107, %113 : vector<208x32xf32>
    %c0_47 = arith.constant 0 : index
    %c242 = arith.constant 242 : index
    %c0_48 = arith.constant 0 : index
    %115 = vector.load %arg1[%c0_47, %c242, %c0_48] : memref<1x900x1xf32, #tpu.memory_space<vmem>>, vector<1x208x1xf32>
    %116 = vector.shape_cast %115 : vector<1x208x1xf32> to vector<208x1xf32>
    %117 = vector.extract_strided_slice %9 {offsets = [5, 0], sizes = [1, 32], strides = [1, 1]} : vector<9x32xf32> to vector<1x32xf32>
    %118 = vector.broadcast %116 : vector<208x1xf32> to vector<208x32xf32>
    %119 = vector.broadcast %117 : vector<1x32xf32> to vector<208x32xf32>
    %120 = arith.mulf %118, %119 : vector<208x32xf32>
    %121 = arith.addf %114, %120 : vector<208x32xf32>
    %c0_49 = arith.constant 0 : index
    %c270 = arith.constant 270 : index
    %c0_50 = arith.constant 0 : index
    %122 = vector.load %arg1[%c0_49, %c270, %c0_50] : memref<1x900x1xf32, #tpu.memory_space<vmem>>, vector<1x208x1xf32>
    %123 = vector.shape_cast %122 : vector<1x208x1xf32> to vector<208x1xf32>
    %124 = vector.extract_strided_slice %9 {offsets = [6, 0], sizes = [1, 32], strides = [1, 1]} : vector<9x32xf32> to vector<1x32xf32>
    %125 = vector.broadcast %123 : vector<208x1xf32> to vector<208x32xf32>
    %126 = vector.broadcast %124 : vector<1x32xf32> to vector<208x32xf32>
    %127 = arith.mulf %125, %126 : vector<208x32xf32>
    %128 = arith.addf %121, %127 : vector<208x32xf32>
    %c0_51 = arith.constant 0 : index
    %c271 = arith.constant 271 : index
    %c0_52 = arith.constant 0 : index
    %129 = vector.load %arg1[%c0_51, %c271, %c0_52] : memref<1x900x1xf32, #tpu.memory_space<vmem>>, vector<1x208x1xf32>
    %130 = vector.shape_cast %129 : vector<1x208x1xf32> to vector<208x1xf32>
    %131 = vector.extract_strided_slice %9 {offsets = [7, 0], sizes = [1, 32], strides = [1, 1]} : vector<9x32xf32> to vector<1x32xf32>
    %132 = vector.broadcast %130 : vector<208x1xf32> to vector<208x32xf32>
    %133 = vector.broadcast %131 : vector<1x32xf32> to vector<208x32xf32>
    %134 = arith.mulf %132, %133 : vector<208x32xf32>
    %135 = arith.addf %128, %134 : vector<208x32xf32>
    %c0_53 = arith.constant 0 : index
    %c272 = arith.constant 272 : index
    %c0_54 = arith.constant 0 : index
    %136 = vector.load %arg1[%c0_53, %c272, %c0_54] : memref<1x900x1xf32, #tpu.memory_space<vmem>>, vector<1x208x1xf32>
    %137 = vector.shape_cast %136 : vector<1x208x1xf32> to vector<208x1xf32>
    %138 = vector.extract_strided_slice %9 {offsets = [8, 0], sizes = [1, 32], strides = [1, 1]} : vector<9x32xf32> to vector<1x32xf32>
    %139 = vector.broadcast %137 : vector<208x1xf32> to vector<208x32xf32>
    %140 = vector.broadcast %138 : vector<1x32xf32> to vector<208x32xf32>
    %141 = arith.mulf %139, %140 : vector<208x32xf32>
    %142 = arith.addf %135, %141 : vector<208x32xf32>
    %cst_55 = arith.constant 0.000000e+00 : f32
    %143 = vector.broadcast %cst_55 : f32 to vector<208x32xf32>
    %144 = arith.maximumf %142, %143 : vector<208x32xf32>
    %c210_56 = arith.constant 210 : index
    %c0_57 = arith.constant 0 : index
    %145 = vector.load %arg9[%c210_56, %c0_57] : memref<838x32xf32, #tpu.memory_space<vmem>>, vector<208x32xf32>
    tpu.vector_store %arg9[%c210_56, %c0_57], %144 {strides = array<i32>} : memref<838x32xf32, #tpu.memory_space<vmem>>, vector<208x32xf32>,
    %146 = vector.shape_cast %6 : vector<1x32xf32> to vector<1x32xf32>
    %147 = vector.broadcast %146 : vector<1x32xf32> to vector<208x32xf32>
    %c0_58 = arith.constant 0 : index
    %c420 = arith.constant 420 : index
    %c0_59 = arith.constant 0 : index
    %148 = vector.load %arg1[%c0_58, %c420, %c0_59] : memref<1x900x1xf32, #tpu.memory_space<vmem>>, vector<1x208x1xf32>
    %149 = vector.shape_cast %148 : vector<1x208x1xf32> to vector<208x1xf32>
    %150 = vector.extract_strided_slice %9 {offsets = [0, 0], sizes = [1, 32], strides = [1, 1]} : vector<9x32xf32> to vector<1x32xf32>
    %151 = vector.broadcast %149 : vector<208x1xf32> to vector<208x32xf32>
    %152 = vector.broadcast %150 : vector<1x32xf32> to vector<208x32xf32>
    %153 = arith.mulf %151, %152 : vector<208x32xf32>
    %154 = arith.addf %147, %153 : vector<208x32xf32>
    %c0_60 = arith.constant 0 : index
    %c421 = arith.constant 421 : index
    %c0_61 = arith.constant 0 : index
    %155 = vector.load %arg1[%c0_60, %c421, %c0_61] : memref<1x900x1xf32, #tpu.memory_space<vmem>>, vector<1x208x1xf32>
    %156 = vector.shape_cast %155 : vector<1x208x1xf32> to vector<208x1xf32>
    %157 = vector.extract_strided_slice %9 {offsets = [1, 0], sizes = [1, 32], strides = [1, 1]} : vector<9x32xf32> to vector<1x32xf32>
    %158 = vector.broadcast %156 : vector<208x1xf32> to vector<208x32xf32>
    %159 = vector.broadcast %157 : vector<1x32xf32> to vector<208x32xf32>
    %160 = arith.mulf %158, %159 : vector<208x32xf32>
    %161 = arith.addf %154, %160 : vector<208x32xf32>
    %c0_62 = arith.constant 0 : index
    %c422 = arith.constant 422 : index
    %c0_63 = arith.constant 0 : index
    %162 = vector.load %arg1[%c0_62, %c422, %c0_63] : memref<1x900x1xf32, #tpu.memory_space<vmem>>, vector<1x208x1xf32>
    %163 = vector.shape_cast %162 : vector<1x208x1xf32> to vector<208x1xf32>
    %164 = vector.extract_strided_slice %9 {offsets = [2, 0], sizes = [1, 32], strides = [1, 1]} : vector<9x32xf32> to vector<1x32xf32>
    %165 = vector.broadcast %163 : vector<208x1xf32> to vector<208x32xf32>
    %166 = vector.broadcast %164 : vector<1x32xf32> to vector<208x32xf32>
    %167 = arith.mulf %165, %166 : vector<208x32xf32>
    %168 = arith.addf %161, %167 : vector<208x32xf32>
    %c0_64 = arith.constant 0 : index
    %c450 = arith.constant 450 : index
    %c0_65 = arith.constant 0 : index
    %169 = vector.load %arg1[%c0_64, %c450, %c0_65] : memref<1x900x1xf32, #tpu.memory_space<vmem>>, vector<1x208x1xf32>
    %170 = vector.shape_cast %169 : vector<1x208x1xf32> to vector<208x1xf32>
    %171 = vector.extract_strided_slice %9 {offsets = [3, 0], sizes = [1, 32], strides = [1, 1]} : vector<9x32xf32> to vector<1x32xf32>
    %172 = vector.broadcast %170 : vector<208x1xf32> to vector<208x32xf32>
    %173 = vector.broadcast %171 : vector<1x32xf32> to vector<208x32xf32>
    %174 = arith.mulf %172, %173 : vector<208x32xf32>
    %175 = arith.addf %168, %174 : vector<208x32xf32>
    %c0_66 = arith.constant 0 : index
    %c451 = arith.constant 451 : index
    %c0_67 = arith.constant 0 : index
    %176 = vector.load %arg1[%c0_66, %c451, %c0_67] : memref<1x900x1xf32, #tpu.memory_space<vmem>>, vector<1x208x1xf32>
    %177 = vector.shape_cast %176 : vector<1x208x1xf32> to vector<208x1xf32>
    %178 = vector.extract_strided_slice %9 {offsets = [4, 0], sizes = [1, 32], strides = [1, 1]} : vector<9x32xf32> to vector<1x32xf32>
    %179 = vector.broadcast %177 : vector<208x1xf32> to vector<208x32xf32>
    %180 = vector.broadcast %178 : vector<1x32xf32> to vector<208x32xf32>
    %181 = arith.mulf %179, %180 : vector<208x32xf32>
    %182 = arith.addf %175, %181 : vector<208x32xf32>
    %c0_68 = arith.constant 0 : index
    %c452 = arith.constant 452 : index
    %c0_69 = arith.constant 0 : index
    %183 = vector.load %arg1[%c0_68, %c452, %c0_69] : memref<1x900x1xf32, #tpu.memory_space<vmem>>, vector<1x208x1xf32>
    %184 = vector.shape_cast %183 : vector<1x208x1xf32> to vector<208x1xf32>
    %185 = vector.extract_strided_slice %9 {offsets = [5, 0], sizes = [1, 32], strides = [1, 1]} : vector<9x32xf32> to vector<1x32xf32>
    %186 = vector.broadcast %184 : vector<208x1xf32> to vector<208x32xf32>
    %187 = vector.broadcast %185 : vector<1x32xf32> to vector<208x32xf32>
    %188 = arith.mulf %186, %187 : vector<208x32xf32>
    %189 = arith.addf %182, %188 : vector<208x32xf32>
    %c0_70 = arith.constant 0 : index
    %c480 = arith.constant 480 : index
    %c0_71 = arith.constant 0 : index
    %190 = vector.load %arg1[%c0_70, %c480, %c0_71] : memref<1x900x1xf32, #tpu.memory_space<vmem>>, vector<1x208x1xf32>
    %191 = vector.shape_cast %190 : vector<1x208x1xf32> to vector<208x1xf32>
    %192 = vector.extract_strided_slice %9 {offsets = [6, 0], sizes = [1, 32], strides = [1, 1]} : vector<9x32xf32> to vector<1x32xf32>
    %193 = vector.broadcast %191 : vector<208x1xf32> to vector<208x32xf32>
    %194 = vector.broadcast %192 : vector<1x32xf32> to vector<208x32xf32>
    %195 = arith.mulf %193, %194 : vector<208x32xf32>
    %196 = arith.addf %189, %195 : vector<208x32xf32>
    %c0_72 = arith.constant 0 : index
    %c481 = arith.constant 481 : index
    %c0_73 = arith.constant 0 : index
    %197 = vector.load %arg1[%c0_72, %c481, %c0_73] : memref<1x900x1xf32, #tpu.memory_space<vmem>>, vector<1x208x1xf32>
    %198 = vector.shape_cast %197 : vector<1x208x1xf32> to vector<208x1xf32>
    %199 = vector.extract_strided_slice %9 {offsets = [7, 0], sizes = [1, 32], strides = [1, 1]} : vector<9x32xf32> to vector<1x32xf32>
    %200 = vector.broadcast %198 : vector<208x1xf32> to vector<208x32xf32>
    %201 = vector.broadcast %199 : vector<1x32xf32> to vector<208x32xf32>
    %202 = arith.mulf %200, %201 : vector<208x32xf32>
    %203 = arith.addf %196, %202 : vector<208x32xf32>
    %c0_74 = arith.constant 0 : index
    %c482 = arith.constant 482 : index
    %c0_75 = arith.constant 0 : index
    %204 = vector.load %arg1[%c0_74, %c482, %c0_75] : memref<1x900x1xf32, #tpu.memory_space<vmem>>, vector<1x208x1xf32>
    %205 = vector.shape_cast %204 : vector<1x208x1xf32> to vector<208x1xf32>
    %206 = vector.extract_strided_slice %9 {offsets = [8, 0], sizes = [1, 32], strides = [1, 1]} : vector<9x32xf32> to vector<1x32xf32>
    %207 = vector.broadcast %205 : vector<208x1xf32> to vector<208x32xf32>
    %208 = vector.broadcast %206 : vector<1x32xf32> to vector<208x32xf32>
    %209 = arith.mulf %207, %208 : vector<208x32xf32>
    %210 = arith.addf %203, %209 : vector<208x32xf32>
    %cst_76 = arith.constant 0.000000e+00 : f32
    %211 = vector.broadcast %cst_76 : f32 to vector<208x32xf32>
    %212 = arith.maximumf %210, %211 : vector<208x32xf32>
    %c420_77 = arith.constant 420 : index
    %c0_78 = arith.constant 0 : index
    %213 = vector.load %arg9[%c420_77, %c0_78] : memref<838x32xf32, #tpu.memory_space<vmem>>, vector<208x32xf32>
    tpu.vector_store %arg9[%c420_77, %c0_78], %212 {strides = array<i32>} : memref<838x32xf32, #tpu.memory_space<vmem>>, vector<208x32xf32>,
    %214 = vector.shape_cast %6 : vector<1x32xf32> to vector<1x32xf32>
    %215 = vector.broadcast %214 : vector<1x32xf32> to vector<208x32xf32>
    %c0_79 = arith.constant 0 : index
    %c630 = arith.constant 630 : index
    %c0_80 = arith.constant 0 : index
    %216 = vector.load %arg1[%c0_79, %c630, %c0_80] : memref<1x900x1xf32, #tpu.memory_space<vmem>>, vector<1x208x1xf32>
    %217 = vector.shape_cast %216 : vector<1x208x1xf32> to vector<208x1xf32>
    %218 = vector.extract_strided_slice %9 {offsets = [0, 0], sizes = [1, 32], strides = [1, 1]} : vector<9x32xf32> to vector<1x32xf32>
    %219 = vector.broadcast %217 : vector<208x1xf32> to vector<208x32xf32>
    %220 = vector.broadcast %218 : vector<1x32xf32> to vector<208x32xf32>
    %221 = arith.mulf %219, %220 : vector<208x32xf32>
    %222 = arith.addf %215, %221 : vector<208x32xf32>
    %c0_81 = arith.constant 0 : index
    %c631 = arith.constant 631 : index
    %c0_82 = arith.constant 0 : index
    %223 = vector.load %arg1[%c0_81, %c631, %c0_82] : memref<1x900x1xf32, #tpu.memory_space<vmem>>, vector<1x208x1xf32>
    %224 = vector.shape_cast %223 : vector<1x208x1xf32> to vector<208x1xf32>
    %225 = vector.extract_strided_slice %9 {offsets = [1, 0], sizes = [1, 32], strides = [1, 1]} : vector<9x32xf32> to vector<1x32xf32>
    %226 = vector.broadcast %224 : vector<208x1xf32> to vector<208x32xf32>
    %227 = vector.broadcast %225 : vector<1x32xf32> to vector<208x32xf32>
    %228 = arith.mulf %226, %227 : vector<208x32xf32>
    %229 = arith.addf %222, %228 : vector<208x32xf32>
    %c0_83 = arith.constant 0 : index
    %c632 = arith.constant 632 : index
    %c0_84 = arith.constant 0 : index
    %230 = vector.load %arg1[%c0_83, %c632, %c0_84] : memref<1x900x1xf32, #tpu.memory_space<vmem>>, vector<1x208x1xf32>
    %231 = vector.shape_cast %230 : vector<1x208x1xf32> to vector<208x1xf32>
    %232 = vector.extract_strided_slice %9 {offsets = [2, 0], sizes = [1, 32], strides = [1, 1]} : vector<9x32xf32> to vector<1x32xf32>
    %233 = vector.broadcast %231 : vector<208x1xf32> to vector<208x32xf32>
    %234 = vector.broadcast %232 : vector<1x32xf32> to vector<208x32xf32>
    %235 = arith.mulf %233, %234 : vector<208x32xf32>
    %236 = arith.addf %229, %235 : vector<208x32xf32>
    %c0_85 = arith.constant 0 : index
    %c660 = arith.constant 660 : index
    %c0_86 = arith.constant 0 : index
    %237 = vector.load %arg1[%c0_85, %c660, %c0_86] : memref<1x900x1xf32, #tpu.memory_space<vmem>>, vector<1x208x1xf32>
    %238 = vector.shape_cast %237 : vector<1x208x1xf32> to vector<208x1xf32>
    %239 = vector.extract_strided_slice %9 {offsets = [3, 0], sizes = [1, 32], strides = [1, 1]} : vector<9x32xf32> to vector<1x32xf32>
    %240 = vector.broadcast %238 : vector<208x1xf32> to vector<208x32xf32>
    %241 = vector.broadcast %239 : vector<1x32xf32> to vector<208x32xf32>
    %242 = arith.mulf %240, %241 : vector<208x32xf32>
    %243 = arith.addf %236, %242 : vector<208x32xf32>
    %c0_87 = arith.constant 0 : index
    %c661 = arith.constant 661 : index
    %c0_88 = arith.constant 0 : index
    %244 = vector.load %arg1[%c0_87, %c661, %c0_88] : memref<1x900x1xf32, #tpu.memory_space<vmem>>, vector<1x208x1xf32>
    %245 = vector.shape_cast %244 : vector<1x208x1xf32> to vector<208x1xf32>
    %246 = vector.extract_strided_slice %9 {offsets = [4, 0], sizes = [1, 32], strides = [1, 1]} : vector<9x32xf32> to vector<1x32xf32>
    %247 = vector.broadcast %245 : vector<208x1xf32> to vector<208x32xf32>
    %248 = vector.broadcast %246 : vector<1x32xf32> to vector<208x32xf32>
    %249 = arith.mulf %247, %248 : vector<208x32xf32>
    %250 = arith.addf %243, %249 : vector<208x32xf32>
    %c0_89 = arith.constant 0 : index
    %c662 = arith.constant 662 : index
    %c0_90 = arith.constant 0 : index
    %251 = vector.load %arg1[%c0_89, %c662, %c0_90] : memref<1x900x1xf32, #tpu.memory_space<vmem>>, vector<1x208x1xf32>
    %252 = vector.shape_cast %251 : vector<1x208x1xf32> to vector<208x1xf32>
    %253 = vector.extract_strided_slice %9 {offsets = [5, 0], sizes = [1, 32], strides = [1, 1]} : vector<9x32xf32> to vector<1x32xf32>
    %254 = vector.broadcast %252 : vector<208x1xf32> to vector<208x32xf32>
    %255 = vector.broadcast %253 : vector<1x32xf32> to vector<208x32xf32>
    %256 = arith.mulf %254, %255 : vector<208x32xf32>
    %257 = arith.addf %250, %256 : vector<208x32xf32>
    %c0_91 = arith.constant 0 : index
    %c690 = arith.constant 690 : index
    %c0_92 = arith.constant 0 : index
    %258 = vector.load %arg1[%c0_91, %c690, %c0_92] : memref<1x900x1xf32, #tpu.memory_space<vmem>>, vector<1x208x1xf32>
    %259 = vector.shape_cast %258 : vector<1x208x1xf32> to vector<208x1xf32>
    %260 = vector.extract_strided_slice %9 {offsets = [6, 0], sizes = [1, 32], strides = [1, 1]} : vector<9x32xf32> to vector<1x32xf32>
    %261 = vector.broadcast %259 : vector<208x1xf32> to vector<208x32xf32>
    %262 = vector.broadcast %260 : vector<1x32xf32> to vector<208x32xf32>
    %263 = arith.mulf %261, %262 : vector<208x32xf32>
    %264 = arith.addf %257, %263 : vector<208x32xf32>
    %c0_93 = arith.constant 0 : index
    %c691 = arith.constant 691 : index
    %c0_94 = arith.constant 0 : index
    %265 = vector.load %arg1[%c0_93, %c691, %c0_94] : memref<1x900x1xf32, #tpu.memory_space<vmem>>, vector<1x208x1xf32>
    %266 = vector.shape_cast %265 : vector<1x208x1xf32> to vector<208x1xf32>
    %267 = vector.extract_strided_slice %9 {offsets = [7, 0], sizes = [1, 32], strides = [1, 1]} : vector<9x32xf32> to vector<1x32xf32>
    %268 = vector.broadcast %266 : vector<208x1xf32> to vector<208x32xf32>
    %269 = vector.broadcast %267 : vector<1x32xf32> to vector<208x32xf32>
    %270 = arith.mulf %268, %269 : vector<208x32xf32>
    %271 = arith.addf %264, %270 : vector<208x32xf32>
    %c0_95 = arith.constant 0 : index
    %c692 = arith.constant 692 : index
    %c0_96 = arith.constant 0 : index
    %272 = vector.load %arg1[%c0_95, %c692, %c0_96] : memref<1x900x1xf32, #tpu.memory_space<vmem>>, vector<1x208x1xf32>
    %273 = vector.shape_cast %272 : vector<1x208x1xf32> to vector<208x1xf32>
    %274 = vector.extract_strided_slice %9 {offsets = [8, 0], sizes = [1, 32], strides = [1, 1]} : vector<9x32xf32> to vector<1x32xf32>
    %275 = vector.broadcast %273 : vector<208x1xf32> to vector<208x32xf32>
    %276 = vector.broadcast %274 : vector<1x32xf32> to vector<208x32xf32>
    %277 = arith.mulf %275, %276 : vector<208x32xf32>
    %278 = arith.addf %271, %277 : vector<208x32xf32>
    %cst_97 = arith.constant 0.000000e+00 : f32
    %279 = vector.broadcast %cst_97 : f32 to vector<208x32xf32>
    %280 = arith.maximumf %278, %279 : vector<208x32xf32>
    %c630_98 = arith.constant 630 : index
    %c0_99 = arith.constant 0 : index
    %281 = vector.load %arg9[%c630_98, %c0_99] : memref<838x32xf32, #tpu.memory_space<vmem>>, vector<208x32xf32>
    tpu.vector_store %arg9[%c630_98, %c0_99], %280 {strides = array<i32>} : memref<838x32xf32, #tpu.memory_space<vmem>>, vector<208x32xf32>,
    %c0_100 = arith.constant 0 : index
    %c0_101 = arith.constant 0 : index
    %282 = vector.load %arg9[%c0_100, %c0_101] : memref<838x32xf32, #tpu.memory_space<vmem>>, vector<808x32xf32>
    %c30_102 = arith.constant 30 : index
    %c0_103 = arith.constant 0 : index
    %283 = vector.load %arg9[%c30_102, %c0_103] : memref<838x32xf32, #tpu.memory_space<vmem>>, vector<808x32xf32>
    %284 = arith.maximumf %282, %283 : vector<808x32xf32>
    %c0_104 = arith.constant 0 : index
    %c0_105 = arith.constant 0 : index
    %285 = vector.load %arg9[%c0_104, %c0_105] : memref<838x32xf32, #tpu.memory_space<vmem>>, vector<808x32xf32>
    tpu.vector_store %arg9[%c0_104, %c0_105], %284 {strides = array<i32>} : memref<838x32xf32, #tpu.memory_space<vmem>>, vector<808x32xf32>,
    %c0_106 = arith.constant 0 : index
    %c0_107 = arith.constant 0 : index
    %286 = tpu.strided_load %arg9[%c0_106, %c0_107] {strides = array<i32: 2, 1>} : memref<838x32xf32, #tpu.memory_space<vmem>>, vector<14x32xf32>
    %c1_108 = arith.constant 1 : index
    %c0_109 = arith.constant 0 : index
    %287 = tpu.strided_load %arg9[%c1_108, %c0_109] {strides = array<i32: 2, 1>} : memref<838x32xf32, #tpu.memory_space<vmem>>, vector<14x32xf32>
    %288 = arith.maximumf %286, %287 : vector<14x32xf32>
    %c17 = arith.constant 17 : index
    %c0_110 = arith.constant 0 : index
    %289 = vector.load %arg10[%c17, %c0_110] : memref<256x32xf32, #tpu.memory_space<vmem>>, vector<14x32xf32>
    tpu.vector_store %arg10[%c17, %c0_110], %288 {strides = array<i32>} : memref<256x32xf32, #tpu.memory_space<vmem>>, vector<14x32xf32>,
    %c60_111 = arith.constant 60 : index
    %c0_112 = arith.constant 0 : index
    %290 = tpu.strided_load %arg9[%c60_111, %c0_112] {strides = array<i32: 2, 1>} : memref<838x32xf32, #tpu.memory_space<vmem>>, vector<14x32xf32>
    %c61_113 = arith.constant 61 : index
    %c0_114 = arith.constant 0 : index
    %291 = tpu.strided_load %arg9[%c61_113, %c0_114] {strides = array<i32: 2, 1>} : memref<838x32xf32, #tpu.memory_space<vmem>>, vector<14x32xf32>
    %292 = arith.maximumf %290, %291 : vector<14x32xf32>
    %c33 = arith.constant 33 : index
    %c0_115 = arith.constant 0 : index
    %293 = vector.load %arg10[%c33, %c0_115] : memref<256x32xf32, #tpu.memory_space<vmem>>, vector<14x32xf32>
    tpu.vector_store %arg10[%c33, %c0_115], %292 {strides = array<i32>} : memref<256x32xf32, #tpu.memory_space<vmem>>, vector<14x32xf32>,
    %c120 = arith.constant 120 : index
    %c0_116 = arith.constant 0 : index
    %294 = tpu.strided_load %arg9[%c120, %c0_116] {strides = array<i32: 2, 1>} : memref<838x32xf32, #tpu.memory_space<vmem>>, vector<14x32xf32>
    %c121 = arith.constant 121 : index
    %c0_117 = arith.constant 0 : index
    %295 = tpu.strided_load %arg9[%c121, %c0_117] {strides = array<i32: 2, 1>} : memref<838x32xf32, #tpu.memory_space<vmem>>, vector<14x32xf32>
    %296 = arith.maximumf %294, %295 : vector<14x32xf32>
    %c49 = arith.constant 49 : index
    %c0_118 = arith.constant 0 : index
    %297 = vector.load %arg10[%c49, %c0_118] : memref<256x32xf32, #tpu.memory_space<vmem>>, vector<14x32xf32>
    tpu.vector_store %arg10[%c49, %c0_118], %296 {strides = array<i32>} : memref<256x32xf32, #tpu.memory_space<vmem>>, vector<14x32xf32>,
    %c180 = arith.constant 180 : index
    %c0_119 = arith.constant 0 : index
    %298 = tpu.strided_load %arg9[%c180, %c0_119] {strides = array<i32: 2, 1>} : memref<838x32xf32, #tpu.memory_space<vmem>>, vector<14x32xf32>
    %c181 = arith.constant 181 : index
    %c0_120 = arith.constant 0 : index
    %299 = tpu.strided_load %arg9[%c181, %c0_120] {strides = array<i32: 2, 1>} : memref<838x32xf32, #tpu.memory_space<vmem>>, vector<14x32xf32>
    %300 = arith.maximumf %298, %299 : vector<14x32xf32>
    %c65 = arith.constant 65 : index
    %c0_121 = arith.constant 0 : index
    %301 = vector.load %arg10[%c65, %c0_121] : memref<256x32xf32, #tpu.memory_space<vmem>>, vector<14x32xf32>
    tpu.vector_store %arg10[%c65, %c0_121], %300 {strides = array<i32>} : memref<256x32xf32, #tpu.memory_space<vmem>>, vector<14x32xf32>,
    %c240_122 = arith.constant 240 : index
    %c0_123 = arith.constant 0 : index
    %302 = tpu.strided_load %arg9[%c240_122, %c0_123] {strides = array<i32: 2, 1>} : memref<838x32xf32, #tpu.memory_space<vmem>>, vector<14x32xf32>
    %c241_124 = arith.constant 241 : index
    %c0_125 = arith.constant 0 : index
    %303 = tpu.strided_load %arg9[%c241_124, %c0_125] {strides = array<i32: 2, 1>} : memref<838x32xf32, #tpu.memory_space<vmem>>, vector<14x32xf32>
    %304 = arith.maximumf %302, %303 : vector<14x32xf32>
    %c81 = arith.constant 81 : index
    %c0_126 = arith.constant 0 : index
    %305 = vector.load %arg10[%c81, %c0_126] : memref<256x32xf32, #tpu.memory_space<vmem>>, vector<14x32xf32>
    tpu.vector_store %arg10[%c81, %c0_126], %304 {strides = array<i32>} : memref<256x32xf32, #tpu.memory_space<vmem>>, vector<14x32xf32>,
    %c300 = arith.constant 300 : index
    %c0_127 = arith.constant 0 : index
    %306 = tpu.strided_load %arg9[%c300, %c0_127] {strides = array<i32: 2, 1>} : memref<838x32xf32, #tpu.memory_space<vmem>>, vector<14x32xf32>
    %c301 = arith.constant 301 : index
    %c0_128 = arith.constant 0 : index
    %307 = tpu.strided_load %arg9[%c301, %c0_128] {strides = array<i32: 2, 1>} : memref<838x32xf32, #tpu.memory_space<vmem>>, vector<14x32xf32>
    %308 = arith.maximumf %306, %307 : vector<14x32xf32>
    %c97 = arith.constant 97 : index
    %c0_129 = arith.constant 0 : index
    %309 = vector.load %arg10[%c97, %c0_129] : memref<256x32xf32, #tpu.memory_space<vmem>>, vector<14x32xf32>
    tpu.vector_store %arg10[%c97, %c0_129], %308 {strides = array<i32>} : memref<256x32xf32, #tpu.memory_space<vmem>>, vector<14x32xf32>,
    %c360 = arith.constant 360 : index
    %c0_130 = arith.constant 0 : index
    %310 = tpu.strided_load %arg9[%c360, %c0_130] {strides = array<i32: 2, 1>} : memref<838x32xf32, #tpu.memory_space<vmem>>, vector<14x32xf32>
    %c361 = arith.constant 361 : index
    %c0_131 = arith.constant 0 : index
    %311 = tpu.strided_load %arg9[%c361, %c0_131] {strides = array<i32: 2, 1>} : memref<838x32xf32, #tpu.memory_space<vmem>>, vector<14x32xf32>
    %312 = arith.maximumf %310, %311 : vector<14x32xf32>
    %c113 = arith.constant 113 : index
    %c0_132 = arith.constant 0 : index
    %313 = vector.load %arg10[%c113, %c0_132] : memref<256x32xf32, #tpu.memory_space<vmem>>, vector<14x32xf32>
    tpu.vector_store %arg10[%c113, %c0_132], %312 {strides = array<i32>} : memref<256x32xf32, #tpu.memory_space<vmem>>, vector<14x32xf32>,
    %c420_133 = arith.constant 420 : index
    %c0_134 = arith.constant 0 : index
    %314 = tpu.strided_load %arg9[%c420_133, %c0_134] {strides = array<i32: 2, 1>} : memref<838x32xf32, #tpu.memory_space<vmem>>, vector<14x32xf32>
    %c421_135 = arith.constant 421 : index
    %c0_136 = arith.constant 0 : index
    %315 = tpu.strided_load %arg9[%c421_135, %c0_136] {strides = array<i32: 2, 1>} : memref<838x32xf32, #tpu.memory_space<vmem>>, vector<14x32xf32>
    %316 = arith.maximumf %314, %315 : vector<14x32xf32>
    %c129 = arith.constant 129 : index
    %c0_137 = arith.constant 0 : index
    %317 = vector.load %arg10[%c129, %c0_137] : memref<256x32xf32, #tpu.memory_space<vmem>>, vector<14x32xf32>
    tpu.vector_store %arg10[%c129, %c0_137], %316 {strides = array<i32>} : memref<256x32xf32, #tpu.memory_space<vmem>>, vector<14x32xf32>,
    %c480_138 = arith.constant 480 : index
    %c0_139 = arith.constant 0 : index
    %318 = tpu.strided_load %arg9[%c480_138, %c0_139] {strides = array<i32: 2, 1>} : memref<838x32xf32, #tpu.memory_space<vmem>>, vector<14x32xf32>
    %c481_140 = arith.constant 481 : index
    %c0_141 = arith.constant 0 : index
    %319 = tpu.strided_load %arg9[%c481_140, %c0_141] {strides = array<i32: 2, 1>} : memref<838x32xf32, #tpu.memory_space<vmem>>, vector<14x32xf32>
    %320 = arith.maximumf %318, %319 : vector<14x32xf32>
    %c145 = arith.constant 145 : index
    %c0_142 = arith.constant 0 : index
    %321 = vector.load %arg10[%c145, %c0_142] : memref<256x32xf32, #tpu.memory_space<vmem>>, vector<14x32xf32>
    tpu.vector_store %arg10[%c145, %c0_142], %320 {strides = array<i32>} : memref<256x32xf32, #tpu.memory_space<vmem>>, vector<14x32xf32>,
    %c540 = arith.constant 540 : index
    %c0_143 = arith.constant 0 : index
    %322 = tpu.strided_load %arg9[%c540, %c0_143] {strides = array<i32: 2, 1>} : memref<838x32xf32, #tpu.memory_space<vmem>>, vector<14x32xf32>
    %c541 = arith.constant 541 : index
    %c0_144 = arith.constant 0 : index
    %323 = tpu.strided_load %arg9[%c541, %c0_144] {strides = array<i32: 2, 1>} : memref<838x32xf32, #tpu.memory_space<vmem>>, vector<14x32xf32>
    %324 = arith.maximumf %322, %323 : vector<14x32xf32>
    %c161 = arith.constant 161 : index
    %c0_145 = arith.constant 0 : index
    %325 = vector.load %arg10[%c161, %c0_145] : memref<256x32xf32, #tpu.memory_space<vmem>>, vector<14x32xf32>
    tpu.vector_store %arg10[%c161, %c0_145], %324 {strides = array<i32>} : memref<256x32xf32, #tpu.memory_space<vmem>>, vector<14x32xf32>,
    %c600 = arith.constant 600 : index
    %c0_146 = arith.constant 0 : index
    %326 = tpu.strided_load %arg9[%c600, %c0_146] {strides = array<i32: 2, 1>} : memref<838x32xf32, #tpu.memory_space<vmem>>, vector<14x32xf32>
    %c601 = arith.constant 601 : index
    %c0_147 = arith.constant 0 : index
    %327 = tpu.strided_load %arg9[%c601, %c0_147] {strides = array<i32: 2, 1>} : memref<838x32xf32, #tpu.memory_space<vmem>>, vector<14x32xf32>
    %328 = arith.maximumf %326, %327 : vector<14x32xf32>
    %c177 = arith.constant 177 : index
    %c0_148 = arith.constant 0 : index
    %329 = vector.load %arg10[%c177, %c0_148] : memref<256x32xf32, #tpu.memory_space<vmem>>, vector<14x32xf32>
    tpu.vector_store %arg10[%c177, %c0_148], %328 {strides = array<i32>} : memref<256x32xf32, #tpu.memory_space<vmem>>, vector<14x32xf32>,
    %c660_149 = arith.constant 660 : index
    %c0_150 = arith.constant 0 : index
    %330 = tpu.strided_load %arg9[%c660_149, %c0_150] {strides = array<i32: 2, 1>} : memref<838x32xf32, #tpu.memory_space<vmem>>, vector<14x32xf32>
    %c661_151 = arith.constant 661 : index
    %c0_152 = arith.constant 0 : index
    %331 = tpu.strided_load %arg9[%c661_151, %c0_152] {strides = array<i32: 2, 1>} : memref<838x32xf32, #tpu.memory_space<vmem>>, vector<14x32xf32>
    %332 = arith.maximumf %330, %331 : vector<14x32xf32>
    %c193 = arith.constant 193 : index
    %c0_153 = arith.constant 0 : index
    %333 = vector.load %arg10[%c193, %c0_153] : memref<256x32xf32, #tpu.memory_space<vmem>>, vector<14x32xf32>
    tpu.vector_store %arg10[%c193, %c0_153], %332 {strides = array<i32>} : memref<256x32xf32, #tpu.memory_space<vmem>>, vector<14x32xf32>,
    %c720 = arith.constant 720 : index
    %c0_154 = arith.constant 0 : index
    %334 = tpu.strided_load %arg9[%c720, %c0_154] {strides = array<i32: 2, 1>} : memref<838x32xf32, #tpu.memory_space<vmem>>, vector<14x32xf32>
    %c721 = arith.constant 721 : index
    %c0_155 = arith.constant 0 : index
    %335 = tpu.strided_load %arg9[%c721, %c0_155] {strides = array<i32: 2, 1>} : memref<838x32xf32, #tpu.memory_space<vmem>>, vector<14x32xf32>
    %336 = arith.maximumf %334, %335 : vector<14x32xf32>
    %c209 = arith.constant 209 : index
    %c0_156 = arith.constant 0 : index
    %337 = vector.load %arg10[%c209, %c0_156] : memref<256x32xf32, #tpu.memory_space<vmem>>, vector<14x32xf32>
    tpu.vector_store %arg10[%c209, %c0_156], %336 {strides = array<i32>} : memref<256x32xf32, #tpu.memory_space<vmem>>, vector<14x32xf32>,
    %c780 = arith.constant 780 : index
    %c0_157 = arith.constant 0 : index
    %338 = tpu.strided_load %arg9[%c780, %c0_157] {strides = array<i32: 2, 1>} : memref<838x32xf32, #tpu.memory_space<vmem>>, vector<14x32xf32>
    %c781 = arith.constant 781 : index
    %c0_158 = arith.constant 0 : index
    %339 = tpu.strided_load %arg9[%c781, %c0_158] {strides = array<i32: 2, 1>} : memref<838x32xf32, #tpu.memory_space<vmem>>, vector<14x32xf32>
    %340 = arith.maximumf %338, %339 : vector<14x32xf32>
    %c225 = arith.constant 225 : index
    %c0_159 = arith.constant 0 : index
    %341 = vector.load %arg10[%c225, %c0_159] : memref<256x32xf32, #tpu.memory_space<vmem>>, vector<14x32xf32>
    tpu.vector_store %arg10[%c225, %c0_159], %340 {strides = array<i32>} : memref<256x32xf32, #tpu.memory_space<vmem>>, vector<14x32xf32>,
    %c0_160 = arith.constant 0 : index
    %c0_161 = arith.constant 0 : index
    %342 = vector.load %arg10[%c0_160, %c0_161] : memref<256x32xf32, #tpu.memory_space<vmem>>, vector<222x32xf32>
    %343 = arith.truncf %342 : vector<222x32xf32> to vector<222x32xbf16>
    %c1_162 = arith.constant 1 : index
    %c0_163 = arith.constant 0 : index
    %344 = vector.load %arg10[%c1_162, %c0_163] : memref<256x32xf32, #tpu.memory_space<vmem>>, vector<222x32xf32>
    %345 = arith.truncf %344 : vector<222x32xf32> to vector<222x32xbf16>
    %c2_164 = arith.constant 2 : index
    %c0_165 = arith.constant 0 : index
    %346 = vector.load %arg10[%c2_164, %c0_165] : memref<256x32xf32, #tpu.memory_space<vmem>>, vector<222x32xf32>
    %347 = arith.truncf %346 : vector<222x32xf32> to vector<222x32xbf16>
    %c16 = arith.constant 16 : index
    %c0_166 = arith.constant 0 : index
    %348 = vector.load %arg10[%c16, %c0_166] : memref<256x32xf32, #tpu.memory_space<vmem>>, vector<222x32xf32>
    %349 = arith.truncf %348 : vector<222x32xf32> to vector<222x32xbf16>
    %c17_167 = arith.constant 17 : index
    %c0_168 = arith.constant 0 : index
    %350 = vector.load %arg10[%c17_167, %c0_168] : memref<256x32xf32, #tpu.memory_space<vmem>>, vector<222x32xf32>
    %351 = arith.truncf %350 : vector<222x32xf32> to vector<222x32xbf16>
    %c18 = arith.constant 18 : index
    %c0_169 = arith.constant 0 : index
    %352 = vector.load %arg10[%c18, %c0_169] : memref<256x32xf32, #tpu.memory_space<vmem>>, vector<222x32xf32>
    %353 = arith.truncf %352 : vector<222x32xf32> to vector<222x32xbf16>
    %c32_170 = arith.constant 32 : index
    %c0_171 = arith.constant 0 : index
    %354 = vector.load %arg10[%c32_170, %c0_171] : memref<256x32xf32, #tpu.memory_space<vmem>>, vector<222x32xf32>
    %355 = arith.truncf %354 : vector<222x32xf32> to vector<222x32xbf16>
    %c33_172 = arith.constant 33 : index
    %c0_173 = arith.constant 0 : index
    %356 = vector.load %arg10[%c33_172, %c0_173] : memref<256x32xf32, #tpu.memory_space<vmem>>, vector<222x32xf32>
    %357 = arith.truncf %356 : vector<222x32xf32> to vector<222x32xbf16>
    %c34 = arith.constant 34 : index
    %c0_174 = arith.constant 0 : index
    %358 = vector.load %arg10[%c34, %c0_174] : memref<256x32xf32, #tpu.memory_space<vmem>>, vector<222x32xf32>
    %359 = arith.truncf %358 : vector<222x32xf32> to vector<222x32xbf16>
    %360 = tpu.concatenate %343, %345, %347, %349, %351, %353, %355, %357, %359 in 1 : vector<222x32xbf16>, vector<222x32xbf16>, vector<222x32xbf16>, vector<222x32xbf16>, vector<222x32xbf16>, vector<222x32xbf16>, vector<222x32xbf16>, vector<222x32xbf16>, vector<222x32xbf16> -> vector<222x288xbf16>
    %c0_175 = arith.constant 0 : index
    %c0_176 = arith.constant 0 : index
    %361 = vector.load %arg4[%c0_175, %c0_176] : memref<288x64xbf16, #tpu.memory_space<vmem>>, vector<288x64xbf16>
    %cst_177 = arith.constant dense<0.000000e+00> : vector<222x64xf32>
    %362 = tpu.matmul %360, %361, %cst_177 {dimension_numbers = #tpu.dot_dimension_numbers<[1], [0], [0], [1], [0, 0, 1, 1], [], []>} : vector<222x288xbf16>, vector<288x64xbf16>, vector<222x64xf32> -> vector<222x64xf32>
    %363 = vector.broadcast %7 : vector<1x64xf32> to vector<222x64xf32>
    %364 = arith.addf %362, %363 : vector<222x64xf32>
    %cst_178 = arith.constant 0.000000e+00 : f32
    %365 = vector.broadcast %cst_178 : f32 to vector<222x64xf32>
    %366 = arith.maximumf %364, %365 : vector<222x64xf32>
    %367 = vector.extract_strided_slice %366 {offsets = [0, 0], sizes = [206, 64], strides = [1, 1]} : vector<222x64xf32> to vector<206x64xf32>
    %368 = vector.extract_strided_slice %366 {offsets = [16, 0], sizes = [206, 64], strides = [1, 1]} : vector<222x64xf32> to vector<206x64xf32>
    %369 = arith.maximumf %367, %368 : vector<206x64xf32>
    %c0_179 = arith.constant 0 : index
    %c0_180 = arith.constant 0 : index
    %370 = vector.load %arg11[%c0_179, %c0_180] : memref<206x64xf32, #tpu.memory_space<vmem>>, vector<206x64xf32>
    tpu.vector_store %arg11[%c0_179, %c0_180], %369 {strides = array<i32>} : memref<206x64xf32, #tpu.memory_space<vmem>>, vector<206x64xf32>,
    %c0_181 = arith.constant 0 : index
    %c0_182 = arith.constant 0 : index
    %371 = tpu.strided_load %arg11[%c0_181, %c0_182] {strides = array<i32: 2, 1>} : memref<206x64xf32, #tpu.memory_space<vmem>>, vector<7x64xf32>
    %c1_183 = arith.constant 1 : index
    %c0_184 = arith.constant 0 : index
    %372 = tpu.strided_load %arg11[%c1_183, %c0_184] {strides = array<i32: 2, 1>} : memref<206x64xf32, #tpu.memory_space<vmem>>, vector<7x64xf32>
    %373 = arith.maximumf %371, %372 : vector<7x64xf32>
    %c10 = arith.constant 10 : index
    %c0_185 = arith.constant 0 : index
    %374 = vector.load %arg12[%c10, %c0_185] : memref<81x64xf32, #tpu.memory_space<vmem>>, vector<7x64xf32>
    tpu.vector_store %arg12[%c10, %c0_185], %373 {strides = array<i32>} : memref<81x64xf32, #tpu.memory_space<vmem>>, vector<7x64xf32>,
    %c32_186 = arith.constant 32 : index
    %c0_187 = arith.constant 0 : index
    %375 = tpu.strided_load %arg11[%c32_186, %c0_187] {strides = array<i32: 2, 1>} : memref<206x64xf32, #tpu.memory_space<vmem>>, vector<7x64xf32>
    %c33_188 = arith.constant 33 : index
    %c0_189 = arith.constant 0 : index
    %376 = tpu.strided_load %arg11[%c33_188, %c0_189] {strides = array<i32: 2, 1>} : memref<206x64xf32, #tpu.memory_space<vmem>>, vector<7x64xf32>
    %377 = arith.maximumf %375, %376 : vector<7x64xf32>
    %c19 = arith.constant 19 : index
    %c0_190 = arith.constant 0 : index
    %378 = vector.load %arg12[%c19, %c0_190] : memref<81x64xf32, #tpu.memory_space<vmem>>, vector<7x64xf32>
    tpu.vector_store %arg12[%c19, %c0_190], %377 {strides = array<i32>} : memref<81x64xf32, #tpu.memory_space<vmem>>, vector<7x64xf32>,
    %c64 = arith.constant 64 : index
    %c0_191 = arith.constant 0 : index
    %379 = tpu.strided_load %arg11[%c64, %c0_191] {strides = array<i32: 2, 1>} : memref<206x64xf32, #tpu.memory_space<vmem>>, vector<7x64xf32>
    %c65_192 = arith.constant 65 : index
    %c0_193 = arith.constant 0 : index
    %380 = tpu.strided_load %arg11[%c65_192, %c0_193] {strides = array<i32: 2, 1>} : memref<206x64xf32, #tpu.memory_space<vmem>>, vector<7x64xf32>
    %381 = arith.maximumf %379, %380 : vector<7x64xf32>
    %c28 = arith.constant 28 : index
    %c0_194 = arith.constant 0 : index
    %382 = vector.load %arg12[%c28, %c0_194] : memref<81x64xf32, #tpu.memory_space<vmem>>, vector<7x64xf32>
    tpu.vector_store %arg12[%c28, %c0_194], %381 {strides = array<i32>} : memref<81x64xf32, #tpu.memory_space<vmem>>, vector<7x64xf32>,
    %c96 = arith.constant 96 : index
    %c0_195 = arith.constant 0 : index
    %383 = tpu.strided_load %arg11[%c96, %c0_195] {strides = array<i32: 2, 1>} : memref<206x64xf32, #tpu.memory_space<vmem>>, vector<7x64xf32>
    %c97_196 = arith.constant 97 : index
    %c0_197 = arith.constant 0 : index
    %384 = tpu.strided_load %arg11[%c97_196, %c0_197] {strides = array<i32: 2, 1>} : memref<206x64xf32, #tpu.memory_space<vmem>>, vector<7x64xf32>
    %385 = arith.maximumf %383, %384 : vector<7x64xf32>
    %c37 = arith.constant 37 : index
    %c0_198 = arith.constant 0 : index
    %386 = vector.load %arg12[%c37, %c0_198] : memref<81x64xf32, #tpu.memory_space<vmem>>, vector<7x64xf32>
    tpu.vector_store %arg12[%c37, %c0_198], %385 {strides = array<i32>} : memref<81x64xf32, #tpu.memory_space<vmem>>, vector<7x64xf32>,
    %c128 = arith.constant 128 : index
    %c0_199 = arith.constant 0 : index
    %387 = tpu.strided_load %arg11[%c128, %c0_199] {strides = array<i32: 2, 1>} : memref<206x64xf32, #tpu.memory_space<vmem>>, vector<7x64xf32>
    %c129_200 = arith.constant 129 : index
    %c0_201 = arith.constant 0 : index
    %388 = tpu.strided_load %arg11[%c129_200, %c0_201] {strides = array<i32: 2, 1>} : memref<206x64xf32, #tpu.memory_space<vmem>>, vector<7x64xf32>
    %389 = arith.maximumf %387, %388 : vector<7x64xf32>
    %c46 = arith.constant 46 : index
    %c0_202 = arith.constant 0 : index
    %390 = vector.load %arg12[%c46, %c0_202] : memref<81x64xf32, #tpu.memory_space<vmem>>, vector<7x64xf32>
    tpu.vector_store %arg12[%c46, %c0_202], %389 {strides = array<i32>} : memref<81x64xf32, #tpu.memory_space<vmem>>, vector<7x64xf32>,
    %c160 = arith.constant 160 : index
    %c0_203 = arith.constant 0 : index
    %391 = tpu.strided_load %arg11[%c160, %c0_203] {strides = array<i32: 2, 1>} : memref<206x64xf32, #tpu.memory_space<vmem>>, vector<7x64xf32>
    %c161_204 = arith.constant 161 : index
    %c0_205 = arith.constant 0 : index
    %392 = tpu.strided_load %arg11[%c161_204, %c0_205] {strides = array<i32: 2, 1>} : memref<206x64xf32, #tpu.memory_space<vmem>>, vector<7x64xf32>
    %393 = arith.maximumf %391, %392 : vector<7x64xf32>
    %c55 = arith.constant 55 : index
    %c0_206 = arith.constant 0 : index
    %394 = vector.load %arg12[%c55, %c0_206] : memref<81x64xf32, #tpu.memory_space<vmem>>, vector<7x64xf32>
    tpu.vector_store %arg12[%c55, %c0_206], %393 {strides = array<i32>} : memref<81x64xf32, #tpu.memory_space<vmem>>, vector<7x64xf32>,
    %c192 = arith.constant 192 : index
    %c0_207 = arith.constant 0 : index
    %395 = tpu.strided_load %arg11[%c192, %c0_207] {strides = array<i32: 2, 1>} : memref<206x64xf32, #tpu.memory_space<vmem>>, vector<7x64xf32>
    %c193_208 = arith.constant 193 : index
    %c0_209 = arith.constant 0 : index
    %396 = tpu.strided_load %arg11[%c193_208, %c0_209] {strides = array<i32: 2, 1>} : memref<206x64xf32, #tpu.memory_space<vmem>>, vector<7x64xf32>
    %397 = arith.maximumf %395, %396 : vector<7x64xf32>
    %c64_210 = arith.constant 64 : index
    %c0_211 = arith.constant 0 : index
    %398 = vector.load %arg12[%c64_210, %c0_211] : memref<81x64xf32, #tpu.memory_space<vmem>>, vector<7x64xf32>
    tpu.vector_store %arg12[%c64_210, %c0_211], %397 {strides = array<i32>} : memref<81x64xf32, #tpu.memory_space<vmem>>, vector<7x64xf32>,
    %c0_212 = arith.constant 0 : index
    %c0_213 = arith.constant 0 : index
    %399 = vector.load %arg12[%c0_212, %c0_213] : memref<81x64xf32, #tpu.memory_space<vmem>>, vector<61x64xf32>
    %400 = arith.truncf %399 : vector<61x64xf32> to vector<61x64xbf16>
    %c1_214 = arith.constant 1 : index
    %c0_215 = arith.constant 0 : index
    %401 = vector.load %arg12[%c1_214, %c0_215] : memref<81x64xf32, #tpu.memory_space<vmem>>, vector<61x64xf32>
    %402 = arith.truncf %401 : vector<61x64xf32> to vector<61x64xbf16>
    %c2_216 = arith.constant 2 : index
    %c0_217 = arith.constant 0 : index
    %403 = vector.load %arg12[%c2_216, %c0_217] : memref<81x64xf32, #tpu.memory_space<vmem>>, vector<61x64xf32>
    %404 = arith.truncf %403 : vector<61x64xf32> to vector<61x64xbf16>
    %c9 = arith.constant 9 : index
    %c0_218 = arith.constant 0 : index
    %405 = vector.load %arg12[%c9, %c0_218] : memref<81x64xf32, #tpu.memory_space<vmem>>, vector<61x64xf32>
    %406 = arith.truncf %405 : vector<61x64xf32> to vector<61x64xbf16>
    %c10_219 = arith.constant 10 : index
    %c0_220 = arith.constant 0 : index
    %407 = vector.load %arg12[%c10_219, %c0_220] : memref<81x64xf32, #tpu.memory_space<vmem>>, vector<61x64xf32>
    %408 = arith.truncf %407 : vector<61x64xf32> to vector<61x64xbf16>
    %c11 = arith.constant 11 : index
    %c0_221 = arith.constant 0 : index
    %409 = vector.load %arg12[%c11, %c0_221] : memref<81x64xf32, #tpu.memory_space<vmem>>, vector<61x64xf32>
    %410 = arith.truncf %409 : vector<61x64xf32> to vector<61x64xbf16>
    %c18_222 = arith.constant 18 : index
    %c0_223 = arith.constant 0 : index
    %411 = vector.load %arg12[%c18_222, %c0_223] : memref<81x64xf32, #tpu.memory_space<vmem>>, vector<61x64xf32>
    %412 = arith.truncf %411 : vector<61x64xf32> to vector<61x64xbf16>
    %c19_224 = arith.constant 19 : index
    %c0_225 = arith.constant 0 : index
    %413 = vector.load %arg12[%c19_224, %c0_225] : memref<81x64xf32, #tpu.memory_space<vmem>>, vector<61x64xf32>
    %414 = arith.truncf %413 : vector<61x64xf32> to vector<61x64xbf16>
    %c20 = arith.constant 20 : index
    %c0_226 = arith.constant 0 : index
    %415 = vector.load %arg12[%c20, %c0_226] : memref<81x64xf32, #tpu.memory_space<vmem>>, vector<61x64xf32>
    %416 = arith.truncf %415 : vector<61x64xf32> to vector<61x64xbf16>
    %417 = tpu.concatenate %400, %402, %404, %406, %408, %410, %412, %414, %416 in 1 : vector<61x64xbf16>, vector<61x64xbf16>, vector<61x64xbf16>, vector<61x64xbf16>, vector<61x64xbf16>, vector<61x64xbf16>, vector<61x64xbf16>, vector<61x64xbf16>, vector<61x64xbf16> -> vector<61x576xbf16>
    %c0_227 = arith.constant 0 : index
    %c0_228 = arith.constant 0 : index
    %418 = vector.load %arg6[%c0_227, %c0_228] : memref<576x128xbf16, #tpu.memory_space<vmem>>, vector<576x128xbf16>
    %cst_229 = arith.constant dense<0.000000e+00> : vector<61x128xf32>
    %419 = tpu.matmul %417, %418, %cst_229 {dimension_numbers = #tpu.dot_dimension_numbers<[1], [0], [0], [1], [0, 0, 1, 1], [], []>} : vector<61x576xbf16>, vector<576x128xbf16>, vector<61x128xf32> -> vector<61x128xf32>
    %420 = vector.broadcast %8 : vector<1x128xf32> to vector<61x128xf32>
    %421 = arith.addf %419, %420 : vector<61x128xf32>
    %cst_230 = arith.constant 0.000000e+00 : f32
    %422 = vector.broadcast %cst_230 : f32 to vector<61x128xf32>
    %423 = arith.maximumf %421, %422 : vector<61x128xf32>
    %424 = tpu.iota {dimensions = array<i32: 0>} : vector<61x1xi32>
    %c9_i32 = arith.constant 9 : i32
    %c0_i32 = arith.constant 0 : i32
    %425 = arith.cmpi eq, %c9_i32, %c0_i32 : i32
    %c1_i32 = arith.constant 1 : i32
    %426 = arith.select %425, %c1_i32, %c9_i32 : i32
    %427 = vector.broadcast %426 : i32 to vector<61x1xi32>
    %428 = arith.remsi %424, %427 : vector<61x1xi32>
    %c0_i32_231 = arith.constant 0 : i32
    %429 = vector.broadcast %c0_i32_231 : i32 to vector<61x1xi32>
    %430 = arith.cmpi ne, %428, %429 : vector<61x1xi32>
    %c0_i32_232 = arith.constant 0 : i32
    %431 = vector.broadcast %c0_i32_232 : i32 to vector<61x1xi32>
    %432 = arith.cmpi slt, %428, %431 : vector<61x1xi32>
    %c0_i32_233 = arith.constant 0 : i32
    %433 = arith.cmpi slt, %426, %c0_i32_233 : i32
    %434 = vector.broadcast %433 : i1 to vector<61x1xi1>
    %435 = vector.broadcast %434 : vector<61x1xi1> to vector<61x1xi1>
    %436 = arith.xori %432, %435 : vector<61x1xi1>
    %437 = arith.andi %436, %430 : vector<61x1xi1>
    %438 = vector.broadcast %426 : i32 to vector<61x1xi32>
    %439 = arith.addi %428, %438 : vector<61x1xi32>
    %440 = arith.select %437, %439, %428 : vector<61x1xi1>, vector<61x1xi32>
    %c7_i32 = arith.constant 7 : i32
    %441 = vector.broadcast %c7_i32 : i32 to vector<61x1xi32>
    %442 = arith.cmpi slt, %440, %441 : vector<61x1xi32>
    %cst_234 = arith.constant 0.000000e+00 : f32
    %443 = vector.shape_cast %442 : vector<61x1xi1> to vector<61x1xi1>
    %444 = vector.broadcast %443 : vector<61x1xi1> to vector<61x128xi1>
    %445 = vector.broadcast %cst_234 : f32 to vector<61x128xf32>
    %446 = arith.select %444, %423, %445 : vector<61x128xi1>, vector<61x128xf32>
    %c16_235 = arith.constant 16 : index
    %c0_236 = arith.constant 0 : index
    %447 = vector.load %arg13[%c16_235, %c0_236] : memref<77x128xf32, #tpu.memory_space<vmem>>, vector<61x128xf32>
    tpu.vector_store %arg13[%c16_235, %c0_236], %446 {strides = array<i32>} : memref<77x128xf32, #tpu.memory_space<vmem>>, vector<61x128xf32>,
    %c7 = arith.constant 7 : index
    %c0_237 = arith.constant 0 : index
    %448 = vector.load %arg13[%c7, %c0_237] : memref<77x128xf32, #tpu.memory_space<vmem>>, vector<61x128xf32>
    %c16_238 = arith.constant 16 : index
    %c0_239 = arith.constant 0 : index
    %449 = vector.load %arg13[%c16_238, %c0_239] : memref<77x128xf32, #tpu.memory_space<vmem>>, vector<61x128xf32>
    %450 = arith.maximumf %448, %449 : vector<61x128xf32>
    %c16_240 = arith.constant 16 : index
    %c0_241 = arith.constant 0 : index
    %451 = vector.load %arg13[%c16_240, %c0_241] : memref<77x128xf32, #tpu.memory_space<vmem>>, vector<61x128xf32>
    tpu.vector_store %arg13[%c16_240, %c0_241], %450 {strides = array<i32>} : memref<77x128xf32, #tpu.memory_space<vmem>>, vector<61x128xf32>,
    %c15 = arith.constant 15 : index
    %c0_242 = arith.constant 0 : index
    %452 = tpu.strided_load %arg13[%c15, %c0_242] {strides = array<i32: 2, 1>} : memref<77x128xf32, #tpu.memory_space<vmem>>, vector<4x128xf32>
    %c16_243 = arith.constant 16 : index
    %c0_244 = arith.constant 0 : index
    %453 = tpu.strided_load %arg13[%c16_243, %c0_244] {strides = array<i32: 2, 1>} : memref<77x128xf32, #tpu.memory_space<vmem>>, vector<4x128xf32>
    %454 = arith.maximumf %452, %453 : vector<4x128xf32>
    %c0_245 = arith.constant 0 : index
    %c0_246 = arith.constant 0 : index
    %c0_247 = arith.constant 0 : index
    %455 = vector.load %arg8[%c0_245, %c0_246, %c0_247] : memref<1x16x128xf32, #tpu.memory_space<vmem>>, vector<1x4x128xf32>
    %456 = vector.shape_cast %455 : vector<1x4x128xf32> to vector<4x128xf32>
    %457 = vector.shape_cast %454 : vector<4x128xf32> to vector<1x4x128xf32>
    tpu.vector_store %arg8[%c0_245, %c0_246, %c0_247], %457 {strides = array<i32>} : memref<1x16x128xf32, #tpu.memory_space<vmem>>, vector<1x4x128xf32>,
    %c33_248 = arith.constant 33 : index
    %c0_249 = arith.constant 0 : index
    %458 = tpu.strided_load %arg13[%c33_248, %c0_249] {strides = array<i32: 2, 1>} : memref<77x128xf32, #tpu.memory_space<vmem>>, vector<4x128xf32>
    %c34_250 = arith.constant 34 : index
    %c0_251 = arith.constant 0 : index
    %459 = tpu.strided_load %arg13[%c34_250, %c0_251] {strides = array<i32: 2, 1>} : memref<77x128xf32, #tpu.memory_space<vmem>>, vector<4x128xf32>
    %460 = arith.maximumf %458, %459 : vector<4x128xf32>
    %c0_252 = arith.constant 0 : index
    %c4 = arith.constant 4 : index
    %c0_253 = arith.constant 0 : index
    %461 = vector.load %arg8[%c0_252, %c4, %c0_253] : memref<1x16x128xf32, #tpu.memory_space<vmem>>, vector<1x4x128xf32>
    %462 = vector.shape_cast %461 : vector<1x4x128xf32> to vector<4x128xf32>
    %463 = vector.shape_cast %460 : vector<4x128xf32> to vector<1x4x128xf32>
    tpu.vector_store %arg8[%c0_252, %c4, %c0_253], %463 {strides = array<i32>} : memref<1x16x128xf32, #tpu.memory_space<vmem>>, vector<1x4x128xf32>,
    %c51 = arith.constant 51 : index
    %c0_254 = arith.constant 0 : index
    %464 = tpu.strided_load %arg13[%c51, %c0_254] {strides = array<i32: 2, 1>} : memref<77x128xf32, #tpu.memory_space<vmem>>, vector<4x128xf32>
    %c52 = arith.constant 52 : index
    %c0_255 = arith.constant 0 : index
    %465 = tpu.strided_load %arg13[%c52, %c0_255] {strides = array<i32: 2, 1>} : memref<77x128xf32, #tpu.memory_space<vmem>>, vector<4x128xf32>
    %466 = arith.maximumf %464, %465 : vector<4x128xf32>
    %c0_256 = arith.constant 0 : index
    %c8 = arith.constant 8 : index
    %c0_257 = arith.constant 0 : index
    %467 = vector.load %arg8[%c0_256, %c8, %c0_257] : memref<1x16x128xf32, #tpu.memory_space<vmem>>, vector<1x4x128xf32>
    %468 = vector.shape_cast %467 : vector<1x4x128xf32> to vector<4x128xf32>
    %469 = vector.shape_cast %466 : vector<4x128xf32> to vector<1x4x128xf32>
    tpu.vector_store %arg8[%c0_256, %c8, %c0_257], %469 {strides = array<i32>} : memref<1x16x128xf32, #tpu.memory_space<vmem>>, vector<1x4x128xf32>,
    %c69 = arith.constant 69 : index
    %c0_258 = arith.constant 0 : index
    %470 = tpu.strided_load %arg13[%c69, %c0_258] {strides = array<i32: 2, 1>} : memref<77x128xf32, #tpu.memory_space<vmem>>, vector<4x128xf32>
    %c70 = arith.constant 70 : index
    %c0_259 = arith.constant 0 : index
    %471 = tpu.strided_load %arg13[%c70, %c0_259] {strides = array<i32: 2, 1>} : memref<77x128xf32, #tpu.memory_space<vmem>>, vector<4x128xf32>
    %472 = arith.maximumf %470, %471 : vector<4x128xf32>
    %c0_260 = arith.constant 0 : index
    %c12 = arith.constant 12 : index
    %c0_261 = arith.constant 0 : index
    %473 = vector.load %arg8[%c0_260, %c12, %c0_261] : memref<1x16x128xf32, #tpu.memory_space<vmem>>, vector<1x4x128xf32>
    %474 = vector.shape_cast %473 : vector<1x4x128xf32> to vector<4x128xf32>
    %475 = vector.shape_cast %472 : vector<4x128xf32> to vector<1x4x128xf32>
    tpu.vector_store %arg8[%c0_260, %c12, %c0_261], %475 {strides = array<i32>} : memref<1x16x128xf32, #tpu.memory_space<vmem>>, vector<1x4x128xf32>,
    return
  }
  func.func @transform_0(%arg0: i32) -> (i32, i32, i32) {
    %c0_i32 = arith.constant 0 : i32
    %c0_i32_0 = arith.constant 0 : i32
    %c0_i32_1 = arith.constant 0 : i32
    return %arg0, %c0_i32, %c0_i32_0 : i32, i32, i32
  }
  func.func @transform_1(%arg0: i32) -> (i32, i32) {
    %c0_i32 = arith.constant 0 : i32
    %c0_i32_0 = arith.constant 0 : i32
    %c0_i32_1 = arith.constant 0 : i32
    return %c0_i32, %c0_i32_0 : i32, i32
  }
  func.func @transform_2(%arg0: i32) -> (i32, i32) {
    %c0_i32 = arith.constant 0 : i32
    %c0_i32_0 = arith.constant 0 : i32
    %c0_i32_1 = arith.constant 0 : i32
    return %c0_i32, %c0_i32_0 : i32, i32
  }
  func.func @transform_3(%arg0: i32) -> (i32, i32) {
    %c0_i32 = arith.constant 0 : i32
    %c0_i32_0 = arith.constant 0 : i32
    %c0_i32_1 = arith.constant 0 : i32
    return %c0_i32, %c0_i32_0 : i32, i32
  }
  func.func @transform_4(%arg0: i32) -> (i32, i32) {
    %c0_i32 = arith.constant 0 : i32
    %c0_i32_0 = arith.constant 0 : i32
    %c0_i32_1 = arith.constant 0 : i32
    return %c0_i32, %c0_i32_0 : i32, i32
  }
  func.func @transform_5(%arg0: i32) -> (i32, i32) {
    %c0_i32 = arith.constant 0 : i32
    %c0_i32_0 = arith.constant 0 : i32
    %c0_i32_1 = arith.constant 0 : i32
    return %c0_i32, %c0_i32_0 : i32, i32
  }
  func.func @transform_6(%arg0: i32) -> (i32, i32) {
    %c0_i32 = arith.constant 0 : i32
    %c0_i32_0 = arith.constant 0 : i32
    %c0_i32_1 = arith.constant 0 : i32
    return %c0_i32, %c0_i32_0 : i32, i32
  }
  func.func @transform_7(%arg0: i32) -> (i32, i32, i32) {
    %c0_i32 = arith.constant 0 : i32
    %c0_i32_0 = arith.constant 0 : i32
    %c0_i32_1 = arith.constant 0 : i32
    return %arg0, %c0_i32, %c0_i32_0 : i32, i32, i32
  }
}

</mosaic_0001>

<llo_original>
// kernel: encoder_forward.1
$region0: #{encoder_forward.1}
  #allocation0 [shape = 'u32[]', space=smem, size = 0x4, offset = 0x4, fixed_abs, tag = 'smem constant byte address 0x4 - core index']
  #allocation1 [shape = 'u32[144,128]{1,0:T(1,128)}', space=vmem, size = 0x12000, scoped, tag = 'internal scratch']
  #allocation2 [shape = 'f32[838,32]{1,0:T(8,128)}', space=vmem, size = 0x69000, scoped, tag = 'scratch operand']
  #allocation3 [shape = 'f32[256,32]{1,0:T(8,128)}', space=vmem, size = 0x20000, scoped, tag = 'scratch operand']
  #allocation4 [shape = 'f32[206,64]{1,0:T(8,128)}', space=vmem, size = 0x1a000, scoped, tag = 'scratch operand']
  #allocation5 [shape = 'f32[81,64]{1,0:T(8,128)}', space=vmem, size = 0xb000, scoped, tag = 'scratch operand']
  #allocation6 [shape = 'f32[77,128]{1,0:T(8,128)}', space=vmem, size = 0xa000, scoped, tag = 'scratch operand']
  %s0 = inlined_call_operand.vmem [shape: f32[2,900,1], index: 0, kind: input, shape index: {}]
  %s1 = inlined_call_operand.vmem [shape: f32[9,32], index: 1, kind: input, shape index: {}]
  %s2 = inlined_call_operand.vmem [shape: f32[1,32], index: 2, kind: input, shape index: {}]
  %s3 = inlined_call_operand.vmem [shape: bf16[288,64], index: 3, kind: input, shape index: {}]
  %s4 = inlined_call_operand.vmem [shape: f32[1,64], index: 4, kind: input, shape index: {}]
  %s5 = inlined_call_operand.vmem [shape: bf16[576,128], index: 5, kind: input, shape index: {}]
  %s6 = inlined_call_operand.vmem [shape: f32[1,128], index: 6, kind: input, shape index: {}]
  %s7 = inlined_call_operand.vmem [shape: f32[2,16,128], index: 7, kind: output, shape index: {}]
  %s8 = sld [smem:[#allocation0]]
  $region61: #{encoder_forward.1} parent=0
    _
  %s10 = ssub.s32 1, %s8
  %s11 = scalar_select 0, %s10, %s8
  loop: start=0, step=1, limit=4
  $region2: #{encoder_forward.1} parent=0 // loop_pre_header
    _
  $region3: #{encoder_forward.1} parent=0 // loop_header
    %s13 = sphi 0, %s17
    %p14 = scmp.ge.s32.totalorder %s13, 4
    %s23 = sphi 0, %s25
    %s26 = sphi 0, %s23
    %s27 = sphi 0, %s26
    %s43 = sphi 0, %s27
    %s47 = sphi 0, %s47
    %s49 = sphi 0, %s47
    %s50 = sphi 0, %s49
    %s64 = sphi 0, %s50
    %s68 = sphi 0, %s68
    %s70 = sphi 0, %s68
    %s71 = sphi 0, %s70
    %s85 = sphi 0, %s71
    %s89 = sphi 0, %s89
    %s91 = sphi 0, %s89
    %s92 = sphi 0, %s91
    %s106 = sphi 0, %s92
    %s110 = sphi 0, %s110
    %s112 = sphi 0, %s110
    %s113 = sphi 0, %s112
    %s127 = sphi 0, %s113
    %s131 = sphi 0, %s131
    %s133 = sphi 0, %s131
    %s134 = sphi 0, %s133
    %s148 = sphi 0, %s134
    %s152 = sphi 0, %s152
    %s154 = sphi 0, %s152
    %s155 = sphi 0, %s154
    %s169 = sphi 0, %s155
    %s175 = sphi 0, %s177
    %s178 = sphi 0, %s175
    %s179 = sphi 0, %s178
    %s195 = sphi 0, %s179
  $region4: #{encoder_forward.1} parent=0 // loop_header_branch
    %16 = sbr.rel (%p14) target = $region8
  $region5: #{encoder_forward.1} parent=0 // loop_body
    %s18 = ssub.s32 %s13, 1
    %s19 = ssub.s32 %s13, 2
    %s20 = sadd.s32 %s13, 1
    %s21 = ssub.s32 %s13, %s20
    %p22 = scmp.eq.s32.totalorder %s21, 0
    %s24 = sadd.s32 %s23, 1
    %s25 = scalar_select %p22, %s23, %s24
    %p28 = pneg %p22
    %p29 = scmp.eq.s32.totalorder %s13, 1
    %p30 = por %p28, %p29
    %p31 = scmp.ne.s32.totalorder %s23, %s26
    %p32 = scmp.eq.s32.totalorder %s13, 0
    %p33 = por %p31, %p32
    %p34 = scmp.ne.s32.totalorder %s23, %s26
    %p35 = scmp.eq.s32.totalorder %s18, 1
    %p36 = por %p34, %p35
    %p37 = scmp.ne.s32.totalorder %s26, %s27
    %p38 = scmp.eq.s32.totalorder %s18, 0
    %p39 = por %p37, %p38
    %p40 = scmp.ne.s32.totalorder %s26, %s27
    %p41 = scmp.eq.s32.totalorder %s19, 1
    %p42 = por %p40, %p41
    %p44 = scmp.ne.s32.totalorder %s27, %s43
    %p45 = scmp.eq.s32.totalorder %s19, 0
    %p46 = por %p44, %p45
    %s48 = sadd.s32 %s47, 1
    %p51 = scmp.eq.s32.totalorder %s13, 1
    %p52 = scmp.ne.s32.totalorder %s47, %s49
    %p53 = scmp.eq.s32.totalorder %s13, 0
    %p54 = por %p52, %p53
    %p55 = scmp.ne.s32.totalorder %s47, %s49
    %p56 = scmp.eq.s32.totalorder %s18, 1
    %p57 = por %p55, %p56
    %p58 = scmp.ne.s32.totalorder %s49, %s50
    %p59 = scmp.eq.s32.totalorder %s18, 0
    %p60 = por %p58, %p59
    %p61 = scmp.ne.s32.totalorder %s49, %s50
    %p62 = scmp.eq.s32.totalorder %s19, 1
    %p63 = por %p61, %p62
    %p65 = scmp.ne.s32.totalorder %s50, %s64
    %p66 = scmp.eq.s32.totalorder %s19, 0
    %p67 = por %p65, %p66
    %s69 = sadd.s32 %s68, 1
    %p72 = scmp.eq.s32.totalorder %s13, 1
    %p73 = scmp.ne.s32.totalorder %s68, %s70
    %p74 = scmp.eq.s32.totalorder %s13, 0
    %p75 = por %p73, %p74
    %p76 = scmp.ne.s32.totalorder %s68, %s70
    %p77 = scmp.eq.s32.totalorder %s18, 1
    %p78 = por %p76, %p77
    %p79 = scmp.ne.s32.totalorder %s70, %s71
    %p80 = scmp.eq.s32.totalorder %s18, 0
    %p81 = por %p79, %p80
    %p82 = scmp.ne.s32.totalorder %s70, %s71
    %p83 = scmp.eq.s32.totalorder %s19, 1
    %p84 = por %p82, %p83
    %p86 = scmp.ne.s32.totalorder %s71, %s85
    %p87 = scmp.eq.s32.totalorder %s19, 0
    %p88 = por %p86, %p87
    %s90 = sadd.s32 %s89, 1
    %p93 = scmp.eq.s32.totalorder %s13, 1
    %p94 = scmp.ne.s32.totalorder %s89, %s91
    %p95 = scmp.eq.s32.totalorder %s13, 0
    %p96 = por %p94, %p95
    %p97 = scmp.ne.s32.totalorder %s89, %s91
    %p98 = scmp.eq.s32.totalorder %s18, 1
    %p99 = por %p97, %p98
    %p100 = scmp.ne.s32.totalorder %s91, %s92
    %p101 = scmp.eq.s32.totalorder %s18, 0
    %p102 = por %p100, %p101
    %p103 = scmp.ne.s32.totalorder %s91, %s92
    %p104 = scmp.eq.s32.totalorder %s19, 1
    %p105 = por %p103, %p104
    %p107 = scmp.ne.s32.totalorder %s92, %s106
    %p108 = scmp.eq.s32.totalorder %s19, 0
    %p109 = por %p107, %p108
    %s111 = sadd.s32 %s110, 1
    %p114 = scmp.eq.s32.totalorder %s13, 1
    %p115 = scmp.ne.s32.totalorder %s110, %s112
    %p116 = scmp.eq.s32.totalorder %s13, 0
    %p117 = por %p115, %p116
    %p118 = scmp.ne.s32.totalorder %s110, %s112
    %p119 = scmp.eq.s32.totalorder %s18, 1
    %p120 = por %p118, %p119
    %p121 = scmp.ne.s32.totalorder %s112, %s113
    %p122 = scmp.eq.s32.totalorder %s18, 0
    %p123 = por %p121, %p122
    %p124 = scmp.ne.s32.totalorder %s112, %s113
    %p125 = scmp.eq.s32.totalorder %s19, 1
    %p126 = por %p124, %p125
    %p128 = scmp.ne.s32.totalorder %s113, %s127
    %p129 = scmp.eq.s32.totalorder %s19, 0
    %p130 = por %p128, %p129
    %s132 = sadd.s32 %s131, 1
    %p135 = scmp.eq.s32.totalorder %s13, 1
    %p136 = scmp.ne.s32.totalorder %s131, %s133
    %p137 = scmp.eq.s32.totalorder %s13, 0
    %p138 = por %p136, %p137
    %p139 = scmp.ne.s32.totalorder %s131, %s133
    %p140 = scmp.eq.s32.totalorder %s18, 1
    %p141 = por %p139, %p140
    %p142 = scmp.ne.s32.totalorder %s133, %s134
    %p143 = scmp.eq.s32.totalorder %s18, 0
    %p144 = por %p142, %p143
    %p145 = scmp.ne.s32.totalorder %s133, %s134
    %p146 = scmp.eq.s32.totalorder %s19, 1
    %p147 = por %p145, %p146
    %p149 = scmp.ne.s32.totalorder %s134, %s148
    %p150 = scmp.eq.s32.totalorder %s19, 0
    %p151 = por %p149, %p150
    %s153 = sadd.s32 %s152, 1
    %p156 = scmp.eq.s32.totalorder %s13, 1
    %p157 = scmp.ne.s32.totalorder %s152, %s154
    %p158 = scmp.eq.s32.totalorder %s13, 0
    %p159 = por %p157, %p158
    %p160 = scmp.ne.s32.totalorder %s152, %s154
    %p161 = scmp.eq.s32.totalorder %s18, 1
    %p162 = por %p160, %p161
    %p163 = scmp.ne.s32.totalorder %s154, %s155
    %p164 = scmp.eq.s32.totalorder %s18, 0
    %p165 = por %p163, %p164
    %p166 = scmp.ne.s32.totalorder %s154, %s155
    %p167 = scmp.eq.s32.totalorder %s19, 1
    %p168 = por %p166, %p167
    %p170 = scmp.ne.s32.totalorder %s155, %s169
    %p171 = scmp.eq.s32.totalorder %s19, 0
    %p172 = por %p170, %p171
    %s173 = ssub.s32 %s13, %s20
    %p174 = scmp.eq.s32.totalorder %s173, 0
    %s176 = sadd.s32 %s175, 1
    %s177 = scalar_select %p174, %s175, %s176
    %p180 = pneg %p174
    %p181 = scmp.eq.s32.totalorder %s13, 1
    %p182 = por %p180, %p181
    %p183 = scmp.ne.s32.totalorder %s175, %s178
    %p184 = scmp.eq.s32.totalorder %s13, 0
    %p185 = por %p183, %p184
    %p186 = scmp.ne.s32.totalorder %s175, %s178
    %p187 = scmp.eq.s32.totalorder %s18, 1
    %p188 = por %p186, %p187
    %p189 = scmp.ne.s32.totalorder %s178, %s179
    %p190 = scmp.eq.s32.totalorder %s18, 0
    %p191 = por %p189, %p190
    %p192 = scmp.ne.s32.totalorder %s178, %s179
    %p193 = scmp.eq.s32.totalorder %s19, 1
    %p194 = por %p192, %p193
    %p196 = scmp.ne.s32.totalorder %s179, %s195
    %p197 = scmp.eq.s32.totalorder %s19, 0
    %p198 = por %p196, %p197
    %p199 = scmp.le.s32.totalorder 1, %s13
    %p200 = scmp.lt.s32.totalorder %s13, 3
    %p201 = pnand %p199, %p200
    %p202 = pneg %p201
    // Predicated region
    $region9: #{encoder_forward.1} parent=5 // pred_check
      _
    $region10: #{encoder_forward.1} parent=5 // pred_check_branch
      %204 = sbr.rel (%p201) target = $region12
    $region11: #{encoder_forward.1} parent=5 // pred_region
      %s205 = ssub.s32 %s13, 1
      // Predicated region
      $region13: #{encoder_forward.1} parent=11 // pred_check
        %p206 = pneg %p60
      $region14: #{encoder_forward.1} parent=11 // pred_check_branch
        %208 = sbr.rel (%p206) target = $region16
      $region15: #{encoder_forward.1} parent=11 // pred_region
        _
      $region16: #{encoder_forward.1} parent=11 // pred_fallthru
        _
      // Predicated region
      $region17: #{encoder_forward.1} parent=11 // pred_check
        %p209 = pneg %p81
      $region18: #{encoder_forward.1} parent=11 // pred_check_branch
        %211 = sbr.rel (%p209) target = $region20
      $region19: #{encoder_forward.1} parent=11 // pred_region
        _
      $region20: #{encoder_forward.1} parent=11 // pred_fallthru
        _
      // Predicated region
      $region21: #{encoder_forward.1} parent=11 // pred_check
        %p212 = pneg %p102
      $region22: #{encoder_forward.1} parent=11 // pred_check_branch
        %214 = sbr.rel (%p212) target = $region24
      $region23: #{encoder_forward.1} parent=11 // pred_region
        _
      $region24: #{encoder_forward.1} parent=11 // pred_fallthru
        _
      // Predicated region
      $region25: #{encoder_forward.1} parent=11 // pred_check
        %p215 = pneg %p123
      $region26: #{encoder_forward.1} parent=11 // pred_check_branch
        %217 = sbr.rel (%p215) target = $region28
      $region27: #{encoder_forward.1} parent=11 // pred_region
        _
      $region28: #{encoder_forward.1} parent=11 // pred_fallthru
        _
      // Predicated region
      $region29: #{encoder_forward.1} parent=11 // pred_check
        %p218 = pneg %p144
      $region30: #{encoder_forward.1} parent=11 // pred_check_branch
        %220 = sbr.rel (%p218) target = $region32
      $region31: #{encoder_forward.1} parent=11 // pred_region
        _
      $region32: #{encoder_forward.1} parent=11 // pred_fallthru
        _
      // Predicated region
      $region33: #{encoder_forward.1} parent=11 // pred_check
        %p221 = pneg %p165
      $region34: #{encoder_forward.1} parent=11 // pred_check_branch
        %223 = sbr.rel (%p221) target = $region36
      $region35: #{encoder_forward.1} parent=11 // pred_region
        _
      $region36: #{encoder_forward.1} parent=11 // pred_fallthru
        _
    $region12: #{encoder_forward.1} parent=5 // pred_fallthru
      _
    %p224 = scmp.lt.s32.totalorder %s13, 2
    // Predicated region
    $region37: #{encoder_forward.1} parent=5 // pred_check
      %p225 = pneg %p224
    $region38: #{encoder_forward.1} parent=5 // pred_check_branch
      %227 = sbr.rel (%p225) target = $region40
    $region39: #{encoder_forward.1} parent=5 // pred_region
      // Predicated region
      $region41: #{encoder_forward.1} parent=39 // pred_check
        %p228 = pneg %p33
      $region42: #{encoder_forward.1} parent=39 // pred_check_branch
        %230 = sbr.rel (%p228) target = $region44
      $region43: #{encoder_forward.1} parent=39 // pred_region
        %p231 = scmp.lt.s32.totalorder %s13, 1
        %s232 = scalar_select %p231, %s13, 1
        %s233 = smul.addr %s232, 113
        %s234 = smul.addr %s233, 8
        %s235 = scalar_lea.vmem %s0, %s234
      $region44: #{encoder_forward.1} parent=39 // pred_fallthru
        _
    $region40: #{encoder_forward.1} parent=5 // pred_fallthru
      _
    %p236 = scmp.le.s32.totalorder 1, %s13
    %p237 = scmp.lt.s32.totalorder %s13, 3
    %p238 = pnand %p236, %p237
    %p239 = pneg %p238
    // Predicated region
    $region45: #{encoder_forward.1} parent=5 // pred_check
      _
    $region46: #{encoder_forward.1} parent=5 // pred_check_branch
      %241 = sbr.rel (%p238) target = $region48
    $region47: #{encoder_forward.1} parent=5 // pred_region
      %s242 = ssub.s32 %s13, 1
      %p243 = scmp.lt.s32.totalorder %s18, 1
      %s244 = scalar_select %p243, %s18, 1
      %s245 = smul.addr %s244, 113
      %s246 = smul.addr %s245, 8
      %s247 = scalar_lea.vmem %s0, %s246
      %p248 = pneg %p39
      %p249 = pneg %p36
      %p250 = pneg %p60
      %p251 = pneg %p57
      %p252 = pneg %p81
      %p253 = pneg %p78
      %p254 = pneg %p102
      %p255 = pneg %p99
      %p256 = pneg %p123
      %p257 = pneg %p120
      %p258 = pneg %p144
      %p259 = pneg %p141
      %p260 = pneg %p165
      %p261 = pneg %p162
      %p262 = pneg %p191
      %p263 = pneg %p188
      %p264 = scmp.lt.s32.totalorder %s18, 1
      %s265 = scalar_select %p264, %s18, 1
      %s266 = smul.addr %s265, 2
      %s267 = smul.addr %s266, 8
      %s268 = scalar_lea.vmem %s7, %s267
      %p269 = scmp.lt.s32.totalorder %s18, 1
      %s270 = scalar_select %p269, %s18, 1
      %s271 = smul.addr %s270, 113
      %s272 = smul.addr %s271, 8
      %s273 = scalar_lea.vmem %s0, %s272
      %p274 = scmp.lt.s32.totalorder %s18, 1
      %s275 = scalar_select %p274, %s18, 1
      %s276 = smul.addr %s275, 2
      %s277 = smul.addr %s276, 8
      %s278 = scalar_lea.vmem %s7, %s277
      %vm280 = vcmask 261120
      %281 = vst.msk [vmem:[#allocation3] sm:$0xff] %vm280, 0.0
      %282 = vst.msk [vmem:[#allocation3 + $0x8] sm:$0xff] %vm280, 0.0
      %283 = vst.msk [vmem:[#allocation3 + $0x10] sm:$0xff] %vm280, 0.0
      %284 = vst.msk [vmem:[#allocation3 + $0x18] sm:$0xff] %vm280, 0.0
      %285 = vst.msk [vmem:[#allocation3 + $0x20] sm:$0xff] %vm280, 0.0
      %286 = vst.msk [vmem:[#allocation3 + $0x28] sm:$0xff] %vm280, 0.0
      %287 = vst.msk [vmem:[#allocation3 + $0x30] sm:$0xff] %vm280, 0.0
      %288 = vst.msk [vmem:[#allocation3 + $0x38] sm:$0xff] %vm280, 0.0
      %289 = vst.msk [vmem:[#allocation3 + $0x40] sm:$0xff] %vm280, 0.0
      %290 = vst.msk [vmem:[#allocation3 + $0x48] sm:$0xff] %vm280, 0.0
      %291 = vst.msk [vmem:[#allocation3 + $0x50] sm:$0xff] %vm280, 0.0
      %292 = vst.msk [vmem:[#allocation3 + $0x58] sm:$0xff] %vm280, 0.0
      %293 = vst.msk [vmem:[#allocation3 + $0x60] sm:$0xff] %vm280, 0.0
      %294 = vst.msk [vmem:[#allocation3 + $0x68] sm:$0xff] %vm280, 0.0
      %295 = vst.msk [vmem:[#allocation3 + $0x70] sm:$0xff] %vm280, 0.0
      %296 = vst.msk [vmem:[#allocation3 + $0x78] sm:$0xff] %vm280, 0.0
      %297 = vst.msk [vmem:[#allocation3 + $0x80] sm:$0xff] %vm280, 0.0
      %298 = vst.msk [vmem:[#allocation3 + $0x88] sm:$0xff] %vm280, 0.0
      %299 = vst.msk [vmem:[#allocation3 + $0x90] sm:$0xff] %vm280, 0.0
      %300 = vst.msk [vmem:[#allocation3 + $0x98] sm:$0xff] %vm280, 0.0
      %301 = vst.msk [vmem:[#allocation3 + $0xa0] sm:$0xff] %vm280, 0.0
      %302 = vst.msk [vmem:[#allocation3 + $0xa8] sm:$0xff] %vm280, 0.0
      %303 = vst.msk [vmem:[#allocation3 + $0xb0] sm:$0xff] %vm280, 0.0
      %304 = vst.msk [vmem:[#allocation3 + $0xb8] sm:$0xff] %vm280, 0.0
      %305 = vst.msk [vmem:[#allocation3 + $0xc0] sm:$0xff] %vm280, 0.0
      %306 = vst.msk [vmem:[#allocation3 + $0xc8] sm:$0xff] %vm280, 0.0
      %307 = vst.msk [vmem:[#allocation3 + $0xd0] sm:$0xff] %vm280, 0.0
      %308 = vst.msk [vmem:[#allocation3 + $0xd8] sm:$0xff] %vm280, 0.0
      %309 = vst.msk [vmem:[#allocation3 + $0xe0] sm:$0xff] %vm280, 0.0
      %310 = vst.msk [vmem:[#allocation3 + $0xe8] sm:$0xff] %vm280, 0.0
      %311 = vst.msk [vmem:[#allocation3 + $0xf0] sm:$0xff] %vm280, 0.0
      %312 = vst.msk [vmem:[#allocation3 + $0xf8] sm:$0xff] %vm280, 0.0
      %vm313 = vcmask 523264
      %314 = vst.msk [vmem:[#allocation5] sm:$0xff] %vm313, 0.0
      %315 = vst.msk [vmem:[#allocation5 + $0x8] sm:$0xff] %vm313, 0.0
      %316 = vst.msk [vmem:[#allocation5 + $0x10] sm:$0xff] %vm313, 0.0
      %317 = vst.msk [vmem:[#allocation5 + $0x18] sm:$0xff] %vm313, 0.0
      %318 = vst.msk [vmem:[#allocation5 + $0x20] sm:$0xff] %vm313, 0.0
      %319 = vst.msk [vmem:[#allocation5 + $0x28] sm:$0xff] %vm313, 0.0
      %320 = vst.msk [vmem:[#allocation5 + $0x30] sm:$0xff] %vm313, 0.0
      %321 = vst.msk [vmem:[#allocation5 + $0x38] sm:$0xff] %vm313, 0.0
      %322 = vst.msk [vmem:[#allocation5 + $0x40] sm:$0xff] %vm313, 0.0
      %323 = vst.msk [vmem:[#allocation5 + $0x48] sm:$0xff] %vm313, 0.0
      %vm324 = vcmask 516096
      %325 = vst.msk [vmem:[#allocation5 + $0x50] sm:$0x1] %vm324, 0.0
      %326 = vst [vmem:[#allocation6] sm:$0xff] 0.0
      %327 = vst [vmem:[#allocation6 + $0x8] sm:$0xff] 0.0
      %v328 = vld [vmem:[%s2] sm:$0x1]
      %v329 = vld [vmem:[%s4] sm:$0x1]
      %v330 = vld [vmem:[%s6] sm:$0x1]
      %v331 = vld [vmem:[%s1] sm:$0xff]
      %v332 = vld [vmem:[%s1 + $0x8] sm:$0x1]
      %v334 = vlaneseq
      %v335 = vshrl.u32 %v334, 7
      %v336 = vsub.s32 0, %v335
      %v337 = vrot.slane %v328, %v336
      %v339 = vld [vmem:[%s273] sm:$0xff]
      %v340 = vld [vmem:[%s273 + $0x8] sm:$0xff]
      %v341 = vld [vmem:[%s273 + $0x10] sm:$0xff]
      %v342 = vld [vmem:[%s273 + $0x18] sm:$0xff]
      %v343 = vld [vmem:[%s273 + $0x20] sm:$0xff]
      %v344 = vld [vmem:[%s273 + $0x28] sm:$0xff]
      %v345 = vld [vmem:[%s273 + $0x30] sm:$0xff]
      %v346 = vld [vmem:[%s273 + $0x38] sm:$0xff]
      %v347 = vld [vmem:[%s273 + $0x40] sm:$0xff]
      %v348 = vld [vmem:[%s273 + $0x48] sm:$0xff]
      %v349 = vld [vmem:[%s273 + $0x50] sm:$0xff]
      %v350 = vld [vmem:[%s273 + $0x58] sm:$0xff]
      %v351 = vld [vmem:[%s273 + $0x60] sm:$0xff]
      %v352 = vld [vmem:[%s273 + $0x68] sm:$0xff]
      %v353 = vld [vmem:[%s273 + $0x70] sm:$0xff]
      %v354 = vld [vmem:[%s273 + $0x78] sm:$0xff]
      %v355 = vld [vmem:[%s273 + $0x80] sm:$0xff]
      %v356 = vld [vmem:[%s273 + $0x88] sm:$0xff]
      %v357 = vld [vmem:[%s273 + $0x90] sm:$0xff]
      %v358 = vld [vmem:[%s273 + $0x98] sm:$0xff]
      %v359 = vld [vmem:[%s273 + $0xa0] sm:$0xff]
      %v360 = vld [vmem:[%s273 + $0xa8] sm:$0xff]
      %v361 = vld [vmem:[%s273 + $0xb0] sm:$0xff]
      %v362 = vld [vmem:[%s273 + $0xb8] sm:$0xff]
      %v363 = vld [vmem:[%s273 + $0xc0] sm:$0xff]
      %v364 = vld [vmem:[%s273 + $0xc8] sm:$0xff]
      %366 = vset.pattern.permute.xlu0 0
      %367 = vperm.xlu0 %366, %v339
      %v368 = vpop.permute.xlu0 %367
      %371 = vset.pattern.permute.xlu0 0
      %372 = vperm.xlu0 %371, %v340
      %v373 = vpop.permute.xlu0 %372
      %376 = vset.pattern.permute.xlu0 0
      %377 = vperm.xlu0 %376, %v341
      %v378 = vpop.permute.xlu0 %377
      %381 = vset.pattern.permute.xlu0 0
      %382 = vperm.xlu0 %381, %v342
      %v383 = vpop.permute.xlu0 %382
      %386 = vset.pattern.permute.xlu0 0
      %387 = vperm.xlu0 %386, %v343
      %v388 = vpop.permute.xlu0 %387
      %391 = vset.pattern.permute.xlu0 0
      %392 = vperm.xlu0 %391, %v344
      %v393 = vpop.permute.xlu0 %392
      %396 = vset.pattern.permute.xlu0 0
      %397 = vperm.xlu0 %396, %v345
      %v398 = vpop.permute.xlu0 %397
      %401 = vset.pattern.permute.xlu0 0
      %402 = vperm.xlu0 %401, %v346
      %v403 = vpop.permute.xlu0 %402
      %406 = vset.pattern.permute.xlu0 0
      %407 = vperm.xlu0 %406, %v347
      %v408 = vpop.permute.xlu0 %407
      %411 = vset.pattern.permute.xlu0 0
      %412 = vperm.xlu0 %411, %v348
      %v413 = vpop.permute.xlu0 %412
      %416 = vset.pattern.permute.xlu0 0
      %417 = vperm.xlu0 %416, %v349
      %v418 = vpop.permute.xlu0 %417
      %421 = vset.pattern.permute.xlu0 0
      %422 = vperm.xlu0 %421, %v350
      %v423 = vpop.permute.xlu0 %422
      %426 = vset.pattern.permute.xlu0 0
      %427 = vperm.xlu0 %426, %v351
      %v428 = vpop.permute.xlu0 %427
      %431 = vset.pattern.permute.xlu0 0
      %432 = vperm.xlu0 %431, %v352
      %v433 = vpop.permute.xlu0 %432
      %436 = vset.pattern.permute.xlu0 0
      %437 = vperm.xlu0 %436, %v353
      %v438 = vpop.permute.xlu0 %437
      %441 = vset.pattern.permute.xlu0 0
      %442 = vperm.xlu0 %441, %v354
      %v443 = vpop.permute.xlu0 %442
      %446 = vset.pattern.permute.xlu0 0
      %447 = vperm.xlu0 %446, %v355
      %v448 = vpop.permute.xlu0 %447
      %451 = vset.pattern.permute.xlu0 0
      %452 = vperm.xlu0 %451, %v356
      %v453 = vpop.permute.xlu0 %452
      %456 = vset.pattern.permute.xlu0 0
      %457 = vperm.xlu0 %456, %v357
      %v458 = vpop.permute.xlu0 %457
      %461 = vset.pattern.permute.xlu0 0
      %462 = vperm.xlu0 %461, %v358
      %v463 = vpop.permute.xlu0 %462
      %466 = vset.pattern.permute.xlu0 0
      %467 = vperm.xlu0 %466, %v359
      %v468 = vpop.permute.xlu0 %467
      %471 = vset.pattern.permute.xlu0 0
      %472 = vperm.xlu0 %471, %v360
      %v473 = vpop.permute.xlu0 %472
      %476 = vset.pattern.permute.xlu0 0
      %477 = vperm.xlu0 %476, %v361
      %v478 = vpop.permute.xlu0 %477
      %481 = vset.pattern.permute.xlu0 0
      %482 = vperm.xlu0 %481, %v362
      %v483 = vpop.permute.xlu0 %482
      %486 = vset.pattern.permute.xlu0 0
      %487 = vperm.xlu0 %486, %v363
      %v488 = vpop.permute.xlu0 %487
      %491 = vset.pattern.permute.xlu0 0
      %492 = vperm.xlu0 %491, %v364
      %v493 = vpop.permute.xlu0 %492
      %v495 = vlaneseq
      %v496 = vshrl.u32 %v495, 7
      %v497 = vsub.s32 0, %v496
      %v498 = vrot.slane %v331, %v497
      %v499 = vmul.f32 %v368, %v498
      %v500 = vmul.f32 %v373, %v498
      %v501 = vmul.f32 %v378, %v498
      %v502 = vmul.f32 %v383, %v498
      %v503 = vmul.f32 %v388, %v498
      %v504 = vmul.f32 %v393, %v498
      %v505 = vmul.f32 %v398, %v498
      %v506 = vmul.f32 %v403, %v498
      %v507 = vmul.f32 %v408, %v498
      %v508 = vmul.f32 %v413, %v498
      %v509 = vmul.f32 %v418, %v498
      %v510 = vmul.f32 %v423, %v498
      %v511 = vmul.f32 %v428, %v498
      %v512 = vmul.f32 %v433, %v498
      %v513 = vmul.f32 %v438, %v498
      %v514 = vmul.f32 %v443, %v498
      %v515 = vmul.f32 %v448, %v498
      %v516 = vmul.f32 %v453, %v498
      %v517 = vmul.f32 %v458, %v498
      %v518 = vmul.f32 %v463, %v498
      %v519 = vmul.f32 %v468, %v498
      %v520 = vmul.f32 %v473, %v498
      %v521 = vmul.f32 %v478, %v498
      %v522 = vmul.f32 %v483, %v498
      %v523 = vmul.f32 %v488, %v498
      %v524 = vmul.f32 %v493, %v498
      %v525 = vadd.f32 %v337, %v499
      %v526 = vadd.f32 %v337, %v500
      %v527 = vadd.f32 %v337, %v501
      %v528 = vadd.f32 %v337, %v502
      %v529 = vadd.f32 %v337, %v503
      %v530 = vadd.f32 %v337, %v504
      %v531 = vadd.f32 %v337, %v505
      %v532 = vadd.f32 %v337, %v506
      %v533 = vadd.f32 %v337, %v507
      %v534 = vadd.f32 %v337, %v508
      %v535 = vadd.f32 %v337, %v509
      %v536 = vadd.f32 %v337, %v510
      %v537 = vadd.f32 %v337, %v511
      %v538 = vadd.f32 %v337, %v512
      %v539 = vadd.f32 %v337, %v513
      %v540 = vadd.f32 %v337, %v514
      %v541 = vadd.f32 %v337, %v515
      %v542 = vadd.f32 %v337, %v516
      %v543 = vadd.f32 %v337, %v517
      %v544 = vadd.f32 %v337, %v518
      %v545 = vadd.f32 %v337, %v519
      %v546 = vadd.f32 %v337, %v520
      %v547 = vadd.f32 %v337, %v521
      %v548 = vadd.f32 %v337, %v522
      %v549 = vadd.f32 %v337, %v523
      %v550 = vadd.f32 %v337, %v524
      %v551 = vld [vmem:[%s273 + $0x1] sm:$0xff]
      %v552 = vld [vmem:[%s273 + $0x9] sm:$0xff]
      %v553 = vld [vmem:[%s273 + $0x11] sm:$0xff]
      %v554 = vld [vmem:[%s273 + $0x19] sm:$0xff]
      %v555 = vld [vmem:[%s273 + $0x21] sm:$0xff]
      %v556 = vld [vmem:[%s273 + $0x29] sm:$0xff]
      %v557 = vld [vmem:[%s273 + $0x31] sm:$0xff]
      %v558 = vld [vmem:[%s273 + $0x39] sm:$0xff]
      %v559 = vld [vmem:[%s273 + $0x41] sm:$0xff]
      %v560 = vld [vmem:[%s273 + $0x49] sm:$0xff]
      %v561 = vld [vmem:[%s273 + $0x51] sm:$0xff]
      %v562 = vld [vmem:[%s273 + $0x59] sm:$0xff]
      %v563 = vld [vmem:[%s273 + $0x61] sm:$0xff]
      %v564 = vld [vmem:[%s273 + $0x69] sm:$0xff]
      %v565 = vld [vmem:[%s273 + $0x71] sm:$0xff]
      %v566 = vld [vmem:[%s273 + $0x79] sm:$0xff]
      %v567 = vld [vmem:[%s273 + $0x81] sm:$0xff]
      %v568 = vld [vmem:[%s273 + $0x89] sm:$0xff]
      %v569 = vld [vmem:[%s273 + $0x91] sm:$0xff]
      %v570 = vld [vmem:[%s273 + $0x99] sm:$0xff]
      %v571 = vld [vmem:[%s273 + $0xa1] sm:$0xff]
      %v572 = vld [vmem:[%s273 + $0xa9] sm:$0xff]
      %v573 = vld [vmem:[%s273 + $0xb1] sm:$0xff]
      %v574 = vld [vmem:[%s273 + $0xb9] sm:$0xff]
      %v575 = vld [vmem:[%s273 + $0xc1] sm:$0xff]
      %v576 = vld [vmem:[%s273 + $0xc9] sm:$0xff]
      %578 = vset.pattern.permute.xlu0 0
      %579 = vperm.xlu0 %578, %v551
      %v580 = vpop.permute.xlu0 %579
      %583 = vset.pattern.permute.xlu0 0
      %584 = vperm.xlu0 %583, %v552
      %v585 = vpop.permute.xlu0 %584
      %588 = vset.pattern.permute.xlu0 0
      %589 = vperm.xlu0 %588, %v553
      %v590 = vpop.permute.xlu0 %589
      %593 = vset.pattern.permute.xlu0 0
      %594 = vperm.xlu0 %593, %v554
      %v595 = vpop.permute.xlu0 %594
      %598 = vset.pattern.permute.xlu0 0
      %599 = vperm.xlu0 %598, %v555
      %v600 = vpop.permute.xlu0 %599
      %603 = vset.pattern.permute.xlu0 0
      %604 = vperm.xlu0 %603, %v556
      %v605 = vpop.permute.xlu0 %604
      %608 = vset.pattern.permute.xlu0 0
      %609 = vperm.xlu0 %608, %v557
      %v610 = vpop.permute.xlu0 %609
      %613 = vset.pattern.permute.xlu0 0
      %614 = vperm.xlu0 %613, %v558
      %v615 = vpop.permute.xlu0 %614
      %618 = vset.pattern.permute.xlu0 0
      %619 = vperm.xlu0 %618, %v559
      %v620 = vpop.permute.xlu0 %619
      %623 = vset.pattern.permute.xlu0 0
      %624 = vperm.xlu0 %623, %v560
      %v625 = vpop.permute.xlu0 %624
      %628 = vset.pattern.permute.xlu0 0
      %629 = vperm.xlu0 %628, %v561
      %v630 = vpop.permute.xlu0 %629
      %633 = vset.pattern.permute.xlu0 0
      %634 = vperm.xlu0 %633, %v562
      %v635 = vpop.permute.xlu0 %634
      %638 = vset.pattern.permute.xlu0 0
      %639 = vperm.xlu0 %638, %v563
      %v640 = vpop.permute.xlu0 %639
      %643 = vset.pattern.permute.xlu0 0
      %644 = vperm.xlu0 %643, %v564
      %v645 = vpop.permute.xlu0 %644
      %648 = vset.pattern.permute.xlu0 0
      %649 = vperm.xlu0 %648, %v565
      %v650 = vpop.permute.xlu0 %649
      %653 = vset.pattern.permute.xlu0 0
      %654 = vperm.xlu0 %653, %v566
      %v655 = vpop.permute.xlu0 %654
      %658 = vset.pattern.permute.xlu0 0
      %659 = vperm.xlu0 %658, %v567
      %v660 = vpop.permute.xlu0 %659
      %663 = vset.pattern.permute.xlu0 0
      %664 = vperm.xlu0 %663, %v568
      %v665 = vpop.permute.xlu0 %664
      %668 = vset.pattern.permute.xlu0 0
      %669 = vperm.xlu0 %668, %v569
      %v670 = vpop.permute.xlu0 %669
      %673 = vset.pattern.permute.xlu0 0
      %674 = vperm.xlu0 %673, %v570
      %v675 = vpop.permute.xlu0 %674
      %678 = vset.pattern.permute.xlu0 0
      %679 = vperm.xlu0 %678, %v571
      %v680 = vpop.permute.xlu0 %679
      %683 = vset.pattern.permute.xlu0 0
      %684 = vperm.xlu0 %683, %v572
      %v685 = vpop.permute.xlu0 %684
      %688 = vset.pattern.permute.xlu0 0
      %689 = vperm.xlu0 %688, %v573
      %v690 = vpop.permute.xlu0 %689
      %693 = vset.pattern.permute.xlu0 0
      %694 = vperm.xlu0 %693, %v574
      %v695 = vpop.permute.xlu0 %694
      %698 = vset.pattern.permute.xlu0 0
      %699 = vperm.xlu0 %698, %v575
      %v700 = vpop.permute.xlu0 %699
      %703 = vset.pattern.permute.xlu0 0
      %704 = vperm.xlu0 %703, %v576
      %v705 = vpop.permute.xlu0 %704
      %v707 = vlaneseq
      %v708 = vshrl.u32 %v707, 7
      %v709 = vsub.s32 1, %v708
      %v710 = vrot.slane %v331, %v709
      %v711 = vmul.f32 %v580, %v710
      %v712 = vmul.f32 %v585, %v710
      %v713 = vmul.f32 %v590, %v710
      %v714 = vmul.f32 %v595, %v710
      %v715 = vmul.f32 %v600, %v710
      %v716 = vmul.f32 %v605, %v710
      %v717 = vmul.f32 %v610, %v710
      %v718 = vmul.f32 %v615, %v710
      %v719 = vmul.f32 %v620, %v710
      %v720 = vmul.f32 %v625, %v710
      %v721 = vmul.f32 %v630, %v710
      %v722 = vmul.f32 %v635, %v710
      %v723 = vmul.f32 %v640, %v710
      %v724 = vmul.f32 %v645, %v710
      %v725 = vmul.f32 %v650, %v710
      %v726 = vmul.f32 %v655, %v710
      %v727 = vmul.f32 %v660, %v710
      %v728 = vmul.f32 %v665, %v710
      %v729 = vmul.f32 %v670, %v710
      %v730 = vmul.f32 %v675, %v710
      %v731 = vmul.f32 %v680, %v710
      %v732 = vmul.f32 %v685, %v710
      %v733 = vmul.f32 %v690, %v710
      %v734 = vmul.f32 %v695, %v710
      %v735 = vmul.f32 %v700, %v710
      %v736 = vmul.f32 %v705, %v710
      %v737 = vadd.f32 %v525, %v711
      %v738 = vadd.f32 %v526, %v712
      %v739 = vadd.f32 %v527, %v713
      %v740 = vadd.f32 %v528, %v714
      %v741 = vadd.f32 %v529, %v715
      %v742 = vadd.f32 %v530, %v716
      %v743 = vadd.f32 %v531, %v717
      %v744 = vadd.f32 %v532, %v718
      %v745 = vadd.f32 %v533, %v719
      %v746 = vadd.f32 %v534, %v720
      %v747 = vadd.f32 %v535, %v721
      %v748 = vadd.f32 %v536, %v722
      %v749 = vadd.f32 %v537, %v723
      %v750 = vadd.f32 %v538, %v724
      %v751 = vadd.f32 %v539, %v725
      %v752 = vadd.f32 %v540, %v726
      %v753 = vadd.f32 %v541, %v727
      %v754 = vadd.f32 %v542, %v728
      %v755 = vadd.f32 %v543, %v729
      %v756 = vadd.f32 %v544, %v730
      %v757 = vadd.f32 %v545, %v731
      %v758 = vadd.f32 %v546, %v732
      %v759 = vadd.f32 %v547, %v733
      %v760 = vadd.f32 %v548, %v734
      %v761 = vadd.f32 %v549, %v735
      %v762 = vadd.f32 %v550, %v736
      %v763 = vld [vmem:[%s273 + $0x2] sm:$0xff]
      %v764 = vld [vmem:[%s273 + $0xa] sm:$0xff]
      %v765 = vld [vmem:[%s273 + $0x12] sm:$0xff]
      %v766 = vld [vmem:[%s273 + $0x1a] sm:$0xff]
      %v767 = vld [vmem:[%s273 + $0x22] sm:$0xff]
      %v768 = vld [vmem:[%s273 + $0x2a] sm:$0xff]
      %v769 = vld [vmem:[%s273 + $0x32] sm:$0xff]
      %v770 = vld [vmem:[%s273 + $0x3a] sm:$0xff]
      %v771 = vld [vmem:[%s273 + $0x42] sm:$0xff]
      %v772 = vld [vmem:[%s273 + $0x4a] sm:$0xff]
      %v773 = vld [vmem:[%s273 + $0x52] sm:$0xff]
      %v774 = vld [vmem:[%s273 + $0x5a] sm:$0xff]
      %v775 = vld [vmem:[%s273 + $0x62] sm:$0xff]
      %v776 = vld [vmem:[%s273 + $0x6a] sm:$0xff]
      %v777 = vld [vmem:[%s273 + $0x72] sm:$0xff]
      %v778 = vld [vmem:[%s273 + $0x7a] sm:$0xff]
      %v779 = vld [vmem:[%s273 + $0x82] sm:$0xff]
      %v780 = vld [vmem:[%s273 + $0x8a] sm:$0xff]
      %v781 = vld [vmem:[%s273 + $0x92] sm:$0xff]
      %v782 = vld [vmem:[%s273 + $0x9a] sm:$0xff]
      %v783 = vld [vmem:[%s273 + $0xa2] sm:$0xff]
      %v784 = vld [vmem:[%s273 + $0xaa] sm:$0xff]
      %v785 = vld [vmem:[%s273 + $0xb2] sm:$0xff]
      %v786 = vld [vmem:[%s273 + $0xba] sm:$0xff]
      %v787 = vld [vmem:[%s273 + $0xc2] sm:$0xff]
      %v788 = vld [vmem:[%s273 + $0xca] sm:$0xff]
      %790 = vset.pattern.permute.xlu0 0
      %791 = vperm.xlu0 %790, %v763
      %v792 = vpop.permute.xlu0 %791
      %795 = vset.pattern.permute.xlu0 0
      %796 = vperm.xlu0 %795, %v764
      %v797 = vpop.permute.xlu0 %796
      %800 = vset.pattern.permute.xlu0 0
      %801 = vperm.xlu0 %800, %v765
      %v802 = vpop.permute.xlu0 %801
      %805 = vset.pattern.permute.xlu0 0
      %806 = vperm.xlu0 %805, %v766
      %v807 = vpop.permute.xlu0 %806
      %810 = vset.pattern.permute.xlu0 0
      %811 = vperm.xlu0 %810, %v767
      %v812 = vpop.permute.xlu0 %811
      %815 = vset.pattern.permute.xlu0 0
      %816 = vperm.xlu0 %815, %v768
      %v817 = vpop.permute.xlu0 %816
      %820 = vset.pattern.permute.xlu0 0
      %821 = vperm.xlu0 %820, %v769
      %v822 = vpop.permute.xlu0 %821
      %825 = vset.pattern.permute.xlu0 0
      %826 = vperm.xlu0 %825, %v770
      %v827 = vpop.permute.xlu0 %826
      %830 = vset.pattern.permute.xlu0 0
      %831 = vperm.xlu0 %830, %v771
      %v832 = vpop.permute.xlu0 %831
      %835 = vset.pattern.permute.xlu0 0
      %836 = vperm.xlu0 %835, %v772
      %v837 = vpop.permute.xlu0 %836
      %840 = vset.pattern.permute.xlu0 0
      %841 = vperm.xlu0 %840, %v773
      %v842 = vpop.permute.xlu0 %841
      %845 = vset.pattern.permute.xlu0 0
      %846 = vperm.xlu0 %845, %v774
      %v847 = vpop.permute.xlu0 %846
      %850 = vset.pattern.permute.xlu0 0
      %851 = vperm.xlu0 %850, %v775
      %v852 = vpop.permute.xlu0 %851
      %855 = vset.pattern.permute.xlu0 0
      %856 = vperm.xlu0 %855, %v776
      %v857 = vpop.permute.xlu0 %856
      %860 = vset.pattern.permute.xlu0 0
      %861 = vperm.xlu0 %860, %v777
      %v862 = vpop.permute.xlu0 %861
      %865 = vset.pattern.permute.xlu0 0
      %866 = vperm.xlu0 %865, %v778
      %v867 = vpop.permute.xlu0 %866
      %870 = vset.pattern.permute.xlu0 0
      %871 = vperm.xlu0 %870, %v779
      %v872 = vpop.permute.xlu0 %871
      %875 = vset.pattern.permute.xlu0 0
      %876 = vperm.xlu0 %875, %v780
      %v877 = vpop.permute.xlu0 %876
      %880 = vset.pattern.permute.xlu0 0
      %881 = vperm.xlu0 %880, %v781
      %v882 = vpop.permute.xlu0 %881
      %885 = vset.pattern.permute.xlu0 0
      %886 = vperm.xlu0 %885, %v782
      %v887 = vpop.permute.xlu0 %886
      %890 = vset.pattern.permute.xlu0 0
      %891 = vperm.xlu0 %890, %v783
      %v892 = vpop.permute.xlu0 %891
      %895 = vset.pattern.permute.xlu0 0
      %896 = vperm.xlu0 %895, %v784
      %v897 = vpop.permute.xlu0 %896
      %900 = vset.pattern.permute.xlu0 0
      %901 = vperm.xlu0 %900, %v785
      %v902 = vpop.permute.xlu0 %901
      %905 = vset.pattern.permute.xlu0 0
      %906 = vperm.xlu0 %905, %v786
      %v907 = vpop.permute.xlu0 %906
      %910 = vset.pattern.permute.xlu0 0
      %911 = vperm.xlu0 %910, %v787
      %v912 = vpop.permute.xlu0 %911
      %915 = vset.pattern.permute.xlu0 0
      %916 = vperm.xlu0 %915, %v788
      %v917 = vpop.permute.xlu0 %916
      %v919 = vlaneseq
      %v920 = vshrl.u32 %v919, 7
      %v921 = vsub.s32 2, %v920
      %v922 = vrot.slane %v331, %v921
      %v923 = vmul.f32 %v792, %v922
      %v924 = vmul.f32 %v797, %v922
      %v925 = vmul.f32 %v802, %v922
      %v926 = vmul.f32 %v807, %v922
      %v927 = vmul.f32 %v812, %v922
      %v928 = vmul.f32 %v817, %v922
      %v929 = vmul.f32 %v822, %v922
      %v930 = vmul.f32 %v827, %v922
      %v931 = vmul.f32 %v832, %v922
      %v932 = vmul.f32 %v837, %v922
      %v933 = vmul.f32 %v842, %v922
      %v934 = vmul.f32 %v847, %v922
      %v935 = vmul.f32 %v852, %v922
      %v936 = vmul.f32 %v857, %v922
      %v937 = vmul.f32 %v862, %v922
      %v938 = vmul.f32 %v867, %v922
      %v939 = vmul.f32 %v872, %v922
      %v940 = vmul.f32 %v877, %v922
      %v941 = vmul.f32 %v882, %v922
      %v942 = vmul.f32 %v887, %v922
      %v943 = vmul.f32 %v892, %v922
      %v944 = vmul.f32 %v897, %v922
      %v945 = vmul.f32 %v902, %v922
      %v946 = vmul.f32 %v907, %v922
      %v947 = vmul.f32 %v912, %v922
      %v948 = vmul.f32 %v917, %v922
      %v949 = vadd.f32 %v737, %v923
      %v950 = vadd.f32 %v738, %v924
      %v951 = vadd.f32 %v739, %v925
      %v952 = vadd.f32 %v740, %v926
      %v953 = vadd.f32 %v741, %v927
      %v954 = vadd.f32 %v742, %v928
      %v955 = vadd.f32 %v743, %v929
      %v956 = vadd.f32 %v744, %v930
      %v957 = vadd.f32 %v745, %v931
      %v958 = vadd.f32 %v746, %v932
      %v959 = vadd.f32 %v747, %v933
      %v960 = vadd.f32 %v748, %v934
      %v961 = vadd.f32 %v749, %v935
      %v962 = vadd.f32 %v750, %v936
      %v963 = vadd.f32 %v751, %v937
      %v964 = vadd.f32 %v752, %v938
      %v965 = vadd.f32 %v753, %v939
      %v966 = vadd.f32 %v754, %v940
      %v967 = vadd.f32 %v755, %v941
      %v968 = vadd.f32 %v756, %v942
      %v969 = vadd.f32 %v757, %v943
      %v970 = vadd.f32 %v758, %v944
      %v971 = vadd.f32 %v759, %v945
      %v972 = vadd.f32 %v760, %v946
      %v973 = vadd.f32 %v761, %v947
      %v974 = vadd.f32 %v762, %v948
      %v975 = vld [vmem:[%s273 + $0x1e] sm:$0xff]
      %v976 = vld [vmem:[%s273 + $0x26] sm:$0xff]
      %v977 = vld [vmem:[%s273 + $0x2e] sm:$0xff]
      %v978 = vld [vmem:[%s273 + $0x36] sm:$0xff]
      %v979 = vld [vmem:[%s273 + $0x3e] sm:$0xff]
      %v980 = vld [vmem:[%s273 + $0x46] sm:$0xff]
      %v981 = vld [vmem:[%s273 + $0x4e] sm:$0xff]
      %v982 = vld [vmem:[%s273 + $0x56] sm:$0xff]
      %v983 = vld [vmem:[%s273 + $0x5e] sm:$0xff]
      %v984 = vld [vmem:[%s273 + $0x66] sm:$0xff]
      %v985 = vld [vmem:[%s273 + $0x6e] sm:$0xff]
      %v986 = vld [vmem:[%s273 + $0x76] sm:$0xff]
      %v987 = vld [vmem:[%s273 + $0x7e] sm:$0xff]
      %v988 = vld [vmem:[%s273 + $0x86] sm:$0xff]
      %v989 = vld [vmem:[%s273 + $0x8e] sm:$0xff]
      %v990 = vld [vmem:[%s273 + $0x96] sm:$0xff]
      %v991 = vld [vmem:[%s273 + $0x9e] sm:$0xff]
      %v992 = vld [vmem:[%s273 + $0xa6] sm:$0xff]
      %v993 = vld [vmem:[%s273 + $0xae] sm:$0xff]
      %v994 = vld [vmem:[%s273 + $0xb6] sm:$0xff]
      %v995 = vld [vmem:[%s273 + $0xbe] sm:$0xff]
      %v996 = vld [vmem:[%s273 + $0xc6] sm:$0xff]
      %v997 = vld [vmem:[%s273 + $0xce] sm:$0xff]
      %v998 = vld [vmem:[%s273 + $0xd6] sm:$0xff]
      %v999 = vld [vmem:[%s273 + $0xde] sm:$0xff]
      %v1000 = vld [vmem:[%s273 + $0xe6] sm:$0xff]
      %1002 = vset.pattern.permute.xlu0 0
      %1003 = vperm.xlu0 %1002, %v975
      %v1004 = vpop.permute.xlu0 %1003
      %1007 = vset.pattern.permute.xlu0 0
      %1008 = vperm.xlu0 %1007, %v976
      %v1009 = vpop.permute.xlu0 %1008
      %1012 = vset.pattern.permute.xlu0 0
      %1013 = vperm.xlu0 %1012, %v977
      %v1014 = vpop.permute.xlu0 %1013
      %1017 = vset.pattern.permute.xlu0 0
      %1018 = vperm.xlu0 %1017, %v978
      %v1019 = vpop.permute.xlu0 %1018
      %1022 = vset.pattern.permute.xlu0 0
      %1023 = vperm.xlu0 %1022, %v979
      %v1024 = vpop.permute.xlu0 %1023
      %1027 = vset.pattern.permute.xlu0 0
      %1028 = vperm.xlu0 %1027, %v980
      %v1029 = vpop.permute.xlu0 %1028
      %1032 = vset.pattern.permute.xlu0 0
      %1033 = vperm.xlu0 %1032, %v981
      %v1034 = vpop.permute.xlu0 %1033
      %1037 = vset.pattern.permute.xlu0 0
      %1038 = vperm.xlu0 %1037, %v982
      %v1039 = vpop.permute.xlu0 %1038
      %1042 = vset.pattern.permute.xlu0 0
      %1043 = vperm.xlu0 %1042, %v983
      %v1044 = vpop.permute.xlu0 %1043
      %1047 = vset.pattern.permute.xlu0 0
      %1048 = vperm.xlu0 %1047, %v984
      %v1049 = vpop.permute.xlu0 %1048
      %1052 = vset.pattern.permute.xlu0 0
      %1053 = vperm.xlu0 %1052, %v985
      %v1054 = vpop.permute.xlu0 %1053
      %1057 = vset.pattern.permute.xlu0 0
      %1058 = vperm.xlu0 %1057, %v986
      %v1059 = vpop.permute.xlu0 %1058
      %1062 = vset.pattern.permute.xlu0 0
      %1063 = vperm.xlu0 %1062, %v987
      %v1064 = vpop.permute.xlu0 %1063
      %1067 = vset.pattern.permute.xlu0 0
      %1068 = vperm.xlu0 %1067, %v988
      %v1069 = vpop.permute.xlu0 %1068
      %1072 = vset.pattern.permute.xlu0 0
      %1073 = vperm.xlu0 %1072, %v989
      %v1074 = vpop.permute.xlu0 %1073
      %1077 = vset.pattern.permute.xlu0 0
      %1078 = vperm.xlu0 %1077, %v990
      %v1079 = vpop.permute.xlu0 %1078
      %1082 = vset.pattern.permute.xlu0 0
      %1083 = vperm.xlu0 %1082, %v991
      %v1084 = vpop.permute.xlu0 %1083
      %1087 = vset.pattern.permute.xlu0 0
      %1088 = vperm.xlu0 %1087, %v992
      %v1089 = vpop.permute.xlu0 %1088
      %1092 = vset.pattern.permute.xlu0 0
      %1093 = vperm.xlu0 %1092, %v993
      %v1094 = vpop.permute.xlu0 %1093
      %1097 = vset.pattern.permute.xlu0 0
      %1098 = vperm.xlu0 %1097, %v994
      %v1099 = vpop.permute.xlu0 %1098
      %1102 = vset.pattern.permute.xlu0 0
      %1103 = vperm.xlu0 %1102, %v995
      %v1104 = vpop.permute.xlu0 %1103
      %1107 = vset.pattern.permute.xlu0 0
      %1108 = vperm.xlu0 %1107, %v996
      %v1109 = vpop.permute.xlu0 %1108
      %1112 = vset.pattern.permute.xlu0 0
      %1113 = vperm.xlu0 %1112, %v997
      %v1114 = vpop.permute.xlu0 %1113
      %1117 = vset.pattern.permute.xlu0 0
      %1118 = vperm.xlu0 %1117, %v998
      %v1119 = vpop.permute.xlu0 %1118
      %1122 = vset.pattern.permute.xlu0 0
      %1123 = vperm.xlu0 %1122, %v999
      %v1124 = vpop.permute.xlu0 %1123
      %1127 = vset.pattern.permute.xlu0 0
      %1128 = vperm.xlu0 %1127, %v1000
      %v1129 = vpop.permute.xlu0 %1128
      %v1131 = vlaneseq
      %v1132 = vshrl.u32 %v1131, 7
      %v1133 = vsub.s32 3, %v1132
      %v1134 = vrot.slane %v331, %v1133
      %v1135 = vmul.f32 %v1004, %v1134
      %v1136 = vmul.f32 %v1009, %v1134
      %v1137 = vmul.f32 %v1014, %v1134
      %v1138 = vmul.f32 %v1019, %v1134
      %v1139 = vmul.f32 %v1024, %v1134
      %v1140 = vmul.f32 %v1029, %v1134
      %v1141 = vmul.f32 %v1034, %v1134
      %v1142 = vmul.f32 %v1039, %v1134
      %v1143 = vmul.f32 %v1044, %v1134
      %v1144 = vmul.f32 %v1049, %v1134
      %v1145 = vmul.f32 %v1054, %v1134
      %v1146 = vmul.f32 %v1059, %v1134
      %v1147 = vmul.f32 %v1064, %v1134
      %v1148 = vmul.f32 %v1069, %v1134
      %v1149 = vmul.f32 %v1074, %v1134
      %v1150 = vmul.f32 %v1079, %v1134
      %v1151 = vmul.f32 %v1084, %v1134
      %v1152 = vmul.f32 %v1089, %v1134
      %v1153 = vmul.f32 %v1094, %v1134
      %v1154 = vmul.f32 %v1099, %v1134
      %v1155 = vmul.f32 %v1104, %v1134
      %v1156 = vmul.f32 %v1109, %v1134
      %v1157 = vmul.f32 %v1114, %v1134
      %v1158 = vmul.f32 %v1119, %v1134
      %v1159 = vmul.f32 %v1124, %v1134
      %v1160 = vmul.f32 %v1129, %v1134
      %v1161 = vadd.f32 %v949, %v1135
      %v1162 = vadd.f32 %v950, %v1136
      %v1163 = vadd.f32 %v951, %v1137
      %v1164 = vadd.f32 %v952, %v1138
      %v1165 = vadd.f32 %v953, %v1139
      %v1166 = vadd.f32 %v954, %v1140
      %v1167 = vadd.f32 %v955, %v1141
      %v1168 = vadd.f32 %v956, %v1142
      %v1169 = vadd.f32 %v957, %v1143
      %v1170 = vadd.f32 %v958, %v1144
      %v1171 = vadd.f32 %v959, %v1145
      %v1172 = vadd.f32 %v960, %v1146
      %v1173 = vadd.f32 %v961, %v1147
      %v1174 = vadd.f32 %v962, %v1148
      %v1175 = vadd.f32 %v963, %v1149
      %v1176 = vadd.f32 %v964, %v1150
      %v1177 = vadd.f32 %v965, %v1151
      %v1178 = vadd.f32 %v966, %v1152
      %v1179 = vadd.f32 %v967, %v1153
      %v1180 = vadd.f32 %v968, %v1154
      %v1181 = vadd.f32 %v969, %v1155
      %v1182 = vadd.f32 %v970, %v1156
      %v1183 = vadd.f32 %v971, %v1157
      %v1184 = vadd.f32 %v972, %v1158
      %v1185 = vadd.f32 %v973, %v1159
      %v1186 = vadd.f32 %v974, %v1160
      %v1187 = vld [vmem:[%s273 + $0x1f] sm:$0xff]
      %v1188 = vld [vmem:[%s273 + $0x27] sm:$0xff]
      %v1189 = vld [vmem:[%s273 + $0x2f] sm:$0xff]
      %v1190 = vld [vmem:[%s273 + $0x37] sm:$0xff]
      %v1191 = vld [vmem:[%s273 + $0x3f] sm:$0xff]
      %v1192 = vld [vmem:[%s273 + $0x47] sm:$0xff]
      %v1193 = vld [vmem:[%s273 + $0x4f] sm:$0xff]
      %v1194 = vld [vmem:[%s273 + $0x57] sm:$0xff]
      %v1195 = vld [vmem:[%s273 + $0x5f] sm:$0xff]
      %v1196 = vld [vmem:[%s273 + $0x67] sm:$0xff]
      %v1197 = vld [vmem:[%s273 + $0x6f] sm:$0xff]
      %v1198 = vld [vmem:[%s273 + $0x77] sm:$0xff]
      %v1199 = vld [vmem:[%s273 + $0x7f] sm:$0xff]
      %v1200 = vld [vmem:[%s273 + $0x87] sm:$0xff]
      %v1201 = vld [vmem:[%s273 + $0x8f] sm:$0xff]
      %v1202 = vld [vmem:[%s273 + $0x97] sm:$0xff]
      %v1203 = vld [vmem:[%s273 + $0x9f] sm:$0xff]
      %v1204 = vld [vmem:[%s273 + $0xa7] sm:$0xff]
      %v1205 = vld [vmem:[%s273 + $0xaf] sm:$0xff]
      %v1206 = vld [vmem:[%s273 + $0xb7] sm:$0xff]
      %v1207 = vld [vmem:[%s273 + $0xbf] sm:$0xff]
      %v1208 = vld [vmem:[%s273 + $0xc7] sm:$0xff]
      %v1209 = vld [vmem:[%s273 + $0xcf] sm:$0xff]
      %v1210 = vld [vmem:[%s273 + $0xd7] sm:$0xff]
      %v1211 = vld [vmem:[%s273 + $0xdf] sm:$0xff]
      %v1212 = vld [vmem:[%s273 + $0xe7] sm:$0xff]
      %1214 = vset.pattern.permute.xlu0 0
      %1215 = vperm.xlu0 %1214, %v1187
      %v1216 = vpop.permute.xlu0 %1215
      %1219 = vset.pattern.permute.xlu0 0
      %1220 = vperm.xlu0 %1219, %v1188
      %v1221 = vpop.permute.xlu0 %1220
      %1224 = vset.pattern.permute.xlu0 0
      %1225 = vperm.xlu0 %1224, %v1189
      %v1226 = vpop.permute.xlu0 %1225
      %1229 = vset.pattern.permute.xlu0 0
      %1230 = vperm.xlu0 %1229, %v1190
      %v1231 = vpop.permute.xlu0 %1230
      %1234 = vset.pattern.permute.xlu0 0
      %1235 = vperm.xlu0 %1234, %v1191
      %v1236 = vpop.permute.xlu0 %1235
      %1239 = vset.pattern.permute.xlu0 0
      %1240 = vperm.xlu0 %1239, %v1192
      %v1241 = vpop.permute.xlu0 %1240
      %1244 = vset.pattern.permute.xlu0 0
      %1245 = vperm.xlu0 %1244, %v1193
      %v1246 = vpop.permute.xlu0 %1245
      %1249 = vset.pattern.permute.xlu0 0
      %1250 = vperm.xlu0 %1249, %v1194
      %v1251 = vpop.permute.xlu0 %1250
      %1254 = vset.pattern.permute.xlu0 0
      %1255 = vperm.xlu0 %1254, %v1195
      %v1256 = vpop.permute.xlu0 %1255
      %1259 = vset.pattern.permute.xlu0 0
      %1260 = vperm.xlu0 %1259, %v1196
      %v1261 = vpop.permute.xlu0 %1260
      %1264 = vset.pattern.permute.xlu0 0
      %1265 = vperm.xlu0 %1264, %v1197
      %v1266 = vpop.permute.xlu0 %1265
      %1269 = vset.pattern.permute.xlu0 0
      %1270 = vperm.xlu0 %1269, %v1198
      %v1271 = vpop.permute.xlu0 %1270
      %1274 = vset.pattern.permute.xlu0 0
      %1275 = vperm.xlu0 %1274, %v1199
      %v1276 = vpop.permute.xlu0 %1275
      %1279 = vset.pattern.permute.xlu0 0
      %1280 = vperm.xlu0 %1279, %v1200
      %v1281 = vpop.permute.xlu0 %1280
      %1284 = vset.pattern.permute.xlu0 0
      %1285 = vperm.xlu0 %1284, %v1201
      %v1286 = vpop.permute.xlu0 %1285
      %1289 = vset.pattern.permute.xlu0 0
      %1290 = vperm.xlu0 %1289, %v1202
      %v1291 = vpop.permute.xlu0 %1290
      %1294 = vset.pattern.permute.xlu0 0
      %1295 = vperm.xlu0 %1294, %v1203
      %v1296 = vpop.permute.xlu0 %1295
      %1299 = vset.pattern.permute.xlu0 0
      %1300 = vperm.xlu0 %1299, %v1204
      %v1301 = vpop.permute.xlu0 %1300
      %1304 = vset.pattern.permute.xlu0 0
      %1305 = vperm.xlu0 %1304, %v1205
      %v1306 = vpop.permute.xlu0 %1305
      %1309 = vset.pattern.permute.xlu0 0
      %1310 = vperm.xlu0 %1309, %v1206
      %v1311 = vpop.permute.xlu0 %1310
      %1314 = vset.pattern.permute.xlu0 0
      %1315 = vperm.xlu0 %1314, %v1207
      %v1316 = vpop.permute.xlu0 %1315
      %1319 = vset.pattern.permute.xlu0 0
      %1320 = vperm.xlu0 %1319, %v1208
      %v1321 = vpop.permute.xlu0 %1320
      %1324 = vset.pattern.permute.xlu0 0
      %1325 = vperm.xlu0 %1324, %v1209
      %v1326 = vpop.permute.xlu0 %1325
      %1329 = vset.pattern.permute.xlu0 0
      %1330 = vperm.xlu0 %1329, %v1210
      %v1331 = vpop.permute.xlu0 %1330
      %1334 = vset.pattern.permute.xlu0 0
      %1335 = vperm.xlu0 %1334, %v1211
      %v1336 = vpop.permute.xlu0 %1335
      %1339 = vset.pattern.permute.xlu0 0
      %1340 = vperm.xlu0 %1339, %v1212
      %v1341 = vpop.permute.xlu0 %1340
      %v1343 = vlaneseq
      %v1344 = vshrl.u32 %v1343, 7
      %v1345 = vsub.s32 4, %v1344
      %v1346 = vrot.slane %v331, %v1345
      %v1347 = vmul.f32 %v1216, %v1346
      %v1348 = vmul.f32 %v1221, %v1346
      %v1349 = vmul.f32 %v1226, %v1346
      %v1350 = vmul.f32 %v1231, %v1346
      %v1351 = vmul.f32 %v1236, %v1346
      %v1352 = vmul.f32 %v1241, %v1346
      %v1353 = vmul.f32 %v1246, %v1346
      %v1354 = vmul.f32 %v1251, %v1346
      %v1355 = vmul.f32 %v1256, %v1346
      %v1356 = vmul.f32 %v1261, %v1346
      %v1357 = vmul.f32 %v1266, %v1346
      %v1358 = vmul.f32 %v1271, %v1346
      %v1359 = vmul.f32 %v1276, %v1346
      %v1360 = vmul.f32 %v1281, %v1346
      %v1361 = vmul.f32 %v1286, %v1346
      %v1362 = vmul.f32 %v1291, %v1346
      %v1363 = vmul.f32 %v1296, %v1346
      %v1364 = vmul.f32 %v1301, %v1346
      %v1365 = vmul.f32 %v1306, %v1346
      %v1366 = vmul.f32 %v1311, %v1346
      %v1367 = vmul.f32 %v1316, %v1346
      %v1368 = vmul.f32 %v1321, %v1346
      %v1369 = vmul.f32 %v1326, %v1346
      %v1370 = vmul.f32 %v1331, %v1346
      %v1371 = vmul.f32 %v1336, %v1346
      %v1372 = vmul.f32 %v1341, %v1346
      %v1373 = vadd.f32 %v1161, %v1347
      %v1374 = vadd.f32 %v1162, %v1348
      %v1375 = vadd.f32 %v1163, %v1349
      %v1376 = vadd.f32 %v1164, %v1350
      %v1377 = vadd.f32 %v1165, %v1351
      %v1378 = vadd.f32 %v1166, %v1352
      %v1379 = vadd.f32 %v1167, %v1353
      %v1380 = vadd.f32 %v1168, %v1354
      %v1381 = vadd.f32 %v1169, %v1355
      %v1382 = vadd.f32 %v1170, %v1356
      %v1383 = vadd.f32 %v1171, %v1357
      %v1384 = vadd.f32 %v1172, %v1358
      %v1385 = vadd.f32 %v1173, %v1359
      %v1386 = vadd.f32 %v1174, %v1360
      %v1387 = vadd.f32 %v1175, %v1361
      %v1388 = vadd.f32 %v1176, %v1362
      %v1389 = vadd.f32 %v1177, %v1363
      %v1390 = vadd.f32 %v1178, %v1364
      %v1391 = vadd.f32 %v1179, %v1365
      %v1392 = vadd.f32 %v1180, %v1366
      %v1393 = vadd.f32 %v1181, %v1367
      %v1394 = vadd.f32 %v1182, %v1368
      %v1395 = vadd.f32 %v1183, %v1369
      %v1396 = vadd.f32 %v1184, %v1370
      %v1397 = vadd.f32 %v1185, %v1371
      %v1398 = vadd.f32 %v1186, %v1372
      %v1399 = vld [vmem:[%s273 + $0x20] sm:$0xff]
      %v1400 = vld [vmem:[%s273 + $0x28] sm:$0xff]
      %v1401 = vld [vmem:[%s273 + $0x30] sm:$0xff]
      %v1402 = vld [vmem:[%s273 + $0x38] sm:$0xff]
      %v1403 = vld [vmem:[%s273 + $0x40] sm:$0xff]
      %v1404 = vld [vmem:[%s273 + $0x48] sm:$0xff]
      %v1405 = vld [vmem:[%s273 + $0x50] sm:$0xff]
      %v1406 = vld [vmem:[%s273 + $0x58] sm:$0xff]
      %v1407 = vld [vmem:[%s273 + $0x60] sm:$0xff]
      %v1408 = vld [vmem:[%s273 + $0x68] sm:$0xff]
      %v1409 = vld [vmem:[%s273 + $0x70] sm:$0xff]
      %v1410 = vld [vmem:[%s273 + $0x78] sm:$0xff]
      %v1411 = vld [vmem:[%s273 + $0x80] sm:$0xff]
      %v1412 = vld [vmem:[%s273 + $0x88] sm:$0xff]
      %v1413 = vld [vmem:[%s273 + $0x90] sm:$0xff]
      %v1414 = vld [vmem:[%s273 + $0x98] sm:$0xff]
      %v1415 = vld [vmem:[%s273 + $0xa0] sm:$0xff]
      %v1416 = vld [vmem:[%s273 + $0xa8] sm:$0xff]
      %v1417 = vld [vmem:[%s273 + $0xb0] sm:$0xff]
      %v1418 = vld [vmem:[%s273 + $0xb8] sm:$0xff]
      %v1419 = vld [vmem:[%s273 + $0xc0] sm:$0xff]
      %v1420 = vld [vmem:[%s273 + $0xc8] sm:$0xff]
      %v1421 = vld [vmem:[%s273 + $0xd0] sm:$0xff]
      %v1422 = vld [vmem:[%s273 + $0xd8] sm:$0xff]
      %v1423 = vld [vmem:[%s273 + $0xe0] sm:$0xff]
      %v1424 = vld [vmem:[%s273 + $0xe8] sm:$0xff]
      %1426 = vset.pattern.permute.xlu0 0
      %1427 = vperm.xlu0 %1426, %v1399
      %v1428 = vpop.permute.xlu0 %1427
      %1431 = vset.pattern.permute.xlu0 0
      %1432 = vperm.xlu0 %1431, %v1400
      %v1433 = vpop.permute.xlu0 %1432
      %1436 = vset.pattern.permute.xlu0 0
      %1437 = vperm.xlu0 %1436, %v1401
      %v1438 = vpop.permute.xlu0 %1437
      %1441 = vset.pattern.permute.xlu0 0
      %1442 = vperm.xlu0 %1441, %v1402
      %v1443 = vpop.permute.xlu0 %1442
      %1446 = vset.pattern.permute.xlu0 0
      %1447 = vperm.xlu0 %1446, %v1403
      %v1448 = vpop.permute.xlu0 %1447
      %1451 = vset.pattern.permute.xlu0 0
      %1452 = vperm.xlu0 %1451, %v1404
      %v1453 = vpop.permute.xlu0 %1452
      %1456 = vset.pattern.permute.xlu0 0
      %1457 = vperm.xlu0 %1456, %v1405
      %v1458 = vpop.permute.xlu0 %1457
      %1461 = vset.pattern.permute.xlu0 0
      %1462 = vperm.xlu0 %1461, %v1406
      %v1463 = vpop.permute.xlu0 %1462
      %1466 = vset.pattern.permute.xlu0 0
      %1467 = vperm.xlu0 %1466, %v1407
      %v1468 = vpop.permute.xlu0 %1467
      %1471 = vset.pattern.permute.xlu0 0
      %1472 = vperm.xlu0 %1471, %v1408
      %v1473 = vpop.permute.xlu0 %1472
      %1476 = vset.pattern.permute.xlu0 0
      %1477 = vperm.xlu0 %1476, %v1409
      %v1478 = vpop.permute.xlu0 %1477
      %1481 = vset.pattern.permute.xlu0 0
      %1482 = vperm.xlu0 %1481, %v1410
      %v1483 = vpop.permute.xlu0 %1482
      %1486 = vset.pattern.permute.xlu0 0
      %1487 = vperm.xlu0 %1486, %v1411
      %v1488 = vpop.permute.xlu0 %1487
      %1491 = vset.pattern.permute.xlu0 0
      %1492 = vperm.xlu0 %1491, %v1412
      %v1493 = vpop.permute.xlu0 %1492
      %1496 = vset.pattern.permute.xlu0 0
      %1497 = vperm.xlu0 %1496, %v1413
      %v1498 = vpop.permute.xlu0 %1497
      %1501 = vset.pattern.permute.xlu0 0
      %1502 = vperm.xlu0 %1501, %v1414
      %v1503 = vpop.permute.xlu0 %1502
      %1506 = vset.pattern.permute.xlu0 0
      %1507 = vperm.xlu0 %1506, %v1415
      %v1508 = vpop.permute.xlu0 %1507
      %1511 = vset.pattern.permute.xlu0 0
      %1512 = vperm.xlu0 %1511, %v1416
      %v1513 = vpop.permute.xlu0 %1512
      %1516 = vset.pattern.permute.xlu0 0
      %1517 = vperm.xlu0 %1516, %v1417
      %v1518 = vpop.permute.xlu0 %1517
      %1521 = vset.pattern.permute.xlu0 0
      %1522 = vperm.xlu0 %1521, %v1418
      %v1523 = vpop.permute.xlu0 %1522
      %1526 = vset.pattern.permute.xlu0 0
      %1527 = vperm.xlu0 %1526, %v1419
      %v1528 = vpop.permute.xlu0 %1527
      %1531 = vset.pattern.permute.xlu0 0
      %1532 = vperm.xlu0 %1531, %v1420
      %v1533 = vpop.permute.xlu0 %1532
      %1536 = vset.pattern.permute.xlu0 0
      %1537 = vperm.xlu0 %1536, %v1421
      %v1538 = vpop.permute.xlu0 %1537
      %1541 = vset.pattern.permute.xlu0 0
      %1542 = vperm.xlu0 %1541, %v1422
      %v1543 = vpop.permute.xlu0 %1542
      %1546 = vset.pattern.permute.xlu0 0
      %1547 = vperm.xlu0 %1546, %v1423
      %v1548 = vpop.permute.xlu0 %1547
      %1551 = vset.pattern.permute.xlu0 0
      %1552 = vperm.xlu0 %1551, %v1424
      %v1553 = vpop.permute.xlu0 %1552
      %v1555 = vlaneseq
      %v1556 = vshrl.u32 %v1555, 7
      %v1557 = vsub.s32 5, %v1556
      %v1558 = vrot.slane %v331, %v1557
      %v1559 = vmul.f32 %v1428, %v1558
      %v1560 = vmul.f32 %v1433, %v1558
      %v1561 = vmul.f32 %v1438, %v1558
      %v1562 = vmul.f32 %v1443, %v1558
      %v1563 = vmul.f32 %v1448, %v1558
      %v1564 = vmul.f32 %v1453, %v1558
      %v1565 = vmul.f32 %v1458, %v1558
      %v1566 = vmul.f32 %v1463, %v1558
      %v1567 = vmul.f32 %v1468, %v1558
      %v1568 = vmul.f32 %v1473, %v1558
      %v1569 = vmul.f32 %v1478, %v1558
      %v1570 = vmul.f32 %v1483, %v1558
      %v1571 = vmul.f32 %v1488, %v1558
      %v1572 = vmul.f32 %v1493, %v1558
      %v1573 = vmul.f32 %v1498, %v1558
      %v1574 = vmul.f32 %v1503, %v1558
      %v1575 = vmul.f32 %v1508, %v1558
      %v1576 = vmul.f32 %v1513, %v1558
      %v1577 = vmul.f32 %v1518, %v1558
      %v1578 = vmul.f32 %v1523, %v1558
      %v1579 = vmul.f32 %v1528, %v1558
      %v1580 = vmul.f32 %v1533, %v1558
      %v1581 = vmul.f32 %v1538, %v1558
      %v1582 = vmul.f32 %v1543, %v1558
      %v1583 = vmul.f32 %v1548, %v1558
      %v1584 = vmul.f32 %v1553, %v1558
      %v1585 = vadd.f32 %v1373, %v1559
      %v1586 = vadd.f32 %v1374, %v1560
      %v1587 = vadd.f32 %v1375, %v1561
      %v1588 = vadd.f32 %v1376, %v1562
      %v1589 = vadd.f32 %v1377, %v1563
      %v1590 = vadd.f32 %v1378, %v1564
      %v1591 = vadd.f32 %v1379, %v1565
      %v1592 = vadd.f32 %v1380, %v1566
      %v1593 = vadd.f32 %v1381, %v1567
      %v1594 = vadd.f32 %v1382, %v1568
      %v1595 = vadd.f32 %v1383, %v1569
      %v1596 = vadd.f32 %v1384, %v1570
      %v1597 = vadd.f32 %v1385, %v1571
      %v1598 = vadd.f32 %v1386, %v1572
      %v1599 = vadd.f32 %v1387, %v1573
      %v1600 = vadd.f32 %v1388, %v1574
      %v1601 = vadd.f32 %v1389, %v1575
      %v1602 = vadd.f32 %v1390, %v1576
      %v1603 = vadd.f32 %v1391, %v1577
      %v1604 = vadd.f32 %v1392, %v1578
      %v1605 = vadd.f32 %v1393, %v1579
      %v1606 = vadd.f32 %v1394, %v1580
      %v1607 = vadd.f32 %v1395, %v1581
      %v1608 = vadd.f32 %v1396, %v1582
      %v1609 = vadd.f32 %v1397, %v1583
      %v1610 = vadd.f32 %v1398, %v1584
      %v1611 = vld [vmem:[%s273 + $0x3c] sm:$0xff]
      %v1612 = vld [vmem:[%s273 + $0x44] sm:$0xff]
      %v1613 = vld [vmem:[%s273 + $0x4c] sm:$0xff]
      %v1614 = vld [vmem:[%s273 + $0x54] sm:$0xff]
      %v1615 = vld [vmem:[%s273 + $0x5c] sm:$0xff]
      %v1616 = vld [vmem:[%s273 + $0x64] sm:$0xff]
      %v1617 = vld [vmem:[%s273 + $0x6c] sm:$0xff]
      %v1618 = vld [vmem:[%s273 + $0x74] sm:$0xff]
      %v1619 = vld [vmem:[%s273 + $0x7c] sm:$0xff]
      %v1620 = vld [vmem:[%s273 + $0x84] sm:$0xff]
      %v1621 = vld [vmem:[%s273 + $0x8c] sm:$0xff]
      %v1622 = vld [vmem:[%s273 + $0x94] sm:$0xff]
      %v1623 = vld [vmem:[%s273 + $0x9c] sm:$0xff]
      %v1624 = vld [vmem:[%s273 + $0xa4] sm:$0xff]
      %v1625 = vld [vmem:[%s273 + $0xac] sm:$0xff]
      %v1626 = vld [vmem:[%s273 + $0xb4] sm:$0xff]
      %v1627 = vld [vmem:[%s273 + $0xbc] sm:$0xff]
      %v1628 = vld [vmem:[%s273 + $0xc4] sm:$0xff]
      %v1629 = vld [vmem:[%s273 + $0xcc] sm:$0xff]
      %v1630 = vld [vmem:[%s273 + $0xd4] sm:$0xff]
      %v1631 = vld [vmem:[%s273 + $0xdc] sm:$0xff]
      %v1632 = vld [vmem:[%s273 + $0xe4] sm:$0xff]
      %v1633 = vld [vmem:[%s273 + $0xec] sm:$0xff]
      %v1634 = vld [vmem:[%s273 + $0xf4] sm:$0xff]
      %v1635 = vld [vmem:[%s273 + $0xfc] sm:$0xff]
      %v1636 = vld [vmem:[%s273 + $0x104] sm:$0xff]
      %1638 = vset.pattern.permute.xlu0 0
      %1639 = vperm.xlu0 %1638, %v1611
      %v1640 = vpop.permute.xlu0 %1639
      %1643 = vset.pattern.permute.xlu0 0
      %1644 = vperm.xlu0 %1643, %v1612
      %v1645 = vpop.permute.xlu0 %1644
      %1648 = vset.pattern.permute.xlu0 0
      %1649 = vperm.xlu0 %1648, %v1613
      %v1650 = vpop.permute.xlu0 %1649
      %1653 = vset.pattern.permute.xlu0 0
      %1654 = vperm.xlu0 %1653, %v1614
      %v1655 = vpop.permute.xlu0 %1654
      %1658 = vset.pattern.permute.xlu0 0
      %1659 = vperm.xlu0 %1658, %v1615
      %v1660 = vpop.permute.xlu0 %1659
      %1663 = vset.pattern.permute.xlu0 0
      %1664 = vperm.xlu0 %1663, %v1616
      %v1665 = vpop.permute.xlu0 %1664
      %1668 = vset.pattern.permute.xlu0 0
      %1669 = vperm.xlu0 %1668, %v1617
      %v1670 = vpop.permute.xlu0 %1669
      %1673 = vset.pattern.permute.xlu0 0
      %1674 = vperm.xlu0 %1673, %v1618
      %v1675 = vpop.permute.xlu0 %1674
      %1678 = vset.pattern.permute.xlu0 0
      %1679 = vperm.xlu0 %1678, %v1619
      %v1680 = vpop.permute.xlu0 %1679
      %1683 = vset.pattern.permute.xlu0 0
      %1684 = vperm.xlu0 %1683, %v1620
      %v1685 = vpop.permute.xlu0 %1684
      %1688 = vset.pattern.permute.xlu0 0
      %1689 = vperm.xlu0 %1688, %v1621
      %v1690 = vpop.permute.xlu0 %1689
      %1693 = vset.pattern.permute.xlu0 0
      %1694 = vperm.xlu0 %1693, %v1622
      %v1695 = vpop.permute.xlu0 %1694
      %1698 = vset.pattern.permute.xlu0 0
      %1699 = vperm.xlu0 %1698, %v1623
      %v1700 = vpop.permute.xlu0 %1699
      %1703 = vset.pattern.permute.xlu0 0
      %1704 = vperm.xlu0 %1703, %v1624
      %v1705 = vpop.permute.xlu0 %1704
      %1708 = vset.pattern.permute.xlu0 0
      %1709 = vperm.xlu0 %1708, %v1625
      %v1710 = vpop.permute.xlu0 %1709
      %1713 = vset.pattern.permute.xlu0 0
      %1714 = vperm.xlu0 %1713, %v1626
      %v1715 = vpop.permute.xlu0 %1714
      %1718 = vset.pattern.permute.xlu0 0
      %1719 = vperm.xlu0 %1718, %v1627
      %v1720 = vpop.permute.xlu0 %1719
      %1723 = vset.pattern.permute.xlu0 0
      %1724 = vperm.xlu0 %1723, %v1628
      %v1725 = vpop.permute.xlu0 %1724
      %1728 = vset.pattern.permute.xlu0 0
      %1729 = vperm.xlu0 %1728, %v1629
      %v1730 = vpop.permute.xlu0 %1729
      %1733 = vset.pattern.permute.xlu0 0
      %1734 = vperm.xlu0 %1733, %v1630
      %v1735 = vpop.permute.xlu0 %1734
      %1738 = vset.pattern.permute.xlu0 0
      %1739 = vperm.xlu0 %1738, %v1631
      %v1740 = vpop.permute.xlu0 %1739
      %1743 = vset.pattern.permute.xlu0 0
      %1744 = vperm.xlu0 %1743, %v1632
      %v1745 = vpop.permute.xlu0 %1744
      %1748 = vset.pattern.permute.xlu0 0
      %1749 = vperm.xlu0 %1748, %v1633
      %v1750 = vpop.permute.xlu0 %1749
      %1753 = vset.pattern.permute.xlu0 0
      %1754 = vperm.xlu0 %1753, %v1634
      %v1755 = vpop.permute.xlu0 %1754
      %1758 = vset.pattern.permute.xlu0 0
      %1759 = vperm.xlu0 %1758, %v1635
      %v1760 = vpop.permute.xlu0 %1759
      %1763 = vset.pattern.permute.xlu0 0
      %1764 = vperm.xlu0 %1763, %v1636
      %v1765 = vpop.permute.xlu0 %1764
      %v1767 = vlaneseq
      %v1768 = vshrl.u32 %v1767, 7
      %v1769 = vsub.s32 6, %v1768
      %v1770 = vrot.slane %v331, %v1769
      %v1771 = vmul.f32 %v1640, %v1770
      %v1772 = vmul.f32 %v1645, %v1770
      %v1773 = vmul.f32 %v1650, %v1770
      %v1774 = vmul.f32 %v1655, %v1770
      %v1775 = vmul.f32 %v1660, %v1770
      %v1776 = vmul.f32 %v1665, %v1770
      %v1777 = vmul.f32 %v1670, %v1770
      %v1778 = vmul.f32 %v1675, %v1770
      %v1779 = vmul.f32 %v1680, %v1770
      %v1780 = vmul.f32 %v1685, %v1770
      %v1781 = vmul.f32 %v1690, %v1770
      %v1782 = vmul.f32 %v1695, %v1770
      %v1783 = vmul.f32 %v1700, %v1770
      %v1784 = vmul.f32 %v1705, %v1770
      %v1785 = vmul.f32 %v1710, %v1770
      %v1786 = vmul.f32 %v1715, %v1770
      %v1787 = vmul.f32 %v1720, %v1770
      %v1788 = vmul.f32 %v1725, %v1770
      %v1789 = vmul.f32 %v1730, %v1770
      %v1790 = vmul.f32 %v1735, %v1770
      %v1791 = vmul.f32 %v1740, %v1770
      %v1792 = vmul.f32 %v1745, %v1770
      %v1793 = vmul.f32 %v1750, %v1770
      %v1794 = vmul.f32 %v1755, %v1770
      %v1795 = vmul.f32 %v1760, %v1770
      %v1796 = vmul.f32 %v1765, %v1770
      %v1797 = vadd.f32 %v1585, %v1771
      %v1798 = vadd.f32 %v1586, %v1772
      %v1799 = vadd.f32 %v1587, %v1773
      %v1800 = vadd.f32 %v1588, %v1774
      %v1801 = vadd.f32 %v1589, %v1775
      %v1802 = vadd.f32 %v1590, %v1776
      %v1803 = vadd.f32 %v1591, %v1777
      %v1804 = vadd.f32 %v1592, %v1778
      %v1805 = vadd.f32 %v1593, %v1779
      %v1806 = vadd.f32 %v1594, %v1780
      %v1807 = vadd.f32 %v1595, %v1781
      %v1808 = vadd.f32 %v1596, %v1782
      %v1809 = vadd.f32 %v1597, %v1783
      %v1810 = vadd.f32 %v1598, %v1784
      %v1811 = vadd.f32 %v1599, %v1785
      %v1812 = vadd.f32 %v1600, %v1786
      %v1813 = vadd.f32 %v1601, %v1787
      %v1814 = vadd.f32 %v1602, %v1788
      %v1815 = vadd.f32 %v1603, %v1789
      %v1816 = vadd.f32 %v1604, %v1790
      %v1817 = vadd.f32 %v1605, %v1791
      %v1818 = vadd.f32 %v1606, %v1792
      %v1819 = vadd.f32 %v1607, %v1793
      %v1820 = vadd.f32 %v1608, %v1794
      %v1821 = vadd.f32 %v1609, %v1795
      %v1822 = vadd.f32 %v1610, %v1796
      %v1823 = vld [vmem:[%s273 + $0x3d] sm:$0xff]
      %v1824 = vld [vmem:[%s273 + $0x45] sm:$0xff]
      %v1825 = vld [vmem:[%s273 + $0x4d] sm:$0xff]
      %v1826 = vld [vmem:[%s273 + $0x55] sm:$0xff]
      %v1827 = vld [vmem:[%s273 + $0x5d] sm:$0xff]
      %v1828 = vld [vmem:[%s273 + $0x65] sm:$0xff]
      %v1829 = vld [vmem:[%s273 + $0x6d] sm:$0xff]
      %v1830 = vld [vmem:[%s273 + $0x75] sm:$0xff]
      %v1831 = vld [vmem:[%s273 + $0x7d] sm:$0xff]
      %v1832 = vld [vmem:[%s273 + $0x85] sm:$0xff]
      %v1833 = vld [vmem:[%s273 + $0x8d] sm:$0xff]
      %v1834 = vld [vmem:[%s273 + $0x95] sm:$0xff]
      %v1835 = vld [vmem:[%s273 + $0x9d] sm:$0xff]
      %v1836 = vld [vmem:[%s273 + $0xa5] sm:$0xff]
      %v1837 = vld [vmem:[%s273 + $0xad] sm:$0xff]
      %v1838 = vld [vmem:[%s273 + $0xb5] sm:$0xff]
      %v1839 = vld [vmem:[%s273 + $0xbd] sm:$0xff]
      %v1840 = vld [vmem:[%s273 + $0xc5] sm:$0xff]
      %v1841 = vld [vmem:[%s273 + $0xcd] sm:$0xff]
      %v1842 = vld [vmem:[%s273 + $0xd5] sm:$0xff]
      %v1843 = vld [vmem:[%s273 + $0xdd] sm:$0xff]
      %v1844 = vld [vmem:[%s273 + $0xe5] sm:$0xff]
      %v1845 = vld [vmem:[%s273 + $0xed] sm:$0xff]
      %v1846 = vld [vmem:[%s273 + $0xf5] sm:$0xff]
      %v1847 = vld [vmem:[%s273 + $0xfd] sm:$0xff]
      %v1848 = vld [vmem:[%s273 + $0x105] sm:$0xff]
      %1850 = vset.pattern.permute.xlu0 0
      %1851 = vperm.xlu0 %1850, %v1823
      %v1852 = vpop.permute.xlu0 %1851
      %1855 = vset.pattern.permute.xlu0 0
      %1856 = vperm.xlu0 %1855, %v1824
      %v1857 = vpop.permute.xlu0 %1856
      %1860 = vset.pattern.permute.xlu0 0
      %1861 = vperm.xlu0 %1860, %v1825
      %v1862 = vpop.permute.xlu0 %1861
      %1865 = vset.pattern.permute.xlu0 0
      %1866 = vperm.xlu0 %1865, %v1826
      %v1867 = vpop.permute.xlu0 %1866
      %1870 = vset.pattern.permute.xlu0 0
      %1871 = vperm.xlu0 %1870, %v1827
      %v1872 = vpop.permute.xlu0 %1871
      %1875 = vset.pattern.permute.xlu0 0
      %1876 = vperm.xlu0 %1875, %v1828
      %v1877 = vpop.permute.xlu0 %1876
      %1880 = vset.pattern.permute.xlu0 0
      %1881 = vperm.xlu0 %1880, %v1829
      %v1882 = vpop.permute.xlu0 %1881
      %1885 = vset.pattern.permute.xlu0 0
      %1886 = vperm.xlu0 %1885, %v1830
      %v1887 = vpop.permute.xlu0 %1886
      %1890 = vset.pattern.permute.xlu0 0
      %1891 = vperm.xlu0 %1890, %v1831
      %v1892 = vpop.permute.xlu0 %1891
      %1895 = vset.pattern.permute.xlu0 0
      %1896 = vperm.xlu0 %1895, %v1832
      %v1897 = vpop.permute.xlu0 %1896
      %1900 = vset.pattern.permute.xlu0 0
      %1901 = vperm.xlu0 %1900, %v1833
      %v1902 = vpop.permute.xlu0 %1901
      %1905 = vset.pattern.permute.xlu0 0
      %1906 = vperm.xlu0 %1905, %v1834
      %v1907 = vpop.permute.xlu0 %1906
      %1910 = vset.pattern.permute.xlu0 0
      %1911 = vperm.xlu0 %1910, %v1835
      %v1912 = vpop.permute.xlu0 %1911
      %1915 = vset.pattern.permute.xlu0 0
      %1916 = vperm.xlu0 %1915, %v1836
      %v1917 = vpop.permute.xlu0 %1916
      %1920 = vset.pattern.permute.xlu0 0
      %1921 = vperm.xlu0 %1920, %v1837
      %v1922 = vpop.permute.xlu0 %1921
      %1925 = vset.pattern.permute.xlu0 0
      %1926 = vperm.xlu0 %1925, %v1838
      %v1927 = vpop.permute.xlu0 %1926
      %1930 = vset.pattern.permute.xlu0 0
      %1931 = vperm.xlu0 %1930, %v1839
      %v1932 = vpop.permute.xlu0 %1931
      %1935 = vset.pattern.permute.xlu0 0
      %1936 = vperm.xlu0 %1935, %v1840
      %v1937 = vpop.permute.xlu0 %1936
      %1940 = vset.pattern.permute.xlu0 0
      %1941 = vperm.xlu0 %1940, %v1841
      %v1942 = vpop.permute.xlu0 %1941
      %1945 = vset.pattern.permute.xlu0 0
      %1946 = vperm.xlu0 %1945, %v1842
      %v1947 = vpop.permute.xlu0 %1946
      %1950 = vset.pattern.permute.xlu0 0
      %1951 = vperm.xlu0 %1950, %v1843
      %v1952 = vpop.permute.xlu0 %1951
      %1955 = vset.pattern.permute.xlu0 0
      %1956 = vperm.xlu0 %1955, %v1844
      %v1957 = vpop.permute.xlu0 %1956
      %1960 = vset.pattern.permute.xlu0 0
      %1961 = vperm.xlu0 %1960, %v1845
      %v1962 = vpop.permute.xlu0 %1961
      %1965 = vset.pattern.permute.xlu0 0
      %1966 = vperm.xlu0 %1965, %v1846
      %v1967 = vpop.permute.xlu0 %1966
      %1970 = vset.pattern.permute.xlu0 0
      %1971 = vperm.xlu0 %1970, %v1847
      %v1972 = vpop.permute.xlu0 %1971
      %1975 = vset.pattern.permute.xlu0 0
      %1976 = vperm.xlu0 %1975, %v1848
      %v1977 = vpop.permute.xlu0 %1976
      %v1979 = vlaneseq
      %v1980 = vshrl.u32 %v1979, 7
      %v1981 = vsub.s32 7, %v1980
      %v1982 = vrot.slane %v331, %v1981
      %v1983 = vmul.f32 %v1852, %v1982
      %v1984 = vmul.f32 %v1857, %v1982
      %v1985 = vmul.f32 %v1862, %v1982
      %v1986 = vmul.f32 %v1867, %v1982
      %v1987 = vmul.f32 %v1872, %v1982
      %v1988 = vmul.f32 %v1877, %v1982
      %v1989 = vmul.f32 %v1882, %v1982
      %v1990 = vmul.f32 %v1887, %v1982
      %v1991 = vmul.f32 %v1892, %v1982
      %v1992 = vmul.f32 %v1897, %v1982
      %v1993 = vmul.f32 %v1902, %v1982
      %v1994 = vmul.f32 %v1907, %v1982
      %v1995 = vmul.f32 %v1912, %v1982
      %v1996 = vmul.f32 %v1917, %v1982
      %v1997 = vmul.f32 %v1922, %v1982
      %v1998 = vmul.f32 %v1927, %v1982
      %v1999 = vmul.f32 %v1932, %v1982
      %v2000 = vmul.f32 %v1937, %v1982
      %v2001 = vmul.f32 %v1942, %v1982
      %v2002 = vmul.f32 %v1947, %v1982
      %v2003 = vmul.f32 %v1952, %v1982
      %v2004 = vmul.f32 %v1957, %v1982
      %v2005 = vmul.f32 %v1962, %v1982
      %v2006 = vmul.f32 %v1967, %v1982
      %v2007 = vmul.f32 %v1972, %v1982
      %v2008 = vmul.f32 %v1977, %v1982
      %v2009 = vadd.f32 %v1797, %v1983
      %v2010 = vadd.f32 %v1798, %v1984
      %v2011 = vadd.f32 %v1799, %v1985
      %v2012 = vadd.f32 %v1800, %v1986
      %v2013 = vadd.f32 %v1801, %v1987
      %v2014 = vadd.f32 %v1802, %v1988
      %v2015 = vadd.f32 %v1803, %v1989
      %v2016 = vadd.f32 %v1804, %v1990
      %v2017 = vadd.f32 %v1805, %v1991
      %v2018 = vadd.f32 %v1806, %v1992
      %v2019 = vadd.f32 %v1807, %v1993
      %v2020 = vadd.f32 %v1808, %v1994
      %v2021 = vadd.f32 %v1809, %v1995
      %v2022 = vadd.f32 %v1810, %v1996
      %v2023 = vadd.f32 %v1811, %v1997
      %v2024 = vadd.f32 %v1812, %v1998
      %v2025 = vadd.f32 %v1813, %v1999
      %v2026 = vadd.f32 %v1814, %v2000
      %v2027 = vadd.f32 %v1815, %v2001
      %v2028 = vadd.f32 %v1816, %v2002
      %v2029 = vadd.f32 %v1817, %v2003
      %v2030 = vadd.f32 %v1818, %v2004
      %v2031 = vadd.f32 %v1819, %v2005
      %v2032 = vadd.f32 %v1820, %v2006
      %v2033 = vadd.f32 %v1821, %v2007
      %v2034 = vadd.f32 %v1822, %v2008
      %v2035 = vld [vmem:[%s273 + $0x3e] sm:$0xff]
      %v2036 = vld [vmem:[%s273 + $0x46] sm:$0xff]
      %v2037 = vld [vmem:[%s273 + $0x4e] sm:$0xff]
      %v2038 = vld [vmem:[%s273 + $0x56] sm:$0xff]
      %v2039 = vld [vmem:[%s273 + $0x5e] sm:$0xff]
      %v2040 = vld [vmem:[%s273 + $0x66] sm:$0xff]
      %v2041 = vld [vmem:[%s273 + $0x6e] sm:$0xff]
      %v2042 = vld [vmem:[%s273 + $0x76] sm:$0xff]
      %v2043 = vld [vmem:[%s273 + $0x7e] sm:$0xff]
      %v2044 = vld [vmem:[%s273 + $0x86] sm:$0xff]
      %v2045 = vld [vmem:[%s273 + $0x8e] sm:$0xff]
      %v2046 = vld [vmem:[%s273 + $0x96] sm:$0xff]
      %v2047 = vld [vmem:[%s273 + $0x9e] sm:$0xff]
      %v2048 = vld [vmem:[%s273 + $0xa6] sm:$0xff]
      %v2049 = vld [vmem:[%s273 + $0xae] sm:$0xff]
      %v2050 = vld [vmem:[%s273 + $0xb6] sm:$0xff]
      %v2051 = vld [vmem:[%s273 + $0xbe] sm:$0xff]
      %v2052 = vld [vmem:[%s273 + $0xc6] sm:$0xff]
      %v2053 = vld [vmem:[%s273 + $0xce] sm:$0xff]
      %v2054 = vld [vmem:[%s273 + $0xd6] sm:$0xff]
      %v2055 = vld [vmem:[%s273 + $0xde] sm:$0xff]
      %v2056 = vld [vmem:[%s273 + $0xe6] sm:$0xff]
      %v2057 = vld [vmem:[%s273 + $0xee] sm:$0xff]
      %v2058 = vld [vmem:[%s273 + $0xf6] sm:$0xff]
      %v2059 = vld [vmem:[%s273 + $0xfe] sm:$0xff]
      %v2060 = vld [vmem:[%s273 + $0x106] sm:$0xff]
      %2062 = vset.pattern.permute.xlu0 0
      %2063 = vperm.xlu0 %2062, %v2035
      %v2064 = vpop.permute.xlu0 %2063
      %2067 = vset.pattern.permute.xlu0 0
      %2068 = vperm.xlu0 %2067, %v2036
      %v2069 = vpop.permute.xlu0 %2068
      %2072 = vset.pattern.permute.xlu0 0
      %2073 = vperm.xlu0 %2072, %v2037
      %v2074 = vpop.permute.xlu0 %2073
      %2077 = vset.pattern.permute.xlu0 0
      %2078 = vperm.xlu0 %2077, %v2038
      %v2079 = vpop.permute.xlu0 %2078
      %2082 = vset.pattern.permute.xlu0 0
      %2083 = vperm.xlu0 %2082, %v2039
      %v2084 = vpop.permute.xlu0 %2083
      %2087 = vset.pattern.permute.xlu0 0
      %2088 = vperm.xlu0 %2087, %v2040
      %v2089 = vpop.permute.xlu0 %2088
      %2092 = vset.pattern.permute.xlu0 0
      %2093 = vperm.xlu0 %2092, %v2041
      %v2094 = vpop.permute.xlu0 %2093
      %2097 = vset.pattern.permute.xlu0 0
      %2098 = vperm.xlu0 %2097, %v2042
      %v2099 = vpop.permute.xlu0 %2098
      %2102 = vset.pattern.permute.xlu0 0
      %2103 = vperm.xlu0 %2102, %v2043
      %v2104 = vpop.permute.xlu0 %2103
      %2107 = vset.pattern.permute.xlu0 0
      %2108 = vperm.xlu0 %2107, %v2044
      %v2109 = vpop.permute.xlu0 %2108
      %2112 = vset.pattern.permute.xlu0 0
      %2113 = vperm.xlu0 %2112, %v2045
      %v2114 = vpop.permute.xlu0 %2113
      %2117 = vset.pattern.permute.xlu0 0
      %2118 = vperm.xlu0 %2117, %v2046
      %v2119 = vpop.permute.xlu0 %2118
      %2122 = vset.pattern.permute.xlu0 0
      %2123 = vperm.xlu0 %2122, %v2047
      %v2124 = vpop.permute.xlu0 %2123
      %2127 = vset.pattern.permute.xlu0 0
      %2128 = vperm.xlu0 %2127, %v2048
      %v2129 = vpop.permute.xlu0 %2128
      %2132 = vset.pattern.permute.xlu0 0
      %2133 = vperm.xlu0 %2132, %v2049
      %v2134 = vpop.permute.xlu0 %2133
      %2137 = vset.pattern.permute.xlu0 0
      %2138 = vperm.xlu0 %2137, %v2050
      %v2139 = vpop.permute.xlu0 %2138
      %2142 = vset.pattern.permute.xlu0 0
      %2143 = vperm.xlu0 %2142, %v2051
      %v2144 = vpop.permute.xlu0 %2143
      %2147 = vset.pattern.permute.xlu0 0
      %2148 = vperm.xlu0 %2147, %v2052
      %v2149 = vpop.permute.xlu0 %2148
      %2152 = vset.pattern.permute.xlu0 0
      %2153 = vperm.xlu0 %2152, %v2053
      %v2154 = vpop.permute.xlu0 %2153
      %2157 = vset.pattern.permute.xlu0 0
      %2158 = vperm.xlu0 %2157, %v2054
      %v2159 = vpop.permute.xlu0 %2158
      %2162 = vset.pattern.permute.xlu0 0
      %2163 = vperm.xlu0 %2162, %v2055
      %v2164 = vpop.permute.xlu0 %2163
      %2167 = vset.pattern.permute.xlu0 0
      %2168 = vperm.xlu0 %2167, %v2056
      %v2169 = vpop.permute.xlu0 %2168
      %2172 = vset.pattern.permute.xlu0 0
      %2173 = vperm.xlu0 %2172, %v2057
      %v2174 = vpop.permute.xlu0 %2173
      %2177 = vset.pattern.permute.xlu0 0
      %2178 = vperm.xlu0 %2177, %v2058
      %v2179 = vpop.permute.xlu0 %2178
      %2182 = vset.pattern.permute.xlu0 0
      %2183 = vperm.xlu0 %2182, %v2059
      %v2184 = vpop.permute.xlu0 %2183
      %2187 = vset.pattern.permute.xlu0 0
      %2188 = vperm.xlu0 %2187, %v2060
      %v2189 = vpop.permute.xlu0 %2188
      %v2191 = vlaneseq
      %v2192 = vshrl.u32 %v2191, 7
      %v2193 = vsub.s32 0, %v2192
      %v2194 = vrot.slane %v332, %v2193
      %v2195 = vmul.f32 %v2064, %v2194
      %v2196 = vmul.f32 %v2069, %v2194
      %v2197 = vmul.f32 %v2074, %v2194
      %v2198 = vmul.f32 %v2079, %v2194
      %v2199 = vmul.f32 %v2084, %v2194
      %v2200 = vmul.f32 %v2089, %v2194
      %v2201 = vmul.f32 %v2094, %v2194
      %v2202 = vmul.f32 %v2099, %v2194
      %v2203 = vmul.f32 %v2104, %v2194
      %v2204 = vmul.f32 %v2109, %v2194
      %v2205 = vmul.f32 %v2114, %v2194
      %v2206 = vmul.f32 %v2119, %v2194
      %v2207 = vmul.f32 %v2124, %v2194
      %v2208 = vmul.f32 %v2129, %v2194
      %v2209 = vmul.f32 %v2134, %v2194
      %v2210 = vmul.f32 %v2139, %v2194
      %v2211 = vmul.f32 %v2144, %v2194
      %v2212 = vmul.f32 %v2149, %v2194
      %v2213 = vmul.f32 %v2154, %v2194
      %v2214 = vmul.f32 %v2159, %v2194
      %v2215 = vmul.f32 %v2164, %v2194
      %v2216 = vmul.f32 %v2169, %v2194
      %v2217 = vmul.f32 %v2174, %v2194
      %v2218 = vmul.f32 %v2179, %v2194
      %v2219 = vmul.f32 %v2184, %v2194
      %v2220 = vmul.f32 %v2189, %v2194
      %v2221 = vadd.f32 %v2009, %v2195
      %v2222 = vadd.f32 %v2010, %v2196
      %v2223 = vadd.f32 %v2011, %v2197
      %v2224 = vadd.f32 %v2012, %v2198
      %v2225 = vadd.f32 %v2013, %v2199
      %v2226 = vadd.f32 %v2014, %v2200
      %v2227 = vadd.f32 %v2015, %v2201
      %v2228 = vadd.f32 %v2016, %v2202
      %v2229 = vadd.f32 %v2017, %v2203
      %v2230 = vadd.f32 %v2018, %v2204
      %v2231 = vadd.f32 %v2019, %v2205
      %v2232 = vadd.f32 %v2020, %v2206
      %v2233 = vadd.f32 %v2021, %v2207
      %v2234 = vadd.f32 %v2022, %v2208
      %v2235 = vadd.f32 %v2023, %v2209
      %v2236 = vadd.f32 %v2024, %v2210
      %v2237 = vadd.f32 %v2025, %v2211
      %v2238 = vadd.f32 %v2026, %v2212
      %v2239 = vadd.f32 %v2027, %v2213
      %v2240 = vadd.f32 %v2028, %v2214
      %v2241 = vadd.f32 %v2029, %v2215
      %v2242 = vadd.f32 %v2030, %v2216
      %v2243 = vadd.f32 %v2031, %v2217
      %v2244 = vadd.f32 %v2032, %v2218
      %v2245 = vadd.f32 %v2033, %v2219
      %v2246 = vadd.f32 %v2034, %v2220
      %v2247 = vmax.f32 %v2221, 0.0
      %v2248 = vmax.f32 %v2222, 0.0
      %v2249 = vmax.f32 %v2223, 0.0
      %v2250 = vmax.f32 %v2224, 0.0
      %v2251 = vmax.f32 %v2225, 0.0
      %v2252 = vmax.f32 %v2226, 0.0
      %v2253 = vmax.f32 %v2227, 0.0
      %v2254 = vmax.f32 %v2228, 0.0
      %v2255 = vmax.f32 %v2229, 0.0
      %v2256 = vmax.f32 %v2230, 0.0
      %v2257 = vmax.f32 %v2231, 0.0
      %v2258 = vmax.f32 %v2232, 0.0
      %v2259 = vmax.f32 %v2233, 0.0
      %v2260 = vmax.f32 %v2234, 0.0
      %v2261 = vmax.f32 %v2235, 0.0
      %v2262 = vmax.f32 %v2236, 0.0
      %v2263 = vmax.f32 %v2237, 0.0
      %v2264 = vmax.f32 %v2238, 0.0
      %v2265 = vmax.f32 %v2239, 0.0
      %v2266 = vmax.f32 %v2240, 0.0
      %v2267 = vmax.f32 %v2241, 0.0
      %v2268 = vmax.f32 %v2242, 0.0
      %v2269 = vmax.f32 %v2243, 0.0
      %v2270 = vmax.f32 %v2244, 0.0
      %v2271 = vmax.f32 %v2245, 0.0
      %v2272 = vmax.f32 %v2246, 0.0
      %2273 = vst.msk [vmem:[#allocation2] sm:$0xff] %vm280, %v2247
      %2274 = vst.msk [vmem:[#allocation2 + $0x8] sm:$0xff] %vm280, %v2248
      %2275 = vst.msk [vmem:[#allocation2 + $0x10] sm:$0xff] %vm280, %v2249
      %2276 = vst.msk [vmem:[#allocation2 + $0x18] sm:$0xff] %vm280, %v2250
      %2277 = vst.msk [vmem:[#allocation2 + $0x20] sm:$0xff] %vm280, %v2251
      %2278 = vst.msk [vmem:[#allocation2 + $0x28] sm:$0xff] %vm280, %v2252
      %2279 = vst.msk [vmem:[#allocation2 + $0x30] sm:$0xff] %vm280, %v2253
      %2280 = vst.msk [vmem:[#allocation2 + $0x38] sm:$0xff] %vm280, %v2254
      %2281 = vst.msk [vmem:[#allocation2 + $0x40] sm:$0xff] %vm280, %v2255
      %2282 = vst.msk [vmem:[#allocation2 + $0x48] sm:$0xff] %vm280, %v2256
      %2283 = vst.msk [vmem:[#allocation2 + $0x50] sm:$0xff] %vm280, %v2257
      %2284 = vst.msk [vmem:[#allocation2 + $0x58] sm:$0xff] %vm280, %v2258
      %2285 = vst.msk [vmem:[#allocation2 + $0x60] sm:$0xff] %vm280, %v2259
      %2286 = vst.msk [vmem:[#allocation2 + $0x68] sm:$0xff] %vm280, %v2260
      %2287 = vst.msk [vmem:[#allocation2 + $0x70] sm:$0xff] %vm280, %v2261
      %2288 = vst.msk [vmem:[#allocation2 + $0x78] sm:$0xff] %vm280, %v2262
      %2289 = vst.msk [vmem:[#allocation2 + $0x80] sm:$0xff] %vm280, %v2263
      %2290 = vst.msk [vmem:[#allocation2 + $0x88] sm:$0xff] %vm280, %v2264
      %2291 = vst.msk [vmem:[#allocation2 + $0x90] sm:$0xff] %vm280, %v2265
      %2292 = vst.msk [vmem:[#allocation2 + $0x98] sm:$0xff] %vm280, %v2266
      %2293 = vst.msk [vmem:[#allocation2 + $0xa0] sm:$0xff] %vm280, %v2267
      %2294 = vst.msk [vmem:[#allocation2 + $0xa8] sm:$0xff] %vm280, %v2268
      %2295 = vst.msk [vmem:[#allocation2 + $0xb0] sm:$0xff] %vm280, %v2269
      %2296 = vst.msk [vmem:[#allocation2 + $0xb8] sm:$0xff] %vm280, %v2270
      %2297 = vst.msk [vmem:[#allocation2 + $0xc0] sm:$0xff] %vm280, %v2271
      %2298 = vst.msk [vmem:[#allocation2 + $0xc8] sm:$0xff] %vm280, %v2272
      %v2299 = vld [vmem:[%s273 + $0xd2] sm:$0xff]
      %v2300 = vld [vmem:[%s273 + $0xda] sm:$0xff]
      %v2301 = vld [vmem:[%s273 + $0xe2] sm:$0xff]
      %v2302 = vld [vmem:[%s273 + $0xea] sm:$0xff]
      %v2303 = vld [vmem:[%s273 + $0xf2] sm:$0xff]
      %v2304 = vld [vmem:[%s273 + $0xfa] sm:$0xff]
      %v2305 = vld [vmem:[%s273 + $0x102] sm:$0xff]
      %v2306 = vld [vmem:[%s273 + $0x10a] sm:$0xff]
      %v2307 = vld [vmem:[%s273 + $0x112] sm:$0xff]
      %v2308 = vld [vmem:[%s273 + $0x11a] sm:$0xff]
      %v2309 = vld [vmem:[%s273 + $0x122] sm:$0xff]
      %v2310 = vld [vmem:[%s273 + $0x12a] sm:$0xff]
      %v2311 = vld [vmem:[%s273 + $0x132] sm:$0xff]
      %v2312 = vld [vmem:[%s273 + $0x13a] sm:$0xff]
      %v2313 = vld [vmem:[%s273 + $0x142] sm:$0xff]
      %v2314 = vld [vmem:[%s273 + $0x14a] sm:$0xff]
      %v2315 = vld [vmem:[%s273 + $0x152] sm:$0xff]
      %v2316 = vld [vmem:[%s273 + $0x15a] sm:$0xff]
      %v2317 = vld [vmem:[%s273 + $0x162] sm:$0xff]
      %v2318 = vld [vmem:[%s273 + $0x16a] sm:$0xff]
      %v2319 = vld [vmem:[%s273 + $0x172] sm:$0xff]
      %v2320 = vld [vmem:[%s273 + $0x17a] sm:$0xff]
      %v2321 = vld [vmem:[%s273 + $0x182] sm:$0xff]
      %v2322 = vld [vmem:[%s273 + $0x18a] sm:$0xff]
      %v2323 = vld [vmem:[%s273 + $0x192] sm:$0xff]
      %v2324 = vld [vmem:[%s273 + $0x19a] sm:$0xff]
      %2326 = vset.pattern.permute.xlu0 0
      %2327 = vperm.xlu0 %2326, %v2299
      %v2328 = vpop.permute.xlu0 %2327
      %2331 = vset.pattern.permute.xlu0 0
      %2332 = vperm.xlu0 %2331, %v2300
      %v2333 = vpop.permute.xlu0 %2332
      %2336 = vset.pattern.permute.xlu0 0
      %2337 = vperm.xlu0 %2336, %v2301
      %v2338 = vpop.permute.xlu0 %2337
      %2341 = vset.pattern.permute.xlu0 0
      %2342 = vperm.xlu0 %2341, %v2302
      %v2343 = vpop.permute.xlu0 %2342
      %2346 = vset.pattern.permute.xlu0 0
      %2347 = vperm.xlu0 %2346, %v2303
      %v2348 = vpop.permute.xlu0 %2347
      %2351 = vset.pattern.permute.xlu0 0
      %2352 = vperm.xlu0 %2351, %v2304
      %v2353 = vpop.permute.xlu0 %2352
      %2356 = vset.pattern.permute.xlu0 0
      %2357 = vperm.xlu0 %2356, %v2305
      %v2358 = vpop.permute.xlu0 %2357
      %2361 = vset.pattern.permute.xlu0 0
      %2362 = vperm.xlu0 %2361, %v2306
      %v2363 = vpop.permute.xlu0 %2362
      %2366 = vset.pattern.permute.xlu0 0
      %2367 = vperm.xlu0 %2366, %v2307
      %v2368 = vpop.permute.xlu0 %2367
      %2371 = vset.pattern.permute.xlu0 0
      %2372 = vperm.xlu0 %2371, %v2308
      %v2373 = vpop.permute.xlu0 %2372
      %2376 = vset.pattern.permute.xlu0 0
      %2377 = vperm.xlu0 %2376, %v2309
      %v2378 = vpop.permute.xlu0 %2377
      %2381 = vset.pattern.permute.xlu0 0
      %2382 = vperm.xlu0 %2381, %v2310
      %v2383 = vpop.permute.xlu0 %2382
      %2386 = vset.pattern.permute.xlu0 0
      %2387 = vperm.xlu0 %2386, %v2311
      %v2388 = vpop.permute.xlu0 %2387
      %2391 = vset.pattern.permute.xlu0 0
      %2392 = vperm.xlu0 %2391, %v2312
      %v2393 = vpop.permute.xlu0 %2392
      %2396 = vset.pattern.permute.xlu0 0
      %2397 = vperm.xlu0 %2396, %v2313
      %v2398 = vpop.permute.xlu0 %2397
      %2401 = vset.pattern.permute.xlu0 0
      %2402 = vperm.xlu0 %2401, %v2314
      %v2403 = vpop.permute.xlu0 %2402
      %2406 = vset.pattern.permute.xlu0 0
      %2407 = vperm.xlu0 %2406, %v2315
      %v2408 = vpop.permute.xlu0 %2407
      %2411 = vset.pattern.permute.xlu0 0
      %2412 = vperm.xlu0 %2411, %v2316
      %v2413 = vpop.permute.xlu0 %2412
      %2416 = vset.pattern.permute.xlu0 0
      %2417 = vperm.xlu0 %2416, %v2317
      %v2418 = vpop.permute.xlu0 %2417
      %2421 = vset.pattern.permute.xlu0 0
      %2422 = vperm.xlu0 %2421, %v2318
      %v2423 = vpop.permute.xlu0 %2422
      %2426 = vset.pattern.permute.xlu0 0
      %2427 = vperm.xlu0 %2426, %v2319
      %v2428 = vpop.permute.xlu0 %2427
      %2431 = vset.pattern.permute.xlu0 0
      %2432 = vperm.xlu0 %2431, %v2320
      %v2433 = vpop.permute.xlu0 %2432
      %2436 = vset.pattern.permute.xlu0 0
      %2437 = vperm.xlu0 %2436, %v2321
      %v2438 = vpop.permute.xlu0 %2437
      %2441 = vset.pattern.permute.xlu0 0
      %2442 = vperm.xlu0 %2441, %v2322
      %v2443 = vpop.permute.xlu0 %2442
      %2446 = vset.pattern.permute.xlu0 0
      %2447 = vperm.xlu0 %2446, %v2323
      %v2448 = vpop.permute.xlu0 %2447
      %2451 = vset.pattern.permute.xlu0 0
      %2452 = vperm.xlu0 %2451, %v2324
      %v2453 = vpop.permute.xlu0 %2452
      %v2455 = vmul.f32 %v2328, %v498
      %v2456 = vmul.f32 %v2333, %v498
      %v2457 = vmul.f32 %v2338, %v498
      %v2458 = vmul.f32 %v2343, %v498
      %v2459 = vmul.f32 %v2348, %v498
      %v2460 = vmul.f32 %v2353, %v498
      %v2461 = vmul.f32 %v2358, %v498
      %v2462 = vmul.f32 %v2363, %v498
      %v2463 = vmul.f32 %v2368, %v498
      %v2464 = vmul.f32 %v2373, %v498
      %v2465 = vmul.f32 %v2378, %v498
      %v2466 = vmul.f32 %v2383, %v498
      %v2467 = vmul.f32 %v2388, %v498
      %v2468 = vmul.f32 %v2393, %v498
      %v2469 = vmul.f32 %v2398, %v498
      %v2470 = vmul.f32 %v2403, %v498
      %v2471 = vmul.f32 %v2408, %v498
      %v2472 = vmul.f32 %v2413, %v498
      %v2473 = vmul.f32 %v2418, %v498
      %v2474 = vmul.f32 %v2423, %v498
      %v2475 = vmul.f32 %v2428, %v498
      %v2476 = vmul.f32 %v2433, %v498
      %v2477 = vmul.f32 %v2438, %v498
      %v2478 = vmul.f32 %v2443, %v498
      %v2479 = vmul.f32 %v2448, %v498
      %v2480 = vmul.f32 %v2453, %v498
      %v2481 = vadd.f32 %v337, %v2455
      %v2482 = vadd.f32 %v337, %v2456
      %v2483 = vadd.f32 %v337, %v2457
      %v2484 = vadd.f32 %v337, %v2458
      %v2485 = vadd.f32 %v337, %v2459
      %v2486 = vadd.f32 %v337, %v2460
      %v2487 = vadd.f32 %v337, %v2461
      %v2488 = vadd.f32 %v337, %v2462
      %v2489 = vadd.f32 %v337, %v2463
      %v2490 = vadd.f32 %v337, %v2464
      %v2491 = vadd.f32 %v337, %v2465
      %v2492 = vadd.f32 %v337, %v2466
      %v2493 = vadd.f32 %v337, %v2467
      %v2494 = vadd.f32 %v337, %v2468
      %v2495 = vadd.f32 %v337, %v2469
      %v2496 = vadd.f32 %v337, %v2470
      %v2497 = vadd.f32 %v337, %v2471
      %v2498 = vadd.f32 %v337, %v2472
      %v2499 = vadd.f32 %v337, %v2473
      %v2500 = vadd.f32 %v337, %v2474
      %v2501 = vadd.f32 %v337, %v2475
      %v2502 = vadd.f32 %v337, %v2476
      %v2503 = vadd.f32 %v337, %v2477
      %v2504 = vadd.f32 %v337, %v2478
      %v2505 = vadd.f32 %v337, %v2479
      %v2506 = vadd.f32 %v337, %v2480
      %v2507 = vld [vmem:[%s273 + $0xd3] sm:$0xff]
      %v2508 = vld [vmem:[%s273 + $0xdb] sm:$0xff]
      %v2509 = vld [vmem:[%s273 + $0xe3] sm:$0xff]
      %v2510 = vld [vmem:[%s273 + $0xeb] sm:$0xff]
      %v2511 = vld [vmem:[%s273 + $0xf3] sm:$0xff]
      %v2512 = vld [vmem:[%s273 + $0xfb] sm:$0xff]
      %v2513 = vld [vmem:[%s273 + $0x103] sm:$0xff]
      %v2514 = vld [vmem:[%s273 + $0x10b] sm:$0xff]
      %v2515 = vld [vmem:[%s273 + $0x113] sm:$0xff]
      %v2516 = vld [vmem:[%s273 + $0x11b] sm:$0xff]
      %v2517 = vld [vmem:[%s273 + $0x123] sm:$0xff]
      %v2518 = vld [vmem:[%s273 + $0x12b] sm:$0xff]
      %v2519 = vld [vmem:[%s273 + $0x133] sm:$0xff]
      %v2520 = vld [vmem:[%s273 + $0x13b] sm:$0xff]
      %v2521 = vld [vmem:[%s273 + $0x143] sm:$0xff]
      %v2522 = vld [vmem:[%s273 + $0x14b] sm:$0xff]
      %v2523 = vld [vmem:[%s273 + $0x153] sm:$0xff]
      %v2524 = vld [vmem:[%s273 + $0x15b] sm:$0xff]
      %v2525 = vld [vmem:[%s273 + $0x163] sm:$0xff]
      %v2526 = vld [vmem:[%s273 + $0x16b] sm:$0xff]
      %v2527 = vld [vmem:[%s273 + $0x173] sm:$0xff]
      %v2528 = vld [vmem:[%s273 + $0x17b] sm:$0xff]
      %v2529 = vld [vmem:[%s273 + $0x183] sm:$0xff]
      %v2530 = vld [vmem:[%s273 + $0x18b] sm:$0xff]
      %v2531 = vld [vmem:[%s273 + $0x193] sm:$0xff]
      %v2532 = vld [vmem:[%s273 + $0x19b] sm:$0xff]
      %2534 = vset.pattern.permute.xlu0 0
      %2535 = vperm.xlu0 %2534, %v2507
      %v2536 = vpop.permute.xlu0 %2535
      %2539 = vset.pattern.permute.xlu0 0
      %2540 = vperm.xlu0 %2539, %v2508
      %v2541 = vpop.permute.xlu0 %2540
      %2544 = vset.pattern.permute.xlu0 0
      %2545 = vperm.xlu0 %2544, %v2509
      %v2546 = vpop.permute.xlu0 %2545
      %2549 = vset.pattern.permute.xlu0 0
      %2550 = vperm.xlu0 %2549, %v2510
      %v2551 = vpop.permute.xlu0 %2550
      %2554 = vset.pattern.permute.xlu0 0
      %2555 = vperm.xlu0 %2554, %v2511
      %v2556 = vpop.permute.xlu0 %2555
      %2559 = vset.pattern.permute.xlu0 0
      %2560 = vperm.xlu0 %2559, %v2512
      %v2561 = vpop.permute.xlu0 %2560
      %2564 = vset.pattern.permute.xlu0 0
      %2565 = vperm.xlu0 %2564, %v2513
      %v2566 = vpop.permute.xlu0 %2565
      %2569 = vset.pattern.permute.xlu0 0
      %2570 = vperm.xlu0 %2569, %v2514
      %v2571 = vpop.permute.xlu0 %2570
      %2574 = vset.pattern.permute.xlu0 0
      %2575 = vperm.xlu0 %2574, %v2515
      %v2576 = vpop.permute.xlu0 %2575
      %2579 = vset.pattern.permute.xlu0 0
      %2580 = vperm.xlu0 %2579, %v2516
      %v2581 = vpop.permute.xlu0 %2580
      %2584 = vset.pattern.permute.xlu0 0
      %2585 = vperm.xlu0 %2584, %v2517
      %v2586 = vpop.permute.xlu0 %2585
      %2589 = vset.pattern.permute.xlu0 0
      %2590 = vperm.xlu0 %2589, %v2518
      %v2591 = vpop.permute.xlu0 %2590
      %2594 = vset.pattern.permute.xlu0 0
      %2595 = vperm.xlu0 %2594, %v2519
      %v2596 = vpop.permute.xlu0 %2595
      %2599 = vset.pattern.permute.xlu0 0
      %2600 = vperm.xlu0 %2599, %v2520
      %v2601 = vpop.permute.xlu0 %2600
      %2604 = vset.pattern.permute.xlu0 0
      %2605 = vperm.xlu0 %2604, %v2521
      %v2606 = vpop.permute.xlu0 %2605
      %2609 = vset.pattern.permute.xlu0 0
      %2610 = vperm.xlu0 %2609, %v2522
      %v2611 = vpop.permute.xlu0 %2610
      %2614 = vset.pattern.permute.xlu0 0
      %2615 = vperm.xlu0 %2614, %v2523
      %v2616 = vpop.permute.xlu0 %2615
      %2619 = vset.pattern.permute.xlu0 0
      %2620 = vperm.xlu0 %2619, %v2524
      %v2621 = vpop.permute.xlu0 %2620
      %2624 = vset.pattern.permute.xlu0 0
      %2625 = vperm.xlu0 %2624, %v2525
      %v2626 = vpop.permute.xlu0 %2625
      %2629 = vset.pattern.permute.xlu0 0
      %2630 = vperm.xlu0 %2629, %v2526
      %v2631 = vpop.permute.xlu0 %2630
      %2634 = vset.pattern.permute.xlu0 0
      %2635 = vperm.xlu0 %2634, %v2527
      %v2636 = vpop.permute.xlu0 %2635
      %2639 = vset.pattern.permute.xlu0 0
      %2640 = vperm.xlu0 %2639, %v2528
      %v2641 = vpop.permute.xlu0 %2640
      %2644 = vset.pattern.permute.xlu0 0
      %2645 = vperm.xlu0 %2644, %v2529
      %v2646 = vpop.permute.xlu0 %2645
      %2649 = vset.pattern.permute.xlu0 0
      %2650 = vperm.xlu0 %2649, %v2530
      %v2651 = vpop.permute.xlu0 %2650
      %2654 = vset.pattern.permute.xlu0 0
      %2655 = vperm.xlu0 %2654, %v2531
      %v2656 = vpop.permute.xlu0 %2655
      %2659 = vset.pattern.permute.xlu0 0
      %2660 = vperm.xlu0 %2659, %v2532
      %v2661 = vpop.permute.xlu0 %2660
      %v2663 = vmul.f32 %v2536, %v710
      %v2664 = vmul.f32 %v2541, %v710
      %v2665 = vmul.f32 %v2546, %v710
      %v2666 = vmul.f32 %v2551, %v710
      %v2667 = vmul.f32 %v2556, %v710
      %v2668 = vmul.f32 %v2561, %v710
      %v2669 = vmul.f32 %v2566, %v710
      %v2670 = vmul.f32 %v2571, %v710
      %v2671 = vmul.f32 %v2576, %v710
      %v2672 = vmul.f32 %v2581, %v710
      %v2673 = vmul.f32 %v2586, %v710
      %v2674 = vmul.f32 %v2591, %v710
      %v2675 = vmul.f32 %v2596, %v710
      %v2676 = vmul.f32 %v2601, %v710
      %v2677 = vmul.f32 %v2606, %v710
      %v2678 = vmul.f32 %v2611, %v710
      %v2679 = vmul.f32 %v2616, %v710
      %v2680 = vmul.f32 %v2621, %v710
      %v2681 = vmul.f32 %v2626, %v710
      %v2682 = vmul.f32 %v2631, %v710
      %v2683 = vmul.f32 %v2636, %v710
      %v2684 = vmul.f32 %v2641, %v710
      %v2685 = vmul.f32 %v2646, %v710
      %v2686 = vmul.f32 %v2651, %v710
      %v2687 = vmul.f32 %v2656, %v710
      %v2688 = vmul.f32 %v2661, %v710
      %v2689 = vadd.f32 %v2481, %v2663
      %v2690 = vadd.f32 %v2482, %v2664
      %v2691 = vadd.f32 %v2483, %v2665
      %v2692 = vadd.f32 %v2484, %v2666
      %v2693 = vadd.f32 %v2485, %v2667
      %v2694 = vadd.f32 %v2486, %v2668
      %v2695 = vadd.f32 %v2487, %v2669
      %v2696 = vadd.f32 %v2488, %v2670
      %v2697 = vadd.f32 %v2489, %v2671
      %v2698 = vadd.f32 %v2490, %v2672
      %v2699 = vadd.f32 %v2491, %v2673
      %v2700 = vadd.f32 %v2492, %v2674
      %v2701 = vadd.f32 %v2493, %v2675
      %v2702 = vadd.f32 %v2494, %v2676
      %v2703 = vadd.f32 %v2495, %v2677
      %v2704 = vadd.f32 %v2496, %v2678
      %v2705 = vadd.f32 %v2497, %v2679
      %v2706 = vadd.f32 %v2498, %v2680
      %v2707 = vadd.f32 %v2499, %v2681
      %v2708 = vadd.f32 %v2500, %v2682
      %v2709 = vadd.f32 %v2501, %v2683
      %v2710 = vadd.f32 %v2502, %v2684
      %v2711 = vadd.f32 %v2503, %v2685
      %v2712 = vadd.f32 %v2504, %v2686
      %v2713 = vadd.f32 %v2505, %v2687
      %v2714 = vadd.f32 %v2506, %v2688
      %v2715 = vld [vmem:[%s273 + $0xd4] sm:$0xff]
      %v2716 = vld [vmem:[%s273 + $0xdc] sm:$0xff]
      %v2717 = vld [vmem:[%s273 + $0xe4] sm:$0xff]
      %v2718 = vld [vmem:[%s273 + $0xec] sm:$0xff]
      %v2719 = vld [vmem:[%s273 + $0xf4] sm:$0xff]
      %v2720 = vld [vmem:[%s273 + $0xfc] sm:$0xff]
      %v2721 = vld [vmem:[%s273 + $0x104] sm:$0xff]
      %v2722 = vld [vmem:[%s273 + $0x10c] sm:$0xff]
      %v2723 = vld [vmem:[%s273 + $0x114] sm:$0xff]
      %v2724 = vld [vmem:[%s273 + $0x11c] sm:$0xff]
      %v2725 = vld [vmem:[%s273 + $0x124] sm:$0xff]
      %v2726 = vld [vmem:[%s273 + $0x12c] sm:$0xff]
      %v2727 = vld [vmem:[%s273 + $0x134] sm:$0xff]
      %v2728 = vld [vmem:[%s273 + $0x13c] sm:$0xff]
      %v2729 = vld [vmem:[%s273 + $0x144] sm:$0xff]
      %v2730 = vld [vmem:[%s273 + $0x14c] sm:$0xff]
      %v2731 = vld [vmem:[%s273 + $0x154] sm:$0xff]
      %v2732 = vld [vmem:[%s273 + $0x15c] sm:$0xff]
      %v2733 = vld [vmem:[%s273 + $0x164] sm:$0xff]
      %v2734 = vld [vmem:[%s273 + $0x16c] sm:$0xff]
      %v2735 = vld [vmem:[%s273 + $0x174] sm:$0xff]
      %v2736 = vld [vmem:[%s273 + $0x17c] sm:$0xff]
      %v2737 = vld [vmem:[%s273 + $0x184] sm:$0xff]
      %v2738 = vld [vmem:[%s273 + $0x18c] sm:$0xff]
      %v2739 = vld [vmem:[%s273 + $0x194] sm:$0xff]
      %v2740 = vld [vmem:[%s273 + $0x19c] sm:$0xff]
      %2742 = vset.pattern.permute.xlu0 0
      %2743 = vperm.xlu0 %2742, %v2715
      %v2744 = vpop.permute.xlu0 %2743
      %2747 = vset.pattern.permute.xlu0 0
      %2748 = vperm.xlu0 %2747, %v2716
      %v2749 = vpop.permute.xlu0 %2748
      %2752 = vset.pattern.permute.xlu0 0
      %2753 = vperm.xlu0 %2752, %v2717
      %v2754 = vpop.permute.xlu0 %2753
      %2757 = vset.pattern.permute.xlu0 0
      %2758 = vperm.xlu0 %2757, %v2718
      %v2759 = vpop.permute.xlu0 %2758
      %2762 = vset.pattern.permute.xlu0 0
      %2763 = vperm.xlu0 %2762, %v2719
      %v2764 = vpop.permute.xlu0 %2763
      %2767 = vset.pattern.permute.xlu0 0
      %2768 = vperm.xlu0 %2767, %v2720
      %v2769 = vpop.permute.xlu0 %2768
      %2772 = vset.pattern.permute.xlu0 0
      %2773 = vperm.xlu0 %2772, %v2721
      %v2774 = vpop.permute.xlu0 %2773
      %2777 = vset.pattern.permute.xlu0 0
      %2778 = vperm.xlu0 %2777, %v2722
      %v2779 = vpop.permute.xlu0 %2778
      %2782 = vset.pattern.permute.xlu0 0
      %2783 = vperm.xlu0 %2782, %v2723
      %v2784 = vpop.permute.xlu0 %2783
      %2787 = vset.pattern.permute.xlu0 0
      %2788 = vperm.xlu0 %2787, %v2724
      %v2789 = vpop.permute.xlu0 %2788
      %2792 = vset.pattern.permute.xlu0 0
      %2793 = vperm.xlu0 %2792, %v2725
      %v2794 = vpop.permute.xlu0 %2793
      %2797 = vset.pattern.permute.xlu0 0
      %2798 = vperm.xlu0 %2797, %v2726
      %v2799 = vpop.permute.xlu0 %2798
      %2802 = vset.pattern.permute.xlu0 0
      %2803 = vperm.xlu0 %2802, %v2727
      %v2804 = vpop.permute.xlu0 %2803
      %2807 = vset.pattern.permute.xlu0 0
      %2808 = vperm.xlu0 %2807, %v2728
      %v2809 = vpop.permute.xlu0 %2808
      %2812 = vset.pattern.permute.xlu0 0
      %2813 = vperm.xlu0 %2812, %v2729
      %v2814 = vpop.permute.xlu0 %2813
      %2817 = vset.pattern.permute.xlu0 0
      %2818 = vperm.xlu0 %2817, %v2730
      %v2819 = vpop.permute.xlu0 %2818
      %2822 = vset.pattern.permute.xlu0 0
      %2823 = vperm.xlu0 %2822, %v2731
      %v2824 = vpop.permute.xlu0 %2823
      %2827 = vset.pattern.permute.xlu0 0
      %2828 = vperm.xlu0 %2827, %v2732
      %v2829 = vpop.permute.xlu0 %2828
      %2832 = vset.pattern.permute.xlu0 0
      %2833 = vperm.xlu0 %2832, %v2733
      %v2834 = vpop.permute.xlu0 %2833
      %2837 = vset.pattern.permute.xlu0 0
      %2838 = vperm.xlu0 %2837, %v2734
      %v2839 = vpop.permute.xlu0 %2838
      %2842 = vset.pattern.permute.xlu0 0
      %2843 = vperm.xlu0 %2842, %v2735
      %v2844 = vpop.permute.xlu0 %2843
      %2847 = vset.pattern.permute.xlu0 0
      %2848 = vperm.xlu0 %2847, %v2736
      %v2849 = vpop.permute.xlu0 %2848
      %2852 = vset.pattern.permute.xlu0 0
      %2853 = vperm.xlu0 %2852, %v2737
      %v2854 = vpop.permute.xlu0 %2853
      %2857 = vset.pattern.permute.xlu0 0
      %2858 = vperm.xlu0 %2857, %v2738
      %v2859 = vpop.permute.xlu0 %2858
      %2862 = vset.pattern.permute.xlu0 0
      %2863 = vperm.xlu0 %2862, %v2739
      %v2864 = vpop.permute.xlu0 %2863
      %2867 = vset.pattern.permute.xlu0 0
      %2868 = vperm.xlu0 %2867, %v2740
      %v2869 = vpop.permute.xlu0 %2868
      %v2871 = vmul.f32 %v2744, %v922
      %v2872 = vmul.f32 %v2749, %v922
      %v2873 = vmul.f32 %v2754, %v922
      %v2874 = vmul.f32 %v2759, %v922
      %v2875 = vmul.f32 %v2764, %v922
      %v2876 = vmul.f32 %v2769, %v922
      %v2877 = vmul.f32 %v2774, %v922
      %v2878 = vmul.f32 %v2779, %v922
      %v2879 = vmul.f32 %v2784, %v922
      %v2880 = vmul.f32 %v2789, %v922
      %v2881 = vmul.f32 %v2794, %v922
      %v2882 = vmul.f32 %v2799, %v922
      %v2883 = vmul.f32 %v2804, %v922
      %v2884 = vmul.f32 %v2809, %v922
      %v2885 = vmul.f32 %v2814, %v922
      %v2886 = vmul.f32 %v2819, %v922
      %v2887 = vmul.f32 %v2824, %v922
      %v2888 = vmul.f32 %v2829, %v922
      %v2889 = vmul.f32 %v2834, %v922
      %v2890 = vmul.f32 %v2839, %v922
      %v2891 = vmul.f32 %v2844, %v922
      %v2892 = vmul.f32 %v2849, %v922
      %v2893 = vmul.f32 %v2854, %v922
      %v2894 = vmul.f32 %v2859, %v922
      %v2895 = vmul.f32 %v2864, %v922
      %v2896 = vmul.f32 %v2869, %v922
      %v2897 = vadd.f32 %v2689, %v2871
      %v2898 = vadd.f32 %v2690, %v2872
      %v2899 = vadd.f32 %v2691, %v2873
      %v2900 = vadd.f32 %v2692, %v2874
      %v2901 = vadd.f32 %v2693, %v2875
      %v2902 = vadd.f32 %v2694, %v2876
      %v2903 = vadd.f32 %v2695, %v2877
      %v2904 = vadd.f32 %v2696, %v2878
      %v2905 = vadd.f32 %v2697, %v2879
      %v2906 = vadd.f32 %v2698, %v2880
      %v2907 = vadd.f32 %v2699, %v2881
      %v2908 = vadd.f32 %v2700, %v2882
      %v2909 = vadd.f32 %v2701, %v2883
      %v2910 = vadd.f32 %v2702, %v2884
      %v2911 = vadd.f32 %v2703, %v2885
      %v2912 = vadd.f32 %v2704, %v2886
      %v2913 = vadd.f32 %v2705, %v2887
      %v2914 = vadd.f32 %v2706, %v2888
      %v2915 = vadd.f32 %v2707, %v2889
      %v2916 = vadd.f32 %v2708, %v2890
      %v2917 = vadd.f32 %v2709, %v2891
      %v2918 = vadd.f32 %v2710, %v2892
      %v2919 = vadd.f32 %v2711, %v2893
      %v2920 = vadd.f32 %v2712, %v2894
      %v2921 = vadd.f32 %v2713, %v2895
      %v2922 = vadd.f32 %v2714, %v2896
      %v2923 = vld [vmem:[%s273 + $0xf0] sm:$0xff]
      %v2924 = vld [vmem:[%s273 + $0xf8] sm:$0xff]
      %v2925 = vld [vmem:[%s273 + $0x100] sm:$0xff]
      %v2926 = vld [vmem:[%s273 + $0x108] sm:$0xff]
      %v2927 = vld [vmem:[%s273 + $0x110] sm:$0xff]
      %v2928 = vld [vmem:[%s273 + $0x118] sm:$0xff]
      %v2929 = vld [vmem:[%s273 + $0x120] sm:$0xff]
      %v2930 = vld [vmem:[%s273 + $0x128] sm:$0xff]
      %v2931 = vld [vmem:[%s273 + $0x130] sm:$0xff]
      %v2932 = vld [vmem:[%s273 + $0x138] sm:$0xff]
      %v2933 = vld [vmem:[%s273 + $0x140] sm:$0xff]
      %v2934 = vld [vmem:[%s273 + $0x148] sm:$0xff]
      %v2935 = vld [vmem:[%s273 + $0x150] sm:$0xff]
      %v2936 = vld [vmem:[%s273 + $0x158] sm:$0xff]
      %v2937 = vld [vmem:[%s273 + $0x160] sm:$0xff]
      %v2938 = vld [vmem:[%s273 + $0x168] sm:$0xff]
      %v2939 = vld [vmem:[%s273 + $0x170] sm:$0xff]
      %v2940 = vld [vmem:[%s273 + $0x178] sm:$0xff]
      %v2941 = vld [vmem:[%s273 + $0x180] sm:$0xff]
      %v2942 = vld [vmem:[%s273 + $0x188] sm:$0xff]
      %v2943 = vld [vmem:[%s273 + $0x190] sm:$0xff]
      %v2944 = vld [vmem:[%s273 + $0x198] sm:$0xff]
      %v2945 = vld [vmem:[%s273 + $0x1a0] sm:$0xff]
      %v2946 = vld [vmem:[%s273 + $0x1a8] sm:$0xff]
      %v2947 = vld [vmem:[%s273 + $0x1b0] sm:$0xff]
      %v2948 = vld [vmem:[%s273 + $0x1b8] sm:$0xff]
      %2950 = vset.pattern.permute.xlu0 0
      %2951 = vperm.xlu0 %2950, %v2923
      %v2952 = vpop.permute.xlu0 %2951
      %2955 = vset.pattern.permute.xlu0 0
      %2956 = vperm.xlu0 %2955, %v2924
      %v2957 = vpop.permute.xlu0 %2956
      %2960 = vset.pattern.permute.xlu0 0
      %2961 = vperm.xlu0 %2960, %v2925
      %v2962 = vpop.permute.xlu0 %2961
      %2965 = vset.pattern.permute.xlu0 0
      %2966 = vperm.xlu0 %2965, %v2926
      %v2967 = vpop.permute.xlu0 %2966
      %2970 = vset.pattern.permute.xlu0 0
      %2971 = vperm.xlu0 %2970, %v2927
      %v2972 = vpop.permute.xlu0 %2971
      %2975 = vset.pattern.permute.xlu0 0
      %2976 = vperm.xlu0 %2975, %v2928
      %v2977 = vpop.permute.xlu0 %2976
      %2980 = vset.pattern.permute.xlu0 0
      %2981 = vperm.xlu0 %2980, %v2929
      %v2982 = vpop.permute.xlu0 %2981
      %2985 = vset.pattern.permute.xlu0 0
      %2986 = vperm.xlu0 %2985, %v2930
      %v2987 = vpop.permute.xlu0 %2986
      %2990 = vset.pattern.permute.xlu0 0
      %2991 = vperm.xlu0 %2990, %v2931
      %v2992 = vpop.permute.xlu0 %2991
      %2995 = vset.pattern.permute.xlu0 0
      %2996 = vperm.xlu0 %2995, %v2932
      %v2997 = vpop.permute.xlu0 %2996
      %3000 = vset.pattern.permute.xlu0 0
      %3001 = vperm.xlu0 %3000, %v2933
      %v3002 = vpop.permute.xlu0 %3001
      %3005 = vset.pattern.permute.xlu0 0
      %3006 = vperm.xlu0 %3005, %v2934
      %v3007 = vpop.permute.xlu0 %3006
      %3010 = vset.pattern.permute.xlu0 0
      %3011 = vperm.xlu0 %3010, %v2935
      %v3012 = vpop.permute.xlu0 %3011
      %3015 = vset.pattern.permute.xlu0 0
      %3016 = vperm.xlu0 %3015, %v2936
      %v3017 = vpop.permute.xlu0 %3016
      %3020 = vset.pattern.permute.xlu0 0
      %3021 = vperm.xlu0 %3020, %v2937
      %v3022 = vpop.permute.xlu0 %3021
      %3025 = vset.pattern.permute.xlu0 0
      %3026 = vperm.xlu0 %3025, %v2938
      %v3027 = vpop.permute.xlu0 %3026
      %3030 = vset.pattern.permute.xlu0 0
      %3031 = vperm.xlu0 %3030, %v2939
      %v3032 = vpop.permute.xlu0 %3031
      %3035 = vset.pattern.permute.xlu0 0
      %3036 = vperm.xlu0 %3035, %v2940
      %v3037 = vpop.permute.xlu0 %3036
      %3040 = vset.pattern.permute.xlu0 0
      %3041 = vperm.xlu0 %3040, %v2941
      %v3042 = vpop.permute.xlu0 %3041
      %3045 = vset.pattern.permute.xlu0 0
      %3046 = vperm.xlu0 %3045, %v2942
      %v3047 = vpop.permute.xlu0 %3046
      %3050 = vset.pattern.permute.xlu0 0
      %3051 = vperm.xlu0 %3050, %v2943
      %v3052 = vpop.permute.xlu0 %3051
      %3055 = vset.pattern.permute.xlu0 0
      %3056 = vperm.xlu0 %3055, %v2944
      %v3057 = vpop.permute.xlu0 %3056
      %3060 = vset.pattern.permute.xlu0 0
      %3061 = vperm.xlu0 %3060, %v2945
      %v3062 = vpop.permute.xlu0 %3061
      %3065 = vset.pattern.permute.xlu0 0
      %3066 = vperm.xlu0 %3065, %v2946
      %v3067 = vpop.permute.xlu0 %3066
      %3070 = vset.pattern.permute.xlu0 0
      %3071 = vperm.xlu0 %3070, %v2947
      %v3072 = vpop.permute.xlu0 %3071
      %3075 = vset.pattern.permute.xlu0 0
      %3076 = vperm.xlu0 %3075, %v2948
      %v3077 = vpop.permute.xlu0 %3076
      %v3079 = vmul.f32 %v2952, %v1134
      %v3080 = vmul.f32 %v2957, %v1134
      %v3081 = vmul.f32 %v2962, %v1134
      %v3082 = vmul.f32 %v2967, %v1134
      %v3083 = vmul.f32 %v2972, %v1134
      %v3084 = vmul.f32 %v2977, %v1134
      %v3085 = vmul.f32 %v2982, %v1134
      %v3086 = vmul.f32 %v2987, %v1134
      %v3087 = vmul.f32 %v2992, %v1134
      %v3088 = vmul.f32 %v2997, %v1134
      %v3089 = vmul.f32 %v3002, %v1134
      %v3090 = vmul.f32 %v3007, %v1134
      %v3091 = vmul.f32 %v3012, %v1134
      %v3092 = vmul.f32 %v3017, %v1134
      %v3093 = vmul.f32 %v3022, %v1134
      %v3094 = vmul.f32 %v3027, %v1134
      %v3095 = vmul.f32 %v3032, %v1134
      %v3096 = vmul.f32 %v3037, %v1134
      %v3097 = vmul.f32 %v3042, %v1134
      %v3098 = vmul.f32 %v3047, %v1134
      %v3099 = vmul.f32 %v3052, %v1134
      %v3100 = vmul.f32 %v3057, %v1134
      %v3101 = vmul.f32 %v3062, %v1134
      %v3102 = vmul.f32 %v3067, %v1134
      %v3103 = vmul.f32 %v3072, %v1134
      %v3104 = vmul.f32 %v3077, %v1134
      %v3105 = vadd.f32 %v2897, %v3079
      %v3106 = vadd.f32 %v2898, %v3080
      %v3107 = vadd.f32 %v2899, %v3081
      %v3108 = vadd.f32 %v2900, %v3082
      %v3109 = vadd.f32 %v2901, %v3083
      %v3110 = vadd.f32 %v2902, %v3084
      %v3111 = vadd.f32 %v2903, %v3085
      %v3112 = vadd.f32 %v2904, %v3086
      %v3113 = vadd.f32 %v2905, %v3087
      %v3114 = vadd.f32 %v2906, %v3088
      %v3115 = vadd.f32 %v2907, %v3089
      %v3116 = vadd.f32 %v2908, %v3090
      %v3117 = vadd.f32 %v2909, %v3091
      %v3118 = vadd.f32 %v2910, %v3092
      %v3119 = vadd.f32 %v2911, %v3093
      %v3120 = vadd.f32 %v2912, %v3094
      %v3121 = vadd.f32 %v2913, %v3095
      %v3122 = vadd.f32 %v2914, %v3096
      %v3123 = vadd.f32 %v2915, %v3097
      %v3124 = vadd.f32 %v2916, %v3098
      %v3125 = vadd.f32 %v2917, %v3099
      %v3126 = vadd.f32 %v2918, %v3100
      %v3127 = vadd.f32 %v2919, %v3101
      %v3128 = vadd.f32 %v2920, %v3102
      %v3129 = vadd.f32 %v2921, %v3103
      %v3130 = vadd.f32 %v2922, %v3104
      %v3131 = vld [vmem:[%s273 + $0xf1] sm:$0xff]
      %v3132 = vld [vmem:[%s273 + $0xf9] sm:$0xff]
      %v3133 = vld [vmem:[%s273 + $0x101] sm:$0xff]
      %v3134 = vld [vmem:[%s273 + $0x109] sm:$0xff]
      %v3135 = vld [vmem:[%s273 + $0x111] sm:$0xff]
      %v3136 = vld [vmem:[%s273 + $0x119] sm:$0xff]
      %v3137 = vld [vmem:[%s273 + $0x121] sm:$0xff]
      %v3138 = vld [vmem:[%s273 + $0x129] sm:$0xff]
      %v3139 = vld [vmem:[%s273 + $0x131] sm:$0xff]
      %v3140 = vld [vmem:[%s273 + $0x139] sm:$0xff]
      %v3141 = vld [vmem:[%s273 + $0x141] sm:$0xff]
      %v3142 = vld [vmem:[%s273 + $0x149] sm:$0xff]
      %v3143 = vld [vmem:[%s273 + $0x151] sm:$0xff]
      %v3144 = vld [vmem:[%s273 + $0x159] sm:$0xff]
      %v3145 = vld [vmem:[%s273 + $0x161] sm:$0xff]
      %v3146 = vld [vmem:[%s273 + $0x169] sm:$0xff]
      %v3147 = vld [vmem:[%s273 + $0x171] sm:$0xff]
      %v3148 = vld [vmem:[%s273 + $0x179] sm:$0xff]
      %v3149 = vld [vmem:[%s273 + $0x181] sm:$0xff]
      %v3150 = vld [vmem:[%s273 + $0x189] sm:$0xff]
      %v3151 = vld [vmem:[%s273 + $0x191] sm:$0xff]
      %v3152 = vld [vmem:[%s273 + $0x199] sm:$0xff]
      %v3153 = vld [vmem:[%s273 + $0x1a1] sm:$0xff]
      %v3154 = vld [vmem:[%s273 + $0x1a9] sm:$0xff]
      %v3155 = vld [vmem:[%s273 + $0x1b1] sm:$0xff]
      %v3156 = vld [vmem:[%s273 + $0x1b9] sm:$0xff]
      %3158 = vset.pattern.permute.xlu0 0
      %3159 = vperm.xlu0 %3158, %v3131
      %v3160 = vpop.permute.xlu0 %3159
      %3163 = vset.pattern.permute.xlu0 0
      %3164 = vperm.xlu0 %3163, %v3132
      %v3165 = vpop.permute.xlu0 %3164
      %3168 = vset.pattern.permute.xlu0 0
      %3169 = vperm.xlu0 %3168, %v3133
      %v3170 = vpop.permute.xlu0 %3169
      %3173 = vset.pattern.permute.xlu0 0
      %3174 = vperm.xlu0 %3173, %v3134
      %v3175 = vpop.permute.xlu0 %3174
      %3178 = vset.pattern.permute.xlu0 0
      %3179 = vperm.xlu0 %3178, %v3135
      %v3180 = vpop.permute.xlu0 %3179
      %3183 = vset.pattern.permute.xlu0 0
      %3184 = vperm.xlu0 %3183, %v3136
      %v3185 = vpop.permute.xlu0 %3184
      %3188 = vset.pattern.permute.xlu0 0
      %3189 = vperm.xlu0 %3188, %v3137
      %v3190 = vpop.permute.xlu0 %3189
      %3193 = vset.pattern.permute.xlu0 0
      %3194 = vperm.xlu0 %3193, %v3138
      %v3195 = vpop.permute.xlu0 %3194
      %3198 = vset.pattern.permute.xlu0 0
      %3199 = vperm.xlu0 %3198, %v3139
      %v3200 = vpop.permute.xlu0 %3199
      %3203 = vset.pattern.permute.xlu0 0
      %3204 = vperm.xlu0 %3203, %v3140
      %v3205 = vpop.permute.xlu0 %3204
      %3208 = vset.pattern.permute.xlu0 0
      %3209 = vperm.xlu0 %3208, %v3141
      %v3210 = vpop.permute.xlu0 %3209
      %3213 = vset.pattern.permute.xlu0 0
      %3214 = vperm.xlu0 %3213, %v3142
      %v3215 = vpop.permute.xlu0 %3214
      %3218 = vset.pattern.permute.xlu0 0
      %3219 = vperm.xlu0 %3218, %v3143
      %v3220 = vpop.permute.xlu0 %3219
      %3223 = vset.pattern.permute.xlu0 0
      %3224 = vperm.xlu0 %3223, %v3144
      %v3225 = vpop.permute.xlu0 %3224
      %3228 = vset.pattern.permute.xlu0 0
      %3229 = vperm.xlu0 %3228, %v3145
      %v3230 = vpop.permute.xlu0 %3229
      %3233 = vset.pattern.permute.xlu0 0
      %3234 = vperm.xlu0 %3233, %v3146
      %v3235 = vpop.permute.xlu0 %3234
      %3238 = vset.pattern.permute.xlu0 0
      %3239 = vperm.xlu0 %3238, %v3147
      %v3240 = vpop.permute.xlu0 %3239
      %3243 = vset.pattern.permute.xlu0 0
      %3244 = vperm.xlu0 %3243, %v3148
      %v3245 = vpop.permute.xlu0 %3244
      %3248 = vset.pattern.permute.xlu0 0
      %3249 = vperm.xlu0 %3248, %v3149
      %v3250 = vpop.permute.xlu0 %3249
      %3253 = vset.pattern.permute.xlu0 0
      %3254 = vperm.xlu0 %3253, %v3150
      %v3255 = vpop.permute.xlu0 %3254
      %3258 = vset.pattern.permute.xlu0 0
      %3259 = vperm.xlu0 %3258, %v3151
      %v3260 = vpop.permute.xlu0 %3259
      %3263 = vset.pattern.permute.xlu0 0
      %3264 = vperm.xlu0 %3263, %v3152
      %v3265 = vpop.permute.xlu0 %3264
      %3268 = vset.pattern.permute.xlu0 0
      %3269 = vperm.xlu0 %3268, %v3153
      %v3270 = vpop.permute.xlu0 %3269
      %3273 = vset.pattern.permute.xlu0 0
      %3274 = vperm.xlu0 %3273, %v3154
      %v3275 = vpop.permute.xlu0 %3274
      %3278 = vset.pattern.permute.xlu0 0
      %3279 = vperm.xlu0 %3278, %v3155
      %v3280 = vpop.permute.xlu0 %3279
      %3283 = vset.pattern.permute.xlu0 0
      %3284 = vperm.xlu0 %3283, %v3156
      %v3285 = vpop.permute.xlu0 %3284
      %v3287 = vmul.f32 %v3160, %v1346
      %v3288 = vmul.f32 %v3165, %v1346
      %v3289 = vmul.f32 %v3170, %v1346
      %v3290 = vmul.f32 %v3175, %v1346
      %v3291 = vmul.f32 %v3180, %v1346
      %v3292 = vmul.f32 %v3185, %v1346
      %v3293 = vmul.f32 %v3190, %v1346
      %v3294 = vmul.f32 %v3195, %v1346
      %v3295 = vmul.f32 %v3200, %v1346
      %v3296 = vmul.f32 %v3205, %v1346
      %v3297 = vmul.f32 %v3210, %v1346
      %v3298 = vmul.f32 %v3215, %v1346
      %v3299 = vmul.f32 %v3220, %v1346
      %v3300 = vmul.f32 %v3225, %v1346
      %v3301 = vmul.f32 %v3230, %v1346
      %v3302 = vmul.f32 %v3235, %v1346
      %v3303 = vmul.f32 %v3240, %v1346
      %v3304 = vmul.f32 %v3245, %v1346
      %v3305 = vmul.f32 %v3250, %v1346
      %v3306 = vmul.f32 %v3255, %v1346
      %v3307 = vmul.f32 %v3260, %v1346
      %v3308 = vmul.f32 %v3265, %v1346
      %v3309 = vmul.f32 %v3270, %v1346
      %v3310 = vmul.f32 %v3275, %v1346
      %v3311 = vmul.f32 %v3280, %v1346
      %v3312 = vmul.f32 %v3285, %v1346
      %v3313 = vadd.f32 %v3105, %v3287
      %v3314 = vadd.f32 %v3106, %v3288
      %v3315 = vadd.f32 %v3107, %v3289
      %v3316 = vadd.f32 %v3108, %v3290
      %v3317 = vadd.f32 %v3109, %v3291
      %v3318 = vadd.f32 %v3110, %v3292
      %v3319 = vadd.f32 %v3111, %v3293
      %v3320 = vadd.f32 %v3112, %v3294
      %v3321 = vadd.f32 %v3113, %v3295
      %v3322 = vadd.f32 %v3114, %v3296
      %v3323 = vadd.f32 %v3115, %v3297
      %v3324 = vadd.f32 %v3116, %v3298
      %v3325 = vadd.f32 %v3117, %v3299
      %v3326 = vadd.f32 %v3118, %v3300
      %v3327 = vadd.f32 %v3119, %v3301
      %v3328 = vadd.f32 %v3120, %v3302
      %v3329 = vadd.f32 %v3121, %v3303
      %v3330 = vadd.f32 %v3122, %v3304
      %v3331 = vadd.f32 %v3123, %v3305
      %v3332 = vadd.f32 %v3124, %v3306
      %v3333 = vadd.f32 %v3125, %v3307
      %v3334 = vadd.f32 %v3126, %v3308
      %v3335 = vadd.f32 %v3127, %v3309
      %v3336 = vadd.f32 %v3128, %v3310
      %v3337 = vadd.f32 %v3129, %v3311
      %v3338 = vadd.f32 %v3130, %v3312
      %v3339 = vld [vmem:[%s273 + $0xf2] sm:$0xff]
      %v3340 = vld [vmem:[%s273 + $0xfa] sm:$0xff]
      %v3341 = vld [vmem:[%s273 + $0x102] sm:$0xff]
      %v3342 = vld [vmem:[%s273 + $0x10a] sm:$0xff]
      %v3343 = vld [vmem:[%s273 + $0x112] sm:$0xff]
      %v3344 = vld [vmem:[%s273 + $0x11a] sm:$0xff]
      %v3345 = vld [vmem:[%s273 + $0x122] sm:$0xff]
      %v3346 = vld [vmem:[%s273 + $0x12a] sm:$0xff]
      %v3347 = vld [vmem:[%s273 + $0x132] sm:$0xff]
      %v3348 = vld [vmem:[%s273 + $0x13a] sm:$0xff]
      %v3349 = vld [vmem:[%s273 + $0x142] sm:$0xff]
      %v3350 = vld [vmem:[%s273 + $0x14a] sm:$0xff]
      %v3351 = vld [vmem:[%s273 + $0x152] sm:$0xff]
      %v3352 = vld [vmem:[%s273 + $0x15a] sm:$0xff]
      %v3353 = vld [vmem:[%s273 + $0x162] sm:$0xff]
      %v3354 = vld [vmem:[%s273 + $0x16a] sm:$0xff]
      %v3355 = vld [vmem:[%s273 + $0x172] sm:$0xff]
      %v3356 = vld [vmem:[%s273 + $0x17a] sm:$0xff]
      %v3357 = vld [vmem:[%s273 + $0x182] sm:$0xff]
      %v3358 = vld [vmem:[%s273 + $0x18a] sm:$0xff]
      %v3359 = vld [vmem:[%s273 + $0x192] sm:$0xff]
      %v3360 = vld [vmem:[%s273 + $0x19a] sm:$0xff]
      %v3361 = vld [vmem:[%s273 + $0x1a2] sm:$0xff]
      %v3362 = vld [vmem:[%s273 + $0x1aa] sm:$0xff]
      %v3363 = vld [vmem:[%s273 + $0x1b2] sm:$0xff]
      %v3364 = vld [vmem:[%s273 + $0x1ba] sm:$0xff]
      %3366 = vset.pattern.permute.xlu0 0
      %3367 = vperm.xlu0 %3366, %v3339
      %v3368 = vpop.permute.xlu0 %3367
      %3371 = vset.pattern.permute.xlu0 0
      %3372 = vperm.xlu0 %3371, %v3340
      %v3373 = vpop.permute.xlu0 %3372
      %3376 = vset.pattern.permute.xlu0 0
      %3377 = vperm.xlu0 %3376, %v3341
      %v3378 = vpop.permute.xlu0 %3377
      %3381 = vset.pattern.permute.xlu0 0
      %3382 = vperm.xlu0 %3381, %v3342
      %v3383 = vpop.permute.xlu0 %3382
      %3386 = vset.pattern.permute.xlu0 0
      %3387 = vperm.xlu0 %3386, %v3343
      %v3388 = vpop.permute.xlu0 %3387
      %3391 = vset.pattern.permute.xlu0 0
      %3392 = vperm.xlu0 %3391, %v3344
      %v3393 = vpop.permute.xlu0 %3392
      %3396 = vset.pattern.permute.xlu0 0
      %3397 = vperm.xlu0 %3396, %v3345
      %v3398 = vpop.permute.xlu0 %3397
      %3401 = vset.pattern.permute.xlu0 0
      %3402 = vperm.xlu0 %3401, %v3346
      %v3403 = vpop.permute.xlu0 %3402
      %3406 = vset.pattern.permute.xlu0 0
      %3407 = vperm.xlu0 %3406, %v3347
      %v3408 = vpop.permute.xlu0 %3407
      %3411 = vset.pattern.permute.xlu0 0
      %3412 = vperm.xlu0 %3411, %v3348
      %v3413 = vpop.permute.xlu0 %3412
      %3416 = vset.pattern.permute.xlu0 0
      %3417 = vperm.xlu0 %3416, %v3349
      %v3418 = vpop.permute.xlu0 %3417
      %3421 = vset.pattern.permute.xlu0 0
      %3422 = vperm.xlu0 %3421, %v3350
      %v3423 = vpop.permute.xlu0 %3422
      %3426 = vset.pattern.permute.xlu0 0
      %3427 = vperm.xlu0 %3426, %v3351
      %v3428 = vpop.permute.xlu0 %3427
      %3431 = vset.pattern.permute.xlu0 0
      %3432 = vperm.xlu0 %3431, %v3352
      %v3433 = vpop.permute.xlu0 %3432
      %3436 = vset.pattern.permute.xlu0 0
      %3437 = vperm.xlu0 %3436, %v3353
      %v3438 = vpop.permute.xlu0 %3437
      %3441 = vset.pattern.permute.xlu0 0
      %3442 = vperm.xlu0 %3441, %v3354
      %v3443 = vpop.permute.xlu0 %3442
      %3446 = vset.pattern.permute.xlu0 0
      %3447 = vperm.xlu0 %3446, %v3355
      %v3448 = vpop.permute.xlu0 %3447
      %3451 = vset.pattern.permute.xlu0 0
      %3452 = vperm.xlu0 %3451, %v3356
      %v3453 = vpop.permute.xlu0 %3452
      %3456 = vset.pattern.permute.xlu0 0
      %3457 = vperm.xlu0 %3456, %v3357
      %v3458 = vpop.permute.xlu0 %3457
      %3461 = vset.pattern.permute.xlu0 0
      %3462 = vperm.xlu0 %3461, %v3358
      %v3463 = vpop.permute.xlu0 %3462
      %3466 = vset.pattern.permute.xlu0 0
      %3467 = vperm.xlu0 %3466, %v3359
      %v3468 = vpop.permute.xlu0 %3467
      %3471 = vset.pattern.permute.xlu0 0
      %3472 = vperm.xlu0 %3471, %v3360
      %v3473 = vpop.permute.xlu0 %3472
      %3476 = vset.pattern.permute.xlu0 0
      %3477 = vperm.xlu0 %3476, %v3361
      %v3478 = vpop.permute.xlu0 %3477
      %3481 = vset.pattern.permute.xlu0 0
      %3482 = vperm.xlu0 %3481, %v3362
      %v3483 = vpop.permute.xlu0 %3482
      %3486 = vset.pattern.permute.xlu0 0
      %3487 = vperm.xlu0 %3486, %v3363
      %v3488 = vpop.permute.xlu0 %3487
      %3491 = vset.pattern.permute.xlu0 0
      %3492 = vperm.xlu0 %3491, %v3364
      %v3493 = vpop.permute.xlu0 %3492
      %v3495 = vmul.f32 %v3368, %v1558
      %v3496 = vmul.f32 %v3373, %v1558
      %v3497 = vmul.f32 %v3378, %v1558
      %v3498 = vmul.f32 %v3383, %v1558
      %v3499 = vmul.f32 %v3388, %v1558
      %v3500 = vmul.f32 %v3393, %v1558
      %v3501 = vmul.f32 %v3398, %v1558
      %v3502 = vmul.f32 %v3403, %v1558
      %v3503 = vmul.f32 %v3408, %v1558
      %v3504 = vmul.f32 %v3413, %v1558
      %v3505 = vmul.f32 %v3418, %v1558
      %v3506 = vmul.f32 %v3423, %v1558
      %v3507 = vmul.f32 %v3428, %v1558
      %v3508 = vmul.f32 %v3433, %v1558
      %v3509 = vmul.f32 %v3438, %v1558
      %v3510 = vmul.f32 %v3443, %v1558
      %v3511 = vmul.f32 %v3448, %v1558
      %v3512 = vmul.f32 %v3453, %v1558
      %v3513 = vmul.f32 %v3458, %v1558
      %v3514 = vmul.f32 %v3463, %v1558
      %v3515 = vmul.f32 %v3468, %v1558
      %v3516 = vmul.f32 %v3473, %v1558
      %v3517 = vmul.f32 %v3478, %v1558
      %v3518 = vmul.f32 %v3483, %v1558
      %v3519 = vmul.f32 %v3488, %v1558
      %v3520 = vmul.f32 %v3493, %v1558
      %v3521 = vadd.f32 %v3313, %v3495
      %v3522 = vadd.f32 %v3314, %v3496
      %v3523 = vadd.f32 %v3315, %v3497
      %v3524 = vadd.f32 %v3316, %v3498
      %v3525 = vadd.f32 %v3317, %v3499
      %v3526 = vadd.f32 %v3318, %v3500
      %v3527 = vadd.f32 %v3319, %v3501
      %v3528 = vadd.f32 %v3320, %v3502
      %v3529 = vadd.f32 %v3321, %v3503
      %v3530 = vadd.f32 %v3322, %v3504
      %v3531 = vadd.f32 %v3323, %v3505
      %v3532 = vadd.f32 %v3324, %v3506
      %v3533 = vadd.f32 %v3325, %v3507
      %v3534 = vadd.f32 %v3326, %v3508
      %v3535 = vadd.f32 %v3327, %v3509
      %v3536 = vadd.f32 %v3328, %v3510
      %v3537 = vadd.f32 %v3329, %v3511
      %v3538 = vadd.f32 %v3330, %v3512
      %v3539 = vadd.f32 %v3331, %v3513
      %v3540 = vadd.f32 %v3332, %v3514
      %v3541 = vadd.f32 %v3333, %v3515
      %v3542 = vadd.f32 %v3334, %v3516
      %v3543 = vadd.f32 %v3335, %v3517
      %v3544 = vadd.f32 %v3336, %v3518
      %v3545 = vadd.f32 %v3337, %v3519
      %v3546 = vadd.f32 %v3338, %v3520
      %v3547 = vld [vmem:[%s273 + $0x10e] sm:$0xff]
      %v3548 = vld [vmem:[%s273 + $0x116] sm:$0xff]
      %v3549 = vld [vmem:[%s273 + $0x11e] sm:$0xff]
      %v3550 = vld [vmem:[%s273 + $0x126] sm:$0xff]
      %v3551 = vld [vmem:[%s273 + $0x12e] sm:$0xff]
      %v3552 = vld [vmem:[%s273 + $0x136] sm:$0xff]
      %v3553 = vld [vmem:[%s273 + $0x13e] sm:$0xff]
      %v3554 = vld [vmem:[%s273 + $0x146] sm:$0xff]
      %v3555 = vld [vmem:[%s273 + $0x14e] sm:$0xff]
      %v3556 = vld [vmem:[%s273 + $0x156] sm:$0xff]
      %v3557 = vld [vmem:[%s273 + $0x15e] sm:$0xff]
      %v3558 = vld [vmem:[%s273 + $0x166] sm:$0xff]
      %v3559 = vld [vmem:[%s273 + $0x16e] sm:$0xff]
      %v3560 = vld [vmem:[%s273 + $0x176] sm:$0xff]
      %v3561 = vld [vmem:[%s273 + $0x17e] sm:$0xff]
      %v3562 = vld [vmem:[%s273 + $0x186] sm:$0xff]
      %v3563 = vld [vmem:[%s273 + $0x18e] sm:$0xff]
      %v3564 = vld [vmem:[%s273 + $0x196] sm:$0xff]
      %v3565 = vld [vmem:[%s273 + $0x19e] sm:$0xff]
      %v3566 = vld [vmem:[%s273 + $0x1a6] sm:$0xff]
      %v3567 = vld [vmem:[%s273 + $0x1ae] sm:$0xff]
      %v3568 = vld [vmem:[%s273 + $0x1b6] sm:$0xff]
      %v3569 = vld [vmem:[%s273 + $0x1be] sm:$0xff]
      %v3570 = vld [vmem:[%s273 + $0x1c6] sm:$0xff]
      %v3571 = vld [vmem:[%s273 + $0x1ce] sm:$0xff]
      %v3572 = vld [vmem:[%s273 + $0x1d6] sm:$0xff]
      %3574 = vset.pattern.permute.xlu0 0
      %3575 = vperm.xlu0 %3574, %v3547
      %v3576 = vpop.permute.xlu0 %3575
      %3579 = vset.pattern.permute.xlu0 0
      %3580 = vperm.xlu0 %3579, %v3548
      %v3581 = vpop.permute.xlu0 %3580
      %3584 = vset.pattern.permute.xlu0 0
      %3585 = vperm.xlu0 %3584, %v3549
      %v3586 = vpop.permute.xlu0 %3585
      %3589 = vset.pattern.permute.xlu0 0
      %3590 = vperm.xlu0 %3589, %v3550
      %v3591 = vpop.permute.xlu0 %3590
      %3594 = vset.pattern.permute.xlu0 0
      %3595 = vperm.xlu0 %3594, %v3551
      %v3596 = vpop.permute.xlu0 %3595
      %3599 = vset.pattern.permute.xlu0 0
      %3600 = vperm.xlu0 %3599, %v3552
      %v3601 = vpop.permute.xlu0 %3600
      %3604 = vset.pattern.permute.xlu0 0
      %3605 = vperm.xlu0 %3604, %v3553
      %v3606 = vpop.permute.xlu0 %3605
      %3609 = vset.pattern.permute.xlu0 0
      %3610 = vperm.xlu0 %3609, %v3554
      %v3611 = vpop.permute.xlu0 %3610
      %3614 = vset.pattern.permute.xlu0 0
      %3615 = vperm.xlu0 %3614, %v3555
      %v3616 = vpop.permute.xlu0 %3615
      %3619 = vset.pattern.permute.xlu0 0
      %3620 = vperm.xlu0 %3619, %v3556
      %v3621 = vpop.permute.xlu0 %3620
      %3624 = vset.pattern.permute.xlu0 0
      %3625 = vperm.xlu0 %3624, %v3557
      %v3626 = vpop.permute.xlu0 %3625
      %3629 = vset.pattern.permute.xlu0 0
      %3630 = vperm.xlu0 %3629, %v3558
      %v3631 = vpop.permute.xlu0 %3630
      %3634 = vset.pattern.permute.xlu0 0
      %3635 = vperm.xlu0 %3634, %v3559
      %v3636 = vpop.permute.xlu0 %3635
      %3639 = vset.pattern.permute.xlu0 0
      %3640 = vperm.xlu0 %3639, %v3560
      %v3641 = vpop.permute.xlu0 %3640
      %3644 = vset.pattern.permute.xlu0 0
      %3645 = vperm.xlu0 %3644, %v3561
      %v3646 = vpop.permute.xlu0 %3645
      %3649 = vset.pattern.permute.xlu0 0
      %3650 = vperm.xlu0 %3649, %v3562
      %v3651 = vpop.permute.xlu0 %3650
      %3654 = vset.pattern.permute.xlu0 0
      %3655 = vperm.xlu0 %3654, %v3563
      %v3656 = vpop.permute.xlu0 %3655
      %3659 = vset.pattern.permute.xlu0 0
      %3660 = vperm.xlu0 %3659, %v3564
      %v3661 = vpop.permute.xlu0 %3660
      %3664 = vset.pattern.permute.xlu0 0
      %3665 = vperm.xlu0 %3664, %v3565
      %v3666 = vpop.permute.xlu0 %3665
      %3669 = vset.pattern.permute.xlu0 0
      %3670 = vperm.xlu0 %3669, %v3566
      %v3671 = vpop.permute.xlu0 %3670
      %3674 = vset.pattern.permute.xlu0 0
      %3675 = vperm.xlu0 %3674, %v3567
      %v3676 = vpop.permute.xlu0 %3675
      %3679 = vset.pattern.permute.xlu0 0
      %3680 = vperm.xlu0 %3679, %v3568
      %v3681 = vpop.permute.xlu0 %3680
      %3684 = vset.pattern.permute.xlu0 0
      %3685 = vperm.xlu0 %3684, %v3569
      %v3686 = vpop.permute.xlu0 %3685
      %3689 = vset.pattern.permute.xlu0 0
      %3690 = vperm.xlu0 %3689, %v3570
      %v3691 = vpop.permute.xlu0 %3690
      %3694 = vset.pattern.permute.xlu0 0
      %3695 = vperm.xlu0 %3694, %v3571
      %v3696 = vpop.permute.xlu0 %3695
      %3699 = vset.pattern.permute.xlu0 0
      %3700 = vperm.xlu0 %3699, %v3572
      %v3701 = vpop.permute.xlu0 %3700
      %v3703 = vmul.f32 %v3576, %v1770
      %v3704 = vmul.f32 %v3581, %v1770
      %v3705 = vmul.f32 %v3586, %v1770
      %v3706 = vmul.f32 %v3591, %v1770
      %v3707 = vmul.f32 %v3596, %v1770
      %v3708 = vmul.f32 %v3601, %v1770
      %v3709 = vmul.f32 %v3606, %v1770
      %v3710 = vmul.f32 %v3611, %v1770
      %v3711 = vmul.f32 %v3616, %v1770
      %v3712 = vmul.f32 %v3621, %v1770
      %v3713 = vmul.f32 %v3626, %v1770
      %v3714 = vmul.f32 %v3631, %v1770
      %v3715 = vmul.f32 %v3636, %v1770
      %v3716 = vmul.f32 %v3641, %v1770
      %v3717 = vmul.f32 %v3646, %v1770
      %v3718 = vmul.f32 %v3651, %v1770
      %v3719 = vmul.f32 %v3656, %v1770
      %v3720 = vmul.f32 %v3661, %v1770
      %v3721 = vmul.f32 %v3666, %v1770
      %v3722 = vmul.f32 %v3671, %v1770
      %v3723 = vmul.f32 %v3676, %v1770
      %v3724 = vmul.f32 %v3681, %v1770
      %v3725 = vmul.f32 %v3686, %v1770
      %v3726 = vmul.f32 %v3691, %v1770
      %v3727 = vmul.f32 %v3696, %v1770
      %v3728 = vmul.f32 %v3701, %v1770
      %v3729 = vadd.f32 %v3521, %v3703
      %v3730 = vadd.f32 %v3522, %v3704
      %v3731 = vadd.f32 %v3523, %v3705
      %v3732 = vadd.f32 %v3524, %v3706
      %v3733 = vadd.f32 %v3525, %v3707
      %v3734 = vadd.f32 %v3526, %v3708
      %v3735 = vadd.f32 %v3527, %v3709
      %v3736 = vadd.f32 %v3528, %v3710
      %v3737 = vadd.f32 %v3529, %v3711
      %v3738 = vadd.f32 %v3530, %v3712
      %v3739 = vadd.f32 %v3531, %v3713
      %v3740 = vadd.f32 %v3532, %v3714
      %v3741 = vadd.f32 %v3533, %v3715
      %v3742 = vadd.f32 %v3534, %v3716
      %v3743 = vadd.f32 %v3535, %v3717
      %v3744 = vadd.f32 %v3536, %v3718
      %v3745 = vadd.f32 %v3537, %v3719
      %v3746 = vadd.f32 %v3538, %v3720
      %v3747 = vadd.f32 %v3539, %v3721
      %v3748 = vadd.f32 %v3540, %v3722
      %v3749 = vadd.f32 %v3541, %v3723
      %v3750 = vadd.f32 %v3542, %v3724
      %v3751 = vadd.f32 %v3543, %v3725
      %v3752 = vadd.f32 %v3544, %v3726
      %v3753 = vadd.f32 %v3545, %v3727
      %v3754 = vadd.f32 %v3546, %v3728
      %v3755 = vld [vmem:[%s273 + $0x10f] sm:$0xff]
      %v3756 = vld [vmem:[%s273 + $0x117] sm:$0xff]
      %v3757 = vld [vmem:[%s273 + $0x11f] sm:$0xff]
      %v3758 = vld [vmem:[%s273 + $0x127] sm:$0xff]
      %v3759 = vld [vmem:[%s273 + $0x12f] sm:$0xff]
      %v3760 = vld [vmem:[%s273 + $0x137] sm:$0xff]
      %v3761 = vld [vmem:[%s273 + $0x13f] sm:$0xff]
      %v3762 = vld [vmem:[%s273 + $0x147] sm:$0xff]
      %v3763 = vld [vmem:[%s273 + $0x14f] sm:$0xff]
      %v3764 = vld [vmem:[%s273 + $0x157] sm:$0xff]
      %v3765 = vld [vmem:[%s273 + $0x15f] sm:$0xff]
      %v3766 = vld [vmem:[%s273 + $0x167] sm:$0xff]
      %v3767 = vld [vmem:[%s273 + $0x16f] sm:$0xff]
      %v3768 = vld [vmem:[%s273 + $0x177] sm:$0xff]
      %v3769 = vld [vmem:[%s273 + $0x17f] sm:$0xff]
      %v3770 = vld [vmem:[%s273 + $0x187] sm:$0xff]
      %v3771 = vld [vmem:[%s273 + $0x18f] sm:$0xff]
      %v3772 = vld [vmem:[%s273 + $0x197] sm:$0xff]
      %v3773 = vld [vmem:[%s273 + $0x19f] sm:$0xff]
      %v3774 = vld [vmem:[%s273 + $0x1a7] sm:$0xff]
      %v3775 = vld [vmem:[%s273 + $0x1af] sm:$0xff]
      %v3776 = vld [vmem:[%s273 + $0x1b7] sm:$0xff]
      %v3777 = vld [vmem:[%s273 + $0x1bf] sm:$0xff]
      %v3778 = vld [vmem:[%s273 + $0x1c7] sm:$0xff]
      %v3779 = vld [vmem:[%s273 + $0x1cf] sm:$0xff]
      %v3780 = vld [vmem:[%s273 + $0x1d7] sm:$0xff]
      %3782 = vset.pattern.permute.xlu0 0
      %3783 = vperm.xlu0 %3782, %v3755
      %v3784 = vpop.permute.xlu0 %3783
      %3787 = vset.pattern.permute.xlu0 0
      %3788 = vperm.xlu0 %3787, %v3756
      %v3789 = vpop.permute.xlu0 %3788
      %3792 = vset.pattern.permute.xlu0 0
      %3793 = vperm.xlu0 %3792, %v3757
      %v3794 = vpop.permute.xlu0 %3793
      %3797 = vset.pattern.permute.xlu0 0
      %3798 = vperm.xlu0 %3797, %v3758
      %v3799 = vpop.permute.xlu0 %3798
      %3802 = vset.pattern.permute.xlu0 0
      %3803 = vperm.xlu0 %3802, %v3759
      %v3804 = vpop.permute.xlu0 %3803
      %3807 = vset.pattern.permute.xlu0 0
      %3808 = vperm.xlu0 %3807, %v3760
      %v3809 = vpop.permute.xlu0 %3808
      %3812 = vset.pattern.permute.xlu0 0
      %3813 = vperm.xlu0 %3812, %v3761
      %v3814 = vpop.permute.xlu0 %3813
      %3817 = vset.pattern.permute.xlu0 0
      %3818 = vperm.xlu0 %3817, %v3762
      %v3819 = vpop.permute.xlu0 %3818
      %3822 = vset.pattern.permute.xlu0 0
      %3823 = vperm.xlu0 %3822, %v3763
      %v3824 = vpop.permute.xlu0 %3823
      %3827 = vset.pattern.permute.xlu0 0
      %3828 = vperm.xlu0 %3827, %v3764
      %v3829 = vpop.permute.xlu0 %3828
      %3832 = vset.pattern.permute.xlu0 0
      %3833 = vperm.xlu0 %3832, %v3765
      %v3834 = vpop.permute.xlu0 %3833
      %3837 = vset.pattern.permute.xlu0 0
      %3838 = vperm.xlu0 %3837, %v3766
      %v3839 = vpop.permute.xlu0 %3838
      %3842 = vset.pattern.permute.xlu0 0
      %3843 = vperm.xlu0 %3842, %v3767
      %v3844 = vpop.permute.xlu0 %3843
      %3847 = vset.pattern.permute.xlu0 0
      %3848 = vperm.xlu0 %3847, %v3768
      %v3849 = vpop.permute.xlu0 %3848
      %3852 = vset.pattern.permute.xlu0 0
      %3853 = vperm.xlu0 %3852, %v3769
      %v3854 = vpop.permute.xlu0 %3853
      %3857 = vset.pattern.permute.xlu0 0
      %3858 = vperm.xlu0 %3857, %v3770
      %v3859 = vpop.permute.xlu0 %3858
      %3862 = vset.pattern.permute.xlu0 0
      %3863 = vperm.xlu0 %3862, %v3771
      %v3864 = vpop.permute.xlu0 %3863
      %3867 = vset.pattern.permute.xlu0 0
      %3868 = vperm.xlu0 %3867, %v3772
      %v3869 = vpop.permute.xlu0 %3868
      %3872 = vset.pattern.permute.xlu0 0
      %3873 = vperm.xlu0 %3872, %v3773
      %v3874 = vpop.permute.xlu0 %3873
      %3877 = vset.pattern.permute.xlu0 0
      %3878 = vperm.xlu0 %3877, %v3774
      %v3879 = vpop.permute.xlu0 %3878
      %3882 = vset.pattern.permute.xlu0 0
      %3883 = vperm.xlu0 %3882, %v3775
      %v3884 = vpop.permute.xlu0 %3883
      %3887 = vset.pattern.permute.xlu0 0
      %3888 = vperm.xlu0 %3887, %v3776
      %v3889 = vpop.permute.xlu0 %3888
      %3892 = vset.pattern.permute.xlu0 0
      %3893 = vperm.xlu0 %3892, %v3777
      %v3894 = vpop.permute.xlu0 %3893
      %3897 = vset.pattern.permute.xlu0 0
      %3898 = vperm.xlu0 %3897, %v3778
      %v3899 = vpop.permute.xlu0 %3898
      %3902 = vset.pattern.permute.xlu0 0
      %3903 = vperm.xlu0 %3902, %v3779
      %v3904 = vpop.permute.xlu0 %3903
      %3907 = vset.pattern.permute.xlu0 0
      %3908 = vperm.xlu0 %3907, %v3780
      %v3909 = vpop.permute.xlu0 %3908
      %v3911 = vmul.f32 %v3784, %v1982
      %v3912 = vmul.f32 %v3789, %v1982
      %v3913 = vmul.f32 %v3794, %v1982
      %v3914 = vmul.f32 %v3799, %v1982
      %v3915 = vmul.f32 %v3804, %v1982
      %v3916 = vmul.f32 %v3809, %v1982
      %v3917 = vmul.f32 %v3814, %v1982
      %v3918 = vmul.f32 %v3819, %v1982
      %v3919 = vmul.f32 %v3824, %v1982
      %v3920 = vmul.f32 %v3829, %v1982
      %v3921 = vmul.f32 %v3834, %v1982
      %v3922 = vmul.f32 %v3839, %v1982
      %v3923 = vmul.f32 %v3844, %v1982
      %v3924 = vmul.f32 %v3849, %v1982
      %v3925 = vmul.f32 %v3854, %v1982
      %v3926 = vmul.f32 %v3859, %v1982
      %v3927 = vmul.f32 %v3864, %v1982
      %v3928 = vmul.f32 %v3869, %v1982
      %v3929 = vmul.f32 %v3874, %v1982
      %v3930 = vmul.f32 %v3879, %v1982
      %v3931 = vmul.f32 %v3884, %v1982
      %v3932 = vmul.f32 %v3889, %v1982
      %v3933 = vmul.f32 %v3894, %v1982
      %v3934 = vmul.f32 %v3899, %v1982
      %v3935 = vmul.f32 %v3904, %v1982
      %v3936 = vmul.f32 %v3909, %v1982
      %v3937 = vadd.f32 %v3729, %v3911
      %v3938 = vadd.f32 %v3730, %v3912
      %v3939 = vadd.f32 %v3731, %v3913
      %v3940 = vadd.f32 %v3732, %v3914
      %v3941 = vadd.f32 %v3733, %v3915
      %v3942 = vadd.f32 %v3734, %v3916
      %v3943 = vadd.f32 %v3735, %v3917
      %v3944 = vadd.f32 %v3736, %v3918
      %v3945 = vadd.f32 %v3737, %v3919
      %v3946 = vadd.f32 %v3738, %v3920
      %v3947 = vadd.f32 %v3739, %v3921
      %v3948 = vadd.f32 %v3740, %v3922
      %v3949 = vadd.f32 %v3741, %v3923
      %v3950 = vadd.f32 %v3742, %v3924
      %v3951 = vadd.f32 %v3743, %v3925
      %v3952 = vadd.f32 %v3744, %v3926
      %v3953 = vadd.f32 %v3745, %v3927
      %v3954 = vadd.f32 %v3746, %v3928
      %v3955 = vadd.f32 %v3747, %v3929
      %v3956 = vadd.f32 %v3748, %v3930
      %v3957 = vadd.f32 %v3749, %v3931
      %v3958 = vadd.f32 %v3750, %v3932
      %v3959 = vadd.f32 %v3751, %v3933
      %v3960 = vadd.f32 %v3752, %v3934
      %v3961 = vadd.f32 %v3753, %v3935
      %v3962 = vadd.f32 %v3754, %v3936
      %v3963 = vld [vmem:[%s273 + $0x110] sm:$0xff]
      %v3964 = vld [vmem:[%s273 + $0x118] sm:$0xff]
      %v3965 = vld [vmem:[%s273 + $0x120] sm:$0xff]
      %v3966 = vld [vmem:[%s273 + $0x128] sm:$0xff]
      %v3967 = vld [vmem:[%s273 + $0x130] sm:$0xff]
      %v3968 = vld [vmem:[%s273 + $0x138] sm:$0xff]
      %v3969 = vld [vmem:[%s273 + $0x140] sm:$0xff]
      %v3970 = vld [vmem:[%s273 + $0x148] sm:$0xff]
      %v3971 = vld [vmem:[%s273 + $0x150] sm:$0xff]
      %v3972 = vld [vmem:[%s273 + $0x158] sm:$0xff]
      %v3973 = vld [vmem:[%s273 + $0x160] sm:$0xff]
      %v3974 = vld [vmem:[%s273 + $0x168] sm:$0xff]
      %v3975 = vld [vmem:[%s273 + $0x170] sm:$0xff]
      %v3976 = vld [vmem:[%s273 + $0x178] sm:$0xff]
      %v3977 = vld [vmem:[%s273 + $0x180] sm:$0xff]
      %v3978 = vld [vmem:[%s273 + $0x188] sm:$0xff]
      %v3979 = vld [vmem:[%s273 + $0x190] sm:$0xff]
      %v3980 = vld [vmem:[%s273 + $0x198] sm:$0xff]
      %v3981 = vld [vmem:[%s273 + $0x1a0] sm:$0xff]
      %v3982 = vld [vmem:[%s273 + $0x1a8] sm:$0xff]
      %v3983 = vld [vmem:[%s273 + $0x1b0] sm:$0xff]
      %v3984 = vld [vmem:[%s273 + $0x1b8] sm:$0xff]
      %v3985 = vld [vmem:[%s273 + $0x1c0] sm:$0xff]
      %v3986 = vld [vmem:[%s273 + $0x1c8] sm:$0xff]
      %v3987 = vld [vmem:[%s273 + $0x1d0] sm:$0xff]
      %v3988 = vld [vmem:[%s273 + $0x1d8] sm:$0xff]
      %3990 = vset.pattern.permute.xlu0 0
      %3991 = vperm.xlu0 %3990, %v3963
      %v3992 = vpop.permute.xlu0 %3991
      %3995 = vset.pattern.permute.xlu0 0
      %3996 = vperm.xlu0 %3995, %v3964
      %v3997 = vpop.permute.xlu0 %3996
      %4000 = vset.pattern.permute.xlu0 0
      %4001 = vperm.xlu0 %4000, %v3965
      %v4002 = vpop.permute.xlu0 %4001
      %4005 = vset.pattern.permute.xlu0 0
      %4006 = vperm.xlu0 %4005, %v3966
      %v4007 = vpop.permute.xlu0 %4006
      %4010 = vset.pattern.permute.xlu0 0
      %4011 = vperm.xlu0 %4010, %v3967
      %v4012 = vpop.permute.xlu0 %4011
      %4015 = vset.pattern.permute.xlu0 0
      %4016 = vperm.xlu0 %4015, %v3968
      %v4017 = vpop.permute.xlu0 %4016
      %4020 = vset.pattern.permute.xlu0 0
      %4021 = vperm.xlu0 %4020, %v3969
      %v4022 = vpop.permute.xlu0 %4021
      %4025 = vset.pattern.permute.xlu0 0
      %4026 = vperm.xlu0 %4025, %v3970
      %v4027 = vpop.permute.xlu0 %4026
      %4030 = vset.pattern.permute.xlu0 0
      %4031 = vperm.xlu0 %4030, %v3971
      %v4032 = vpop.permute.xlu0 %4031
      %4035 = vset.pattern.permute.xlu0 0
      %4036 = vperm.xlu0 %4035, %v3972
      %v4037 = vpop.permute.xlu0 %4036
      %4040 = vset.pattern.permute.xlu0 0
      %4041 = vperm.xlu0 %4040, %v3973
      %v4042 = vpop.permute.xlu0 %4041
      %4045 = vset.pattern.permute.xlu0 0
      %4046 = vperm.xlu0 %4045, %v3974
      %v4047 = vpop.permute.xlu0 %4046
      %4050 = vset.pattern.permute.xlu0 0
      %4051 = vperm.xlu0 %4050, %v3975
      %v4052 = vpop.permute.xlu0 %4051
      %4055 = vset.pattern.permute.xlu0 0
      %4056 = vperm.xlu0 %4055, %v3976
      %v4057 = vpop.permute.xlu0 %4056
      %4060 = vset.pattern.permute.xlu0 0
      %4061 = vperm.xlu0 %4060, %v3977
      %v4062 = vpop.permute.xlu0 %4061
      %4065 = vset.pattern.permute.xlu0 0
      %4066 = vperm.xlu0 %4065, %v3978
      %v4067 = vpop.permute.xlu0 %4066
      %4070 = vset.pattern.permute.xlu0 0
      %4071 = vperm.xlu0 %4070, %v3979
      %v4072 = vpop.permute.xlu0 %4071
      %4075 = vset.pattern.permute.xlu0 0
      %4076 = vperm.xlu0 %4075, %v3980
      %v4077 = vpop.permute.xlu0 %4076
      %4080 = vset.pattern.permute.xlu0 0
      %4081 = vperm.xlu0 %4080, %v3981
      %v4082 = vpop.permute.xlu0 %4081
      %4085 = vset.pattern.permute.xlu0 0
      %4086 = vperm.xlu0 %4085, %v3982
      %v4087 = vpop.permute.xlu0 %4086
      %4090 = vset.pattern.permute.xlu0 0
      %4091 = vperm.xlu0 %4090, %v3983
      %v4092 = vpop.permute.xlu0 %4091
      %4095 = vset.pattern.permute.xlu0 0
      %4096 = vperm.xlu0 %4095, %v3984
      %v4097 = vpop.permute.xlu0 %4096
      %4100 = vset.pattern.permute.xlu0 0
      %4101 = vperm.xlu0 %4100, %v3985
      %v4102 = vpop.permute.xlu0 %4101
      %4105 = vset.pattern.permute.xlu0 0
      %4106 = vperm.xlu0 %4105, %v3986
      %v4107 = vpop.permute.xlu0 %4106
      %4110 = vset.pattern.permute.xlu0 0
      %4111 = vperm.xlu0 %4110, %v3987
      %v4112 = vpop.permute.xlu0 %4111
      %4115 = vset.pattern.permute.xlu0 0
      %4116 = vperm.xlu0 %4115, %v3988
      %v4117 = vpop.permute.xlu0 %4116
      %v4119 = vmul.f32 %v3992, %v2194
      %v4120 = vmul.f32 %v3997, %v2194
      %v4121 = vmul.f32 %v4002, %v2194
      %v4122 = vmul.f32 %v4007, %v2194
      %v4123 = vmul.f32 %v4012, %v2194
      %v4124 = vmul.f32 %v4017, %v2194
      %v4125 = vmul.f32 %v4022, %v2194
      %v4126 = vmul.f32 %v4027, %v2194
      %v4127 = vmul.f32 %v4032, %v2194
      %v4128 = vmul.f32 %v4037, %v2194
      %v4129 = vmul.f32 %v4042, %v2194
      %v4130 = vmul.f32 %v4047, %v2194
      %v4131 = vmul.f32 %v4052, %v2194
      %v4132 = vmul.f32 %v4057, %v2194
      %v4133 = vmul.f32 %v4062, %v2194
      %v4134 = vmul.f32 %v4067, %v2194
      %v4135 = vmul.f32 %v4072, %v2194
      %v4136 = vmul.f32 %v4077, %v2194
      %v4137 = vmul.f32 %v4082, %v2194
      %v4138 = vmul.f32 %v4087, %v2194
      %v4139 = vmul.f32 %v4092, %v2194
      %v4140 = vmul.f32 %v4097, %v2194
      %v4141 = vmul.f32 %v4102, %v2194
      %v4142 = vmul.f32 %v4107, %v2194
      %v4143 = vmul.f32 %v4112, %v2194
      %v4144 = vmul.f32 %v4117, %v2194
      %v4145 = vadd.f32 %v3937, %v4119
      %v4146 = vadd.f32 %v3938, %v4120
      %v4147 = vadd.f32 %v3939, %v4121
      %v4148 = vadd.f32 %v3940, %v4122
      %v4149 = vadd.f32 %v3941, %v4123
      %v4150 = vadd.f32 %v3942, %v4124
      %v4151 = vadd.f32 %v3943, %v4125
      %v4152 = vadd.f32 %v3944, %v4126
      %v4153 = vadd.f32 %v3945, %v4127
      %v4154 = vadd.f32 %v3946, %v4128
      %v4155 = vadd.f32 %v3947, %v4129
      %v4156 = vadd.f32 %v3948, %v4130
      %v4157 = vadd.f32 %v3949, %v4131
      %v4158 = vadd.f32 %v3950, %v4132
      %v4159 = vadd.f32 %v3951, %v4133
      %v4160 = vadd.f32 %v3952, %v4134
      %v4161 = vadd.f32 %v3953, %v4135
      %v4162 = vadd.f32 %v3954, %v4136
      %v4163 = vadd.f32 %v3955, %v4137
      %v4164 = vadd.f32 %v3956, %v4138
      %v4165 = vadd.f32 %v3957, %v4139
      %v4166 = vadd.f32 %v3958, %v4140
      %v4167 = vadd.f32 %v3959, %v4141
      %v4168 = vadd.f32 %v3960, %v4142
      %v4169 = vadd.f32 %v3961, %v4143
      %v4170 = vadd.f32 %v3962, %v4144
      %v4171 = vmax.f32 %v4145, 0.0
      %v4172 = vmax.f32 %v4146, 0.0
      %v4173 = vmax.f32 %v4147, 0.0
      %v4174 = vmax.f32 %v4148, 0.0
      %v4175 = vmax.f32 %v4149, 0.0
      %v4176 = vmax.f32 %v4150, 0.0
      %v4177 = vmax.f32 %v4151, 0.0
      %v4178 = vmax.f32 %v4152, 0.0
      %v4179 = vmax.f32 %v4153, 0.0
      %v4180 = vmax.f32 %v4154, 0.0
      %v4181 = vmax.f32 %v4155, 0.0
      %v4182 = vmax.f32 %v4156, 0.0
      %v4183 = vmax.f32 %v4157, 0.0
      %v4184 = vmax.f32 %v4158, 0.0
      %v4185 = vmax.f32 %v4159, 0.0
      %v4186 = vmax.f32 %v4160, 0.0
      %v4187 = vmax.f32 %v4161, 0.0
      %v4188 = vmax.f32 %v4162, 0.0
      %v4189 = vmax.f32 %v4163, 0.0
      %v4190 = vmax.f32 %v4164, 0.0
      %v4191 = vmax.f32 %v4165, 0.0
      %v4192 = vmax.f32 %v4166, 0.0
      %v4193 = vmax.f32 %v4167, 0.0
      %v4194 = vmax.f32 %v4168, 0.0
      %v4195 = vmax.f32 %v4169, 0.0
      %v4196 = vmax.f32 %v4170, 0.0
      %4197 = vst.msk [vmem:[#allocation2 + $0xd2] sm:$0xff] %vm280, %v4171
      %4198 = vst.msk [vmem:[#allocation2 + $0xda] sm:$0xff] %vm280, %v4172
      %4199 = vst.msk [vmem:[#allocation2 + $0xe2] sm:$0xff] %vm280, %v4173
      %4200 = vst.msk [vmem:[#allocation2 + $0xea] sm:$0xff] %vm280, %v4174
      %4201 = vst.msk [vmem:[#allocation2 + $0xf2] sm:$0xff] %vm280, %v4175
      %4202 = vst.msk [vmem:[#allocation2 + $0xfa] sm:$0xff] %vm280, %v4176
      %4203 = vst.msk [vmem:[#allocation2 + $0x102] sm:$0xff] %vm280, %v4177
      %4204 = vst.msk [vmem:[#allocation2 + $0x10a] sm:$0xff] %vm280, %v4178
      %4205 = vst.msk [vmem:[#allocation2 + $0x112] sm:$0xff] %vm280, %v4179
      %4206 = vst.msk [vmem:[#allocation2 + $0x11a] sm:$0xff] %vm280, %v4180
      %4207 = vst.msk [vmem:[#allocation2 + $0x122] sm:$0xff] %vm280, %v4181
      %4208 = vst.msk [vmem:[#allocation2 + $0x12a] sm:$0xff] %vm280, %v4182
      %4209 = vst.msk [vmem:[#allocation2 + $0x132] sm:$0xff] %vm280, %v4183
      %4210 = vst.msk [vmem:[#allocation2 + $0x13a] sm:$0xff] %vm280, %v4184
      %4211 = vst.msk [vmem:[#allocation2 + $0x142] sm:$0xff] %vm280, %v4185
      %4212 = vst.msk [vmem:[#allocation2 + $0x14a] sm:$0xff] %vm280, %v4186
      %4213 = vst.msk [vmem:[#allocation2 + $0x152] sm:$0xff] %vm280, %v4187
      %4214 = vst.msk [vmem:[#allocation2 + $0x15a] sm:$0xff] %vm280, %v4188
      %4215 = vst.msk [vmem:[#allocation2 + $0x162] sm:$0xff] %vm280, %v4189
      %4216 = vst.msk [vmem:[#allocation2 + $0x16a] sm:$0xff] %vm280, %v4190
      %4217 = vst.msk [vmem:[#allocation2 + $0x172] sm:$0xff] %vm280, %v4191
      %4218 = vst.msk [vmem:[#allocation2 + $0x17a] sm:$0xff] %vm280, %v4192
      %4219 = vst.msk [vmem:[#allocation2 + $0x182] sm:$0xff] %vm280, %v4193
      %4220 = vst.msk [vmem:[#allocation2 + $0x18a] sm:$0xff] %vm280, %v4194
      %4221 = vst.msk [vmem:[#allocation2 + $0x192] sm:$0xff] %vm280, %v4195
      %4222 = vst.msk [vmem:[#allocation2 + $0x19a] sm:$0xff] %vm280, %v4196
      %v4223 = vld [vmem:[%s273 + $0x1a4] sm:$0xff]
      %v4224 = vld [vmem:[%s273 + $0x1ac] sm:$0xff]
      %v4225 = vld [vmem:[%s273 + $0x1b4] sm:$0xff]
      %v4226 = vld [vmem:[%s273 + $0x1bc] sm:$0xff]
      %v4227 = vld [vmem:[%s273 + $0x1c4] sm:$0xff]
      %v4228 = vld [vmem:[%s273 + $0x1cc] sm:$0xff]
      %v4229 = vld [vmem:[%s273 + $0x1d4] sm:$0xff]
      %v4230 = vld [vmem:[%s273 + $0x1dc] sm:$0xff]
      %v4231 = vld [vmem:[%s273 + $0x1e4] sm:$0xff]
      %v4232 = vld [vmem:[%s273 + $0x1ec] sm:$0xff]
      %v4233 = vld [vmem:[%s273 + $0x1f4] sm:$0xff]
      %v4234 = vld [vmem:[%s273 + $0x1fc] sm:$0xff]
      %v4235 = vld [vmem:[%s273 + $0x204] sm:$0xff]
      %v4236 = vld [vmem:[%s273 + $0x20c] sm:$0xff]
      %v4237 = vld [vmem:[%s273 + $0x214] sm:$0xff]
      %v4238 = vld [vmem:[%s273 + $0x21c] sm:$0xff]
      %v4239 = vld [vmem:[%s273 + $0x224] sm:$0xff]
      %v4240 = vld [vmem:[%s273 + $0x22c] sm:$0xff]
      %v4241 = vld [vmem:[%s273 + $0x234] sm:$0xff]
      %v4242 = vld [vmem:[%s273 + $0x23c] sm:$0xff]
      %v4243 = vld [vmem:[%s273 + $0x244] sm:$0xff]
      %v4244 = vld [vmem:[%s273 + $0x24c] sm:$0xff]
      %v4245 = vld [vmem:[%s273 + $0x254] sm:$0xff]
      %v4246 = vld [vmem:[%s273 + $0x25c] sm:$0xff]
      %v4247 = vld [vmem:[%s273 + $0x264] sm:$0xff]
      %v4248 = vld [vmem:[%s273 + $0x26c] sm:$0xff]
      %4250 = vset.pattern.permute.xlu0 0
      %4251 = vperm.xlu0 %4250, %v4223
      %v4252 = vpop.permute.xlu0 %4251
      %4255 = vset.pattern.permute.xlu0 0
      %4256 = vperm.xlu0 %4255, %v4224
      %v4257 = vpop.permute.xlu0 %4256
      %4260 = vset.pattern.permute.xlu0 0
      %4261 = vperm.xlu0 %4260, %v4225
      %v4262 = vpop.permute.xlu0 %4261
      %4265 = vset.pattern.permute.xlu0 0
      %4266 = vperm.xlu0 %4265, %v4226
      %v4267 = vpop.permute.xlu0 %4266
      %4270 = vset.pattern.permute.xlu0 0
      %4271 = vperm.xlu0 %4270, %v4227
      %v4272 = vpop.permute.xlu0 %4271
      %4275 = vset.pattern.permute.xlu0 0
      %4276 = vperm.xlu0 %4275, %v4228
      %v4277 = vpop.permute.xlu0 %4276
      %4280 = vset.pattern.permute.xlu0 0
      %4281 = vperm.xlu0 %4280, %v4229
      %v4282 = vpop.permute.xlu0 %4281
      %4285 = vset.pattern.permute.xlu0 0
      %4286 = vperm.xlu0 %4285, %v4230
      %v4287 = vpop.permute.xlu0 %4286
      %4290 = vset.pattern.permute.xlu0 0
      %4291 = vperm.xlu0 %4290, %v4231
      %v4292 = vpop.permute.xlu0 %4291
      %4295 = vset.pattern.permute.xlu0 0
      %4296 = vperm.xlu0 %4295, %v4232
      %v4297 = vpop.permute.xlu0 %4296
      %4300 = vset.pattern.permute.xlu0 0
      %4301 = vperm.xlu0 %4300, %v4233
      %v4302 = vpop.permute.xlu0 %4301
      %4305 = vset.pattern.permute.xlu0 0
      %4306 = vperm.xlu0 %4305, %v4234
      %v4307 = vpop.permute.xlu0 %4306
      %4310 = vset.pattern.permute.xlu0 0
      %4311 = vperm.xlu0 %4310, %v4235
      %v4312 = vpop.permute.xlu0 %4311
      %4315 = vset.pattern.permute.xlu0 0
      %4316 = vperm.xlu0 %4315, %v4236
      %v4317 = vpop.permute.xlu0 %4316
      %4320 = vset.pattern.permute.xlu0 0
      %4321 = vperm.xlu0 %4320, %v4237
      %v4322 = vpop.permute.xlu0 %4321
      %4325 = vset.pattern.permute.xlu0 0
      %4326 = vperm.xlu0 %4325, %v4238
      %v4327 = vpop.permute.xlu0 %4326
      %4330 = vset.pattern.permute.xlu0 0
      %4331 = vperm.xlu0 %4330, %v4239
      %v4332 = vpop.permute.xlu0 %4331
      %4335 = vset.pattern.permute.xlu0 0
      %4336 = vperm.xlu0 %4335, %v4240
      %v4337 = vpop.permute.xlu0 %4336
      %4340 = vset.pattern.permute.xlu0 0
      %4341 = vperm.xlu0 %4340, %v4241
      %v4342 = vpop.permute.xlu0 %4341
      %4345 = vset.pattern.permute.xlu0 0
      %4346 = vperm.xlu0 %4345, %v4242
      %v4347 = vpop.permute.xlu0 %4346
      %4350 = vset.pattern.permute.xlu0 0
      %4351 = vperm.xlu0 %4350, %v4243
      %v4352 = vpop.permute.xlu0 %4351
      %4355 = vset.pattern.permute.xlu0 0
      %4356 = vperm.xlu0 %4355, %v4244
      %v4357 = vpop.permute.xlu0 %4356
      %4360 = vset.pattern.permute.xlu0 0
      %4361 = vperm.xlu0 %4360, %v4245
      %v4362 = vpop.permute.xlu0 %4361
      %4365 = vset.pattern.permute.xlu0 0
      %4366 = vperm.xlu0 %4365, %v4246
      %v4367 = vpop.permute.xlu0 %4366
      %4370 = vset.pattern.permute.xlu0 0
      %4371 = vperm.xlu0 %4370, %v4247
      %v4372 = vpop.permute.xlu0 %4371
      %4375 = vset.pattern.permute.xlu0 0
      %4376 = vperm.xlu0 %4375, %v4248
      %v4377 = vpop.permute.xlu0 %4376
      %v4379 = vmul.f32 %v4252, %v498
      %v4380 = vmul.f32 %v4257, %v498
      %v4381 = vmul.f32 %v4262, %v498
      %v4382 = vmul.f32 %v4267, %v498
      %v4383 = vmul.f32 %v4272, %v498
      %v4384 = vmul.f32 %v4277, %v498
      %v4385 = vmul.f32 %v4282, %v498
      %v4386 = vmul.f32 %v4287, %v498
      %v4387 = vmul.f32 %v4292, %v498
      %v4388 = vmul.f32 %v4297, %v498
      %v4389 = vmul.f32 %v4302, %v498
      %v4390 = vmul.f32 %v4307, %v498
      %v4391 = vmul.f32 %v4312, %v498
      %v4392 = vmul.f32 %v4317, %v498
      %v4393 = vmul.f32 %v4322, %v498
      %v4394 = vmul.f32 %v4327, %v498
      %v4395 = vmul.f32 %v4332, %v498
      %v4396 = vmul.f32 %v4337, %v498
      %v4397 = vmul.f32 %v4342, %v498
      %v4398 = vmul.f32 %v4347, %v498
      %v4399 = vmul.f32 %v4352, %v498
      %v4400 = vmul.f32 %v4357, %v498
      %v4401 = vmul.f32 %v4362, %v498
      %v4402 = vmul.f32 %v4367, %v498
      %v4403 = vmul.f32 %v4372, %v498
      %v4404 = vmul.f32 %v4377, %v498
      %v4405 = vadd.f32 %v337, %v4379
      %v4406 = vadd.f32 %v337, %v4380
      %v4407 = vadd.f32 %v337, %v4381
      %v4408 = vadd.f32 %v337, %v4382
      %v4409 = vadd.f32 %v337, %v4383
      %v4410 = vadd.f32 %v337, %v4384
      %v4411 = vadd.f32 %v337, %v4385
      %v4412 = vadd.f32 %v337, %v4386
      %v4413 = vadd.f32 %v337, %v4387
      %v4414 = vadd.f32 %v337, %v4388
      %v4415 = vadd.f32 %v337, %v4389
      %v4416 = vadd.f32 %v337, %v4390
      %v4417 = vadd.f32 %v337, %v4391
      %v4418 = vadd.f32 %v337, %v4392
      %v4419 = vadd.f32 %v337, %v4393
      %v4420 = vadd.f32 %v337, %v4394
      %v4421 = vadd.f32 %v337, %v4395
      %v4422 = vadd.f32 %v337, %v4396
      %v4423 = vadd.f32 %v337, %v4397
      %v4424 = vadd.f32 %v337, %v4398
      %v4425 = vadd.f32 %v337, %v4399
      %v4426 = vadd.f32 %v337, %v4400
      %v4427 = vadd.f32 %v337, %v4401
      %v4428 = vadd.f32 %v337, %v4402
      %v4429 = vadd.f32 %v337, %v4403
      %v4430 = vadd.f32 %v337, %v4404
      %v4431 = vld [vmem:[%s273 + $0x1a5] sm:$0xff]
      %v4432 = vld [vmem:[%s273 + $0x1ad] sm:$0xff]
      %v4433 = vld [vmem:[%s273 + $0x1b5] sm:$0xff]
      %v4434 = vld [vmem:[%s273 + $0x1bd] sm:$0xff]
      %v4435 = vld [vmem:[%s273 + $0x1c5] sm:$0xff]
      %v4436 = vld [vmem:[%s273 + $0x1cd] sm:$0xff]
      %v4437 = vld [vmem:[%s273 + $0x1d5] sm:$0xff]
      %v4438 = vld [vmem:[%s273 + $0x1dd] sm:$0xff]
      %v4439 = vld [vmem:[%s273 + $0x1e5] sm:$0xff]
      %v4440 = vld [vmem:[%s273 + $0x1ed] sm:$0xff]
      %v4441 = vld [vmem:[%s273 + $0x1f5] sm:$0xff]
      %v4442 = vld [vmem:[%s273 + $0x1fd] sm:$0xff]
      %v4443 = vld [vmem:[%s273 + $0x205] sm:$0xff]
      %v4444 = vld [vmem:[%s273 + $0x20d] sm:$0xff]
      %v4445 = vld [vmem:[%s273 + $0x215] sm:$0xff]
      %v4446 = vld [vmem:[%s273 + $0x21d] sm:$0xff]
      %v4447 = vld [vmem:[%s273 + $0x225] sm:$0xff]
      %v4448 = vld [vmem:[%s273 + $0x22d] sm:$0xff]
      %v4449 = vld [vmem:[%s273 + $0x235] sm:$0xff]
      %v4450 = vld [vmem:[%s273 + $0x23d] sm:$0xff]
      %v4451 = vld [vmem:[%s273 + $0x245] sm:$0xff]
      %v4452 = vld [vmem:[%s273 + $0x24d] sm:$0xff]
      %v4453 = vld [vmem:[%s273 + $0x255] sm:$0xff]
      %v4454 = vld [vmem:[%s273 + $0x25d] sm:$0xff]
      %v4455 = vld [vmem:[%s273 + $0x265] sm:$0xff]
      %v4456 = vld [vmem:[%s273 + $0x26d] sm:$0xff]
      %4458 = vset.pattern.permute.xlu0 0
      %4459 = vperm.xlu0 %4458, %v4431
      %v4460 = vpop.permute.xlu0 %4459
      %4463 = vset.pattern.permute.xlu0 0
      %4464 = vperm.xlu0 %4463, %v4432
      %v4465 = vpop.permute.xlu0 %4464
      %4468 = vset.pattern.permute.xlu0 0
      %4469 = vperm.xlu0 %4468, %v4433
      %v4470 = vpop.permute.xlu0 %4469
      %4473 = vset.pattern.permute.xlu0 0
      %4474 = vperm.xlu0 %4473, %v4434
      %v4475 = vpop.permute.xlu0 %4474
      %4478 = vset.pattern.permute.xlu0 0
      %4479 = vperm.xlu0 %4478, %v4435
      %v4480 = vpop.permute.xlu0 %4479
      %4483 = vset.pattern.permute.xlu0 0
      %4484 = vperm.xlu0 %4483, %v4436
      %v4485 = vpop.permute.xlu0 %4484
      %4488 = vset.pattern.permute.xlu0 0
      %4489 = vperm.xlu0 %4488, %v4437
      %v4490 = vpop.permute.xlu0 %4489
      %4493 = vset.pattern.permute.xlu0 0
      %4494 = vperm.xlu0 %4493, %v4438
      %v4495 = vpop.permute.xlu0 %4494
      %4498 = vset.pattern.permute.xlu0 0
      %4499 = vperm.xlu0 %4498, %v4439
      %v4500 = vpop.permute.xlu0 %4499
      %4503 = vset.pattern.permute.xlu0 0
      %4504 = vperm.xlu0 %4503, %v4440
      %v4505 = vpop.permute.xlu0 %4504
      %4508 = vset.pattern.permute.xlu0 0
      %4509 = vperm.xlu0 %4508, %v4441
      %v4510 = vpop.permute.xlu0 %4509
      %4513 = vset.pattern.permute.xlu0 0
      %4514 = vperm.xlu0 %4513, %v4442
      %v4515 = vpop.permute.xlu0 %4514
      %4518 = vset.pattern.permute.xlu0 0
      %4519 = vperm.xlu0 %4518, %v4443
      %v4520 = vpop.permute.xlu0 %4519
      %4523 = vset.pattern.permute.xlu0 0
      %4524 = vperm.xlu0 %4523, %v4444
      %v4525 = vpop.permute.xlu0 %4524
      %4528 = vset.pattern.permute.xlu0 0
      %4529 = vperm.xlu0 %4528, %v4445
      %v4530 = vpop.permute.xlu0 %4529
      %4533 = vset.pattern.permute.xlu0 0
      %4534 = vperm.xlu0 %4533, %v4446
      %v4535 = vpop.permute.xlu0 %4534
      %4538 = vset.pattern.permute.xlu0 0
      %4539 = vperm.xlu0 %4538, %v4447
      %v4540 = vpop.permute.xlu0 %4539
      %4543 = vset.pattern.permute.xlu0 0
      %4544 = vperm.xlu0 %4543, %v4448
      %v4545 = vpop.permute.xlu0 %4544
      %4548 = vset.pattern.permute.xlu0 0
      %4549 = vperm.xlu0 %4548, %v4449
      %v4550 = vpop.permute.xlu0 %4549
      %4553 = vset.pattern.permute.xlu0 0
      %4554 = vperm.xlu0 %4553, %v4450
      %v4555 = vpop.permute.xlu0 %4554
      %4558 = vset.pattern.permute.xlu0 0
      %4559 = vperm.xlu0 %4558, %v4451
      %v4560 = vpop.permute.xlu0 %4559
      %4563 = vset.pattern.permute.xlu0 0
      %4564 = vperm.xlu0 %4563, %v4452
      %v4565 = vpop.permute.xlu0 %4564
      %4568 = vset.pattern.permute.xlu0 0
      %4569 = vperm.xlu0 %4568, %v4453
      %v4570 = vpop.permute.xlu0 %4569
      %4573 = vset.pattern.permute.xlu0 0
      %4574 = vperm.xlu0 %4573, %v4454
      %v4575 = vpop.permute.xlu0 %4574
      %4578 = vset.pattern.permute.xlu0 0
      %4579 = vperm.xlu0 %4578, %v4455
      %v4580 = vpop.permute.xlu0 %4579
      %4583 = vset.pattern.permute.xlu0 0
      %4584 = vperm.xlu0 %4583, %v4456
      %v4585 = vpop.permute.xlu0 %4584
      %v4587 = vmul.f32 %v4460, %v710
      %v4588 = vmul.f32 %v4465, %v710
      %v4589 = vmul.f32 %v4470, %v710
      %v4590 = vmul.f32 %v4475, %v710
      %v4591 = vmul.f32 %v4480, %v710
      %v4592 = vmul.f32 %v4485, %v710
      %v4593 = vmul.f32 %v4490, %v710
      %v4594 = vmul.f32 %v4495, %v710
      %v4595 = vmul.f32 %v4500, %v710
      %v4596 = vmul.f32 %v4505, %v710
      %v4597 = vmul.f32 %v4510, %v710
      %v4598 = vmul.f32 %v4515, %v710
      %v4599 = vmul.f32 %v4520, %v710
      %v4600 = vmul.f32 %v4525, %v710
      %v4601 = vmul.f32 %v4530, %v710
      %v4602 = vmul.f32 %v4535, %v710
      %v4603 = vmul.f32 %v4540, %v710
      %v4604 = vmul.f32 %v4545, %v710
      %v4605 = vmul.f32 %v4550, %v710
      %v4606 = vmul.f32 %v4555, %v710
      %v4607 = vmul.f32 %v4560, %v710
      %v4608 = vmul.f32 %v4565, %v710
      %v4609 = vmul.f32 %v4570, %v710
      %v4610 = vmul.f32 %v4575, %v710
      %v4611 = vmul.f32 %v4580, %v710
      %v4612 = vmul.f32 %v4585, %v710
      %v4613 = vadd.f32 %v4405, %v4587
      %v4614 = vadd.f32 %v4406, %v4588
      %v4615 = vadd.f32 %v4407, %v4589
      %v4616 = vadd.f32 %v4408, %v4590
      %v4617 = vadd.f32 %v4409, %v4591
      %v4618 = vadd.f32 %v4410, %v4592
      %v4619 = vadd.f32 %v4411, %v4593
      %v4620 = vadd.f32 %v4412, %v4594
      %v4621 = vadd.f32 %v4413, %v4595
      %v4622 = vadd.f32 %v4414, %v4596
      %v4623 = vadd.f32 %v4415, %v4597
      %v4624 = vadd.f32 %v4416, %v4598
      %v4625 = vadd.f32 %v4417, %v4599
      %v4626 = vadd.f32 %v4418, %v4600
      %v4627 = vadd.f32 %v4419, %v4601
      %v4628 = vadd.f32 %v4420, %v4602
      %v4629 = vadd.f32 %v4421, %v4603
      %v4630 = vadd.f32 %v4422, %v4604
      %v4631 = vadd.f32 %v4423, %v4605
      %v4632 = vadd.f32 %v4424, %v4606
      %v4633 = vadd.f32 %v4425, %v4607
      %v4634 = vadd.f32 %v4426, %v4608
      %v4635 = vadd.f32 %v4427, %v4609
      %v4636 = vadd.f32 %v4428, %v4610
      %v4637 = vadd.f32 %v4429, %v4611
      %v4638 = vadd.f32 %v4430, %v4612
      %v4639 = vld [vmem:[%s273 + $0x1a6] sm:$0xff]
      %v4640 = vld [vmem:[%s273 + $0x1ae] sm:$0xff]
      %v4641 = vld [vmem:[%s273 + $0x1b6] sm:$0xff]
      %v4642 = vld [vmem:[%s273 + $0x1be] sm:$0xff]
      %v4643 = vld [vmem:[%s273 + $0x1c6] sm:$0xff]
      %v4644 = vld [vmem:[%s273 + $0x1ce] sm:$0xff]
      %v4645 = vld [vmem:[%s273 + $0x1d6] sm:$0xff]
      %v4646 = vld [vmem:[%s273 + $0x1de] sm:$0xff]
      %v4647 = vld [vmem:[%s273 + $0x1e6] sm:$0xff]
      %v4648 = vld [vmem:[%s273 + $0x1ee] sm:$0xff]
      %v4649 = vld [vmem:[%s273 + $0x1f6] sm:$0xff]
      %v4650 = vld [vmem:[%s273 + $0x1fe] sm:$0xff]
      %v4651 = vld [vmem:[%s273 + $0x206] sm:$0xff]
      %v4652 = vld [vmem:[%s273 + $0x20e] sm:$0xff]
      %v4653 = vld [vmem:[%s273 + $0x216] sm:$0xff]
      %v4654 = vld [vmem:[%s273 + $0x21e] sm:$0xff]
      %v4655 = vld [vmem:[%s273 + $0x226] sm:$0xff]
      %v4656 = vld [vmem:[%s273 + $0x22e] sm:$0xff]
      %v4657 = vld [vmem:[%s273 + $0x236] sm:$0xff]
      %v4658 = vld [vmem:[%s273 + $0x23e] sm:$0xff]
      %v4659 = vld [vmem:[%s273 + $0x246] sm:$0xff]
      %v4660 = vld [vmem:[%s273 + $0x24e] sm:$0xff]
      %v4661 = vld [vmem:[%s273 + $0x256] sm:$0xff]
      %v4662 = vld [vmem:[%s273 + $0x25e] sm:$0xff]
      %v4663 = vld [vmem:[%s273 + $0x266] sm:$0xff]
      %v4664 = vld [vmem:[%s273 + $0x26e] sm:$0xff]
      %4666 = vset.pattern.permute.xlu0 0
      %4667 = vperm.xlu0 %4666, %v4639
      %v4668 = vpop.permute.xlu0 %4667
      %4671 = vset.pattern.permute.xlu0 0
      %4672 = vperm.xlu0 %4671, %v4640
      %v4673 = vpop.permute.xlu0 %4672
      %4676 = vset.pattern.permute.xlu0 0
      %4677 = vperm.xlu0 %4676, %v4641
      %v4678 = vpop.permute.xlu0 %4677
      %4681 = vset.pattern.permute.xlu0 0
      %4682 = vperm.xlu0 %4681, %v4642
      %v4683 = vpop.permute.xlu0 %4682
      %4686 = vset.pattern.permute.xlu0 0
      %4687 = vperm.xlu0 %4686, %v4643
      %v4688 = vpop.permute.xlu0 %4687
      %4691 = vset.pattern.permute.xlu0 0
      %4692 = vperm.xlu0 %4691, %v4644
      %v4693 = vpop.permute.xlu0 %4692
      %4696 = vset.pattern.permute.xlu0 0
      %4697 = vperm.xlu0 %4696, %v4645
      %v4698 = vpop.permute.xlu0 %4697
      %4701 = vset.pattern.permute.xlu0 0
      %4702 = vperm.xlu0 %4701, %v4646
      %v4703 = vpop.permute.xlu0 %4702
      %4706 = vset.pattern.permute.xlu0 0
      %4707 = vperm.xlu0 %4706, %v4647
      %v4708 = vpop.permute.xlu0 %4707
      %4711 = vset.pattern.permute.xlu0 0
      %4712 = vperm.xlu0 %4711, %v4648
      %v4713 = vpop.permute.xlu0 %4712
      %4716 = vset.pattern.permute.xlu0 0
      %4717 = vperm.xlu0 %4716, %v4649
      %v4718 = vpop.permute.xlu0 %4717
      %4721 = vset.pattern.permute.xlu0 0
      %4722 = vperm.xlu0 %4721, %v4650
      %v4723 = vpop.permute.xlu0 %4722
      %4726 = vset.pattern.permute.xlu0 0
      %4727 = vperm.xlu0 %4726, %v4651
      %v4728 = vpop.permute.xlu0 %4727
      %4731 = vset.pattern.permute.xlu0 0
      %4732 = vperm.xlu0 %4731, %v4652
      %v4733 = vpop.permute.xlu0 %4732
      %4736 = vset.pattern.permute.xlu0 0
      %4737 = vperm.xlu0 %4736, %v4653
      %v4738 = vpop.permute.xlu0 %4737
      %4741 = vset.pattern.permute.xlu0 0
      %4742 = vperm.xlu0 %4741, %v4654
      %v4743 = vpop.permute.xlu0 %4742
      %4746 = vset.pattern.permute.xlu0 0
      %4747 = vperm.xlu0 %4746, %v4655
      %v4748 = vpop.permute.xlu0 %4747
      %4751 = vset.pattern.permute.xlu0 0
      %4752 = vperm.xlu0 %4751, %v4656
      %v4753 = vpop.permute.xlu0 %4752
      %4756 = vset.pattern.permute.xlu0 0
      %4757 = vperm.xlu0 %4756, %v4657
      %v4758 = vpop.permute.xlu0 %4757
      %4761 = vset.pattern.permute.xlu0 0
      %4762 = vperm.xlu0 %4761, %v4658
      %v4763 = vpop.permute.xlu0 %4762
      %4766 = vset.pattern.permute.xlu0 0
      %4767 = vperm.xlu0 %4766, %v4659
      %v4768 = vpop.permute.xlu0 %4767
      %4771 = vset.pattern.permute.xlu0 0
      %4772 = vperm.xlu0 %4771, %v4660
      %v4773 = vpop.permute.xlu0 %4772
      %4776 = vset.pattern.permute.xlu0 0
      %4777 = vperm.xlu0 %4776, %v4661
      %v4778 = vpop.permute.xlu0 %4777
      %4781 = vset.pattern.permute.xlu0 0
      %4782 = vperm.xlu0 %4781, %v4662
      %v4783 = vpop.permute.xlu0 %4782
      %4786 = vset.pattern.permute.xlu0 0
      %4787 = vperm.xlu0 %4786, %v4663
      %v4788 = vpop.permute.xlu0 %4787
      %4791 = vset.pattern.permute.xlu0 0
      %4792 = vperm.xlu0 %4791, %v4664
      %v4793 = vpop.permute.xlu0 %4792
      %v4795 = vmul.f32 %v4668, %v922
      %v4796 = vmul.f32 %v4673, %v922
      %v4797 = vmul.f32 %v4678, %v922
      %v4798 = vmul.f32 %v4683, %v922
      %v4799 = vmul.f32 %v4688, %v922
      %v4800 = vmul.f32 %v4693, %v922
      %v4801 = vmul.f32 %v4698, %v922
      %v4802 = vmul.f32 %v4703, %v922
      %v4803 = vmul.f32 %v4708, %v922
      %v4804 = vmul.f32 %v4713, %v922
      %v4805 = vmul.f32 %v4718, %v922
      %v4806 = vmul.f32 %v4723, %v922
      %v4807 = vmul.f32 %v4728, %v922
      %v4808 = vmul.f32 %v4733, %v922
      %v4809 = vmul.f32 %v4738, %v922
      %v4810 = vmul.f32 %v4743, %v922
      %v4811 = vmul.f32 %v4748, %v922
      %v4812 = vmul.f32 %v4753, %v922
      %v4813 = vmul.f32 %v4758, %v922
      %v4814 = vmul.f32 %v4763, %v922
      %v4815 = vmul.f32 %v4768, %v922
      %v4816 = vmul.f32 %v4773, %v922
      %v4817 = vmul.f32 %v4778, %v922
      %v4818 = vmul.f32 %v4783, %v922
      %v4819 = vmul.f32 %v4788, %v922
      %v4820 = vmul.f32 %v4793, %v922
      %v4821 = vadd.f32 %v4613, %v4795
      %v4822 = vadd.f32 %v4614, %v4796
      %v4823 = vadd.f32 %v4615, %v4797
      %v4824 = vadd.f32 %v4616, %v4798
      %v4825 = vadd.f32 %v4617, %v4799
      %v4826 = vadd.f32 %v4618, %v4800
      %v4827 = vadd.f32 %v4619, %v4801
      %v4828 = vadd.f32 %v4620, %v4802
      %v4829 = vadd.f32 %v4621, %v4803
      %v4830 = vadd.f32 %v4622, %v4804
      %v4831 = vadd.f32 %v4623, %v4805
      %v4832 = vadd.f32 %v4624, %v4806
      %v4833 = vadd.f32 %v4625, %v4807
      %v4834 = vadd.f32 %v4626, %v4808
      %v4835 = vadd.f32 %v4627, %v4809
      %v4836 = vadd.f32 %v4628, %v4810
      %v4837 = vadd.f32 %v4629, %v4811
      %v4838 = vadd.f32 %v4630, %v4812
      %v4839 = vadd.f32 %v4631, %v4813
      %v4840 = vadd.f32 %v4632, %v4814
      %v4841 = vadd.f32 %v4633, %v4815
      %v4842 = vadd.f32 %v4634, %v4816
      %v4843 = vadd.f32 %v4635, %v4817
      %v4844 = vadd.f32 %v4636, %v4818
      %v4845 = vadd.f32 %v4637, %v4819
      %v4846 = vadd.f32 %v4638, %v4820
      %v4847 = vld [vmem:[%s273 + $0x1c2] sm:$0xff]
      %v4848 = vld [vmem:[%s273 + $0x1ca] sm:$0xff]
      %v4849 = vld [vmem:[%s273 + $0x1d2] sm:$0xff]
      %v4850 = vld [vmem:[%s273 + $0x1da] sm:$0xff]
      %v4851 = vld [vmem:[%s273 + $0x1e2] sm:$0xff]
      %v4852 = vld [vmem:[%s273 + $0x1ea] sm:$0xff]
      %v4853 = vld [vmem:[%s273 + $0x1f2] sm:$0xff]
      %v4854 = vld [vmem:[%s273 + $0x1fa] sm:$0xff]
      %v4855 = vld [vmem:[%s273 + $0x202] sm:$0xff]
      %v4856 = vld [vmem:[%s273 + $0x20a] sm:$0xff]
      %v4857 = vld [vmem:[%s273 + $0x212] sm:$0xff]
      %v4858 = vld [vmem:[%s273 + $0x21a] sm:$0xff]
      %v4859 = vld [vmem:[%s273 + $0x222] sm:$0xff]
      %v4860 = vld [vmem:[%s273 + $0x22a] sm:$0xff]
      %v4861 = vld [vmem:[%s273 + $0x232] sm:$0xff]
      %v4862 = vld [vmem:[%s273 + $0x23a] sm:$0xff]
      %v4863 = vld [vmem:[%s273 + $0x242] sm:$0xff]
      %v4864 = vld [vmem:[%s273 + $0x24a] sm:$0xff]
      %v4865 = vld [vmem:[%s273 + $0x252] sm:$0xff]
      %v4866 = vld [vmem:[%s273 + $0x25a] sm:$0xff]
      %v4867 = vld [vmem:[%s273 + $0x262] sm:$0xff]
      %v4868 = vld [vmem:[%s273 + $0x26a] sm:$0xff]
      %v4869 = vld [vmem:[%s273 + $0x272] sm:$0xff]
      %v4870 = vld [vmem:[%s273 + $0x27a] sm:$0xff]
      %v4871 = vld [vmem:[%s273 + $0x282] sm:$0xff]
      %v4872 = vld [vmem:[%s273 + $0x28a] sm:$0xff]
      %4874 = vset.pattern.permute.xlu0 0
      %4875 = vperm.xlu0 %4874, %v4847
      %v4876 = vpop.permute.xlu0 %4875
      %4879 = vset.pattern.permute.xlu0 0
      %4880 = vperm.xlu0 %4879, %v4848
      %v4881 = vpop.permute.xlu0 %4880
      %4884 = vset.pattern.permute.xlu0 0
      %4885 = vperm.xlu0 %4884, %v4849
      %v4886 = vpop.permute.xlu0 %4885
      %4889 = vset.pattern.permute.xlu0 0
      %4890 = vperm.xlu0 %4889, %v4850
      %v4891 = vpop.permute.xlu0 %4890
      %4894 = vset.pattern.permute.xlu0 0
      %4895 = vperm.xlu0 %4894, %v4851
      %v4896 = vpop.permute.xlu0 %4895
      %4899 = vset.pattern.permute.xlu0 0
      %4900 = vperm.xlu0 %4899, %v4852
      %v4901 = vpop.permute.xlu0 %4900
      %4904 = vset.pattern.permute.xlu0 0
      %4905 = vperm.xlu0 %4904, %v4853
      %v4906 = vpop.permute.xlu0 %4905
      %4909 = vset.pattern.permute.xlu0 0
      %4910 = vperm.xlu0 %4909, %v4854
      %v4911 = vpop.permute.xlu0 %4910
      %4914 = vset.pattern.permute.xlu0 0
      %4915 = vperm.xlu0 %4914, %v4855
      %v4916 = vpop.permute.xlu0 %4915
      %4919 = vset.pattern.permute.xlu0 0
      %4920 = vperm.xlu0 %4919, %v4856
      %v4921 = vpop.permute.xlu0 %4920
      %4924 = vset.pattern.permute.xlu0 0
      %4925 = vperm.xlu0 %4924, %v4857
      %v4926 = vpop.permute.xlu0 %4925
      %4929 = vset.pattern.permute.xlu0 0
      %4930 = vperm.xlu0 %4929, %v4858
      %v4931 = vpop.permute.xlu0 %4930
      %4934 = vset.pattern.permute.xlu0 0
      %4935 = vperm.xlu0 %4934, %v4859
      %v4936 = vpop.permute.xlu0 %4935
      %4939 = vset.pattern.permute.xlu0 0
      %4940 = vperm.xlu0 %4939, %v4860
      %v4941 = vpop.permute.xlu0 %4940
      %4944 = vset.pattern.permute.xlu0 0
      %4945 = vperm.xlu0 %4944, %v4861
      %v4946 = vpop.permute.xlu0 %4945
      %4949 = vset.pattern.permute.xlu0 0
      %4950 = vperm.xlu0 %4949, %v4862
      %v4951 = vpop.permute.xlu0 %4950
      %4954 = vset.pattern.permute.xlu0 0
      %4955 = vperm.xlu0 %4954, %v4863
      %v4956 = vpop.permute.xlu0 %4955
      %4959 = vset.pattern.permute.xlu0 0
      %4960 = vperm.xlu0 %4959, %v4864
      %v4961 = vpop.permute.xlu0 %4960
      %4964 = vset.pattern.permute.xlu0 0
      %4965 = vperm.xlu0 %4964, %v4865
      %v4966 = vpop.permute.xlu0 %4965
      %4969 = vset.pattern.permute.xlu0 0
      %4970 = vperm.xlu0 %4969, %v4866
      %v4971 = vpop.permute.xlu0 %4970
      %4974 = vset.pattern.permute.xlu0 0
      %4975 = vperm.xlu0 %4974, %v4867
      %v4976 = vpop.permute.xlu0 %4975
      %4979 = vset.pattern.permute.xlu0 0
      %4980 = vperm.xlu0 %4979, %v4868
      %v4981 = vpop.permute.xlu0 %4980
      %4984 = vset.pattern.permute.xlu0 0
      %4985 = vperm.xlu0 %4984, %v4869
      %v4986 = vpop.permute.xlu0 %4985
      %4989 = vset.pattern.permute.xlu0 0
      %4990 = vperm.xlu0 %4989, %v4870
      %v4991 = vpop.permute.xlu0 %4990
      %4994 = vset.pattern.permute.xlu0 0
      %4995 = vperm.xlu0 %4994, %v4871
      %v4996 = vpop.permute.xlu0 %4995
      %4999 = vset.pattern.permute.xlu0 0
      %5000 = vperm.xlu0 %4999, %v4872
      %v5001 = vpop.permute.xlu0 %5000
      %v5003 = vmul.f32 %v4876, %v1134
      %v5004 = vmul.f32 %v4881, %v1134
      %v5005 = vmul.f32 %v4886, %v1134
      %v5006 = vmul.f32 %v4891, %v1134
      %v5007 = vmul.f32 %v4896, %v1134
      %v5008 = vmul.f32 %v4901, %v1134
      %v5009 = vmul.f32 %v4906, %v1134
      %v5010 = vmul.f32 %v4911, %v1134
      %v5011 = vmul.f32 %v4916, %v1134
      %v5012 = vmul.f32 %v4921, %v1134
      %v5013 = vmul.f32 %v4926, %v1134
      %v5014 = vmul.f32 %v4931, %v1134
      %v5015 = vmul.f32 %v4936, %v1134
      %v5016 = vmul.f32 %v4941, %v1134
      %v5017 = vmul.f32 %v4946, %v1134
      %v5018 = vmul.f32 %v4951, %v1134
      %v5019 = vmul.f32 %v4956, %v1134
      %v5020 = vmul.f32 %v4961, %v1134
      %v5021 = vmul.f32 %v4966, %v1134
      %v5022 = vmul.f32 %v4971, %v1134
      %v5023 = vmul.f32 %v4976, %v1134
      %v5024 = vmul.f32 %v4981, %v1134
      %v5025 = vmul.f32 %v4986, %v1134
      %v5026 = vmul.f32 %v4991, %v1134
      %v5027 = vmul.f32 %v4996, %v1134
      %v5028 = vmul.f32 %v5001, %v1134
      %v5029 = vadd.f32 %v4821, %v5003
      %v5030 = vadd.f32 %v4822, %v5004
      %v5031 = vadd.f32 %v4823, %v5005
      %v5032 = vadd.f32 %v4824, %v5006
      %v5033 = vadd.f32 %v4825, %v5007
      %v5034 = vadd.f32 %v4826, %v5008
      %v5035 = vadd.f32 %v4827, %v5009
      %v5036 = vadd.f32 %v4828, %v5010
      %v5037 = vadd.f32 %v4829, %v5011
      %v5038 = vadd.f32 %v4830, %v5012
      %v5039 = vadd.f32 %v4831, %v5013
      %v5040 = vadd.f32 %v4832, %v5014
      %v5041 = vadd.f32 %v4833, %v5015
      %v5042 = vadd.f32 %v4834, %v5016
      %v5043 = vadd.f32 %v4835, %v5017
      %v5044 = vadd.f32 %v4836, %v5018
      %v5045 = vadd.f32 %v4837, %v5019
      %v5046 = vadd.f32 %v4838, %v5020
      %v5047 = vadd.f32 %v4839, %v5021
      %v5048 = vadd.f32 %v4840, %v5022
      %v5049 = vadd.f32 %v4841, %v5023
      %v5050 = vadd.f32 %v4842, %v5024
      %v5051 = vadd.f32 %v4843, %v5025
      %v5052 = vadd.f32 %v4844, %v5026
      %v5053 = vadd.f32 %v4845, %v5027
      %v5054 = vadd.f32 %v4846, %v5028
      %v5055 = vld [vmem:[%s273 + $0x1c3] sm:$0xff]
      %v5056 = vld [vmem:[%s273 + $0x1cb] sm:$0xff]
      %v5057 = vld [vmem:[%s273 + $0x1d3] sm:$0xff]
      %v5058 = vld [vmem:[%s273 + $0x1db] sm:$0xff]
      %v5059 = vld [vmem:[%s273 + $0x1e3] sm:$0xff]
      %v5060 = vld [vmem:[%s273 + $0x1eb] sm:$0xff]
      %v5061 = vld [vmem:[%s273 + $0x1f3] sm:$0xff]
      %v5062 = vld [vmem:[%s273 + $0x1fb] sm:$0xff]
      %v5063 = vld [vmem:[%s273 + $0x203] sm:$0xff]
      %v5064 = vld [vmem:[%s273 + $0x20b] sm:$0xff]
      %v5065 = vld [vmem:[%s273 + $0x213] sm:$0xff]
      %v5066 = vld [vmem:[%s273 + $0x21b] sm:$0xff]
      %v5067 = vld [vmem:[%s273 + $0x223] sm:$0xff]
      %v5068 = vld [vmem:[%s273 + $0x22b] sm:$0xff]
      %v5069 = vld [vmem:[%s273 + $0x233] sm:$0xff]
      %v5070 = vld [vmem:[%s273 + $0x23b] sm:$0xff]
      %v5071 = vld [vmem:[%s273 + $0x243] sm:$0xff]
      %v5072 = vld [vmem:[%s273 + $0x24b] sm:$0xff]
      %v5073 = vld [vmem:[%s273 + $0x253] sm:$0xff]
      %v5074 = vld [vmem:[%s273 + $0x25b] sm:$0xff]
      %v5075 = vld [vmem:[%s273 + $0x263] sm:$0xff]
      %v5076 = vld [vmem:[%s273 + $0x26b] sm:$0xff]
      %v5077 = vld [vmem:[%s273 + $0x273] sm:$0xff]
      %v5078 = vld [vmem:[%s273 + $0x27b] sm:$0xff]
      %v5079 = vld [vmem:[%s273 + $0x283] sm:$0xff]
      %v5080 = vld [vmem:[%s273 + $0x28b] sm:$0xff]
      %5082 = vset.pattern.permute.xlu0 0
      %5083 = vperm.xlu0 %5082, %v5055
      %v5084 = vpop.permute.xlu0 %5083
      %5087 = vset.pattern.permute.xlu0 0
      %5088 = vperm.xlu0 %5087, %v5056
      %v5089 = vpop.permute.xlu0 %5088
      %5092 = vset.pattern.permute.xlu0 0
      %5093 = vperm.xlu0 %5092, %v5057
      %v5094 = vpop.permute.xlu0 %5093
      %5097 = vset.pattern.permute.xlu0 0
      %5098 = vperm.xlu0 %5097, %v5058
      %v5099 = vpop.permute.xlu0 %5098
      %5102 = vset.pattern.permute.xlu0 0
      %5103 = vperm.xlu0 %5102, %v5059
      %v5104 = vpop.permute.xlu0 %5103
      %5107 = vset.pattern.permute.xlu0 0
      %5108 = vperm.xlu0 %5107, %v5060
      %v5109 = vpop.permute.xlu0 %5108
      %5112 = vset.pattern.permute.xlu0 0
      %5113 = vperm.xlu0 %5112, %v5061
      %v5114 = vpop.permute.xlu0 %5113
      %5117 = vset.pattern.permute.xlu0 0
      %5118 = vperm.xlu0 %5117, %v5062
      %v5119 = vpop.permute.xlu0 %5118
      %5122 = vset.pattern.permute.xlu0 0
      %5123 = vperm.xlu0 %5122, %v5063
      %v5124 = vpop.permute.xlu0 %5123
      %5127 = vset.pattern.permute.xlu0 0
      %5128 = vperm.xlu0 %5127, %v5064
      %v5129 = vpop.permute.xlu0 %5128
      %5132 = vset.pattern.permute.xlu0 0
      %5133 = vperm.xlu0 %5132, %v5065
      %v5134 = vpop.permute.xlu0 %5133
      %5137 = vset.pattern.permute.xlu0 0
      %5138 = vperm.xlu0 %5137, %v5066
      %v5139 = vpop.permute.xlu0 %5138
      %5142 = vset.pattern.permute.xlu0 0
      %5143 = vperm.xlu0 %5142, %v5067
      %v5144 = vpop.permute.xlu0 %5143
      %5147 = vset.pattern.permute.xlu0 0
      %5148 = vperm.xlu0 %5147, %v5068
      %v5149 = vpop.permute.xlu0 %5148
      %5152 = vset.pattern.permute.xlu0 0
      %5153 = vperm.xlu0 %5152, %v5069
      %v5154 = vpop.permute.xlu0 %5153
      %5157 = vset.pattern.permute.xlu0 0
      %5158 = vperm.xlu0 %5157, %v5070
      %v5159 = vpop.permute.xlu0 %5158
      %5162 = vset.pattern.permute.xlu0 0
      %5163 = vperm.xlu0 %5162, %v5071
      %v5164 = vpop.permute.xlu0 %5163
      %5167 = vset.pattern.permute.xlu0 0
      %5168 = vperm.xlu0 %5167, %v5072
      %v5169 = vpop.permute.xlu0 %5168
      %5172 = vset.pattern.permute.xlu0 0
      %5173 = vperm.xlu0 %5172, %v5073
      %v5174 = vpop.permute.xlu0 %5173
      %5177 = vset.pattern.permute.xlu0 0
      %5178 = vperm.xlu0 %5177, %v5074
      %v5179 = vpop.permute.xlu0 %5178
      %5182 = vset.pattern.permute.xlu0 0
      %5183 = vperm.xlu0 %5182, %v5075
      %v5184 = vpop.permute.xlu0 %5183
      %5187 = vset.pattern.permute.xlu0 0
      %5188 = vperm.xlu0 %5187, %v5076
      %v5189 = vpop.permute.xlu0 %5188
      %5192 = vset.pattern.permute.xlu0 0
      %5193 = vperm.xlu0 %5192, %v5077
      %v5194 = vpop.permute.xlu0 %5193
      %5197 = vset.pattern.permute.xlu0 0
      %5198 = vperm.xlu0 %5197, %v5078
      %v5199 = vpop.permute.xlu0 %5198
      %5202 = vset.pattern.permute.xlu0 0
      %5203 = vperm.xlu0 %5202, %v5079
      %v5204 = vpop.permute.xlu0 %5203
      %5207 = vset.pattern.permute.xlu0 0
      %5208 = vperm.xlu0 %5207, %v5080
      %v5209 = vpop.permute.xlu0 %5208
      %v5211 = vmul.f32 %v5084, %v1346
      %v5212 = vmul.f32 %v5089, %v1346
      %v5213 = vmul.f32 %v5094, %v1346
      %v5214 = vmul.f32 %v5099, %v1346
      %v5215 = vmul.f32 %v5104, %v1346
      %v5216 = vmul.f32 %v5109, %v1346
      %v5217 = vmul.f32 %v5114, %v1346
      %v5218 = vmul.f32 %v5119, %v1346
      %v5219 = vmul.f32 %v5124, %v1346
      %v5220 = vmul.f32 %v5129, %v1346
      %v5221 = vmul.f32 %v5134, %v1346
      %v5222 = vmul.f32 %v5139, %v1346
      %v5223 = vmul.f32 %v5144, %v1346
      %v5224 = vmul.f32 %v5149, %v1346
      %v5225 = vmul.f32 %v5154, %v1346
      %v5226 = vmul.f32 %v5159, %v1346
      %v5227 = vmul.f32 %v5164, %v1346
      %v5228 = vmul.f32 %v5169, %v1346
      %v5229 = vmul.f32 %v5174, %v1346
      %v5230 = vmul.f32 %v5179, %v1346
      %v5231 = vmul.f32 %v5184, %v1346
      %v5232 = vmul.f32 %v5189, %v1346
      %v5233 = vmul.f32 %v5194, %v1346
      %v5234 = vmul.f32 %v5199, %v1346
      %v5235 = vmul.f32 %v5204, %v1346
      %v5236 = vmul.f32 %v5209, %v1346
      %v5237 = vadd.f32 %v5029, %v5211
      %v5238 = vadd.f32 %v5030, %v5212
      %v5239 = vadd.f32 %v5031, %v5213
      %v5240 = vadd.f32 %v5032, %v5214
      %v5241 = vadd.f32 %v5033, %v5215
      %v5242 = vadd.f32 %v5034, %v5216
      %v5243 = vadd.f32 %v5035, %v5217
      %v5244 = vadd.f32 %v5036, %v5218
      %v5245 = vadd.f32 %v5037, %v5219
      %v5246 = vadd.f32 %v5038, %v5220
      %v5247 = vadd.f32 %v5039, %v5221
      %v5248 = vadd.f32 %v5040, %v5222
      %v5249 = vadd.f32 %v5041, %v5223
      %v5250 = vadd.f32 %v5042, %v5224
      %v5251 = vadd.f32 %v5043, %v5225
      %v5252 = vadd.f32 %v5044, %v5226
      %v5253 = vadd.f32 %v5045, %v5227
      %v5254 = vadd.f32 %v5046, %v5228
      %v5255 = vadd.f32 %v5047, %v5229
      %v5256 = vadd.f32 %v5048, %v5230
      %v5257 = vadd.f32 %v5049, %v5231
      %v5258 = vadd.f32 %v5050, %v5232
      %v5259 = vadd.f32 %v5051, %v5233
      %v5260 = vadd.f32 %v5052, %v5234
      %v5261 = vadd.f32 %v5053, %v5235
      %v5262 = vadd.f32 %v5054, %v5236
      %v5263 = vld [vmem:[%s273 + $0x1c4] sm:$0xff]
      %v5264 = vld [vmem:[%s273 + $0x1cc] sm:$0xff]
      %v5265 = vld [vmem:[%s273 + $0x1d4] sm:$0xff]
      %v5266 = vld [vmem:[%s273 + $0x1dc] sm:$0xff]
      %v5267 = vld [vmem:[%s273 + $0x1e4] sm:$0xff]
      %v5268 = vld [vmem:[%s273 + $0x1ec] sm:$0xff]
      %v5269 = vld [vmem:[%s273 + $0x1f4] sm:$0xff]
      %v5270 = vld [vmem:[%s273 + $0x1fc] sm:$0xff]
      %v5271 = vld [vmem:[%s273 + $0x204] sm:$0xff]
      %v5272 = vld [vmem:[%s273 + $0x20c] sm:$0xff]
      %v5273 = vld [vmem:[%s273 + $0x214] sm:$0xff]
      %v5274 = vld [vmem:[%s273 + $0x21c] sm:$0xff]
      %v5275 = vld [vmem:[%s273 + $0x224] sm:$0xff]
      %v5276 = vld [vmem:[%s273 + $0x22c] sm:$0xff]
      %v5277 = vld [vmem:[%s273 + $0x234] sm:$0xff]
      %v5278 = vld [vmem:[%s273 + $0x23c] sm:$0xff]
      %v5279 = vld [vmem:[%s273 + $0x244] sm:$0xff]
      %v5280 = vld [vmem:[%s273 + $0x24c] sm:$0xff]
      %v5281 = vld [vmem:[%s273 + $0x254] sm:$0xff]
      %v5282 = vld [vmem:[%s273 + $0x25c] sm:$0xff]
      %v5283 = vld [vmem:[%s273 + $0x264] sm:$0xff]
      %v5284 = vld [vmem:[%s273 + $0x26c] sm:$0xff]
      %v5285 = vld [vmem:[%s273 + $0x274] sm:$0xff]
      %v5286 = vld [vmem:[%s273 + $0x27c] sm:$0xff]
      %v5287 = vld [vmem:[%s273 + $0x284] sm:$0xff]
      %v5288 = vld [vmem:[%s273 + $0x28c] sm:$0xff]
      %5290 = vset.pattern.permute.xlu0 0
      %5291 = vperm.xlu0 %5290, %v5263
      %v5292 = vpop.permute.xlu0 %5291
      %5295 = vset.pattern.permute.xlu0 0
      %5296 = vperm.xlu0 %5295, %v5264
      %v5297 = vpop.permute.xlu0 %5296
      %5300 = vset.pattern.permute.xlu0 0
      %5301 = vperm.xlu0 %5300, %v5265
      %v5302 = vpop.permute.xlu0 %5301
      %5305 = vset.pattern.permute.xlu0 0
      %5306 = vperm.xlu0 %5305, %v5266
      %v5307 = vpop.permute.xlu0 %5306
      %5310 = vset.pattern.permute.xlu0 0
      %5311 = vperm.xlu0 %5310, %v5267
      %v5312 = vpop.permute.xlu0 %5311
      %5315 = vset.pattern.permute.xlu0 0
      %5316 = vperm.xlu0 %5315, %v5268
      %v5317 = vpop.permute.xlu0 %5316
      %5320 = vset.pattern.permute.xlu0 0
      %5321 = vperm.xlu0 %5320, %v5269
      %v5322 = vpop.permute.xlu0 %5321
      %5325 = vset.pattern.permute.xlu0 0
      %5326 = vperm.xlu0 %5325, %v5270
      %v5327 = vpop.permute.xlu0 %5326
      %5330 = vset.pattern.permute.xlu0 0
      %5331 = vperm.xlu0 %5330, %v5271
      %v5332 = vpop.permute.xlu0 %5331
      %5335 = vset.pattern.permute.xlu0 0
      %5336 = vperm.xlu0 %5335, %v5272
      %v5337 = vpop.permute.xlu0 %5336
      %5340 = vset.pattern.permute.xlu0 0
      %5341 = vperm.xlu0 %5340, %v5273
      %v5342 = vpop.permute.xlu0 %5341
      %5345 = vset.pattern.permute.xlu0 0
      %5346 = vperm.xlu0 %5345, %v5274
      %v5347 = vpop.permute.xlu0 %5346
      %5350 = vset.pattern.permute.xlu0 0
      %5351 = vperm.xlu0 %5350, %v5275
      %v5352 = vpop.permute.xlu0 %5351
      %5355 = vset.pattern.permute.xlu0 0
      %5356 = vperm.xlu0 %5355, %v5276
      %v5357 = vpop.permute.xlu0 %5356
      %5360 = vset.pattern.permute.xlu0 0
      %5361 = vperm.xlu0 %5360, %v5277
      %v5362 = vpop.permute.xlu0 %5361
      %5365 = vset.pattern.permute.xlu0 0
      %5366 = vperm.xlu0 %5365, %v5278
      %v5367 = vpop.permute.xlu0 %5366
      %5370 = vset.pattern.permute.xlu0 0
      %5371 = vperm.xlu0 %5370, %v5279
      %v5372 = vpop.permute.xlu0 %5371
      %5375 = vset.pattern.permute.xlu0 0
      %5376 = vperm.xlu0 %5375, %v5280
      %v5377 = vpop.permute.xlu0 %5376
      %5380 = vset.pattern.permute.xlu0 0
      %5381 = vperm.xlu0 %5380, %v5281
      %v5382 = vpop.permute.xlu0 %5381
      %5385 = vset.pattern.permute.xlu0 0
      %5386 = vperm.xlu0 %5385, %v5282
      %v5387 = vpop.permute.xlu0 %5386
      %5390 = vset.pattern.permute.xlu0 0
      %5391 = vperm.xlu0 %5390, %v5283
      %v5392 = vpop.permute.xlu0 %5391
      %5395 = vset.pattern.permute.xlu0 0
      %5396 = vperm.xlu0 %5395, %v5284
      %v5397 = vpop.permute.xlu0 %5396
      %5400 = vset.pattern.permute.xlu0 0
      %5401 = vperm.xlu0 %5400, %v5285
      %v5402 = vpop.permute.xlu0 %5401
      %5405 = vset.pattern.permute.xlu0 0
      %5406 = vperm.xlu0 %5405, %v5286
      %v5407 = vpop.permute.xlu0 %5406
      %5410 = vset.pattern.permute.xlu0 0
      %5411 = vperm.xlu0 %5410, %v5287
      %v5412 = vpop.permute.xlu0 %5411
      %5415 = vset.pattern.permute.xlu0 0
      %5416 = vperm.xlu0 %5415, %v5288
      %v5417 = vpop.permute.xlu0 %5416
      %v5419 = vmul.f32 %v5292, %v1558
      %v5420 = vmul.f32 %v5297, %v1558
      %v5421 = vmul.f32 %v5302, %v1558
      %v5422 = vmul.f32 %v5307, %v1558
      %v5423 = vmul.f32 %v5312, %v1558
      %v5424 = vmul.f32 %v5317, %v1558
      %v5425 = vmul.f32 %v5322, %v1558
      %v5426 = vmul.f32 %v5327, %v1558
      %v5427 = vmul.f32 %v5332, %v1558
      %v5428 = vmul.f32 %v5337, %v1558
      %v5429 = vmul.f32 %v5342, %v1558
      %v5430 = vmul.f32 %v5347, %v1558
      %v5431 = vmul.f32 %v5352, %v1558
      %v5432 = vmul.f32 %v5357, %v1558
      %v5433 = vmul.f32 %v5362, %v1558
      %v5434 = vmul.f32 %v5367, %v1558
      %v5435 = vmul.f32 %v5372, %v1558
      %v5436 = vmul.f32 %v5377, %v1558
      %v5437 = vmul.f32 %v5382, %v1558
      %v5438 = vmul.f32 %v5387, %v1558
      %v5439 = vmul.f32 %v5392, %v1558
      %v5440 = vmul.f32 %v5397, %v1558
      %v5441 = vmul.f32 %v5402, %v1558
      %v5442 = vmul.f32 %v5407, %v1558
      %v5443 = vmul.f32 %v5412, %v1558
      %v5444 = vmul.f32 %v5417, %v1558
      %v5445 = vadd.f32 %v5237, %v5419
      %v5446 = vadd.f32 %v5238, %v5420
      %v5447 = vadd.f32 %v5239, %v5421
      %v5448 = vadd.f32 %v5240, %v5422
      %v5449 = vadd.f32 %v5241, %v5423
      %v5450 = vadd.f32 %v5242, %v5424
      %v5451 = vadd.f32 %v5243, %v5425
      %v5452 = vadd.f32 %v5244, %v5426
      %v5453 = vadd.f32 %v5245, %v5427
      %v5454 = vadd.f32 %v5246, %v5428
      %v5455 = vadd.f32 %v5247, %v5429
      %v5456 = vadd.f32 %v5248, %v5430
      %v5457 = vadd.f32 %v5249, %v5431
      %v5458 = vadd.f32 %v5250, %v5432
      %v5459 = vadd.f32 %v5251, %v5433
      %v5460 = vadd.f32 %v5252, %v5434
      %v5461 = vadd.f32 %v5253, %v5435
      %v5462 = vadd.f32 %v5254, %v5436
      %v5463 = vadd.f32 %v5255, %v5437
      %v5464 = vadd.f32 %v5256, %v5438
      %v5465 = vadd.f32 %v5257, %v5439
      %v5466 = vadd.f32 %v5258, %v5440
      %v5467 = vadd.f32 %v5259, %v5441
      %v5468 = vadd.f32 %v5260, %v5442
      %v5469 = vadd.f32 %v5261, %v5443
      %v5470 = vadd.f32 %v5262, %v5444
      %v5471 = vld [vmem:[%s273 + $0x1e0] sm:$0xff]
      %v5472 = vld [vmem:[%s273 + $0x1e8] sm:$0xff]
      %v5473 = vld [vmem:[%s273 + $0x1f0] sm:$0xff]
      %v5474 = vld [vmem:[%s273 + $0x1f8] sm:$0xff]
      %v5475 = vld [vmem:[%s273 + $0x200] sm:$0xff]
      %v5476 = vld [vmem:[%s273 + $0x208] sm:$0xff]
      %v5477 = vld [vmem:[%s273 + $0x210] sm:$0xff]
      %v5478 = vld [vmem:[%s273 + $0x218] sm:$0xff]
      %v5479 = vld [vmem:[%s273 + $0x220] sm:$0xff]
      %v5480 = vld [vmem:[%s273 + $0x228] sm:$0xff]
      %v5481 = vld [vmem:[%s273 + $0x230] sm:$0xff]
      %v5482 = vld [vmem:[%s273 + $0x238] sm:$0xff]
      %v5483 = vld [vmem:[%s273 + $0x240] sm:$0xff]
      %v5484 = vld [vmem:[%s273 + $0x248] sm:$0xff]
      %v5485 = vld [vmem:[%s273 + $0x250] sm:$0xff]
      %v5486 = vld [vmem:[%s273 + $0x258] sm:$0xff]
      %v5487 = vld [vmem:[%s273 + $0x260] sm:$0xff]
      %v5488 = vld [vmem:[%s273 + $0x268] sm:$0xff]
      %v5489 = vld [vmem:[%s273 + $0x270] sm:$0xff]
      %v5490 = vld [vmem:[%s273 + $0x278] sm:$0xff]
      %v5491 = vld [vmem:[%s273 + $0x280] sm:$0xff]
      %v5492 = vld [vmem:[%s273 + $0x288] sm:$0xff]
      %v5493 = vld [vmem:[%s273 + $0x290] sm:$0xff]
      %v5494 = vld [vmem:[%s273 + $0x298] sm:$0xff]
      %v5495 = vld [vmem:[%s273 + $0x2a0] sm:$0xff]
      %v5496 = vld [vmem:[%s273 + $0x2a8] sm:$0xff]
      %5498 = vset.pattern.permute.xlu0 0
      %5499 = vperm.xlu0 %5498, %v5471
      %v5500 = vpop.permute.xlu0 %5499
      %5503 = vset.pattern.permute.xlu0 0
      %5504 = vperm.xlu0 %5503, %v5472
      %v5505 = vpop.permute.xlu0 %5504
      %5508 = vset.pattern.permute.xlu0 0
      %5509 = vperm.xlu0 %5508, %v5473
      %v5510 = vpop.permute.xlu0 %5509
      %5513 = vset.pattern.permute.xlu0 0
      %5514 = vperm.xlu0 %5513, %v5474
      %v5515 = vpop.permute.xlu0 %5514
      %5518 = vset.pattern.permute.xlu0 0
      %5519 = vperm.xlu0 %5518, %v5475
      %v5520 = vpop.permute.xlu0 %5519
      %5523 = vset.pattern.permute.xlu0 0
      %5524 = vperm.xlu0 %5523, %v5476
      %v5525 = vpop.permute.xlu0 %5524
      %5528 = vset.pattern.permute.xlu0 0
      %5529 = vperm.xlu0 %5528, %v5477
      %v5530 = vpop.permute.xlu0 %5529
      %5533 = vset.pattern.permute.xlu0 0
      %5534 = vperm.xlu0 %5533, %v5478
      %v5535 = vpop.permute.xlu0 %5534
      %5538 = vset.pattern.permute.xlu0 0
      %5539 = vperm.xlu0 %5538, %v5479
      %v5540 = vpop.permute.xlu0 %5539
      %5543 = vset.pattern.permute.xlu0 0
      %5544 = vperm.xlu0 %5543, %v5480
      %v5545 = vpop.permute.xlu0 %5544
      %5548 = vset.pattern.permute.xlu0 0
      %5549 = vperm.xlu0 %5548, %v5481
      %v5550 = vpop.permute.xlu0 %5549
      %5553 = vset.pattern.permute.xlu0 0
      %5554 = vperm.xlu0 %5553, %v5482
      %v5555 = vpop.permute.xlu0 %5554
      %5558 = vset.pattern.permute.xlu0 0
      %5559 = vperm.xlu0 %5558, %v5483
      %v5560 = vpop.permute.xlu0 %5559
      %5563 = vset.pattern.permute.xlu0 0
      %5564 = vperm.xlu0 %5563, %v5484
      %v5565 = vpop.permute.xlu0 %5564
      %5568 = vset.pattern.permute.xlu0 0
      %5569 = vperm.xlu0 %5568, %v5485
      %v5570 = vpop.permute.xlu0 %5569
      %5573 = vset.pattern.permute.xlu0 0
      %5574 = vperm.xlu0 %5573, %v5486
      %v5575 = vpop.permute.xlu0 %5574
      %5578 = vset.pattern.permute.xlu0 0
      %5579 = vperm.xlu0 %5578, %v5487
      %v5580 = vpop.permute.xlu0 %5579
      %5583 = vset.pattern.permute.xlu0 0
      %5584 = vperm.xlu0 %5583, %v5488
      %v5585 = vpop.permute.xlu0 %5584
      %5588 = vset.pattern.permute.xlu0 0
      %5589 = vperm.xlu0 %5588, %v5489
      %v5590 = vpop.permute.xlu0 %5589
      %5593 = vset.pattern.permute.xlu0 0
      %5594 = vperm.xlu0 %5593, %v5490
      %v5595 = vpop.permute.xlu0 %5594
      %5598 = vset.pattern.permute.xlu0 0
      %5599 = vperm.xlu0 %5598, %v5491
      %v5600 = vpop.permute.xlu0 %5599
      %5603 = vset.pattern.permute.xlu0 0
      %5604 = vperm.xlu0 %5603, %v5492
      %v5605 = vpop.permute.xlu0 %5604
      %5608 = vset.pattern.permute.xlu0 0
      %5609 = vperm.xlu0 %5608, %v5493
      %v5610 = vpop.permute.xlu0 %5609
      %5613 = vset.pattern.permute.xlu0 0
      %5614 = vperm.xlu0 %5613, %v5494
      %v5615 = vpop.permute.xlu0 %5614
      %5618 = vset.pattern.permute.xlu0 0
      %5619 = vperm.xlu0 %5618, %v5495
      %v5620 = vpop.permute.xlu0 %5619
      %5623 = vset.pattern.permute.xlu0 0
      %5624 = vperm.xlu0 %5623, %v5496
      %v5625 = vpop.permute.xlu0 %5624
      %v5627 = vmul.f32 %v5500, %v1770
      %v5628 = vmul.f32 %v5505, %v1770
      %v5629 = vmul.f32 %v5510, %v1770
      %v5630 = vmul.f32 %v5515, %v1770
      %v5631 = vmul.f32 %v5520, %v1770
      %v5632 = vmul.f32 %v5525, %v1770
      %v5633 = vmul.f32 %v5530, %v1770
      %v5634 = vmul.f32 %v5535, %v1770
      %v5635 = vmul.f32 %v5540, %v1770
      %v5636 = vmul.f32 %v5545, %v1770
      %v5637 = vmul.f32 %v5550, %v1770
      %v5638 = vmul.f32 %v5555, %v1770
      %v5639 = vmul.f32 %v5560, %v1770
      %v5640 = vmul.f32 %v5565, %v1770
      %v5641 = vmul.f32 %v5570, %v1770
      %v5642 = vmul.f32 %v5575, %v1770
      %v5643 = vmul.f32 %v5580, %v1770
      %v5644 = vmul.f32 %v5585, %v1770
      %v5645 = vmul.f32 %v5590, %v1770
      %v5646 = vmul.f32 %v5595, %v1770
      %v5647 = vmul.f32 %v5600, %v1770
      %v5648 = vmul.f32 %v5605, %v1770
      %v5649 = vmul.f32 %v5610, %v1770
      %v5650 = vmul.f32 %v5615, %v1770
      %v5651 = vmul.f32 %v5620, %v1770
      %v5652 = vmul.f32 %v5625, %v1770
      %v5653 = vadd.f32 %v5445, %v5627
      %v5654 = vadd.f32 %v5446, %v5628
      %v5655 = vadd.f32 %v5447, %v5629
      %v5656 = vadd.f32 %v5448, %v5630
      %v5657 = vadd.f32 %v5449, %v5631
      %v5658 = vadd.f32 %v5450, %v5632
      %v5659 = vadd.f32 %v5451, %v5633
      %v5660 = vadd.f32 %v5452, %v5634
      %v5661 = vadd.f32 %v5453, %v5635
      %v5662 = vadd.f32 %v5454, %v5636
      %v5663 = vadd.f32 %v5455, %v5637
      %v5664 = vadd.f32 %v5456, %v5638
      %v5665 = vadd.f32 %v5457, %v5639
      %v5666 = vadd.f32 %v5458, %v5640
      %v5667 = vadd.f32 %v5459, %v5641
      %v5668 = vadd.f32 %v5460, %v5642
      %v5669 = vadd.f32 %v5461, %v5643
      %v5670 = vadd.f32 %v5462, %v5644
      %v5671 = vadd.f32 %v5463, %v5645
      %v5672 = vadd.f32 %v5464, %v5646
      %v5673 = vadd.f32 %v5465, %v5647
      %v5674 = vadd.f32 %v5466, %v5648
      %v5675 = vadd.f32 %v5467, %v5649
      %v5676 = vadd.f32 %v5468, %v5650
      %v5677 = vadd.f32 %v5469, %v5651
      %v5678 = vadd.f32 %v5470, %v5652
      %v5679 = vld [vmem:[%s273 + $0x1e1] sm:$0xff]
      %v5680 = vld [vmem:[%s273 + $0x1e9] sm:$0xff]
      %v5681 = vld [vmem:[%s273 + $0x1f1] sm:$0xff]
      %v5682 = vld [vmem:[%s273 + $0x1f9] sm:$0xff]
      %v5683 = vld [vmem:[%s273 + $0x201] sm:$0xff]
      %v5684 = vld [vmem:[%s273 + $0x209] sm:$0xff]
      %v5685 = vld [vmem:[%s273 + $0x211] sm:$0xff]
      %v5686 = vld [vmem:[%s273 + $0x219] sm:$0xff]
      %v5687 = vld [vmem:[%s273 + $0x221] sm:$0xff]
      %v5688 = vld [vmem:[%s273 + $0x229] sm:$0xff]
      %v5689 = vld [vmem:[%s273 + $0x231] sm:$0xff]
      %v5690 = vld [vmem:[%s273 + $0x239] sm:$0xff]
      %v5691 = vld [vmem:[%s273 + $0x241] sm:$0xff]
      %v5692 = vld [vmem:[%s273 + $0x249] sm:$0xff]
      %v5693 = vld [vmem:[%s273 + $0x251] sm:$0xff]
      %v5694 = vld [vmem:[%s273 + $0x259] sm:$0xff]
      %v5695 = vld [vmem:[%s273 + $0x261] sm:$0xff]
      %v5696 = vld [vmem:[%s273 + $0x269] sm:$0xff]
      %v5697 = vld [vmem:[%s273 + $0x271] sm:$0xff]
      %v5698 = vld [vmem:[%s273 + $0x279] sm:$0xff]
      %v5699 = vld [vmem:[%s273 + $0x281] sm:$0xff]
      %v5700 = vld [vmem:[%s273 + $0x289] sm:$0xff]
      %v5701 = vld [vmem:[%s273 + $0x291] sm:$0xff]
      %v5702 = vld [vmem:[%s273 + $0x299] sm:$0xff]
      %v5703 = vld [vmem:[%s273 + $0x2a1] sm:$0xff]
      %v5704 = vld [vmem:[%s273 + $0x2a9] sm:$0xff]
      %5706 = vset.pattern.permute.xlu0 0
      %5707 = vperm.xlu0 %5706, %v5679
      %v5708 = vpop.permute.xlu0 %5707
      %5711 = vset.pattern.permute.xlu0 0
      %5712 = vperm.xlu0 %5711, %v5680
      %v5713 = vpop.permute.xlu0 %5712
      %5716 = vset.pattern.permute.xlu0 0
      %5717 = vperm.xlu0 %5716, %v5681
      %v5718 = vpop.permute.xlu0 %5717
      %5721 = vset.pattern.permute.xlu0 0
      %5722 = vperm.xlu0 %5721, %v5682
      %v5723 = vpop.permute.xlu0 %5722
      %5726 = vset.pattern.permute.xlu0 0
      %5727 = vperm.xlu0 %5726, %v5683
      %v5728 = vpop.permute.xlu0 %5727
      %5731 = vset.pattern.permute.xlu0 0
      %5732 = vperm.xlu0 %5731, %v5684
      %v5733 = vpop.permute.xlu0 %5732
      %5736 = vset.pattern.permute.xlu0 0
      %5737 = vperm.xlu0 %5736, %v5685
      %v5738 = vpop.permute.xlu0 %5737
      %5741 = vset.pattern.permute.xlu0 0
      %5742 = vperm.xlu0 %5741, %v5686
      %v5743 = vpop.permute.xlu0 %5742
      %5746 = vset.pattern.permute.xlu0 0
      %5747 = vperm.xlu0 %5746, %v5687
      %v5748 = vpop.permute.xlu0 %5747
      %5751 = vset.pattern.permute.xlu0 0
      %5752 = vperm.xlu0 %5751, %v5688
      %v5753 = vpop.permute.xlu0 %5752
      %5756 = vset.pattern.permute.xlu0 0
      %5757 = vperm.xlu0 %5756, %v5689
      %v5758 = vpop.permute.xlu0 %5757
      %5761 = vset.pattern.permute.xlu0 0
      %5762 = vperm.xlu0 %5761, %v5690
      %v5763 = vpop.permute.xlu0 %5762
      %5766 = vset.pattern.permute.xlu0 0
      %5767 = vperm.xlu0 %5766, %v5691
      %v5768 = vpop.permute.xlu0 %5767
      %5771 = vset.pattern.permute.xlu0 0
      %5772 = vperm.xlu0 %5771, %v5692
      %v5773 = vpop.permute.xlu0 %5772
      %5776 = vset.pattern.permute.xlu0 0
      %5777 = vperm.xlu0 %5776, %v5693
      %v5778 = vpop.permute.xlu0 %5777
      %5781 = vset.pattern.permute.xlu0 0
      %5782 = vperm.xlu0 %5781, %v5694
      %v5783 = vpop.permute.xlu0 %5782
      %5786 = vset.pattern.permute.xlu0 0
      %5787 = vperm.xlu0 %5786, %v5695
      %v5788 = vpop.permute.xlu0 %5787
      %5791 = vset.pattern.permute.xlu0 0
      %5792 = vperm.xlu0 %5791, %v5696
      %v5793 = vpop.permute.xlu0 %5792
      %5796 = vset.pattern.permute.xlu0 0
      %5797 = vperm.xlu0 %5796, %v5697
      %v5798 = vpop.permute.xlu0 %5797
      %5801 = vset.pattern.permute.xlu0 0
      %5802 = vperm.xlu0 %5801, %v5698
      %v5803 = vpop.permute.xlu0 %5802
      %5806 = vset.pattern.permute.xlu0 0
      %5807 = vperm.xlu0 %5806, %v5699
      %v5808 = vpop.permute.xlu0 %5807
      %5811 = vset.pattern.permute.xlu0 0
      %5812 = vperm.xlu0 %5811, %v5700
      %v5813 = vpop.permute.xlu0 %5812
      %5816 = vset.pattern.permute.xlu0 0
      %5817 = vperm.xlu0 %5816, %v5701
      %v5818 = vpop.permute.xlu0 %5817
      %5821 = vset.pattern.permute.xlu0 0
      %5822 = vperm.xlu0 %5821, %v5702
      %v5823 = vpop.permute.xlu0 %5822
      %5826 = vset.pattern.permute.xlu0 0
      %5827 = vperm.xlu0 %5826, %v5703
      %v5828 = vpop.permute.xlu0 %5827
      %5831 = vset.pattern.permute.xlu0 0
      %5832 = vperm.xlu0 %5831, %v5704
      %v5833 = vpop.permute.xlu0 %5832
      %v5835 = vmul.f32 %v5708, %v1982
      %v5836 = vmul.f32 %v5713, %v1982
      %v5837 = vmul.f32 %v5718, %v1982
      %v5838 = vmul.f32 %v5723, %v1982
      %v5839 = vmul.f32 %v5728, %v1982
      %v5840 = vmul.f32 %v5733, %v1982
      %v5841 = vmul.f32 %v5738, %v1982
      %v5842 = vmul.f32 %v5743, %v1982
      %v5843 = vmul.f32 %v5748, %v1982
      %v5844 = vmul.f32 %v5753, %v1982
      %v5845 = vmul.f32 %v5758, %v1982
      %v5846 = vmul.f32 %v5763, %v1982
      %v5847 = vmul.f32 %v5768, %v1982
      %v5848 = vmul.f32 %v5773, %v1982
      %v5849 = vmul.f32 %v5778, %v1982
      %v5850 = vmul.f32 %v5783, %v1982
      %v5851 = vmul.f32 %v5788, %v1982
      %v5852 = vmul.f32 %v5793, %v1982
      %v5853 = vmul.f32 %v5798, %v1982
      %v5854 = vmul.f32 %v5803, %v1982
      %v5855 = vmul.f32 %v5808, %v1982
      %v5856 = vmul.f32 %v5813, %v1982
      %v5857 = vmul.f32 %v5818, %v1982
      %v5858 = vmul.f32 %v5823, %v1982
      %v5859 = vmul.f32 %v5828, %v1982
      %v5860 = vmul.f32 %v5833, %v1982
      %v5861 = vadd.f32 %v5653, %v5835
      %v5862 = vadd.f32 %v5654, %v5836
      %v5863 = vadd.f32 %v5655, %v5837
      %v5864 = vadd.f32 %v5656, %v5838
      %v5865 = vadd.f32 %v5657, %v5839
      %v5866 = vadd.f32 %v5658, %v5840
      %v5867 = vadd.f32 %v5659, %v5841
      %v5868 = vadd.f32 %v5660, %v5842
      %v5869 = vadd.f32 %v5661, %v5843
      %v5870 = vadd.f32 %v5662, %v5844
      %v5871 = vadd.f32 %v5663, %v5845
      %v5872 = vadd.f32 %v5664, %v5846
      %v5873 = vadd.f32 %v5665, %v5847
      %v5874 = vadd.f32 %v5666, %v5848
      %v5875 = vadd.f32 %v5667, %v5849
      %v5876 = vadd.f32 %v5668, %v5850
      %v5877 = vadd.f32 %v5669, %v5851
      %v5878 = vadd.f32 %v5670, %v5852
      %v5879 = vadd.f32 %v5671, %v5853
      %v5880 = vadd.f32 %v5672, %v5854
      %v5881 = vadd.f32 %v5673, %v5855
      %v5882 = vadd.f32 %v5674, %v5856
      %v5883 = vadd.f32 %v5675, %v5857
      %v5884 = vadd.f32 %v5676, %v5858
      %v5885 = vadd.f32 %v5677, %v5859
      %v5886 = vadd.f32 %v5678, %v5860
      %v5887 = vld [vmem:[%s273 + $0x1e2] sm:$0xff]
      %v5888 = vld [vmem:[%s273 + $0x1ea] sm:$0xff]
      %v5889 = vld [vmem:[%s273 + $0x1f2] sm:$0xff]
      %v5890 = vld [vmem:[%s273 + $0x1fa] sm:$0xff]
      %v5891 = vld [vmem:[%s273 + $0x202] sm:$0xff]
      %v5892 = vld [vmem:[%s273 + $0x20a] sm:$0xff]
      %v5893 = vld [vmem:[%s273 + $0x212] sm:$0xff]
      %v5894 = vld [vmem:[%s273 + $0x21a] sm:$0xff]
      %v5895 = vld [vmem:[%s273 + $0x222] sm:$0xff]
      %v5896 = vld [vmem:[%s273 + $0x22a] sm:$0xff]
      %v5897 = vld [vmem:[%s273 + $0x232] sm:$0xff]
      %v5898 = vld [vmem:[%s273 + $0x23a] sm:$0xff]
      %v5899 = vld [vmem:[%s273 + $0x242] sm:$0xff]
      %v5900 = vld [vmem:[%s273 + $0x24a] sm:$0xff]
      %v5901 = vld [vmem:[%s273 + $0x252] sm:$0xff]
      %v5902 = vld [vmem:[%s273 + $0x25a] sm:$0xff]
      %v5903 = vld [vmem:[%s273 + $0x262] sm:$0xff]
      %v5904 = vld [vmem:[%s273 + $0x26a] sm:$0xff]
      %v5905 = vld [vmem:[%s273 + $0x272] sm:$0xff]
      %v5906 = vld [vmem:[%s273 + $0x27a] sm:$0xff]
      %v5907 = vld [vmem:[%s273 + $0x282] sm:$0xff]
      %v5908 = vld [vmem:[%s273 + $0x28a] sm:$0xff]
      %v5909 = vld [vmem:[%s273 + $0x292] sm:$0xff]
      %v5910 = vld [vmem:[%s273 + $0x29a] sm:$0xff]
      %v5911 = vld [vmem:[%s273 + $0x2a2] sm:$0xff]
      %v5912 = vld [vmem:[%s273 + $0x2aa] sm:$0xff]
      %5914 = vset.pattern.permute.xlu0 0
      %5915 = vperm.xlu0 %5914, %v5887
      %v5916 = vpop.permute.xlu0 %5915
      %5919 = vset.pattern.permute.xlu0 0
      %5920 = vperm.xlu0 %5919, %v5888
      %v5921 = vpop.permute.xlu0 %5920
      %5924 = vset.pattern.permute.xlu0 0
      %5925 = vperm.xlu0 %5924, %v5889
      %v5926 = vpop.permute.xlu0 %5925
      %5929 = vset.pattern.permute.xlu0 0
      %5930 = vperm.xlu0 %5929, %v5890
      %v5931 = vpop.permute.xlu0 %5930
      %5934 = vset.pattern.permute.xlu0 0
      %5935 = vperm.xlu0 %5934, %v5891
      %v5936 = vpop.permute.xlu0 %5935
      %5939 = vset.pattern.permute.xlu0 0
      %5940 = vperm.xlu0 %5939, %v5892
      %v5941 = vpop.permute.xlu0 %5940
      %5944 = vset.pattern.permute.xlu0 0
      %5945 = vperm.xlu0 %5944, %v5893
      %v5946 = vpop.permute.xlu0 %5945
      %5949 = vset.pattern.permute.xlu0 0
      %5950 = vperm.xlu0 %5949, %v5894
      %v5951 = vpop.permute.xlu0 %5950
      %5954 = vset.pattern.permute.xlu0 0
      %5955 = vperm.xlu0 %5954, %v5895
      %v5956 = vpop.permute.xlu0 %5955
      %5959 = vset.pattern.permute.xlu0 0
      %5960 = vperm.xlu0 %5959, %v5896
      %v5961 = vpop.permute.xlu0 %5960
      %5964 = vset.pattern.permute.xlu0 0
      %5965 = vperm.xlu0 %5964, %v5897
      %v5966 = vpop.permute.xlu0 %5965
      %5969 = vset.pattern.permute.xlu0 0
      %5970 = vperm.xlu0 %5969, %v5898
      %v5971 = vpop.permute.xlu0 %5970
      %5974 = vset.pattern.permute.xlu0 0
      %5975 = vperm.xlu0 %5974, %v5899
      %v5976 = vpop.permute.xlu0 %5975
      %5979 = vset.pattern.permute.xlu0 0
      %5980 = vperm.xlu0 %5979, %v5900
      %v5981 = vpop.permute.xlu0 %5980
      %5984 = vset.pattern.permute.xlu0 0
      %5985 = vperm.xlu0 %5984, %v5901
      %v5986 = vpop.permute.xlu0 %5985
      %5989 = vset.pattern.permute.xlu0 0
      %5990 = vperm.xlu0 %5989, %v5902
      %v5991 = vpop.permute.xlu0 %5990
      %5994 = vset.pattern.permute.xlu0 0
      %5995 = vperm.xlu0 %5994, %v5903
      %v5996 = vpop.permute.xlu0 %5995
      %5999 = vset.pattern.permute.xlu0 0
      %6000 = vperm.xlu0 %5999, %v5904
      %v6001 = vpop.permute.xlu0 %6000
      %6004 = vset.pattern.permute.xlu0 0
      %6005 = vperm.xlu0 %6004, %v5905
      %v6006 = vpop.permute.xlu0 %6005
      %6009 = vset.pattern.permute.xlu0 0
      %6010 = vperm.xlu0 %6009, %v5906
      %v6011 = vpop.permute.xlu0 %6010
      %6014 = vset.pattern.permute.xlu0 0
      %6015 = vperm.xlu0 %6014, %v5907
      %v6016 = vpop.permute.xlu0 %6015
      %6019 = vset.pattern.permute.xlu0 0
      %6020 = vperm.xlu0 %6019, %v5908
      %v6021 = vpop.permute.xlu0 %6020
      %6024 = vset.pattern.permute.xlu0 0
      %6025 = vperm.xlu0 %6024, %v5909
      %v6026 = vpop.permute.xlu0 %6025
      %6029 = vset.pattern.permute.xlu0 0
      %6030 = vperm.xlu0 %6029, %v5910
      %v6031 = vpop.permute.xlu0 %6030
      %6034 = vset.pattern.permute.xlu0 0
      %6035 = vperm.xlu0 %6034, %v5911
      %v6036 = vpop.permute.xlu0 %6035
      %6039 = vset.pattern.permute.xlu0 0
      %6040 = vperm.xlu0 %6039, %v5912
      %v6041 = vpop.permute.xlu0 %6040
      %v6043 = vmul.f32 %v5916, %v2194
      %v6044 = vmul.f32 %v5921, %v2194
      %v6045 = vmul.f32 %v5926, %v2194
      %v6046 = vmul.f32 %v5931, %v2194
      %v6047 = vmul.f32 %v5936, %v2194
      %v6048 = vmul.f32 %v5941, %v2194
      %v6049 = vmul.f32 %v5946, %v2194
      %v6050 = vmul.f32 %v5951, %v2194
      %v6051 = vmul.f32 %v5956, %v2194
      %v6052 = vmul.f32 %v5961, %v2194
      %v6053 = vmul.f32 %v5966, %v2194
      %v6054 = vmul.f32 %v5971, %v2194
      %v6055 = vmul.f32 %v5976, %v2194
      %v6056 = vmul.f32 %v5981, %v2194
      %v6057 = vmul.f32 %v5986, %v2194
      %v6058 = vmul.f32 %v5991, %v2194
      %v6059 = vmul.f32 %v5996, %v2194
      %v6060 = vmul.f32 %v6001, %v2194
      %v6061 = vmul.f32 %v6006, %v2194
      %v6062 = vmul.f32 %v6011, %v2194
      %v6063 = vmul.f32 %v6016, %v2194
      %v6064 = vmul.f32 %v6021, %v2194
      %v6065 = vmul.f32 %v6026, %v2194
      %v6066 = vmul.f32 %v6031, %v2194
      %v6067 = vmul.f32 %v6036, %v2194
      %v6068 = vmul.f32 %v6041, %v2194
      %v6069 = vadd.f32 %v5861, %v6043
      %v6070 = vadd.f32 %v5862, %v6044
      %v6071 = vadd.f32 %v5863, %v6045
      %v6072 = vadd.f32 %v5864, %v6046
      %v6073 = vadd.f32 %v5865, %v6047
      %v6074 = vadd.f32 %v5866, %v6048
      %v6075 = vadd.f32 %v5867, %v6049
      %v6076 = vadd.f32 %v5868, %v6050
      %v6077 = vadd.f32 %v5869, %v6051
      %v6078 = vadd.f32 %v5870, %v6052
      %v6079 = vadd.f32 %v5871, %v6053
      %v6080 = vadd.f32 %v5872, %v6054
      %v6081 = vadd.f32 %v5873, %v6055
      %v6082 = vadd.f32 %v5874, %v6056
      %v6083 = vadd.f32 %v5875, %v6057
      %v6084 = vadd.f32 %v5876, %v6058
      %v6085 = vadd.f32 %v5877, %v6059
      %v6086 = vadd.f32 %v5878, %v6060
      %v6087 = vadd.f32 %v5879, %v6061
      %v6088 = vadd.f32 %v5880, %v6062
      %v6089 = vadd.f32 %v5881, %v6063
      %v6090 = vadd.f32 %v5882, %v6064
      %v6091 = vadd.f32 %v5883, %v6065
      %v6092 = vadd.f32 %v5884, %v6066
      %v6093 = vadd.f32 %v5885, %v6067
      %v6094 = vadd.f32 %v5886, %v6068
      %v6095 = vmax.f32 %v6069, 0.0
      %v6096 = vmax.f32 %v6070, 0.0
      %v6097 = vmax.f32 %v6071, 0.0
      %v6098 = vmax.f32 %v6072, 0.0
      %v6099 = vmax.f32 %v6073, 0.0
      %v6100 = vmax.f32 %v6074, 0.0
      %v6101 = vmax.f32 %v6075, 0.0
      %v6102 = vmax.f32 %v6076, 0.0
      %v6103 = vmax.f32 %v6077, 0.0
      %v6104 = vmax.f32 %v6078, 0.0
      %v6105 = vmax.f32 %v6079, 0.0
      %v6106 = vmax.f32 %v6080, 0.0
      %v6107 = vmax.f32 %v6081, 0.0
      %v6108 = vmax.f32 %v6082, 0.0
      %v6109 = vmax.f32 %v6083, 0.0
      %v6110 = vmax.f32 %v6084, 0.0
      %v6111 = vmax.f32 %v6085, 0.0
      %v6112 = vmax.f32 %v6086, 0.0
      %v6113 = vmax.f32 %v6087, 0.0
      %v6114 = vmax.f32 %v6088, 0.0
      %v6115 = vmax.f32 %v6089, 0.0
      %v6116 = vmax.f32 %v6090, 0.0
      %v6117 = vmax.f32 %v6091, 0.0
      %v6118 = vmax.f32 %v6092, 0.0
      %v6119 = vmax.f32 %v6093, 0.0
      %v6120 = vmax.f32 %v6094, 0.0
      %6121 = vst.msk [vmem:[#allocation2 + $0x1a4] sm:$0xff] %vm280, %v6095
      %6122 = vst.msk [vmem:[#allocation2 + $0x1ac] sm:$0xff] %vm280, %v6096
      %6123 = vst.msk [vmem:[#allocation2 + $0x1b4] sm:$0xff] %vm280, %v6097
      %6124 = vst.msk [vmem:[#allocation2 + $0x1bc] sm:$0xff] %vm280, %v6098
      %6125 = vst.msk [vmem:[#allocation2 + $0x1c4] sm:$0xff] %vm280, %v6099
      %6126 = vst.msk [vmem:[#allocation2 + $0x1cc] sm:$0xff] %vm280, %v6100
      %6127 = vst.msk [vmem:[#allocation2 + $0x1d4] sm:$0xff] %vm280, %v6101
      %6128 = vst.msk [vmem:[#allocation2 + $0x1dc] sm:$0xff] %vm280, %v6102
      %6129 = vst.msk [vmem:[#allocation2 + $0x1e4] sm:$0xff] %vm280, %v6103
      %6130 = vst.msk [vmem:[#allocation2 + $0x1ec] sm:$0xff] %vm280, %v6104
      %6131 = vst.msk [vmem:[#allocation2 + $0x1f4] sm:$0xff] %vm280, %v6105
      %6132 = vst.msk [vmem:[#allocation2 + $0x1fc] sm:$0xff] %vm280, %v6106
      %6133 = vst.msk [vmem:[#allocation2 + $0x204] sm:$0xff] %vm280, %v6107
      %6134 = vst.msk [vmem:[#allocation2 + $0x20c] sm:$0xff] %vm280, %v6108
      %6135 = vst.msk [vmem:[#allocation2 + $0x214] sm:$0xff] %vm280, %v6109
      %6136 = vst.msk [vmem:[#allocation2 + $0x21c] sm:$0xff] %vm280, %v6110
      %6137 = vst.msk [vmem:[#allocation2 + $0x224] sm:$0xff] %vm280, %v6111
      %6138 = vst.msk [vmem:[#allocation2 + $0x22c] sm:$0xff] %vm280, %v6112
      %6139 = vst.msk [vmem:[#allocation2 + $0x234] sm:$0xff] %vm280, %v6113
      %6140 = vst.msk [vmem:[#allocation2 + $0x23c] sm:$0xff] %vm280, %v6114
      %6141 = vst.msk [vmem:[#allocation2 + $0x244] sm:$0xff] %vm280, %v6115
      %6142 = vst.msk [vmem:[#allocation2 + $0x24c] sm:$0xff] %vm280, %v6116
      %6143 = vst.msk [vmem:[#allocation2 + $0x254] sm:$0xff] %vm280, %v6117
      %6144 = vst.msk [vmem:[#allocation2 + $0x25c] sm:$0xff] %vm280, %v6118
      %6145 = vst.msk [vmem:[#allocation2 + $0x264] sm:$0xff] %vm280, %v6119
      %6146 = vst.msk [vmem:[#allocation2 + $0x26c] sm:$0xff] %vm280, %v6120
      %v6147 = vld [vmem:[%s273 + $0x276] sm:$0xff]
      %v6148 = vld [vmem:[%s273 + $0x27e] sm:$0xff]
      %v6149 = vld [vmem:[%s273 + $0x286] sm:$0xff]
      %v6150 = vld [vmem:[%s273 + $0x28e] sm:$0xff]
      %v6151 = vld [vmem:[%s273 + $0x296] sm:$0xff]
      %v6152 = vld [vmem:[%s273 + $0x29e] sm:$0xff]
      %v6153 = vld [vmem:[%s273 + $0x2a6] sm:$0xff]
      %v6154 = vld [vmem:[%s273 + $0x2ae] sm:$0xff]
      %v6155 = vld [vmem:[%s273 + $0x2b6] sm:$0xff]
      %v6156 = vld [vmem:[%s273 + $0x2be] sm:$0xff]
      %v6157 = vld [vmem:[%s273 + $0x2c6] sm:$0xff]
      %v6158 = vld [vmem:[%s273 + $0x2ce] sm:$0xff]
      %v6159 = vld [vmem:[%s273 + $0x2d6] sm:$0xff]
      %v6160 = vld [vmem:[%s273 + $0x2de] sm:$0xff]
      %v6161 = vld [vmem:[%s273 + $0x2e6] sm:$0xff]
      %v6162 = vld [vmem:[%s273 + $0x2ee] sm:$0xff]
      %v6163 = vld [vmem:[%s273 + $0x2f6] sm:$0xff]
      %v6164 = vld [vmem:[%s273 + $0x2fe] sm:$0xff]
      %v6165 = vld [vmem:[%s273 + $0x306] sm:$0xff]
      %v6166 = vld [vmem:[%s273 + $0x30e] sm:$0xff]
      %v6167 = vld [vmem:[%s273 + $0x316] sm:$0xff]
      %v6168 = vld [vmem:[%s273 + $0x31e] sm:$0xff]
      %v6169 = vld [vmem:[%s273 + $0x326] sm:$0xff]
      %v6170 = vld [vmem:[%s273 + $0x32e] sm:$0xff]
      %v6171 = vld [vmem:[%s273 + $0x336] sm:$0xff]
      %v6172 = vld [vmem:[%s273 + $0x33e] sm:$0xff]
      %6174 = vset.pattern.permute.xlu0 0
      %6175 = vperm.xlu0 %6174, %v6147
      %v6176 = vpop.permute.xlu0 %6175
      %6179 = vset.pattern.permute.xlu0 0
      %6180 = vperm.xlu0 %6179, %v6148
      %v6181 = vpop.permute.xlu0 %6180
      %6184 = vset.pattern.permute.xlu0 0
      %6185 = vperm.xlu0 %6184, %v6149
      %v6186 = vpop.permute.xlu0 %6185
      %6189 = vset.pattern.permute.xlu0 0
      %6190 = vperm.xlu0 %6189, %v6150
      %v6191 = vpop.permute.xlu0 %6190
      %6194 = vset.pattern.permute.xlu0 0
      %6195 = vperm.xlu0 %6194, %v6151
      %v6196 = vpop.permute.xlu0 %6195
      %6199 = vset.pattern.permute.xlu0 0
      %6200 = vperm.xlu0 %6199, %v6152
      %v6201 = vpop.permute.xlu0 %6200
      %6204 = vset.pattern.permute.xlu0 0
      %6205 = vperm.xlu0 %6204, %v6153
      %v6206 = vpop.permute.xlu0 %6205
      %6209 = vset.pattern.permute.xlu0 0
      %6210 = vperm.xlu0 %6209, %v6154
      %v6211 = vpop.permute.xlu0 %6210
      %6214 = vset.pattern.permute.xlu0 0
      %6215 = vperm.xlu0 %6214, %v6155
      %v6216 = vpop.permute.xlu0 %6215
      %6219 = vset.pattern.permute.xlu0 0
      %6220 = vperm.xlu0 %6219, %v6156
      %v6221 = vpop.permute.xlu0 %6220
      %6224 = vset.pattern.permute.xlu0 0
      %6225 = vperm.xlu0 %6224, %v6157
      %v6226 = vpop.permute.xlu0 %6225
      %6229 = vset.pattern.permute.xlu0 0
      %6230 = vperm.xlu0 %6229, %v6158
      %v6231 = vpop.permute.xlu0 %6230
      %6234 = vset.pattern.permute.xlu0 0
      %6235 = vperm.xlu0 %6234, %v6159
      %v6236 = vpop.permute.xlu0 %6235
      %6239 = vset.pattern.permute.xlu0 0
      %6240 = vperm.xlu0 %6239, %v6160
      %v6241 = vpop.permute.xlu0 %6240
      %6244 = vset.pattern.permute.xlu0 0
      %6245 = vperm.xlu0 %6244, %v6161
      %v6246 = vpop.permute.xlu0 %6245
      %6249 = vset.pattern.permute.xlu0 0
      %6250 = vperm.xlu0 %6249, %v6162
      %v6251 = vpop.permute.xlu0 %6250
      %6254 = vset.pattern.permute.xlu0 0
      %6255 = vperm.xlu0 %6254, %v6163
      %v6256 = vpop.permute.xlu0 %6255
      %6259 = vset.pattern.permute.xlu0 0
      %6260 = vperm.xlu0 %6259, %v6164
      %v6261 = vpop.permute.xlu0 %6260
      %6264 = vset.pattern.permute.xlu0 0
      %6265 = vperm.xlu0 %6264, %v6165
      %v6266 = vpop.permute.xlu0 %6265
      %6269 = vset.pattern.permute.xlu0 0
      %6270 = vperm.xlu0 %6269, %v6166
      %v6271 = vpop.permute.xlu0 %6270
      %6274 = vset.pattern.permute.xlu0 0
      %6275 = vperm.xlu0 %6274, %v6167
      %v6276 = vpop.permute.xlu0 %6275
      %6279 = vset.pattern.permute.xlu0 0
      %6280 = vperm.xlu0 %6279, %v6168
      %v6281 = vpop.permute.xlu0 %6280
      %6284 = vset.pattern.permute.xlu0 0
      %6285 = vperm.xlu0 %6284, %v6169
      %v6286 = vpop.permute.xlu0 %6285
      %6289 = vset.pattern.permute.xlu0 0
      %6290 = vperm.xlu0 %6289, %v6170
      %v6291 = vpop.permute.xlu0 %6290
      %6294 = vset.pattern.permute.xlu0 0
      %6295 = vperm.xlu0 %6294, %v6171
      %v6296 = vpop.permute.xlu0 %6295
      %6299 = vset.pattern.permute.xlu0 0
      %6300 = vperm.xlu0 %6299, %v6172
      %v6301 = vpop.permute.xlu0 %6300
      %v6303 = vmul.f32 %v6176, %v498
      %v6304 = vmul.f32 %v6181, %v498
      %v6305 = vmul.f32 %v6186, %v498
      %v6306 = vmul.f32 %v6191, %v498
      %v6307 = vmul.f32 %v6196, %v498
      %v6308 = vmul.f32 %v6201, %v498
      %v6309 = vmul.f32 %v6206, %v498
      %v6310 = vmul.f32 %v6211, %v498
      %v6311 = vmul.f32 %v6216, %v498
      %v6312 = vmul.f32 %v6221, %v498
      %v6313 = vmul.f32 %v6226, %v498
      %v6314 = vmul.f32 %v6231, %v498
      %v6315 = vmul.f32 %v6236, %v498
      %v6316 = vmul.f32 %v6241, %v498
      %v6317 = vmul.f32 %v6246, %v498
      %v6318 = vmul.f32 %v6251, %v498
      %v6319 = vmul.f32 %v6256, %v498
      %v6320 = vmul.f32 %v6261, %v498
      %v6321 = vmul.f32 %v6266, %v498
      %v6322 = vmul.f32 %v6271, %v498
      %v6323 = vmul.f32 %v6276, %v498
      %v6324 = vmul.f32 %v6281, %v498
      %v6325 = vmul.f32 %v6286, %v498
      %v6326 = vmul.f32 %v6291, %v498
      %v6327 = vmul.f32 %v6296, %v498
      %v6328 = vmul.f32 %v6301, %v498
      %v6329 = vadd.f32 %v337, %v6303
      %v6330 = vadd.f32 %v337, %v6304
      %v6331 = vadd.f32 %v337, %v6305
      %v6332 = vadd.f32 %v337, %v6306
      %v6333 = vadd.f32 %v337, %v6307
      %v6334 = vadd.f32 %v337, %v6308
      %v6335 = vadd.f32 %v337, %v6309
      %v6336 = vadd.f32 %v337, %v6310
      %v6337 = vadd.f32 %v337, %v6311
      %v6338 = vadd.f32 %v337, %v6312
      %v6339 = vadd.f32 %v337, %v6313
      %v6340 = vadd.f32 %v337, %v6314
      %v6341 = vadd.f32 %v337, %v6315
      %v6342 = vadd.f32 %v337, %v6316
      %v6343 = vadd.f32 %v337, %v6317
      %v6344 = vadd.f32 %v337, %v6318
      %v6345 = vadd.f32 %v337, %v6319
      %v6346 = vadd.f32 %v337, %v6320
      %v6347 = vadd.f32 %v337, %v6321
      %v6348 = vadd.f32 %v337, %v6322
      %v6349 = vadd.f32 %v337, %v6323
      %v6350 = vadd.f32 %v337, %v6324
      %v6351 = vadd.f32 %v337, %v6325
      %v6352 = vadd.f32 %v337, %v6326
      %v6353 = vadd.f32 %v337, %v6327
      %v6354 = vadd.f32 %v337, %v6328
      %v6355 = vld [vmem:[%s273 + $0x277] sm:$0xff]
      %v6356 = vld [vmem:[%s273 + $0x27f] sm:$0xff]
      %v6357 = vld [vmem:[%s273 + $0x287] sm:$0xff]
      %v6358 = vld [vmem:[%s273 + $0x28f] sm:$0xff]
      %v6359 = vld [vmem:[%s273 + $0x297] sm:$0xff]
      %v6360 = vld [vmem:[%s273 + $0x29f] sm:$0xff]
      %v6361 = vld [vmem:[%s273 + $0x2a7] sm:$0xff]
      %v6362 = vld [vmem:[%s273 + $0x2af] sm:$0xff]
      %v6363 = vld [vmem:[%s273 + $0x2b7] sm:$0xff]
      %v6364 = vld [vmem:[%s273 + $0x2bf] sm:$0xff]
      %v6365 = vld [vmem:[%s273 + $0x2c7] sm:$0xff]
      %v6366 = vld [vmem:[%s273 + $0x2cf] sm:$0xff]
      %v6367 = vld [vmem:[%s273 + $0x2d7] sm:$0xff]
      %v6368 = vld [vmem:[%s273 + $0x2df] sm:$0xff]
      %v6369 = vld [vmem:[%s273 + $0x2e7] sm:$0xff]
      %v6370 = vld [vmem:[%s273 + $0x2ef] sm:$0xff]
      %v6371 = vld [vmem:[%s273 + $0x2f7] sm:$0xff]
      %v6372 = vld [vmem:[%s273 + $0x2ff] sm:$0xff]
      %v6373 = vld [vmem:[%s273 + $0x307] sm:$0xff]
      %v6374 = vld [vmem:[%s273 + $0x30f] sm:$0xff]
      %v6375 = vld [vmem:[%s273 + $0x317] sm:$0xff]
      %v6376 = vld [vmem:[%s273 + $0x31f] sm:$0xff]
      %v6377 = vld [vmem:[%s273 + $0x327] sm:$0xff]
      %v6378 = vld [vmem:[%s273 + $0x32f] sm:$0xff]
      %v6379 = vld [vmem:[%s273 + $0x337] sm:$0xff]
      %v6380 = vld [vmem:[%s273 + $0x33f] sm:$0xff]
      %6382 = vset.pattern.permute.xlu0 0
      %6383 = vperm.xlu0 %6382, %v6355
      %v6384 = vpop.permute.xlu0 %6383
      %6387 = vset.pattern.permute.xlu0 0
      %6388 = vperm.xlu0 %6387, %v6356
      %v6389 = vpop.permute.xlu0 %6388
      %6392 = vset.pattern.permute.xlu0 0
      %6393 = vperm.xlu0 %6392, %v6357
      %v6394 = vpop.permute.xlu0 %6393
      %6397 = vset.pattern.permute.xlu0 0
      %6398 = vperm.xlu0 %6397, %v6358
      %v6399 = vpop.permute.xlu0 %6398
      %6402 = vset.pattern.permute.xlu0 0
      %6403 = vperm.xlu0 %6402, %v6359
      %v6404 = vpop.permute.xlu0 %6403
      %6407 = vset.pattern.permute.xlu0 0
      %6408 = vperm.xlu0 %6407, %v6360
      %v6409 = vpop.permute.xlu0 %6408
      %6412 = vset.pattern.permute.xlu0 0
      %6413 = vperm.xlu0 %6412, %v6361
      %v6414 = vpop.permute.xlu0 %6413
      %6417 = vset.pattern.permute.xlu0 0
      %6418 = vperm.xlu0 %6417, %v6362
      %v6419 = vpop.permute.xlu0 %6418
      %6422 = vset.pattern.permute.xlu0 0
      %6423 = vperm.xlu0 %6422, %v6363
      %v6424 = vpop.permute.xlu0 %6423
      %6427 = vset.pattern.permute.xlu0 0
      %6428 = vperm.xlu0 %6427, %v6364
      %v6429 = vpop.permute.xlu0 %6428
      %6432 = vset.pattern.permute.xlu0 0
      %6433 = vperm.xlu0 %6432, %v6365
      %v6434 = vpop.permute.xlu0 %6433
      %6437 = vset.pattern.permute.xlu0 0
      %6438 = vperm.xlu0 %6437, %v6366
      %v6439 = vpop.permute.xlu0 %6438
      %6442 = vset.pattern.permute.xlu0 0
      %6443 = vperm.xlu0 %6442, %v6367
      %v6444 = vpop.permute.xlu0 %6443
      %6447 = vset.pattern.permute.xlu0 0
      %6448 = vperm.xlu0 %6447, %v6368
      %v6449 = vpop.permute.xlu0 %6448
      %6452 = vset.pattern.permute.xlu0 0
      %6453 = vperm.xlu0 %6452, %v6369
      %v6454 = vpop.permute.xlu0 %6453
      %6457 = vset.pattern.permute.xlu0 0
      %6458 = vperm.xlu0 %6457, %v6370
      %v6459 = vpop.permute.xlu0 %6458
      %6462 = vset.pattern.permute.xlu0 0
      %6463 = vperm.xlu0 %6462, %v6371
      %v6464 = vpop.permute.xlu0 %6463
      %6467 = vset.pattern.permute.xlu0 0
      %6468 = vperm.xlu0 %6467, %v6372
      %v6469 = vpop.permute.xlu0 %6468
      %6472 = vset.pattern.permute.xlu0 0
      %6473 = vperm.xlu0 %6472, %v6373
      %v6474 = vpop.permute.xlu0 %6473
      %6477 = vset.pattern.permute.xlu0 0
      %6478 = vperm.xlu0 %6477, %v6374
      %v6479 = vpop.permute.xlu0 %6478
      %6482 = vset.pattern.permute.xlu0 0
      %6483 = vperm.xlu0 %6482, %v6375
      %v6484 = vpop.permute.xlu0 %6483
      %6487 = vset.pattern.permute.xlu0 0
      %6488 = vperm.xlu0 %6487, %v6376
      %v6489 = vpop.permute.xlu0 %6488
      %6492 = vset.pattern.permute.xlu0 0
      %6493 = vperm.xlu0 %6492, %v6377
      %v6494 = vpop.permute.xlu0 %6493
      %6497 = vset.pattern.permute.xlu0 0
      %6498 = vperm.xlu0 %6497, %v6378
      %v6499 = vpop.permute.xlu0 %6498
      %6502 = vset.pattern.permute.xlu0 0
      %6503 = vperm.xlu0 %6502, %v6379
      %v6504 = vpop.permute.xlu0 %6503
      %6507 = vset.pattern.permute.xlu0 0
      %6508 = vperm.xlu0 %6507, %v6380
      %v6509 = vpop.permute.xlu0 %6508
      %v6511 = vmul.f32 %v6384, %v710
      %v6512 = vmul.f32 %v6389, %v710
      %v6513 = vmul.f32 %v6394, %v710
      %v6514 = vmul.f32 %v6399, %v710
      %v6515 = vmul.f32 %v6404, %v710
      %v6516 = vmul.f32 %v6409, %v710
      %v6517 = vmul.f32 %v6414, %v710
      %v6518 = vmul.f32 %v6419, %v710
      %v6519 = vmul.f32 %v6424, %v710
      %v6520 = vmul.f32 %v6429, %v710
      %v6521 = vmul.f32 %v6434, %v710
      %v6522 = vmul.f32 %v6439, %v710
      %v6523 = vmul.f32 %v6444, %v710
      %v6524 = vmul.f32 %v6449, %v710
      %v6525 = vmul.f32 %v6454, %v710
      %v6526 = vmul.f32 %v6459, %v710
      %v6527 = vmul.f32 %v6464, %v710
      %v6528 = vmul.f32 %v6469, %v710
      %v6529 = vmul.f32 %v6474, %v710
      %v6530 = vmul.f32 %v6479, %v710
      %v6531 = vmul.f32 %v6484, %v710
      %v6532 = vmul.f32 %v6489, %v710
      %v6533 = vmul.f32 %v6494, %v710
      %v6534 = vmul.f32 %v6499, %v710
      %v6535 = vmul.f32 %v6504, %v710
      %v6536 = vmul.f32 %v6509, %v710
      %v6537 = vadd.f32 %v6329, %v6511
      %v6538 = vadd.f32 %v6330, %v6512
      %v6539 = vadd.f32 %v6331, %v6513
      %v6540 = vadd.f32 %v6332, %v6514
      %v6541 = vadd.f32 %v6333, %v6515
      %v6542 = vadd.f32 %v6334, %v6516
      %v6543 = vadd.f32 %v6335, %v6517
      %v6544 = vadd.f32 %v6336, %v6518
      %v6545 = vadd.f32 %v6337, %v6519
      %v6546 = vadd.f32 %v6338, %v6520
      %v6547 = vadd.f32 %v6339, %v6521
      %v6548 = vadd.f32 %v6340, %v6522
      %v6549 = vadd.f32 %v6341, %v6523
      %v6550 = vadd.f32 %v6342, %v6524
      %v6551 = vadd.f32 %v6343, %v6525
      %v6552 = vadd.f32 %v6344, %v6526
      %v6553 = vadd.f32 %v6345, %v6527
      %v6554 = vadd.f32 %v6346, %v6528
      %v6555 = vadd.f32 %v6347, %v6529
      %v6556 = vadd.f32 %v6348, %v6530
      %v6557 = vadd.f32 %v6349, %v6531
      %v6558 = vadd.f32 %v6350, %v6532
      %v6559 = vadd.f32 %v6351, %v6533
      %v6560 = vadd.f32 %v6352, %v6534
      %v6561 = vadd.f32 %v6353, %v6535
      %v6562 = vadd.f32 %v6354, %v6536
      %v6563 = vld [vmem:[%s273 + $0x278] sm:$0xff]
      %v6564 = vld [vmem:[%s273 + $0x280] sm:$0xff]
      %v6565 = vld [vmem:[%s273 + $0x288] sm:$0xff]
      %v6566 = vld [vmem:[%s273 + $0x290] sm:$0xff]
      %v6567 = vld [vmem:[%s273 + $0x298] sm:$0xff]
      %v6568 = vld [vmem:[%s273 + $0x2a0] sm:$0xff]
      %v6569 = vld [vmem:[%s273 + $0x2a8] sm:$0xff]
      %v6570 = vld [vmem:[%s273 + $0x2b0] sm:$0xff]
      %v6571 = vld [vmem:[%s273 + $0x2b8] sm:$0xff]
      %v6572 = vld [vmem:[%s273 + $0x2c0] sm:$0xff]
      %v6573 = vld [vmem:[%s273 + $0x2c8] sm:$0xff]
      %v6574 = vld [vmem:[%s273 + $0x2d0] sm:$0xff]
      %v6575 = vld [vmem:[%s273 + $0x2d8] sm:$0xff]
      %v6576 = vld [vmem:[%s273 + $0x2e0] sm:$0xff]
      %v6577 = vld [vmem:[%s273 + $0x2e8] sm:$0xff]
      %v6578 = vld [vmem:[%s273 + $0x2f0] sm:$0xff]
      %v6579 = vld [vmem:[%s273 + $0x2f8] sm:$0xff]
      %v6580 = vld [vmem:[%s273 + $0x300] sm:$0xff]
      %v6581 = vld [vmem:[%s273 + $0x308] sm:$0xff]
      %v6582 = vld [vmem:[%s273 + $0x310] sm:$0xff]
      %v6583 = vld [vmem:[%s273 + $0x318] sm:$0xff]
      %v6584 = vld [vmem:[%s273 + $0x320] sm:$0xff]
      %v6585 = vld [vmem:[%s273 + $0x328] sm:$0xff]
      %v6586 = vld [vmem:[%s273 + $0x330] sm:$0xff]
      %v6587 = vld [vmem:[%s273 + $0x338] sm:$0xff]
      %v6588 = vld [vmem:[%s273 + $0x340] sm:$0xff]
      %6590 = vset.pattern.permute.xlu0 0
      %6591 = vperm.xlu0 %6590, %v6563
      %v6592 = vpop.permute.xlu0 %6591
      %6595 = vset.pattern.permute.xlu0 0
      %6596 = vperm.xlu0 %6595, %v6564
      %v6597 = vpop.permute.xlu0 %6596
      %6600 = vset.pattern.permute.xlu0 0
      %6601 = vperm.xlu0 %6600, %v6565
      %v6602 = vpop.permute.xlu0 %6601
      %6605 = vset.pattern.permute.xlu0 0
      %6606 = vperm.xlu0 %6605, %v6566
      %v6607 = vpop.permute.xlu0 %6606
      %6610 = vset.pattern.permute.xlu0 0
      %6611 = vperm.xlu0 %6610, %v6567
      %v6612 = vpop.permute.xlu0 %6611
      %6615 = vset.pattern.permute.xlu0 0
      %6616 = vperm.xlu0 %6615, %v6568
      %v6617 = vpop.permute.xlu0 %6616
      %6620 = vset.pattern.permute.xlu0 0
      %6621 = vperm.xlu0 %6620, %v6569
      %v6622 = vpop.permute.xlu0 %6621
      %6625 = vset.pattern.permute.xlu0 0
      %6626 = vperm.xlu0 %6625, %v6570
      %v6627 = vpop.permute.xlu0 %6626
      %6630 = vset.pattern.permute.xlu0 0
      %6631 = vperm.xlu0 %6630, %v6571
      %v6632 = vpop.permute.xlu0 %6631
      %6635 = vset.pattern.permute.xlu0 0
      %6636 = vperm.xlu0 %6635, %v6572
      %v6637 = vpop.permute.xlu0 %6636
      %6640 = vset.pattern.permute.xlu0 0
      %6641 = vperm.xlu0 %6640, %v6573
      %v6642 = vpop.permute.xlu0 %6641
      %6645 = vset.pattern.permute.xlu0 0
      %6646 = vperm.xlu0 %6645, %v6574
      %v6647 = vpop.permute.xlu0 %6646
      %6650 = vset.pattern.permute.xlu0 0
      %6651 = vperm.xlu0 %6650, %v6575
      %v6652 = vpop.permute.xlu0 %6651
      %6655 = vset.pattern.permute.xlu0 0
      %6656 = vperm.xlu0 %6655, %v6576
      %v6657 = vpop.permute.xlu0 %6656
      %6660 = vset.pattern.permute.xlu0 0
      %6661 = vperm.xlu0 %6660, %v6577
      %v6662 = vpop.permute.xlu0 %6661
      %6665 = vset.pattern.permute.xlu0 0
      %6666 = vperm.xlu0 %6665, %v6578
      %v6667 = vpop.permute.xlu0 %6666
      %6670 = vset.pattern.permute.xlu0 0
      %6671 = vperm.xlu0 %6670, %v6579
      %v6672 = vpop.permute.xlu0 %6671
      %6675 = vset.pattern.permute.xlu0 0
      %6676 = vperm.xlu0 %6675, %v6580
      %v6677 = vpop.permute.xlu0 %6676
      %6680 = vset.pattern.permute.xlu0 0
      %6681 = vperm.xlu0 %6680, %v6581
      %v6682 = vpop.permute.xlu0 %6681
      %6685 = vset.pattern.permute.xlu0 0
      %6686 = vperm.xlu0 %6685, %v6582
      %v6687 = vpop.permute.xlu0 %6686
      %6690 = vset.pattern.permute.xlu0 0
      %6691 = vperm.xlu0 %6690, %v6583
      %v6692 = vpop.permute.xlu0 %6691
      %6695 = vset.pattern.permute.xlu0 0
      %6696 = vperm.xlu0 %6695, %v6584
      %v6697 = vpop.permute.xlu0 %6696
      %6700 = vset.pattern.permute.xlu0 0
      %6701 = vperm.xlu0 %6700, %v6585
      %v6702 = vpop.permute.xlu0 %6701
      %6705 = vset.pattern.permute.xlu0 0
      %6706 = vperm.xlu0 %6705, %v6586
      %v6707 = vpop.permute.xlu0 %6706
      %6710 = vset.pattern.permute.xlu0 0
      %6711 = vperm.xlu0 %6710, %v6587
      %v6712 = vpop.permute.xlu0 %6711
      %6715 = vset.pattern.permute.xlu0 0
      %6716 = vperm.xlu0 %6715, %v6588
      %v6717 = vpop.permute.xlu0 %6716
      %v6719 = vmul.f32 %v6592, %v922
      %v6720 = vmul.f32 %v6597, %v922
      %v6721 = vmul.f32 %v6602, %v922
      %v6722 = vmul.f32 %v6607, %v922
      %v6723 = vmul.f32 %v6612, %v922
      %v6724 = vmul.f32 %v6617, %v922
      %v6725 = vmul.f32 %v6622, %v922
      %v6726 = vmul.f32 %v6627, %v922
      %v6727 = vmul.f32 %v6632, %v922
      %v6728 = vmul.f32 %v6637, %v922
      %v6729 = vmul.f32 %v6642, %v922
      %v6730 = vmul.f32 %v6647, %v922
      %v6731 = vmul.f32 %v6652, %v922
      %v6732 = vmul.f32 %v6657, %v922
      %v6733 = vmul.f32 %v6662, %v922
      %v6734 = vmul.f32 %v6667, %v922
      %v6735 = vmul.f32 %v6672, %v922
      %v6736 = vmul.f32 %v6677, %v922
      %v6737 = vmul.f32 %v6682, %v922
      %v6738 = vmul.f32 %v6687, %v922
      %v6739 = vmul.f32 %v6692, %v922
      %v6740 = vmul.f32 %v6697, %v922
      %v6741 = vmul.f32 %v6702, %v922
      %v6742 = vmul.f32 %v6707, %v922
      %v6743 = vmul.f32 %v6712, %v922
      %v6744 = vmul.f32 %v6717, %v922
      %v6745 = vadd.f32 %v6537, %v6719
      %v6746 = vadd.f32 %v6538, %v6720
      %v6747 = vadd.f32 %v6539, %v6721
      %v6748 = vadd.f32 %v6540, %v6722
      %v6749 = vadd.f32 %v6541, %v6723
      %v6750 = vadd.f32 %v6542, %v6724
      %v6751 = vadd.f32 %v6543, %v6725
      %v6752 = vadd.f32 %v6544, %v6726
      %v6753 = vadd.f32 %v6545, %v6727
      %v6754 = vadd.f32 %v6546, %v6728
      %v6755 = vadd.f32 %v6547, %v6729
      %v6756 = vadd.f32 %v6548, %v6730
      %v6757 = vadd.f32 %v6549, %v6731
      %v6758 = vadd.f32 %v6550, %v6732
      %v6759 = vadd.f32 %v6551, %v6733
      %v6760 = vadd.f32 %v6552, %v6734
      %v6761 = vadd.f32 %v6553, %v6735
      %v6762 = vadd.f32 %v6554, %v6736
      %v6763 = vadd.f32 %v6555, %v6737
      %v6764 = vadd.f32 %v6556, %v6738
      %v6765 = vadd.f32 %v6557, %v6739
      %v6766 = vadd.f32 %v6558, %v6740
      %v6767 = vadd.f32 %v6559, %v6741
      %v6768 = vadd.f32 %v6560, %v6742
      %v6769 = vadd.f32 %v6561, %v6743
      %v6770 = vadd.f32 %v6562, %v6744
      %v6771 = vld [vmem:[%s273 + $0x294] sm:$0xff]
      %v6772 = vld [vmem:[%s273 + $0x29c] sm:$0xff]
      %v6773 = vld [vmem:[%s273 + $0x2a4] sm:$0xff]
      %v6774 = vld [vmem:[%s273 + $0x2ac] sm:$0xff]
      %v6775 = vld [vmem:[%s273 + $0x2b4] sm:$0xff]
      %v6776 = vld [vmem:[%s273 + $0x2bc] sm:$0xff]
      %v6777 = vld [vmem:[%s273 + $0x2c4] sm:$0xff]
      %v6778 = vld [vmem:[%s273 + $0x2cc] sm:$0xff]
      %v6779 = vld [vmem:[%s273 + $0x2d4] sm:$0xff]
      %v6780 = vld [vmem:[%s273 + $0x2dc] sm:$0xff]
      %v6781 = vld [vmem:[%s273 + $0x2e4] sm:$0xff]
      %v6782 = vld [vmem:[%s273 + $0x2ec] sm:$0xff]
      %v6783 = vld [vmem:[%s273 + $0x2f4] sm:$0xff]
      %v6784 = vld [vmem:[%s273 + $0x2fc] sm:$0xff]
      %v6785 = vld [vmem:[%s273 + $0x304] sm:$0xff]
      %v6786 = vld [vmem:[%s273 + $0x30c] sm:$0xff]
      %v6787 = vld [vmem:[%s273 + $0x314] sm:$0xff]
      %v6788 = vld [vmem:[%s273 + $0x31c] sm:$0xff]
      %v6789 = vld [vmem:[%s273 + $0x324] sm:$0xff]
      %v6790 = vld [vmem:[%s273 + $0x32c] sm:$0xff]
      %v6791 = vld [vmem:[%s273 + $0x334] sm:$0xff]
      %v6792 = vld [vmem:[%s273 + $0x33c] sm:$0xff]
      %v6793 = vld [vmem:[%s273 + $0x344] sm:$0xff]
      %v6794 = vld [vmem:[%s273 + $0x34c] sm:$0xff]
      %v6795 = vld [vmem:[%s273 + $0x354] sm:$0xff]
      %v6796 = vld [vmem:[%s273 + $0x35c] sm:$0xff]
      %6798 = vset.pattern.permute.xlu0 0
      %6799 = vperm.xlu0 %6798, %v6771
      %v6800 = vpop.permute.xlu0 %6799
      %6803 = vset.pattern.permute.xlu0 0
      %6804 = vperm.xlu0 %6803, %v6772
      %v6805 = vpop.permute.xlu0 %6804
      %6808 = vset.pattern.permute.xlu0 0
      %6809 = vperm.xlu0 %6808, %v6773
      %v6810 = vpop.permute.xlu0 %6809
      %6813 = vset.pattern.permute.xlu0 0
      %6814 = vperm.xlu0 %6813, %v6774
      %v6815 = vpop.permute.xlu0 %6814
      %6818 = vset.pattern.permute.xlu0 0
      %6819 = vperm.xlu0 %6818, %v6775
      %v6820 = vpop.permute.xlu0 %6819
      %6823 = vset.pattern.permute.xlu0 0
      %6824 = vperm.xlu0 %6823, %v6776
      %v6825 = vpop.permute.xlu0 %6824
      %6828 = vset.pattern.permute.xlu0 0
      %6829 = vperm.xlu0 %6828, %v6777
      %v6830 = vpop.permute.xlu0 %6829
      %6833 = vset.pattern.permute.xlu0 0
      %6834 = vperm.xlu0 %6833, %v6778
      %v6835 = vpop.permute.xlu0 %6834
      %6838 = vset.pattern.permute.xlu0 0
      %6839 = vperm.xlu0 %6838, %v6779
      %v6840 = vpop.permute.xlu0 %6839
      %6843 = vset.pattern.permute.xlu0 0
      %6844 = vperm.xlu0 %6843, %v6780
      %v6845 = vpop.permute.xlu0 %6844
      %6848 = vset.pattern.permute.xlu0 0
      %6849 = vperm.xlu0 %6848, %v6781
      %v6850 = vpop.permute.xlu0 %6849
      %6853 = vset.pattern.permute.xlu0 0
      %6854 = vperm.xlu0 %6853, %v6782
      %v6855 = vpop.permute.xlu0 %6854
      %6858 = vset.pattern.permute.xlu0 0
      %6859 = vperm.xlu0 %6858, %v6783
      %v6860 = vpop.permute.xlu0 %6859
      %6863 = vset.pattern.permute.xlu0 0
      %6864 = vperm.xlu0 %6863, %v6784
      %v6865 = vpop.permute.xlu0 %6864
      %6868 = vset.pattern.permute.xlu0 0
      %6869 = vperm.xlu0 %6868, %v6785
      %v6870 = vpop.permute.xlu0 %6869
      %6873 = vset.pattern.permute.xlu0 0
      %6874 = vperm.xlu0 %6873, %v6786
      %v6875 = vpop.permute.xlu0 %6874
      %6878 = vset.pattern.permute.xlu0 0
      %6879 = vperm.xlu0 %6878, %v6787
      %v6880 = vpop.permute.xlu0 %6879
      %6883 = vset.pattern.permute.xlu0 0
      %6884 = vperm.xlu0 %6883, %v6788
      %v6885 = vpop.permute.xlu0 %6884
      %6888 = vset.pattern.permute.xlu0 0
      %6889 = vperm.xlu0 %6888, %v6789
      %v6890 = vpop.permute.xlu0 %6889
      %6893 = vset.pattern.permute.xlu0 0
      %6894 = vperm.xlu0 %6893, %v6790
      %v6895 = vpop.permute.xlu0 %6894
      %6898 = vset.pattern.permute.xlu0 0
      %6899 = vperm.xlu0 %6898, %v6791
      %v6900 = vpop.permute.xlu0 %6899
      %6903 = vset.pattern.permute.xlu0 0
      %6904 = vperm.xlu0 %6903, %v6792
      %v6905 = vpop.permute.xlu0 %6904
      %6908 = vset.pattern.permute.xlu0 0
      %6909 = vperm.xlu0 %6908, %v6793
      %v6910 = vpop.permute.xlu0 %6909
      %6913 = vset.pattern.permute.xlu0 0
      %6914 = vperm.xlu0 %6913, %v6794
      %v6915 = vpop.permute.xlu0 %6914
      %6918 = vset.pattern.permute.xlu0 0
      %6919 = vperm.xlu0 %6918, %v6795
      %v6920 = vpop.permute.xlu0 %6919
      %6923 = vset.pattern.permute.xlu0 0
      %6924 = vperm.xlu0 %6923, %v6796
      %v6925 = vpop.permute.xlu0 %6924
      %v6927 = vmul.f32 %v6800, %v1134
      %v6928 = vmul.f32 %v6805, %v1134
      %v6929 = vmul.f32 %v6810, %v1134
      %v6930 = vmul.f32 %v6815, %v1134
      %v6931 = vmul.f32 %v6820, %v1134
      %v6932 = vmul.f32 %v6825, %v1134
      %v6933 = vmul.f32 %v6830, %v1134
      %v6934 = vmul.f32 %v6835, %v1134
      %v6935 = vmul.f32 %v6840, %v1134
      %v6936 = vmul.f32 %v6845, %v1134
      %v6937 = vmul.f32 %v6850, %v1134
      %v6938 = vmul.f32 %v6855, %v1134
      %v6939 = vmul.f32 %v6860, %v1134
      %v6940 = vmul.f32 %v6865, %v1134
      %v6941 = vmul.f32 %v6870, %v1134
      %v6942 = vmul.f32 %v6875, %v1134
      %v6943 = vmul.f32 %v6880, %v1134
      %v6944 = vmul.f32 %v6885, %v1134
      %v6945 = vmul.f32 %v6890, %v1134
      %v6946 = vmul.f32 %v6895, %v1134
      %v6947 = vmul.f32 %v6900, %v1134
      %v6948 = vmul.f32 %v6905, %v1134
      %v6949 = vmul.f32 %v6910, %v1134
      %v6950 = vmul.f32 %v6915, %v1134
      %v6951 = vmul.f32 %v6920, %v1134
      %v6952 = vmul.f32 %v6925, %v1134
      %v6953 = vadd.f32 %v6745, %v6927
      %v6954 = vadd.f32 %v6746, %v6928
      %v6955 = vadd.f32 %v6747, %v6929
      %v6956 = vadd.f32 %v6748, %v6930
      %v6957 = vadd.f32 %v6749, %v6931
      %v6958 = vadd.f32 %v6750, %v6932
      %v6959 = vadd.f32 %v6751, %v6933
      %v6960 = vadd.f32 %v6752, %v6934
      %v6961 = vadd.f32 %v6753, %v6935
      %v6962 = vadd.f32 %v6754, %v6936
      %v6963 = vadd.f32 %v6755, %v6937
      %v6964 = vadd.f32 %v6756, %v6938
      %v6965 = vadd.f32 %v6757, %v6939
      %v6966 = vadd.f32 %v6758, %v6940
      %v6967 = vadd.f32 %v6759, %v6941
      %v6968 = vadd.f32 %v6760, %v6942
      %v6969 = vadd.f32 %v6761, %v6943
      %v6970 = vadd.f32 %v6762, %v6944
      %v6971 = vadd.f32 %v6763, %v6945
      %v6972 = vadd.f32 %v6764, %v6946
      %v6973 = vadd.f32 %v6765, %v6947
      %v6974 = vadd.f32 %v6766, %v6948
      %v6975 = vadd.f32 %v6767, %v6949
      %v6976 = vadd.f32 %v6768, %v6950
      %v6977 = vadd.f32 %v6769, %v6951
      %v6978 = vadd.f32 %v6770, %v6952
      %v6979 = vld [vmem:[%s273 + $0x295] sm:$0xff]
      %v6980 = vld [vmem:[%s273 + $0x29d] sm:$0xff]
      %v6981 = vld [vmem:[%s273 + $0x2a5] sm:$0xff]
      %v6982 = vld [vmem:[%s273 + $0x2ad] sm:$0xff]
      %v6983 = vld [vmem:[%s273 + $0x2b5] sm:$0xff]
      %v6984 = vld [vmem:[%s273 + $0x2bd] sm:$0xff]
      %v6985 = vld [vmem:[%s273 + $0x2c5] sm:$0xff]
      %v6986 = vld [vmem:[%s273 + $0x2cd] sm:$0xff]
      %v6987 = vld [vmem:[%s273 + $0x2d5] sm:$0xff]
      %v6988 = vld [vmem:[%s273 + $0x2dd] sm:$0xff]
      %v6989 = vld [vmem:[%s273 + $0x2e5] sm:$0xff]
      %v6990 = vld [vmem:[%s273 + $0x2ed] sm:$0xff]
      %v6991 = vld [vmem:[%s273 + $0x2f5] sm:$0xff]
      %v6992 = vld [vmem:[%s273 + $0x2fd] sm:$0xff]
      %v6993 = vld [vmem:[%s273 + $0x305] sm:$0xff]
      %v6994 = vld [vmem:[%s273 + $0x30d] sm:$0xff]
      %v6995 = vld [vmem:[%s273 + $0x315] sm:$0xff]
      %v6996 = vld [vmem:[%s273 + $0x31d] sm:$0xff]
      %v6997 = vld [vmem:[%s273 + $0x325] sm:$0xff]
      %v6998 = vld [vmem:[%s273 + $0x32d] sm:$0xff]
      %v6999 = vld [vmem:[%s273 + $0x335] sm:$0xff]
      %v7000 = vld [vmem:[%s273 + $0x33d] sm:$0xff]
      %v7001 = vld [vmem:[%s273 + $0x345] sm:$0xff]
      %v7002 = vld [vmem:[%s273 + $0x34d] sm:$0xff]
      %v7003 = vld [vmem:[%s273 + $0x355] sm:$0xff]
      %v7004 = vld [vmem:[%s273 + $0x35d] sm:$0xff]
      %7006 = vset.pattern.permute.xlu0 0
      %7007 = vperm.xlu0 %7006, %v6979
      %v7008 = vpop.permute.xlu0 %7007
      %7011 = vset.pattern.permute.xlu0 0
      %7012 = vperm.xlu0 %7011, %v6980
      %v7013 = vpop.permute.xlu0 %7012
      %7016 = vset.pattern.permute.xlu0 0
      %7017 = vperm.xlu0 %7016, %v6981
      %v7018 = vpop.permute.xlu0 %7017
      %7021 = vset.pattern.permute.xlu0 0
      %7022 = vperm.xlu0 %7021, %v6982
      %v7023 = vpop.permute.xlu0 %7022
      %7026 = vset.pattern.permute.xlu0 0
      %7027 = vperm.xlu0 %7026, %v6983
      %v7028 = vpop.permute.xlu0 %7027
      %7031 = vset.pattern.permute.xlu0 0
      %7032 = vperm.xlu0 %7031, %v6984
      %v7033 = vpop.permute.xlu0 %7032
      %7036 = vset.pattern.permute.xlu0 0
      %7037 = vperm.xlu0 %7036, %v6985
      %v7038 = vpop.permute.xlu0 %7037
      %7041 = vset.pattern.permute.xlu0 0
      %7042 = vperm.xlu0 %7041, %v6986
      %v7043 = vpop.permute.xlu0 %7042
      %7046 = vset.pattern.permute.xlu0 0
      %7047 = vperm.xlu0 %7046, %v6987
      %v7048 = vpop.permute.xlu0 %7047
      %7051 = vset.pattern.permute.xlu0 0
      %7052 = vperm.xlu0 %7051, %v6988
      %v7053 = vpop.permute.xlu0 %7052
      %7056 = vset.pattern.permute.xlu0 0
      %7057 = vperm.xlu0 %7056, %v6989
      %v7058 = vpop.permute.xlu0 %7057
      %7061 = vset.pattern.permute.xlu0 0
      %7062 = vperm.xlu0 %7061, %v6990
      %v7063 = vpop.permute.xlu0 %7062
      %7066 = vset.pattern.permute.xlu0 0
      %7067 = vperm.xlu0 %7066, %v6991
      %v7068 = vpop.permute.xlu0 %7067
      %7071 = vset.pattern.permute.xlu0 0
      %7072 = vperm.xlu0 %7071, %v6992
      %v7073 = vpop.permute.xlu0 %7072
      %7076 = vset.pattern.permute.xlu0 0
      %7077 = vperm.xlu0 %7076, %v6993
      %v7078 = vpop.permute.xlu0 %7077
      %7081 = vset.pattern.permute.xlu0 0
      %7082 = vperm.xlu0 %7081, %v6994
      %v7083 = vpop.permute.xlu0 %7082
      %7086 = vset.pattern.permute.xlu0 0
      %7087 = vperm.xlu0 %7086, %v6995
      %v7088 = vpop.permute.xlu0 %7087
      %7091 = vset.pattern.permute.xlu0 0
      %7092 = vperm.xlu0 %7091, %v6996
      %v7093 = vpop.permute.xlu0 %7092
      %7096 = vset.pattern.permute.xlu0 0
      %7097 = vperm.xlu0 %7096, %v6997
      %v7098 = vpop.permute.xlu0 %7097
      %7101 = vset.pattern.permute.xlu0 0
      %7102 = vperm.xlu0 %7101, %v6998
      %v7103 = vpop.permute.xlu0 %7102
      %7106 = vset.pattern.permute.xlu0 0
      %7107 = vperm.xlu0 %7106, %v6999
      %v7108 = vpop.permute.xlu0 %7107
      %7111 = vset.pattern.permute.xlu0 0
      %7112 = vperm.xlu0 %7111, %v7000
      %v7113 = vpop.permute.xlu0 %7112
      %7116 = vset.pattern.permute.xlu0 0
      %7117 = vperm.xlu0 %7116, %v7001
      %v7118 = vpop.permute.xlu0 %7117
      %7121 = vset.pattern.permute.xlu0 0
      %7122 = vperm.xlu0 %7121, %v7002
      %v7123 = vpop.permute.xlu0 %7122
      %7126 = vset.pattern.permute.xlu0 0
      %7127 = vperm.xlu0 %7126, %v7003
      %v7128 = vpop.permute.xlu0 %7127
      %7131 = vset.pattern.permute.xlu0 0
      %7132 = vperm.xlu0 %7131, %v7004
      %v7133 = vpop.permute.xlu0 %7132
      %v7135 = vmul.f32 %v7008, %v1346
      %v7136 = vmul.f32 %v7013, %v1346
      %v7137 = vmul.f32 %v7018, %v1346
      %v7138 = vmul.f32 %v7023, %v1346
      %v7139 = vmul.f32 %v7028, %v1346
      %v7140 = vmul.f32 %v7033, %v1346
      %v7141 = vmul.f32 %v7038, %v1346
      %v7142 = vmul.f32 %v7043, %v1346
      %v7143 = vmul.f32 %v7048, %v1346
      %v7144 = vmul.f32 %v7053, %v1346
      %v7145 = vmul.f32 %v7058, %v1346
      %v7146 = vmul.f32 %v7063, %v1346
      %v7147 = vmul.f32 %v7068, %v1346
      %v7148 = vmul.f32 %v7073, %v1346
      %v7149 = vmul.f32 %v7078, %v1346
      %v7150 = vmul.f32 %v7083, %v1346
      %v7151 = vmul.f32 %v7088, %v1346
      %v7152 = vmul.f32 %v7093, %v1346
      %v7153 = vmul.f32 %v7098, %v1346
      %v7154 = vmul.f32 %v7103, %v1346
      %v7155 = vmul.f32 %v7108, %v1346
      %v7156 = vmul.f32 %v7113, %v1346
      %v7157 = vmul.f32 %v7118, %v1346
      %v7158 = vmul.f32 %v7123, %v1346
      %v7159 = vmul.f32 %v7128, %v1346
      %v7160 = vmul.f32 %v7133, %v1346
      %v7161 = vadd.f32 %v6953, %v7135
      %v7162 = vadd.f32 %v6954, %v7136
      %v7163 = vadd.f32 %v6955, %v7137
      %v7164 = vadd.f32 %v6956, %v7138
      %v7165 = vadd.f32 %v6957, %v7139
      %v7166 = vadd.f32 %v6958, %v7140
      %v7167 = vadd.f32 %v6959, %v7141
      %v7168 = vadd.f32 %v6960, %v7142
      %v7169 = vadd.f32 %v6961, %v7143
      %v7170 = vadd.f32 %v6962, %v7144
      %v7171 = vadd.f32 %v6963, %v7145
      %v7172 = vadd.f32 %v6964, %v7146
      %v7173 = vadd.f32 %v6965, %v7147
      %v7174 = vadd.f32 %v6966, %v7148
      %v7175 = vadd.f32 %v6967, %v7149
      %v7176 = vadd.f32 %v6968, %v7150
      %v7177 = vadd.f32 %v6969, %v7151
      %v7178 = vadd.f32 %v6970, %v7152
      %v7179 = vadd.f32 %v6971, %v7153
      %v7180 = vadd.f32 %v6972, %v7154
      %v7181 = vadd.f32 %v6973, %v7155
      %v7182 = vadd.f32 %v6974, %v7156
      %v7183 = vadd.f32 %v6975, %v7157
      %v7184 = vadd.f32 %v6976, %v7158
      %v7185 = vadd.f32 %v6977, %v7159
      %v7186 = vadd.f32 %v6978, %v7160
      %v7187 = vld [vmem:[%s273 + $0x296] sm:$0xff]
      %v7188 = vld [vmem:[%s273 + $0x29e] sm:$0xff]
      %v7189 = vld [vmem:[%s273 + $0x2a6] sm:$0xff]
      %v7190 = vld [vmem:[%s273 + $0x2ae] sm:$0xff]
      %v7191 = vld [vmem:[%s273 + $0x2b6] sm:$0xff]
      %v7192 = vld [vmem:[%s273 + $0x2be] sm:$0xff]
      %v7193 = vld [vmem:[%s273 + $0x2c6] sm:$0xff]
      %v7194 = vld [vmem:[%s273 + $0x2ce] sm:$0xff]
      %v7195 = vld [vmem:[%s273 + $0x2d6] sm:$0xff]
      %v7196 = vld [vmem:[%s273 + $0x2de] sm:$0xff]
      %v7197 = vld [vmem:[%s273 + $0x2e6] sm:$0xff]
      %v7198 = vld [vmem:[%s273 + $0x2ee] sm:$0xff]
      %v7199 = vld [vmem:[%s273 + $0x2f6] sm:$0xff]
      %v7200 = vld [vmem:[%s273 + $0x2fe] sm:$0xff]
      %v7201 = vld [vmem:[%s273 + $0x306] sm:$0xff]
      %v7202 = vld [vmem:[%s273 + $0x30e] sm:$0xff]
      %v7203 = vld [vmem:[%s273 + $0x316] sm:$0xff]
      %v7204 = vld [vmem:[%s273 + $0x31e] sm:$0xff]
      %v7205 = vld [vmem:[%s273 + $0x326] sm:$0xff]
      %v7206 = vld [vmem:[%s273 + $0x32e] sm:$0xff]
      %v7207 = vld [vmem:[%s273 + $0x336] sm:$0xff]
      %v7208 = vld [vmem:[%s273 + $0x33e] sm:$0xff]
      %v7209 = vld [vmem:[%s273 + $0x346] sm:$0xff]
      %v7210 = vld [vmem:[%s273 + $0x34e] sm:$0xff]
      %v7211 = vld [vmem:[%s273 + $0x356] sm:$0xff]
      %v7212 = vld [vmem:[%s273 + $0x35e] sm:$0xff]
      %7214 = vset.pattern.permute.xlu0 0
      %7215 = vperm.xlu0 %7214, %v7187
      %v7216 = vpop.permute.xlu0 %7215
      %7219 = vset.pattern.permute.xlu0 0
      %7220 = vperm.xlu0 %7219, %v7188
      %v7221 = vpop.permute.xlu0 %7220
      %7224 = vset.pattern.permute.xlu0 0
      %7225 = vperm.xlu0 %7224, %v7189
      %v7226 = vpop.permute.xlu0 %7225
      %7229 = vset.pattern.permute.xlu0 0
      %7230 = vperm.xlu0 %7229, %v7190
      %v7231 = vpop.permute.xlu0 %7230
      %7234 = vset.pattern.permute.xlu0 0
      %7235 = vperm.xlu0 %7234, %v7191
      %v7236 = vpop.permute.xlu0 %7235
      %7239 = vset.pattern.permute.xlu0 0
      %7240 = vperm.xlu0 %7239, %v7192
      %v7241 = vpop.permute.xlu0 %7240
      %7244 = vset.pattern.permute.xlu0 0
      %7245 = vperm.xlu0 %7244, %v7193
      %v7246 = vpop.permute.xlu0 %7245
      %7249 = vset.pattern.permute.xlu0 0
      %7250 = vperm.xlu0 %7249, %v7194
      %v7251 = vpop.permute.xlu0 %7250
      %7254 = vset.pattern.permute.xlu0 0
      %7255 = vperm.xlu0 %7254, %v7195
      %v7256 = vpop.permute.xlu0 %7255
      %7259 = vset.pattern.permute.xlu0 0
      %7260 = vperm.xlu0 %7259, %v7196
      %v7261 = vpop.permute.xlu0 %7260
      %7264 = vset.pattern.permute.xlu0 0
      %7265 = vperm.xlu0 %7264, %v7197
      %v7266 = vpop.permute.xlu0 %7265
      %7269 = vset.pattern.permute.xlu0 0
      %7270 = vperm.xlu0 %7269, %v7198
      %v7271 = vpop.permute.xlu0 %7270
      %7274 = vset.pattern.permute.xlu0 0
      %7275 = vperm.xlu0 %7274, %v7199
      %v7276 = vpop.permute.xlu0 %7275
      %7279 = vset.pattern.permute.xlu0 0
      %7280 = vperm.xlu0 %7279, %v7200
      %v7281 = vpop.permute.xlu0 %7280
      %7284 = vset.pattern.permute.xlu0 0
      %7285 = vperm.xlu0 %7284, %v7201
      %v7286 = vpop.permute.xlu0 %7285
      %7289 = vset.pattern.permute.xlu0 0
      %7290 = vperm.xlu0 %7289, %v7202
      %v7291 = vpop.permute.xlu0 %7290
      %7294 = vset.pattern.permute.xlu0 0
      %7295 = vperm.xlu0 %7294, %v7203
      %v7296 = vpop.permute.xlu0 %7295
      %7299 = vset.pattern.permute.xlu0 0
      %7300 = vperm.xlu0 %7299, %v7204
      %v7301 = vpop.permute.xlu0 %7300
      %7304 = vset.pattern.permute.xlu0 0
      %7305 = vperm.xlu0 %7304, %v7205
      %v7306 = vpop.permute.xlu0 %7305
      %7309 = vset.pattern.permute.xlu0 0
      %7310 = vperm.xlu0 %7309, %v7206
      %v7311 = vpop.permute.xlu0 %7310
      %7314 = vset.pattern.permute.xlu0 0
      %7315 = vperm.xlu0 %7314, %v7207
      %v7316 = vpop.permute.xlu0 %7315
      %7319 = vset.pattern.permute.xlu0 0
      %7320 = vperm.xlu0 %7319, %v7208
      %v7321 = vpop.permute.xlu0 %7320
      %7324 = vset.pattern.permute.xlu0 0
      %7325 = vperm.xlu0 %7324, %v7209
      %v7326 = vpop.permute.xlu0 %7325
      %7329 = vset.pattern.permute.xlu0 0
      %7330 = vperm.xlu0 %7329, %v7210
      %v7331 = vpop.permute.xlu0 %7330
      %7334 = vset.pattern.permute.xlu0 0
      %7335 = vperm.xlu0 %7334, %v7211
      %v7336 = vpop.permute.xlu0 %7335
      %7339 = vset.pattern.permute.xlu0 0
      %7340 = vperm.xlu0 %7339, %v7212
      %v7341 = vpop.permute.xlu0 %7340
      %v7343 = vmul.f32 %v7216, %v1558
      %v7344 = vmul.f32 %v7221, %v1558
      %v7345 = vmul.f32 %v7226, %v1558
      %v7346 = vmul.f32 %v7231, %v1558
      %v7347 = vmul.f32 %v7236, %v1558
      %v7348 = vmul.f32 %v7241, %v1558
      %v7349 = vmul.f32 %v7246, %v1558
      %v7350 = vmul.f32 %v7251, %v1558
      %v7351 = vmul.f32 %v7256, %v1558
      %v7352 = vmul.f32 %v7261, %v1558
      %v7353 = vmul.f32 %v7266, %v1558
      %v7354 = vmul.f32 %v7271, %v1558
      %v7355 = vmul.f32 %v7276, %v1558
      %v7356 = vmul.f32 %v7281, %v1558
      %v7357 = vmul.f32 %v7286, %v1558
      %v7358 = vmul.f32 %v7291, %v1558
      %v7359 = vmul.f32 %v7296, %v1558
      %v7360 = vmul.f32 %v7301, %v1558
      %v7361 = vmul.f32 %v7306, %v1558
      %v7362 = vmul.f32 %v7311, %v1558
      %v7363 = vmul.f32 %v7316, %v1558
      %v7364 = vmul.f32 %v7321, %v1558
      %v7365 = vmul.f32 %v7326, %v1558
      %v7366 = vmul.f32 %v7331, %v1558
      %v7367 = vmul.f32 %v7336, %v1558
      %v7368 = vmul.f32 %v7341, %v1558
      %v7369 = vadd.f32 %v7161, %v7343
      %v7370 = vadd.f32 %v7162, %v7344
      %v7371 = vadd.f32 %v7163, %v7345
      %v7372 = vadd.f32 %v7164, %v7346
      %v7373 = vadd.f32 %v7165, %v7347
      %v7374 = vadd.f32 %v7166, %v7348
      %v7375 = vadd.f32 %v7167, %v7349
      %v7376 = vadd.f32 %v7168, %v7350
      %v7377 = vadd.f32 %v7169, %v7351
      %v7378 = vadd.f32 %v7170, %v7352
      %v7379 = vadd.f32 %v7171, %v7353
      %v7380 = vadd.f32 %v7172, %v7354
      %v7381 = vadd.f32 %v7173, %v7355
      %v7382 = vadd.f32 %v7174, %v7356
      %v7383 = vadd.f32 %v7175, %v7357
      %v7384 = vadd.f32 %v7176, %v7358
      %v7385 = vadd.f32 %v7177, %v7359
      %v7386 = vadd.f32 %v7178, %v7360
      %v7387 = vadd.f32 %v7179, %v7361
      %v7388 = vadd.f32 %v7180, %v7362
      %v7389 = vadd.f32 %v7181, %v7363
      %v7390 = vadd.f32 %v7182, %v7364
      %v7391 = vadd.f32 %v7183, %v7365
      %v7392 = vadd.f32 %v7184, %v7366
      %v7393 = vadd.f32 %v7185, %v7367
      %v7394 = vadd.f32 %v7186, %v7368
      %v7395 = vld [vmem:[%s273 + $0x2b2] sm:$0xff]
      %v7396 = vld [vmem:[%s273 + $0x2ba] sm:$0xff]
      %v7397 = vld [vmem:[%s273 + $0x2c2] sm:$0xff]
      %v7398 = vld [vmem:[%s273 + $0x2ca] sm:$0xff]
      %v7399 = vld [vmem:[%s273 + $0x2d2] sm:$0xff]
      %v7400 = vld [vmem:[%s273 + $0x2da] sm:$0xff]
      %v7401 = vld [vmem:[%s273 + $0x2e2] sm:$0xff]
      %v7402 = vld [vmem:[%s273 + $0x2ea] sm:$0xff]
      %v7403 = vld [vmem:[%s273 + $0x2f2] sm:$0xff]
      %v7404 = vld [vmem:[%s273 + $0x2fa] sm:$0xff]
      %v7405 = vld [vmem:[%s273 + $0x302] sm:$0xff]
      %v7406 = vld [vmem:[%s273 + $0x30a] sm:$0xff]
      %v7407 = vld [vmem:[%s273 + $0x312] sm:$0xff]
      %v7408 = vld [vmem:[%s273 + $0x31a] sm:$0xff]
      %v7409 = vld [vmem:[%s273 + $0x322] sm:$0xff]
      %v7410 = vld [vmem:[%s273 + $0x32a] sm:$0xff]
      %v7411 = vld [vmem:[%s273 + $0x332] sm:$0xff]
      %v7412 = vld [vmem:[%s273 + $0x33a] sm:$0xff]
      %v7413 = vld [vmem:[%s273 + $0x342] sm:$0xff]
      %v7414 = vld [vmem:[%s273 + $0x34a] sm:$0xff]
      %v7415 = vld [vmem:[%s273 + $0x352] sm:$0xff]
      %v7416 = vld [vmem:[%s273 + $0x35a] sm:$0xff]
      %v7417 = vld [vmem:[%s273 + $0x362] sm:$0xff]
      %v7418 = vld [vmem:[%s273 + $0x36a] sm:$0xff]
      %v7419 = vld [vmem:[%s273 + $0x372] sm:$0xff]
      %v7420 = vld [vmem:[%s273 + $0x37a] sm:$0xff]
      %7422 = vset.pattern.permute.xlu0 0
      %7423 = vperm.xlu0 %7422, %v7395
      %v7424 = vpop.permute.xlu0 %7423
      %7427 = vset.pattern.permute.xlu0 0
      %7428 = vperm.xlu0 %7427, %v7396
      %v7429 = vpop.permute.xlu0 %7428
      %7432 = vset.pattern.permute.xlu0 0
      %7433 = vperm.xlu0 %7432, %v7397
      %v7434 = vpop.permute.xlu0 %7433
      %7437 = vset.pattern.permute.xlu0 0
      %7438 = vperm.xlu0 %7437, %v7398
      %v7439 = vpop.permute.xlu0 %7438
      %7442 = vset.pattern.permute.xlu0 0
      %7443 = vperm.xlu0 %7442, %v7399
      %v7444 = vpop.permute.xlu0 %7443
      %7447 = vset.pattern.permute.xlu0 0
      %7448 = vperm.xlu0 %7447, %v7400
      %v7449 = vpop.permute.xlu0 %7448
      %7452 = vset.pattern.permute.xlu0 0
      %7453 = vperm.xlu0 %7452, %v7401
      %v7454 = vpop.permute.xlu0 %7453
      %7457 = vset.pattern.permute.xlu0 0
      %7458 = vperm.xlu0 %7457, %v7402
      %v7459 = vpop.permute.xlu0 %7458
      %7462 = vset.pattern.permute.xlu0 0
      %7463 = vperm.xlu0 %7462, %v7403
      %v7464 = vpop.permute.xlu0 %7463
      %7467 = vset.pattern.permute.xlu0 0
      %7468 = vperm.xlu0 %7467, %v7404
      %v7469 = vpop.permute.xlu0 %7468
      %7472 = vset.pattern.permute.xlu0 0
      %7473 = vperm.xlu0 %7472, %v7405
      %v7474 = vpop.permute.xlu0 %7473
      %7477 = vset.pattern.permute.xlu0 0
      %7478 = vperm.xlu0 %7477, %v7406
      %v7479 = vpop.permute.xlu0 %7478
      %7482 = vset.pattern.permute.xlu0 0
      %7483 = vperm.xlu0 %7482, %v7407
      %v7484 = vpop.permute.xlu0 %7483
      %7487 = vset.pattern.permute.xlu0 0
      %7488 = vperm.xlu0 %7487, %v7408
      %v7489 = vpop.permute.xlu0 %7488
      %7492 = vset.pattern.permute.xlu0 0
      %7493 = vperm.xlu0 %7492, %v7409
      %v7494 = vpop.permute.xlu0 %7493
      %7497 = vset.pattern.permute.xlu0 0
      %7498 = vperm.xlu0 %7497, %v7410
      %v7499 = vpop.permute.xlu0 %7498
      %7502 = vset.pattern.permute.xlu0 0
      %7503 = vperm.xlu0 %7502, %v7411
      %v7504 = vpop.permute.xlu0 %7503
      %7507 = vset.pattern.permute.xlu0 0
      %7508 = vperm.xlu0 %7507, %v7412
      %v7509 = vpop.permute.xlu0 %7508
      %7512 = vset.pattern.permute.xlu0 0
      %7513 = vperm.xlu0 %7512, %v7413
      %v7514 = vpop.permute.xlu0 %7513
      %7517 = vset.pattern.permute.xlu0 0
      %7518 = vperm.xlu0 %7517, %v7414
      %v7519 = vpop.permute.xlu0 %7518
      %7522 = vset.pattern.permute.xlu0 0
      %7523 = vperm.xlu0 %7522, %v7415
      %v7524 = vpop.permute.xlu0 %7523
      %7527 = vset.pattern.permute.xlu0 0
      %7528 = vperm.xlu0 %7527, %v7416
      %v7529 = vpop.permute.xlu0 %7528
      %7532 = vset.pattern.permute.xlu0 0
      %7533 = vperm.xlu0 %7532, %v7417
      %v7534 = vpop.permute.xlu0 %7533
      %7537 = vset.pattern.permute.xlu0 0
      %7538 = vperm.xlu0 %7537, %v7418
      %v7539 = vpop.permute.xlu0 %7538
      %7542 = vset.pattern.permute.xlu0 0
      %7543 = vperm.xlu0 %7542, %v7419
      %v7544 = vpop.permute.xlu0 %7543
      %7547 = vset.pattern.permute.xlu0 0
      %7548 = vperm.xlu0 %7547, %v7420
      %v7549 = vpop.permute.xlu0 %7548
      %v7551 = vmul.f32 %v7424, %v1770
      %v7552 = vmul.f32 %v7429, %v1770
      %v7553 = vmul.f32 %v7434, %v1770
      %v7554 = vmul.f32 %v7439, %v1770
      %v7555 = vmul.f32 %v7444, %v1770
      %v7556 = vmul.f32 %v7449, %v1770
      %v7557 = vmul.f32 %v7454, %v1770
      %v7558 = vmul.f32 %v7459, %v1770
      %v7559 = vmul.f32 %v7464, %v1770
      %v7560 = vmul.f32 %v7469, %v1770
      %v7561 = vmul.f32 %v7474, %v1770
      %v7562 = vmul.f32 %v7479, %v1770
      %v7563 = vmul.f32 %v7484, %v1770
      %v7564 = vmul.f32 %v7489, %v1770
      %v7565 = vmul.f32 %v7494, %v1770
      %v7566 = vmul.f32 %v7499, %v1770
      %v7567 = vmul.f32 %v7504, %v1770
      %v7568 = vmul.f32 %v7509, %v1770
      %v7569 = vmul.f32 %v7514, %v1770
      %v7570 = vmul.f32 %v7519, %v1770
      %v7571 = vmul.f32 %v7524, %v1770
      %v7572 = vmul.f32 %v7529, %v1770
      %v7573 = vmul.f32 %v7534, %v1770
      %v7574 = vmul.f32 %v7539, %v1770
      %v7575 = vmul.f32 %v7544, %v1770
      %v7576 = vmul.f32 %v7549, %v1770
      %v7577 = vadd.f32 %v7369, %v7551
      %v7578 = vadd.f32 %v7370, %v7552
      %v7579 = vadd.f32 %v7371, %v7553
      %v7580 = vadd.f32 %v7372, %v7554
      %v7581 = vadd.f32 %v7373, %v7555
      %v7582 = vadd.f32 %v7374, %v7556
      %v7583 = vadd.f32 %v7375, %v7557
      %v7584 = vadd.f32 %v7376, %v7558
      %v7585 = vadd.f32 %v7377, %v7559
      %v7586 = vadd.f32 %v7378, %v7560
      %v7587 = vadd.f32 %v7379, %v7561
      %v7588 = vadd.f32 %v7380, %v7562
      %v7589 = vadd.f32 %v7381, %v7563
      %v7590 = vadd.f32 %v7382, %v7564
      %v7591 = vadd.f32 %v7383, %v7565
      %v7592 = vadd.f32 %v7384, %v7566
      %v7593 = vadd.f32 %v7385, %v7567
      %v7594 = vadd.f32 %v7386, %v7568
      %v7595 = vadd.f32 %v7387, %v7569
      %v7596 = vadd.f32 %v7388, %v7570
      %v7597 = vadd.f32 %v7389, %v7571
      %v7598 = vadd.f32 %v7390, %v7572
      %v7599 = vadd.f32 %v7391, %v7573
      %v7600 = vadd.f32 %v7392, %v7574
      %v7601 = vadd.f32 %v7393, %v7575
      %v7602 = vadd.f32 %v7394, %v7576
      %v7603 = vld [vmem:[%s273 + $0x2b3] sm:$0xff]
      %v7604 = vld [vmem:[%s273 + $0x2bb] sm:$0xff]
      %v7605 = vld [vmem:[%s273 + $0x2c3] sm:$0xff]
      %v7606 = vld [vmem:[%s273 + $0x2cb] sm:$0xff]
      %v7607 = vld [vmem:[%s273 + $0x2d3] sm:$0xff]
      %v7608 = vld [vmem:[%s273 + $0x2db] sm:$0xff]
      %v7609 = vld [vmem:[%s273 + $0x2e3] sm:$0xff]
      %v7610 = vld [vmem:[%s273 + $0x2eb] sm:$0xff]
      %v7611 = vld [vmem:[%s273 + $0x2f3] sm:$0xff]
      %v7612 = vld [vmem:[%s273 + $0x2fb] sm:$0xff]
      %v7613 = vld [vmem:[%s273 + $0x303] sm:$0xff]
      %v7614 = vld [vmem:[%s273 + $0x30b] sm:$0xff]
      %v7615 = vld [vmem:[%s273 + $0x313] sm:$0xff]
      %v7616 = vld [vmem:[%s273 + $0x31b] sm:$0xff]
      %v7617 = vld [vmem:[%s273 + $0x323] sm:$0xff]
      %v7618 = vld [vmem:[%s273 + $0x32b] sm:$0xff]
      %v7619 = vld [vmem:[%s273 + $0x333] sm:$0xff]
      %v7620 = vld [vmem:[%s273 + $0x33b] sm:$0xff]
      %v7621 = vld [vmem:[%s273 + $0x343] sm:$0xff]
      %v7622 = vld [vmem:[%s273 + $0x34b] sm:$0xff]
      %v7623 = vld [vmem:[%s273 + $0x353] sm:$0xff]
      %v7624 = vld [vmem:[%s273 + $0x35b] sm:$0xff]
      %v7625 = vld [vmem:[%s273 + $0x363] sm:$0xff]
      %v7626 = vld [vmem:[%s273 + $0x36b] sm:$0xff]
      %v7627 = vld [vmem:[%s273 + $0x373] sm:$0xff]
      %v7628 = vld [vmem:[%s273 + $0x37b] sm:$0xff]
      %7630 = vset.pattern.permute.xlu0 0
      %7631 = vperm.xlu0 %7630, %v7603
      %v7632 = vpop.permute.xlu0 %7631
      %7635 = vset.pattern.permute.xlu0 0
      %7636 = vperm.xlu0 %7635, %v7604
      %v7637 = vpop.permute.xlu0 %7636
      %7640 = vset.pattern.permute.xlu0 0
      %7641 = vperm.xlu0 %7640, %v7605
      %v7642 = vpop.permute.xlu0 %7641
      %7645 = vset.pattern.permute.xlu0 0
      %7646 = vperm.xlu0 %7645, %v7606
      %v7647 = vpop.permute.xlu0 %7646
      %7650 = vset.pattern.permute.xlu0 0
      %7651 = vperm.xlu0 %7650, %v7607
      %v7652 = vpop.permute.xlu0 %7651
      %7655 = vset.pattern.permute.xlu0 0
      %7656 = vperm.xlu0 %7655, %v7608
      %v7657 = vpop.permute.xlu0 %7656
      %7660 = vset.pattern.permute.xlu0 0
      %7661 = vperm.xlu0 %7660, %v7609
      %v7662 = vpop.permute.xlu0 %7661
      %7665 = vset.pattern.permute.xlu0 0
      %7666 = vperm.xlu0 %7665, %v7610
      %v7667 = vpop.permute.xlu0 %7666
      %7670 = vset.pattern.permute.xlu0 0
      %7671 = vperm.xlu0 %7670, %v7611
      %v7672 = vpop.permute.xlu0 %7671
      %7675 = vset.pattern.permute.xlu0 0
      %7676 = vperm.xlu0 %7675, %v7612
      %v7677 = vpop.permute.xlu0 %7676
      %7680 = vset.pattern.permute.xlu0 0
      %7681 = vperm.xlu0 %7680, %v7613
      %v7682 = vpop.permute.xlu0 %7681
      %7685 = vset.pattern.permute.xlu0 0
      %7686 = vperm.xlu0 %7685, %v7614
      %v7687 = vpop.permute.xlu0 %7686
      %7690 = vset.pattern.permute.xlu0 0
      %7691 = vperm.xlu0 %7690, %v7615
      %v7692 = vpop.permute.xlu0 %7691
      %7695 = vset.pattern.permute.xlu0 0
      %7696 = vperm.xlu0 %7695, %v7616
      %v7697 = vpop.permute.xlu0 %7696
      %7700 = vset.pattern.permute.xlu0 0
      %7701 = vperm.xlu0 %7700, %v7617
      %v7702 = vpop.permute.xlu0 %7701
      %7705 = vset.pattern.permute.xlu0 0
      %7706 = vperm.xlu0 %7705, %v7618
      %v7707 = vpop.permute.xlu0 %7706
      %7710 = vset.pattern.permute.xlu0 0
      %7711 = vperm.xlu0 %7710, %v7619
      %v7712 = vpop.permute.xlu0 %7711
      %7715 = vset.pattern.permute.xlu0 0
      %7716 = vperm.xlu0 %7715, %v7620
      %v7717 = vpop.permute.xlu0 %7716
      %7720 = vset.pattern.permute.xlu0 0
      %7721 = vperm.xlu0 %7720, %v7621
      %v7722 = vpop.permute.xlu0 %7721
      %7725 = vset.pattern.permute.xlu0 0
      %7726 = vperm.xlu0 %7725, %v7622
      %v7727 = vpop.permute.xlu0 %7726
      %7730 = vset.pattern.permute.xlu0 0
      %7731 = vperm.xlu0 %7730, %v7623
      %v7732 = vpop.permute.xlu0 %7731
      %7735 = vset.pattern.permute.xlu0 0
      %7736 = vperm.xlu0 %7735, %v7624
      %v7737 = vpop.permute.xlu0 %7736
      %7740 = vset.pattern.permute.xlu0 0
      %7741 = vperm.xlu0 %7740, %v7625
      %v7742 = vpop.permute.xlu0 %7741
      %7745 = vset.pattern.permute.xlu0 0
      %7746 = vperm.xlu0 %7745, %v7626
      %v7747 = vpop.permute.xlu0 %7746
      %7750 = vset.pattern.permute.xlu0 0
      %7751 = vperm.xlu0 %7750, %v7627
      %v7752 = vpop.permute.xlu0 %7751
      %7755 = vset.pattern.permute.xlu0 0
      %7756 = vperm.xlu0 %7755, %v7628
      %v7757 = vpop.permute.xlu0 %7756
      %v7759 = vmul.f32 %v7632, %v1982
      %v7760 = vmul.f32 %v7637, %v1982
      %v7761 = vmul.f32 %v7642, %v1982
      %v7762 = vmul.f32 %v7647, %v1982
      %v7763 = vmul.f32 %v7652, %v1982
      %v7764 = vmul.f32 %v7657, %v1982
      %v7765 = vmul.f32 %v7662, %v1982
      %v7766 = vmul.f32 %v7667, %v1982
      %v7767 = vmul.f32 %v7672, %v1982
      %v7768 = vmul.f32 %v7677, %v1982
      %v7769 = vmul.f32 %v7682, %v1982
      %v7770 = vmul.f32 %v7687, %v1982
      %v7771 = vmul.f32 %v7692, %v1982
      %v7772 = vmul.f32 %v7697, %v1982
      %v7773 = vmul.f32 %v7702, %v1982
      %v7774 = vmul.f32 %v7707, %v1982
      %v7775 = vmul.f32 %v7712, %v1982
      %v7776 = vmul.f32 %v7717, %v1982
      %v7777 = vmul.f32 %v7722, %v1982
      %v7778 = vmul.f32 %v7727, %v1982
      %v7779 = vmul.f32 %v7732, %v1982
      %v7780 = vmul.f32 %v7737, %v1982
      %v7781 = vmul.f32 %v7742, %v1982
      %v7782 = vmul.f32 %v7747, %v1982
      %v7783 = vmul.f32 %v7752, %v1982
      %v7784 = vmul.f32 %v7757, %v1982
      %v7785 = vadd.f32 %v7577, %v7759
      %v7786 = vadd.f32 %v7578, %v7760
      %v7787 = vadd.f32 %v7579, %v7761
      %v7788 = vadd.f32 %v7580, %v7762
      %v7789 = vadd.f32 %v7581, %v7763
      %v7790 = vadd.f32 %v7582, %v7764
      %v7791 = vadd.f32 %v7583, %v7765
      %v7792 = vadd.f32 %v7584, %v7766
      %v7793 = vadd.f32 %v7585, %v7767
      %v7794 = vadd.f32 %v7586, %v7768
      %v7795 = vadd.f32 %v7587, %v7769
      %v7796 = vadd.f32 %v7588, %v7770
      %v7797 = vadd.f32 %v7589, %v7771
      %v7798 = vadd.f32 %v7590, %v7772
      %v7799 = vadd.f32 %v7591, %v7773
      %v7800 = vadd.f32 %v7592, %v7774
      %v7801 = vadd.f32 %v7593, %v7775
      %v7802 = vadd.f32 %v7594, %v7776
      %v7803 = vadd.f32 %v7595, %v7777
      %v7804 = vadd.f32 %v7596, %v7778
      %v7805 = vadd.f32 %v7597, %v7779
      %v7806 = vadd.f32 %v7598, %v7780
      %v7807 = vadd.f32 %v7599, %v7781
      %v7808 = vadd.f32 %v7600, %v7782
      %v7809 = vadd.f32 %v7601, %v7783
      %v7810 = vadd.f32 %v7602, %v7784
      %v7811 = vld [vmem:[%s273 + $0x2b4] sm:$0xff]
      %v7812 = vld [vmem:[%s273 + $0x2bc] sm:$0xff]
      %v7813 = vld [vmem:[%s273 + $0x2c4] sm:$0xff]
      %v7814 = vld [vmem:[%s273 + $0x2cc] sm:$0xff]
      %v7815 = vld [vmem:[%s273 + $0x2d4] sm:$0xff]
      %v7816 = vld [vmem:[%s273 + $0x2dc] sm:$0xff]
      %v7817 = vld [vmem:[%s273 + $0x2e4] sm:$0xff]
      %v7818 = vld [vmem:[%s273 + $0x2ec] sm:$0xff]
      %v7819 = vld [vmem:[%s273 + $0x2f4] sm:$0xff]
      %v7820 = vld [vmem:[%s273 + $0x2fc] sm:$0xff]
      %v7821 = vld [vmem:[%s273 + $0x304] sm:$0xff]
      %v7822 = vld [vmem:[%s273 + $0x30c] sm:$0xff]
      %v7823 = vld [vmem:[%s273 + $0x314] sm:$0xff]
      %v7824 = vld [vmem:[%s273 + $0x31c] sm:$0xff]
      %v7825 = vld [vmem:[%s273 + $0x324] sm:$0xff]
      %v7826 = vld [vmem:[%s273 + $0x32c] sm:$0xff]
      %v7827 = vld [vmem:[%s273 + $0x334] sm:$0xff]
      %v7828 = vld [vmem:[%s273 + $0x33c] sm:$0xff]
      %v7829 = vld [vmem:[%s273 + $0x344] sm:$0xff]
      %v7830 = vld [vmem:[%s273 + $0x34c] sm:$0xff]
      %v7831 = vld [vmem:[%s273 + $0x354] sm:$0xff]
      %v7832 = vld [vmem:[%s273 + $0x35c] sm:$0xff]
      %v7833 = vld [vmem:[%s273 + $0x364] sm:$0xff]
      %v7834 = vld [vmem:[%s273 + $0x36c] sm:$0xff]
      %v7835 = vld [vmem:[%s273 + $0x374] sm:$0xff]
      %v7836 = vld [vmem:[%s273 + $0x37c] sm:$0xff]
      %7838 = vset.pattern.permute.xlu0 0
      %7839 = vperm.xlu0 %7838, %v7811
      %v7840 = vpop.permute.xlu0 %7839
      %7843 = vset.pattern.permute.xlu0 0
      %7844 = vperm.xlu0 %7843, %v7812
      %v7845 = vpop.permute.xlu0 %7844
      %7848 = vset.pattern.permute.xlu0 0
      %7849 = vperm.xlu0 %7848, %v7813
      %v7850 = vpop.permute.xlu0 %7849
      %7853 = vset.pattern.permute.xlu0 0
      %7854 = vperm.xlu0 %7853, %v7814
      %v7855 = vpop.permute.xlu0 %7854
      %7858 = vset.pattern.permute.xlu0 0
      %7859 = vperm.xlu0 %7858, %v7815
      %v7860 = vpop.permute.xlu0 %7859
      %7863 = vset.pattern.permute.xlu0 0
      %7864 = vperm.xlu0 %7863, %v7816
      %v7865 = vpop.permute.xlu0 %7864
      %7868 = vset.pattern.permute.xlu0 0
      %7869 = vperm.xlu0 %7868, %v7817
      %v7870 = vpop.permute.xlu0 %7869
      %7873 = vset.pattern.permute.xlu0 0
      %7874 = vperm.xlu0 %7873, %v7818
      %v7875 = vpop.permute.xlu0 %7874
      %7878 = vset.pattern.permute.xlu0 0
      %7879 = vperm.xlu0 %7878, %v7819
      %v7880 = vpop.permute.xlu0 %7879
      %7883 = vset.pattern.permute.xlu0 0
      %7884 = vperm.xlu0 %7883, %v7820
      %v7885 = vpop.permute.xlu0 %7884
      %7888 = vset.pattern.permute.xlu0 0
      %7889 = vperm.xlu0 %7888, %v7821
      %v7890 = vpop.permute.xlu0 %7889
      %7893 = vset.pattern.permute.xlu0 0
      %7894 = vperm.xlu0 %7893, %v7822
      %v7895 = vpop.permute.xlu0 %7894
      %7898 = vset.pattern.permute.xlu0 0
      %7899 = vperm.xlu0 %7898, %v7823
      %v7900 = vpop.permute.xlu0 %7899
      %7903 = vset.pattern.permute.xlu0 0
      %7904 = vperm.xlu0 %7903, %v7824
      %v7905 = vpop.permute.xlu0 %7904
      %7908 = vset.pattern.permute.xlu0 0
      %7909 = vperm.xlu0 %7908, %v7825
      %v7910 = vpop.permute.xlu0 %7909
      %7913 = vset.pattern.permute.xlu0 0
      %7914 = vperm.xlu0 %7913, %v7826
      %v7915 = vpop.permute.xlu0 %7914
      %7918 = vset.pattern.permute.xlu0 0
      %7919 = vperm.xlu0 %7918, %v7827
      %v7920 = vpop.permute.xlu0 %7919
      %7923 = vset.pattern.permute.xlu0 0
      %7924 = vperm.xlu0 %7923, %v7828
      %v7925 = vpop.permute.xlu0 %7924
      %7928 = vset.pattern.permute.xlu0 0
      %7929 = vperm.xlu0 %7928, %v7829
      %v7930 = vpop.permute.xlu0 %7929
      %7933 = vset.pattern.permute.xlu0 0
      %7934 = vperm.xlu0 %7933, %v7830
      %v7935 = vpop.permute.xlu0 %7934
      %7938 = vset.pattern.permute.xlu0 0
      %7939 = vperm.xlu0 %7938, %v7831
      %v7940 = vpop.permute.xlu0 %7939
      %7943 = vset.pattern.permute.xlu0 0
      %7944 = vperm.xlu0 %7943, %v7832
      %v7945 = vpop.permute.xlu0 %7944
      %7948 = vset.pattern.permute.xlu0 0
      %7949 = vperm.xlu0 %7948, %v7833
      %v7950 = vpop.permute.xlu0 %7949
      %7953 = vset.pattern.permute.xlu0 0
      %7954 = vperm.xlu0 %7953, %v7834
      %v7955 = vpop.permute.xlu0 %7954
      %7958 = vset.pattern.permute.xlu0 0
      %7959 = vperm.xlu0 %7958, %v7835
      %v7960 = vpop.permute.xlu0 %7959
      %7963 = vset.pattern.permute.xlu0 0
      %7964 = vperm.xlu0 %7963, %v7836
      %v7965 = vpop.permute.xlu0 %7964
      %v7967 = vmul.f32 %v7840, %v2194
      %v7968 = vmul.f32 %v7845, %v2194
      %v7969 = vmul.f32 %v7850, %v2194
      %v7970 = vmul.f32 %v7855, %v2194
      %v7971 = vmul.f32 %v7860, %v2194
      %v7972 = vmul.f32 %v7865, %v2194
      %v7973 = vmul.f32 %v7870, %v2194
      %v7974 = vmul.f32 %v7875, %v2194
      %v7975 = vmul.f32 %v7880, %v2194
      %v7976 = vmul.f32 %v7885, %v2194
      %v7977 = vmul.f32 %v7890, %v2194
      %v7978 = vmul.f32 %v7895, %v2194
      %v7979 = vmul.f32 %v7900, %v2194
      %v7980 = vmul.f32 %v7905, %v2194
      %v7981 = vmul.f32 %v7910, %v2194
      %v7982 = vmul.f32 %v7915, %v2194
      %v7983 = vmul.f32 %v7920, %v2194
      %v7984 = vmul.f32 %v7925, %v2194
      %v7985 = vmul.f32 %v7930, %v2194
      %v7986 = vmul.f32 %v7935, %v2194
      %v7987 = vmul.f32 %v7940, %v2194
      %v7988 = vmul.f32 %v7945, %v2194
      %v7989 = vmul.f32 %v7950, %v2194
      %v7990 = vmul.f32 %v7955, %v2194
      %v7991 = vmul.f32 %v7960, %v2194
      %v7992 = vmul.f32 %v7965, %v2194
      %v7993 = vadd.f32 %v7785, %v7967
      %v7994 = vadd.f32 %v7786, %v7968
      %v7995 = vadd.f32 %v7787, %v7969
      %v7996 = vadd.f32 %v7788, %v7970
      %v7997 = vadd.f32 %v7789, %v7971
      %v7998 = vadd.f32 %v7790, %v7972
      %v7999 = vadd.f32 %v7791, %v7973
      %v8000 = vadd.f32 %v7792, %v7974
      %v8001 = vadd.f32 %v7793, %v7975
      %v8002 = vadd.f32 %v7794, %v7976
      %v8003 = vadd.f32 %v7795, %v7977
      %v8004 = vadd.f32 %v7796, %v7978
      %v8005 = vadd.f32 %v7797, %v7979
      %v8006 = vadd.f32 %v7798, %v7980
      %v8007 = vadd.f32 %v7799, %v7981
      %v8008 = vadd.f32 %v7800, %v7982
      %v8009 = vadd.f32 %v7801, %v7983
      %v8010 = vadd.f32 %v7802, %v7984
      %v8011 = vadd.f32 %v7803, %v7985
      %v8012 = vadd.f32 %v7804, %v7986
      %v8013 = vadd.f32 %v7805, %v7987
      %v8014 = vadd.f32 %v7806, %v7988
      %v8015 = vadd.f32 %v7807, %v7989
      %v8016 = vadd.f32 %v7808, %v7990
      %v8017 = vadd.f32 %v7809, %v7991
      %v8018 = vadd.f32 %v7810, %v7992
      %v8019 = vmax.f32 %v7993, 0.0
      %v8020 = vmax.f32 %v7994, 0.0
      %v8021 = vmax.f32 %v7995, 0.0
      %v8022 = vmax.f32 %v7996, 0.0
      %v8023 = vmax.f32 %v7997, 0.0
      %v8024 = vmax.f32 %v7998, 0.0
      %v8025 = vmax.f32 %v7999, 0.0
      %v8026 = vmax.f32 %v8000, 0.0
      %v8027 = vmax.f32 %v8001, 0.0
      %v8028 = vmax.f32 %v8002, 0.0
      %v8029 = vmax.f32 %v8003, 0.0
      %v8030 = vmax.f32 %v8004, 0.0
      %v8031 = vmax.f32 %v8005, 0.0
      %v8032 = vmax.f32 %v8006, 0.0
      %v8033 = vmax.f32 %v8007, 0.0
      %v8034 = vmax.f32 %v8008, 0.0
      %v8035 = vmax.f32 %v8009, 0.0
      %v8036 = vmax.f32 %v8010, 0.0
      %v8037 = vmax.f32 %v8011, 0.0
      %v8038 = vmax.f32 %v8012, 0.0
      %v8039 = vmax.f32 %v8013, 0.0
      %v8040 = vmax.f32 %v8014, 0.0
      %v8041 = vmax.f32 %v8015, 0.0
      %v8042 = vmax.f32 %v8016, 0.0
      %v8043 = vmax.f32 %v8017, 0.0
      %v8044 = vmax.f32 %v8018, 0.0
      %8045 = vst.msk [vmem:[#allocation2 + $0x276] sm:$0xff] %vm280, %v8019
      %8046 = vst.msk [vmem:[#allocation2 + $0x27e] sm:$0xff] %vm280, %v8020
      %8047 = vst.msk [vmem:[#allocation2 + $0x286] sm:$0xff] %vm280, %v8021
      %8048 = vst.msk [vmem:[#allocation2 + $0x28e] sm:$0xff] %vm280, %v8022
      %8049 = vst.msk [vmem:[#allocation2 + $0x296] sm:$0xff] %vm280, %v8023
      %8050 = vst.msk [vmem:[#allocation2 + $0x29e] sm:$0xff] %vm280, %v8024
      %8051 = vst.msk [vmem:[#allocation2 + $0x2a6] sm:$0xff] %vm280, %v8025
      %8052 = vst.msk [vmem:[#allocation2 + $0x2ae] sm:$0xff] %vm280, %v8026
      %8053 = vst.msk [vmem:[#allocation2 + $0x2b6] sm:$0xff] %vm280, %v8027
      %8054 = vst.msk [vmem:[#allocation2 + $0x2be] sm:$0xff] %vm280, %v8028
      %8055 = vst.msk [vmem:[#allocation2 + $0x2c6] sm:$0xff] %vm280, %v8029
      %8056 = vst.msk [vmem:[#allocation2 + $0x2ce] sm:$0xff] %vm280, %v8030
      %8057 = vst.msk [vmem:[#allocation2 + $0x2d6] sm:$0xff] %vm280, %v8031
      %8058 = vst.msk [vmem:[#allocation2 + $0x2de] sm:$0xff] %vm280, %v8032
      %8059 = vst.msk [vmem:[#allocation2 + $0x2e6] sm:$0xff] %vm280, %v8033
      %8060 = vst.msk [vmem:[#allocation2 + $0x2ee] sm:$0xff] %vm280, %v8034
      %8061 = vst.msk [vmem:[#allocation2 + $0x2f6] sm:$0xff] %vm280, %v8035
      %8062 = vst.msk [vmem:[#allocation2 + $0x2fe] sm:$0xff] %vm280, %v8036
      %8063 = vst.msk [vmem:[#allocation2 + $0x306] sm:$0xff] %vm280, %v8037
      %8064 = vst.msk [vmem:[#allocation2 + $0x30e] sm:$0xff] %vm280, %v8038
      %8065 = vst.msk [vmem:[#allocation2 + $0x316] sm:$0xff] %vm280, %v8039
      %8066 = vst.msk [vmem:[#allocation2 + $0x31e] sm:$0xff] %vm280, %v8040
      %8067 = vst.msk [vmem:[#allocation2 + $0x326] sm:$0xff] %vm280, %v8041
      %8068 = vst.msk [vmem:[#allocation2 + $0x32e] sm:$0xff] %vm280, %v8042
      %8069 = vst.msk [vmem:[#allocation2 + $0x336] sm:$0xff] %vm280, %v8043
      %8070 = vst.msk [vmem:[#allocation2 + $0x33e] sm:$0xff] %vm280, %v8044
      %v8071 = vld [vmem:[#allocation2] sm:$0xff]
      %v8072 = vld [vmem:[#allocation2 + $0x8] sm:$0xff]
      %v8073 = vld [vmem:[#allocation2 + $0x10] sm:$0xff]
      %v8074 = vld [vmem:[#allocation2 + $0x18] sm:$0xff]
      %v8075 = vld [vmem:[#allocation2 + $0x20] sm:$0xff]
      %v8076 = vld [vmem:[#allocation2 + $0x28] sm:$0xff]
      %v8077 = vld [vmem:[#allocation2 + $0x30] sm:$0xff]
      %v8078 = vld [vmem:[#allocation2 + $0x38] sm:$0xff]
      %v8079 = vld [vmem:[#allocation2 + $0x40] sm:$0xff]
      %v8080 = vld [vmem:[#allocation2 + $0x48] sm:$0xff]
      %v8081 = vld [vmem:[#allocation2 + $0x50] sm:$0xff]
      %v8082 = vld [vmem:[#allocation2 + $0x58] sm:$0xff]
      %v8083 = vld [vmem:[#allocation2 + $0x60] sm:$0xff]
      %v8084 = vld [vmem:[#allocation2 + $0x68] sm:$0xff]
      %v8085 = vld [vmem:[#allocation2 + $0x70] sm:$0xff]
      %v8086 = vld [vmem:[#allocation2 + $0x78] sm:$0xff]
      %v8087 = vld [vmem:[#allocation2 + $0x80] sm:$0xff]
      %v8088 = vld [vmem:[#allocation2 + $0x88] sm:$0xff]
      %v8089 = vld [vmem:[#allocation2 + $0x90] sm:$0xff]
      %v8090 = vld [vmem:[#allocation2 + $0x98] sm:$0xff]
      %v8091 = vld [vmem:[#allocation2 + $0xa0] sm:$0xff]
      %v8092 = vld [vmem:[#allocation2 + $0xa8] sm:$0xff]
      %v8093 = vld [vmem:[#allocation2 + $0xb0] sm:$0xff]
      %v8094 = vld [vmem:[#allocation2 + $0xb8] sm:$0xff]
      %v8095 = vld [vmem:[#allocation2 + $0xc0] sm:$0xff]
      %v8096 = vld [vmem:[#allocation2 + $0xc8] sm:$0xff]
      %v8097 = vld [vmem:[#allocation2 + $0xd0] sm:$0xff]
      %v8098 = vld [vmem:[#allocation2 + $0xd8] sm:$0xff]
      %v8099 = vld [vmem:[#allocation2 + $0xe0] sm:$0xff]
      %v8100 = vld [vmem:[#allocation2 + $0xe8] sm:$0xff]
      %v8101 = vld [vmem:[#allocation2 + $0xf0] sm:$0xff]
      %v8102 = vld [vmem:[#allocation2 + $0xf8] sm:$0xff]
      %v8103 = vld [vmem:[#allocation2 + $0x100] sm:$0xff]
      %v8104 = vld [vmem:[#allocation2 + $0x108] sm:$0xff]
      %v8105 = vld [vmem:[#allocation2 + $0x110] sm:$0xff]
      %v8106 = vld [vmem:[#allocation2 + $0x118] sm:$0xff]
      %v8107 = vld [vmem:[#allocation2 + $0x120] sm:$0xff]
      %v8108 = vld [vmem:[#allocation2 + $0x128] sm:$0xff]
      %v8109 = vld [vmem:[#allocation2 + $0x130] sm:$0xff]
      %v8110 = vld [vmem:[#allocation2 + $0x138] sm:$0xff]
      %v8111 = vld [vmem:[#allocation2 + $0x140] sm:$0xff]
      %v8112 = vld [vmem:[#allocation2 + $0x148] sm:$0xff]
      %v8113 = vld [vmem:[#allocation2 + $0x150] sm:$0xff]
      %v8114 = vld [vmem:[#allocation2 + $0x158] sm:$0xff]
      %v8115 = vld [vmem:[#allocation2 + $0x160] sm:$0xff]
      %v8116 = vld [vmem:[#allocation2 + $0x168] sm:$0xff]
      %v8117 = vld [vmem:[#allocation2 + $0x170] sm:$0xff]
      %v8118 = vld [vmem:[#allocation2 + $0x178] sm:$0xff]
      %v8119 = vld [vmem:[#allocation2 + $0x180] sm:$0xff]
      %v8120 = vld [vmem:[#allocation2 + $0x188] sm:$0xff]
      %v8121 = vld [vmem:[#allocation2 + $0x190] sm:$0xff]
      %v8122 = vld [vmem:[#allocation2 + $0x198] sm:$0xff]
      %v8123 = vld [vmem:[#allocation2 + $0x1a0] sm:$0xff]
      %v8124 = vld [vmem:[#allocation2 + $0x1a8] sm:$0xff]
      %v8125 = vld [vmem:[#allocation2 + $0x1b0] sm:$0xff]
      %v8126 = vld [vmem:[#allocation2 + $0x1b8] sm:$0xff]
      %v8127 = vld [vmem:[#allocation2 + $0x1c0] sm:$0xff]
      %v8128 = vld [vmem:[#allocation2 + $0x1c8] sm:$0xff]
      %v8129 = vld [vmem:[#allocation2 + $0x1d0] sm:$0xff]
      %v8130 = vld [vmem:[#allocation2 + $0x1d8] sm:$0xff]
      %v8131 = vld [vmem:[#allocation2 + $0x1e0] sm:$0xff]
      %v8132 = vld [vmem:[#allocation2 + $0x1e8] sm:$0xff]
      %v8133 = vld [vmem:[#allocation2 + $0x1f0] sm:$0xff]
      %v8134 = vld [vmem:[#allocation2 + $0x1f8] sm:$0xff]
      %v8135 = vld [vmem:[#allocation2 + $0x200] sm:$0xff]
      %v8136 = vld [vmem:[#allocation2 + $0x208] sm:$0xff]
      %v8137 = vld [vmem:[#allocation2 + $0x210] sm:$0xff]
      %v8138 = vld [vmem:[#allocation2 + $0x218] sm:$0xff]
      %v8139 = vld [vmem:[#allocation2 + $0x220] sm:$0xff]
      %v8140 = vld [vmem:[#allocation2 + $0x228] sm:$0xff]
      %v8141 = vld [vmem:[#allocation2 + $0x230] sm:$0xff]
      %v8142 = vld [vmem:[#allocation2 + $0x238] sm:$0xff]
      %v8143 = vld [vmem:[#allocation2 + $0x240] sm:$0xff]
      %v8144 = vld [vmem:[#allocation2 + $0x248] sm:$0xff]
      %v8145 = vld [vmem:[#allocation2 + $0x250] sm:$0xff]
      %v8146 = vld [vmem:[#allocation2 + $0x258] sm:$0xff]
      %v8147 = vld [vmem:[#allocation2 + $0x260] sm:$0xff]
      %v8148 = vld [vmem:[#allocation2 + $0x268] sm:$0xff]
      %v8149 = vld [vmem:[#allocation2 + $0x270] sm:$0xff]
      %v8150 = vld [vmem:[#allocation2 + $0x278] sm:$0xff]
      %v8151 = vld [vmem:[#allocation2 + $0x280] sm:$0xff]
      %v8152 = vld [vmem:[#allocation2 + $0x288] sm:$0xff]
      %v8153 = vld [vmem:[#allocation2 + $0x290] sm:$0xff]
      %v8154 = vld [vmem:[#allocation2 + $0x298] sm:$0xff]
      %v8155 = vld [vmem:[#allocation2 + $0x2a0] sm:$0xff]
      %v8156 = vld [vmem:[#allocation2 + $0x2a8] sm:$0xff]
      %v8157 = vld [vmem:[#allocation2 + $0x2b0] sm:$0xff]
      %v8158 = vld [vmem:[#allocation2 + $0x2b8] sm:$0xff]
      %v8159 = vld [vmem:[#allocation2 + $0x2c0] sm:$0xff]
      %v8160 = vld [vmem:[#allocation2 + $0x2c8] sm:$0xff]
      %v8161 = vld [vmem:[#allocation2 + $0x2d0] sm:$0xff]
      %v8162 = vld [vmem:[#allocation2 + $0x2d8] sm:$0xff]
      %v8163 = vld [vmem:[#allocation2 + $0x2e0] sm:$0xff]
      %v8164 = vld [vmem:[#allocation2 + $0x2e8] sm:$0xff]
      %v8165 = vld [vmem:[#allocation2 + $0x2f0] sm:$0xff]
      %v8166 = vld [vmem:[#allocation2 + $0x2f8] sm:$0xff]
      %v8167 = vld [vmem:[#allocation2 + $0x300] sm:$0xff]
      %v8168 = vld [vmem:[#allocation2 + $0x308] sm:$0xff]
      %v8169 = vld [vmem:[#allocation2 + $0x310] sm:$0xff]
      %v8170 = vld [vmem:[#allocation2 + $0x318] sm:$0xff]
      %v8171 = vld [vmem:[#allocation2 + $0x320] sm:$0xff]
      %v8172 = vld [vmem:[#allocation2 + $0x1e] sm:$0xff]
      %v8173 = vld [vmem:[#allocation2 + $0x26] sm:$0xff]
      %v8174 = vld [vmem:[#allocation2 + $0x2e] sm:$0xff]
      %v8175 = vld [vmem:[#allocation2 + $0x36] sm:$0xff]
      %v8176 = vld [vmem:[#allocation2 + $0x3e] sm:$0xff]
      %v8177 = vld [vmem:[#allocation2 + $0x46] sm:$0xff]
      %v8178 = vld [vmem:[#allocation2 + $0x4e] sm:$0xff]
      %v8179 = vld [vmem:[#allocation2 + $0x56] sm:$0xff]
      %v8180 = vld [vmem:[#allocation2 + $0x5e] sm:$0xff]
      %v8181 = vld [vmem:[#allocation2 + $0x66] sm:$0xff]
      %v8182 = vld [vmem:[#allocation2 + $0x6e] sm:$0xff]
      %v8183 = vld [vmem:[#allocation2 + $0x76] sm:$0xff]
      %v8184 = vld [vmem:[#allocation2 + $0x7e] sm:$0xff]
      %v8185 = vld [vmem:[#allocation2 + $0x86] sm:$0xff]
      %v8186 = vld [vmem:[#allocation2 + $0x8e] sm:$0xff]
      %v8187 = vld [vmem:[#allocation2 + $0x96] sm:$0xff]
      %v8188 = vld [vmem:[#allocation2 + $0x9e] sm:$0xff]
      %v8189 = vld [vmem:[#allocation2 + $0xa6] sm:$0xff]
      %v8190 = vld [vmem:[#allocation2 + $0xae] sm:$0xff]
      %v8191 = vld [vmem:[#allocation2 + $0xb6] sm:$0xff]
      %v8192 = vld [vmem:[#allocation2 + $0xbe] sm:$0xff]
      %v8193 = vld [vmem:[#allocation2 + $0xc6] sm:$0xff]
      %v8194 = vld [vmem:[#allocation2 + $0xce] sm:$0xff]
      %v8195 = vld [vmem:[#allocation2 + $0xd6] sm:$0xff]
      %v8196 = vld [vmem:[#allocation2 + $0xde] sm:$0xff]
      %v8197 = vld [vmem:[#allocation2 + $0xe6] sm:$0xff]
      %v8198 = vld [vmem:[#allocation2 + $0xee] sm:$0xff]
      %v8199 = vld [vmem:[#allocation2 + $0xf6] sm:$0xff]
      %v8200 = vld [vmem:[#allocation2 + $0xfe] sm:$0xff]
      %v8201 = vld [vmem:[#allocation2 + $0x106] sm:$0xff]
      %v8202 = vld [vmem:[#allocation2 + $0x10e] sm:$0xff]
      %v8203 = vld [vmem:[#allocation2 + $0x116] sm:$0xff]
      %v8204 = vld [vmem:[#allocation2 + $0x11e] sm:$0xff]
      %v8205 = vld [vmem:[#allocation2 + $0x126] sm:$0xff]
      %v8206 = vld [vmem:[#allocation2 + $0x12e] sm:$0xff]
      %v8207 = vld [vmem:[#allocation2 + $0x136] sm:$0xff]
      %v8208 = vld [vmem:[#allocation2 + $0x13e] sm:$0xff]
      %v8209 = vld [vmem:[#allocation2 + $0x146] sm:$0xff]
      %v8210 = vld [vmem:[#allocation2 + $0x14e] sm:$0xff]
      %v8211 = vld [vmem:[#allocation2 + $0x156] sm:$0xff]
      %v8212 = vld [vmem:[#allocation2 + $0x15e] sm:$0xff]
      %v8213 = vld [vmem:[#allocation2 + $0x166] sm:$0xff]
      %v8214 = vld [vmem:[#allocation2 + $0x16e] sm:$0xff]
      %v8215 = vld [vmem:[#allocation2 + $0x176] sm:$0xff]
      %v8216 = vld [vmem:[#allocation2 + $0x17e] sm:$0xff]
      %v8217 = vld [vmem:[#allocation2 + $0x186] sm:$0xff]
      %v8218 = vld [vmem:[#allocation2 + $0x18e] sm:$0xff]
      %v8219 = vld [vmem:[#allocation2 + $0x196] sm:$0xff]
      %v8220 = vld [vmem:[#allocation2 + $0x19e] sm:$0xff]
      %v8221 = vld [vmem:[#allocation2 + $0x1a6] sm:$0xff]
      %v8222 = vld [vmem:[#allocation2 + $0x1ae] sm:$0xff]
      %v8223 = vld [vmem:[#allocation2 + $0x1b6] sm:$0xff]
      %v8224 = vld [vmem:[#allocation2 + $0x1be] sm:$0xff]
      %v8225 = vld [vmem:[#allocation2 + $0x1c6] sm:$0xff]
      %v8226 = vld [vmem:[#allocation2 + $0x1ce] sm:$0xff]
      %v8227 = vld [vmem:[#allocation2 + $0x1d6] sm:$0xff]
      %v8228 = vld [vmem:[#allocation2 + $0x1de] sm:$0xff]
      %v8229 = vld [vmem:[#allocation2 + $0x1e6] sm:$0xff]
      %v8230 = vld [vmem:[#allocation2 + $0x1ee] sm:$0xff]
      %v8231 = vld [vmem:[#allocation2 + $0x1f6] sm:$0xff]
      %v8232 = vld [vmem:[#allocation2 + $0x1fe] sm:$0xff]
      %v8233 = vld [vmem:[#allocation2 + $0x206] sm:$0xff]
      %v8234 = vld [vmem:[#allocation2 + $0x20e] sm:$0xff]
      %v8235 = vld [vmem:[#allocation2 + $0x216] sm:$0xff]
      %v8236 = vld [vmem:[#allocation2 + $0x21e] sm:$0xff]
      %v8237 = vld [vmem:[#allocation2 + $0x226] sm:$0xff]
      %v8238 = vld [vmem:[#allocation2 + $0x22e] sm:$0xff]
      %v8239 = vld [vmem:[#allocation2 + $0x236] sm:$0xff]
      %v8240 = vld [vmem:[#allocation2 + $0x23e] sm:$0xff]
      %v8241 = vld [vmem:[#allocation2 + $0x246] sm:$0xff]
      %v8242 = vld [vmem:[#allocation2 + $0x24e] sm:$0xff]
      %v8243 = vld [vmem:[#allocation2 + $0x256] sm:$0xff]
      %v8244 = vld [vmem:[#allocation2 + $0x25e] sm:$0xff]
      %v8245 = vld [vmem:[#allocation2 + $0x266] sm:$0xff]
      %v8246 = vld [vmem:[#allocation2 + $0x26e] sm:$0xff]
      %v8247 = vld [vmem:[#allocation2 + $0x276] sm:$0xff]
      %v8248 = vld [vmem:[#allocation2 + $0x27e] sm:$0xff]
      %v8249 = vld [vmem:[#allocation2 + $0x286] sm:$0xff]
      %v8250 = vld [vmem:[#allocation2 + $0x28e] sm:$0xff]
      %v8251 = vld [vmem:[#allocation2 + $0x296] sm:$0xff]
      %v8252 = vld [vmem:[#allocation2 + $0x29e] sm:$0xff]
      %v8253 = vld [vmem:[#allocation2 + $0x2a6] sm:$0xff]
      %v8254 = vld [vmem:[#allocation2 + $0x2ae] sm:$0xff]
      %v8255 = vld [vmem:[#allocation2 + $0x2b6] sm:$0xff]
      %v8256 = vld [vmem:[#allocation2 + $0x2be] sm:$0xff]
      %v8257 = vld [vmem:[#allocation2 + $0x2c6] sm:$0xff]
      %v8258 = vld [vmem:[#allocation2 + $0x2ce] sm:$0xff]
      %v8259 = vld [vmem:[#allocation2 + $0x2d6] sm:$0xff]
      %v8260 = vld [vmem:[#allocation2 + $0x2de] sm:$0xff]
      %v8261 = vld [vmem:[#allocation2 + $0x2e6] sm:$0xff]
      %v8262 = vld [vmem:[#allocation2 + $0x2ee] sm:$0xff]
      %v8263 = vld [vmem:[#allocation2 + $0x2f6] sm:$0xff]
      %v8264 = vld [vmem:[#allocation2 + $0x2fe] sm:$0xff]
      %v8265 = vld [vmem:[#allocation2 + $0x306] sm:$0xff]
      %v8266 = vld [vmem:[#allocation2 + $0x30e] sm:$0xff]
      %v8267 = vld [vmem:[#allocation2 + $0x316] sm:$0xff]
      %v8268 = vld [vmem:[#allocation2 + $0x31e] sm:$0xff]
      %v8269 = vld [vmem:[#allocation2 + $0x326] sm:$0xff]
      %v8270 = vld [vmem:[#allocation2 + $0x32e] sm:$0xff]
      %v8271 = vld [vmem:[#allocation2 + $0x336] sm:$0xff]
      %v8272 = vld [vmem:[#allocation2 + $0x33e] sm:$0xff]
      %v8273 = vmax.f32 %v8071, %v8172
      %v8274 = vmax.f32 %v8072, %v8173
      %v8275 = vmax.f32 %v8073, %v8174
      %v8276 = vmax.f32 %v8074, %v8175
      %v8277 = vmax.f32 %v8075, %v8176
      %v8278 = vmax.f32 %v8076, %v8177
      %v8279 = vmax.f32 %v8077, %v8178
      %v8280 = vmax.f32 %v8078, %v8179
      %v8281 = vmax.f32 %v8079, %v8180
      %v8282 = vmax.f32 %v8080, %v8181
      %v8283 = vmax.f32 %v8081, %v8182
      %v8284 = vmax.f32 %v8082, %v8183
      %v8285 = vmax.f32 %v8083, %v8184
      %v8286 = vmax.f32 %v8084, %v8185
      %v8287 = vmax.f32 %v8085, %v8186
      %v8288 = vmax.f32 %v8086, %v8187
      %v8289 = vmax.f32 %v8087, %v8188
      %v8290 = vmax.f32 %v8088, %v8189
      %v8291 = vmax.f32 %v8089, %v8190
      %v8292 = vmax.f32 %v8090, %v8191
      %v8293 = vmax.f32 %v8091, %v8192
      %v8294 = vmax.f32 %v8092, %v8193
      %v8295 = vmax.f32 %v8093, %v8194
      %v8296 = vmax.f32 %v8094, %v8195
      %v8297 = vmax.f32 %v8095, %v8196
      %v8298 = vmax.f32 %v8096, %v8197
      %v8299 = vmax.f32 %v8097, %v8198
      %v8300 = vmax.f32 %v8098, %v8199
      %v8301 = vmax.f32 %v8099, %v8200
      %v8302 = vmax.f32 %v8100, %v8201
      %v8303 = vmax.f32 %v8101, %v8202
      %v8304 = vmax.f32 %v8102, %v8203
      %v8305 = vmax.f32 %v8103, %v8204
      %v8306 = vmax.f32 %v8104, %v8205
      %v8307 = vmax.f32 %v8105, %v8206
      %v8308 = vmax.f32 %v8106, %v8207
      %v8309 = vmax.f32 %v8107, %v8208
      %v8310 = vmax.f32 %v8108, %v8209
      %v8311 = vmax.f32 %v8109, %v8210
      %v8312 = vmax.f32 %v8110, %v8211
      %v8313 = vmax.f32 %v8111, %v8212
      %v8314 = vmax.f32 %v8112, %v8213
      %v8315 = vmax.f32 %v8113, %v8214
      %v8316 = vmax.f32 %v8114, %v8215
      %v8317 = vmax.f32 %v8115, %v8216
      %v8318 = vmax.f32 %v8116, %v8217
      %v8319 = vmax.f32 %v8117, %v8218
      %v8320 = vmax.f32 %v8118, %v8219
      %v8321 = vmax.f32 %v8119, %v8220
      %v8322 = vmax.f32 %v8120, %v8221
      %v8323 = vmax.f32 %v8121, %v8222
      %v8324 = vmax.f32 %v8122, %v8223
      %v8325 = vmax.f32 %v8123, %v8224
      %v8326 = vmax.f32 %v8124, %v8225
      %v8327 = vmax.f32 %v8125, %v8226
      %v8328 = vmax.f32 %v8126, %v8227
      %v8329 = vmax.f32 %v8127, %v8228
      %v8330 = vmax.f32 %v8128, %v8229
      %v8331 = vmax.f32 %v8129, %v8230
      %v8332 = vmax.f32 %v8130, %v8231
      %v8333 = vmax.f32 %v8131, %v8232
      %v8334 = vmax.f32 %v8132, %v8233
      %v8335 = vmax.f32 %v8133, %v8234
      %v8336 = vmax.f32 %v8134, %v8235
      %v8337 = vmax.f32 %v8135, %v8236
      %v8338 = vmax.f32 %v8136, %v8237
      %v8339 = vmax.f32 %v8137, %v8238
      %v8340 = vmax.f32 %v8138, %v8239
      %v8341 = vmax.f32 %v8139, %v8240
      %v8342 = vmax.f32 %v8140, %v8241
      %v8343 = vmax.f32 %v8141, %v8242
      %v8344 = vmax.f32 %v8142, %v8243
      %v8345 = vmax.f32 %v8143, %v8244
      %v8346 = vmax.f32 %v8144, %v8245
      %v8347 = vmax.f32 %v8145, %v8246
      %v8348 = vmax.f32 %v8146, %v8247
      %v8349 = vmax.f32 %v8147, %v8248
      %v8350 = vmax.f32 %v8148, %v8249
      %v8351 = vmax.f32 %v8149, %v8250
      %v8352 = vmax.f32 %v8150, %v8251
      %v8353 = vmax.f32 %v8151, %v8252
      %v8354 = vmax.f32 %v8152, %v8253
      %v8355 = vmax.f32 %v8153, %v8254
      %v8356 = vmax.f32 %v8154, %v8255
      %v8357 = vmax.f32 %v8155, %v8256
      %v8358 = vmax.f32 %v8156, %v8257
      %v8359 = vmax.f32 %v8157, %v8258
      %v8360 = vmax.f32 %v8158, %v8259
      %v8361 = vmax.f32 %v8159, %v8260
      %v8362 = vmax.f32 %v8160, %v8261
      %v8363 = vmax.f32 %v8161, %v8262
      %v8364 = vmax.f32 %v8162, %v8263
      %v8365 = vmax.f32 %v8163, %v8264
      %v8366 = vmax.f32 %v8164, %v8265
      %v8367 = vmax.f32 %v8165, %v8266
      %v8368 = vmax.f32 %v8166, %v8267
      %v8369 = vmax.f32 %v8167, %v8268
      %v8370 = vmax.f32 %v8168, %v8269
      %v8371 = vmax.f32 %v8169, %v8270
      %v8372 = vmax.f32 %v8170, %v8271
      %v8373 = vmax.f32 %v8171, %v8272
      %8374 = vst.msk [vmem:[#allocation2] sm:$0xff] %vm280, %v8273
      %8375 = vst.msk [vmem:[#allocation2 + $0x8] sm:$0xff] %vm280, %v8274
      %8376 = vst.msk [vmem:[#allocation2 + $0x10] sm:$0xff] %vm280, %v8275
      %8377 = vst.msk [vmem:[#allocation2 + $0x18] sm:$0xff] %vm280, %v8276
      %8378 = vst.msk [vmem:[#allocation2 + $0x20] sm:$0xff] %vm280, %v8277
      %8379 = vst.msk [vmem:[#allocation2 + $0x28] sm:$0xff] %vm280, %v8278
      %8380 = vst.msk [vmem:[#allocation2 + $0x30] sm:$0xff] %vm280, %v8279
      %8381 = vst.msk [vmem:[#allocation2 + $0x38] sm:$0xff] %vm280, %v8280
      %8382 = vst.msk [vmem:[#allocation2 + $0x40] sm:$0xff] %vm280, %v8281
      %8383 = vst.msk [vmem:[#allocation2 + $0x48] sm:$0xff] %vm280, %v8282
      %8384 = vst.msk [vmem:[#allocation2 + $0x50] sm:$0xff] %vm280, %v8283
      %8385 = vst.msk [vmem:[#allocation2 + $0x58] sm:$0xff] %vm280, %v8284
      %8386 = vst.msk [vmem:[#allocation2 + $0x60] sm:$0xff] %vm280, %v8285
      %8387 = vst.msk [vmem:[#allocation2 + $0x68] sm:$0xff] %vm280, %v8286
      %8388 = vst.msk [vmem:[#allocation2 + $0x70] sm:$0xff] %vm280, %v8287
      %8389 = vst.msk [vmem:[#allocation2 + $0x78] sm:$0xff] %vm280, %v8288
      %8390 = vst.msk [vmem:[#allocation2 + $0x80] sm:$0xff] %vm280, %v8289
      %8391 = vst.msk [vmem:[#allocation2 + $0x88] sm:$0xff] %vm280, %v8290
      %8392 = vst.msk [vmem:[#allocation2 + $0x90] sm:$0xff] %vm280, %v8291
      %8393 = vst.msk [vmem:[#allocation2 + $0x98] sm:$0xff] %vm280, %v8292
      %8394 = vst.msk [vmem:[#allocation2 + $0xa0] sm:$0xff] %vm280, %v8293
      %8395 = vst.msk [vmem:[#allocation2 + $0xa8] sm:$0xff] %vm280, %v8294
      %8396 = vst.msk [vmem:[#allocation2 + $0xb0] sm:$0xff] %vm280, %v8295
      %8397 = vst.msk [vmem:[#allocation2 + $0xb8] sm:$0xff] %vm280, %v8296
      %8398 = vst.msk [vmem:[#allocation2 + $0xc0] sm:$0xff] %vm280, %v8297
      %8399 = vst.msk [vmem:[#allocation2 + $0xc8] sm:$0xff] %vm280, %v8298
      %8400 = vst.msk [vmem:[#allocation2 + $0xd0] sm:$0xff] %vm280, %v8299
      %8401 = vst.msk [vmem:[#allocation2 + $0xd8] sm:$0xff] %vm280, %v8300
      %8402 = vst.msk [vmem:[#allocation2 + $0xe0] sm:$0xff] %vm280, %v8301
      %8403 = vst.msk [vmem:[#allocation2 + $0xe8] sm:$0xff] %vm280, %v8302
      %8404 = vst.msk [vmem:[#allocation2 + $0xf0] sm:$0xff] %vm280, %v8303
      %8405 = vst.msk [vmem:[#allocation2 + $0xf8] sm:$0xff] %vm280, %v8304
      %8406 = vst.msk [vmem:[#allocation2 + $0x100] sm:$0xff] %vm280, %v8305
      %8407 = vst.msk [vmem:[#allocation2 + $0x108] sm:$0xff] %vm280, %v8306
      %8408 = vst.msk [vmem:[#allocation2 + $0x110] sm:$0xff] %vm280, %v8307
      %8409 = vst.msk [vmem:[#allocation2 + $0x118] sm:$0xff] %vm280, %v8308
      %8410 = vst.msk [vmem:[#allocation2 + $0x120] sm:$0xff] %vm280, %v8309
      %8411 = vst.msk [vmem:[#allocation2 + $0x128] sm:$0xff] %vm280, %v8310
      %8412 = vst.msk [vmem:[#allocation2 + $0x130] sm:$0xff] %vm280, %v8311
      %8413 = vst.msk [vmem:[#allocation2 + $0x138] sm:$0xff] %vm280, %v8312
      %8414 = vst.msk [vmem:[#allocation2 + $0x140] sm:$0xff] %vm280, %v8313
      %8415 = vst.msk [vmem:[#allocation2 + $0x148] sm:$0xff] %vm280, %v8314
      %8416 = vst.msk [vmem:[#allocation2 + $0x150] sm:$0xff] %vm280, %v8315
      %8417 = vst.msk [vmem:[#allocation2 + $0x158] sm:$0xff] %vm280, %v8316
      %8418 = vst.msk [vmem:[#allocation2 + $0x160] sm:$0xff] %vm280, %v8317
      %8419 = vst.msk [vmem:[#allocation2 + $0x168] sm:$0xff] %vm280, %v8318
      %8420 = vst.msk [vmem:[#allocation2 + $0x170] sm:$0xff] %vm280, %v8319
      %8421 = vst.msk [vmem:[#allocation2 + $0x178] sm:$0xff] %vm280, %v8320
      %8422 = vst.msk [vmem:[#allocation2 + $0x180] sm:$0xff] %vm280, %v8321
      %8423 = vst.msk [vmem:[#allocation2 + $0x188] sm:$0xff] %vm280, %v8322
      %8424 = vst.msk [vmem:[#allocation2 + $0x190] sm:$0xff] %vm280, %v8323
      %8425 = vst.msk [vmem:[#allocation2 + $0x198] sm:$0xff] %vm280, %v8324
      %8426 = vst.msk [vmem:[#allocation2 + $0x1a0] sm:$0xff] %vm280, %v8325
      %8427 = vst.msk [vmem:[#allocation2 + $0x1a8] sm:$0xff] %vm280, %v8326
      %8428 = vst.msk [vmem:[#allocation2 + $0x1b0] sm:$0xff] %vm280, %v8327
      %8429 = vst.msk [vmem:[#allocation2 + $0x1b8] sm:$0xff] %vm280, %v8328
      %8430 = vst.msk [vmem:[#allocation2 + $0x1c0] sm:$0xff] %vm280, %v8329
      %8431 = vst.msk [vmem:[#allocation2 + $0x1c8] sm:$0xff] %vm280, %v8330
      %8432 = vst.msk [vmem:[#allocation2 + $0x1d0] sm:$0xff] %vm280, %v8331
      %8433 = vst.msk [vmem:[#allocation2 + $0x1d8] sm:$0xff] %vm280, %v8332
      %8434 = vst.msk [vmem:[#allocation2 + $0x1e0] sm:$0xff] %vm280, %v8333
      %8435 = vst.msk [vmem:[#allocation2 + $0x1e8] sm:$0xff] %vm280, %v8334
      %8436 = vst.msk [vmem:[#allocation2 + $0x1f0] sm:$0xff] %vm280, %v8335
      %8437 = vst.msk [vmem:[#allocation2 + $0x1f8] sm:$0xff] %vm280, %v8336
      %8438 = vst.msk [vmem:[#allocation2 + $0x200] sm:$0xff] %vm280, %v8337
      %8439 = vst.msk [vmem:[#allocation2 + $0x208] sm:$0xff] %vm280, %v8338
      %8440 = vst.msk [vmem:[#allocation2 + $0x210] sm:$0xff] %vm280, %v8339
      %8441 = vst.msk [vmem:[#allocation2 + $0x218] sm:$0xff] %vm280, %v8340
      %8442 = vst.msk [vmem:[#allocation2 + $0x220] sm:$0xff] %vm280, %v8341
      %8443 = vst.msk [vmem:[#allocation2 + $0x228] sm:$0xff] %vm280, %v8342
      %8444 = vst.msk [vmem:[#allocation2 + $0x230] sm:$0xff] %vm280, %v8343
      %8445 = vst.msk [vmem:[#allocation2 + $0x238] sm:$0xff] %vm280, %v8344
      %8446 = vst.msk [vmem:[#allocation2 + $0x240] sm:$0xff] %vm280, %v8345
      %8447 = vst.msk [vmem:[#allocation2 + $0x248] sm:$0xff] %vm280, %v8346
      %8448 = vst.msk [vmem:[#allocation2 + $0x250] sm:$0xff] %vm280, %v8347
      %8449 = vst.msk [vmem:[#allocation2 + $0x258] sm:$0xff] %vm280, %v8348
      %8450 = vst.msk [vmem:[#allocation2 + $0x260] sm:$0xff] %vm280, %v8349
      %8451 = vst.msk [vmem:[#allocation2 + $0x268] sm:$0xff] %vm280, %v8350
      %8452 = vst.msk [vmem:[#allocation2 + $0x270] sm:$0xff] %vm280, %v8351
      %8453 = vst.msk [vmem:[#allocation2 + $0x278] sm:$0xff] %vm280, %v8352
      %8454 = vst.msk [vmem:[#allocation2 + $0x280] sm:$0xff] %vm280, %v8353
      %8455 = vst.msk [vmem:[#allocation2 + $0x288] sm:$0xff] %vm280, %v8354
      %8456 = vst.msk [vmem:[#allocation2 + $0x290] sm:$0xff] %vm280, %v8355
      %8457 = vst.msk [vmem:[#allocation2 + $0x298] sm:$0xff] %vm280, %v8356
      %8458 = vst.msk [vmem:[#allocation2 + $0x2a0] sm:$0xff] %vm280, %v8357
      %8459 = vst.msk [vmem:[#allocation2 + $0x2a8] sm:$0xff] %vm280, %v8358
      %8460 = vst.msk [vmem:[#allocation2 + $0x2b0] sm:$0xff] %vm280, %v8359
      %8461 = vst.msk [vmem:[#allocation2 + $0x2b8] sm:$0xff] %vm280, %v8360
      %8462 = vst.msk [vmem:[#allocation2 + $0x2c0] sm:$0xff] %vm280, %v8361
      %8463 = vst.msk [vmem:[#allocation2 + $0x2c8] sm:$0xff] %vm280, %v8362
      %8464 = vst.msk [vmem:[#allocation2 + $0x2d0] sm:$0xff] %vm280, %v8363
      %8465 = vst.msk [vmem:[#allocation2 + $0x2d8] sm:$0xff] %vm280, %v8364
      %8466 = vst.msk [vmem:[#allocation2 + $0x2e0] sm:$0xff] %vm280, %v8365
      %8467 = vst.msk [vmem:[#allocation2 + $0x2e8] sm:$0xff] %vm280, %v8366
      %8468 = vst.msk [vmem:[#allocation2 + $0x2f0] sm:$0xff] %vm280, %v8367
      %8469 = vst.msk [vmem:[#allocation2 + $0x2f8] sm:$0xff] %vm280, %v8368
      %8470 = vst.msk [vmem:[#allocation2 + $0x300] sm:$0xff] %vm280, %v8369
      %8471 = vst.msk [vmem:[#allocation2 + $0x308] sm:$0xff] %vm280, %v8370
      %8472 = vst.msk [vmem:[#allocation2 + $0x310] sm:$0xff] %vm280, %v8371
      %8473 = vst.msk [vmem:[#allocation2 + $0x318] sm:$0xff] %vm280, %v8372
      %8474 = vst.msk [vmem:[#allocation2 + $0x320] sm:$0xff] %vm280, %v8373
      %v8475 = vld [vmem:[#allocation2] ss:$2 sm:$0xff]
      %s8476 = scalar_lea.vmem [#allocation2], 16
      %v8477 = vld [vmem:[%s8476] ss:$2 sm:$0x3f]
      %s8478 = scalar_lea.vmem [#allocation2], 1
      %v8479 = vld [vmem:[%s8478] ss:$2 sm:$0xff]
      %s8480 = scalar_lea.vmem [#allocation2], 17
      %v8481 = vld [vmem:[%s8480] ss:$2 sm:$0x3f]
      %v8482 = vmax.f32 %v8475, %v8479
      %v8483 = vmax.f32 %v8477, %v8481
      %8484 = vst.msk [vmem:[#allocation3 + $0x11] sm:$0xff] %vm280, %v8482
      %vm8485 = vcmask 259072
      %8486 = vst.msk [vmem:[#allocation3 + $0x19] sm:$0x3f] %vm8485, %v8483
      %s8487 = scalar_lea.vmem [#allocation2], 60
      %v8488 = vld [vmem:[%s8487] ss:$2 sm:$0xff]
      %s8489 = scalar_lea.vmem [#allocation2], 76
      %v8490 = vld [vmem:[%s8489] ss:$2 sm:$0x3f]
      %s8491 = scalar_lea.vmem [#allocation2], 61
      %v8492 = vld [vmem:[%s8491] ss:$2 sm:$0xff]
      %s8493 = scalar_lea.vmem [#allocation2], 77
      %v8494 = vld [vmem:[%s8493] ss:$2 sm:$0x3f]
      %v8495 = vmax.f32 %v8488, %v8492
      %v8496 = vmax.f32 %v8490, %v8494
      %8497 = vst.msk [vmem:[#allocation3 + $0x21] sm:$0xff] %vm280, %v8495
      %8498 = vst.msk [vmem:[#allocation3 + $0x29] sm:$0x3f] %vm8485, %v8496
      %s8499 = scalar_lea.vmem [#allocation2], 120
      %v8500 = vld [vmem:[%s8499] ss:$2 sm:$0xff]
      %s8501 = scalar_lea.vmem [#allocation2], 136
      %v8502 = vld [vmem:[%s8501] ss:$2 sm:$0x3f]
      %s8503 = scalar_lea.vmem [#allocation2], 121
      %v8504 = vld [vmem:[%s8503] ss:$2 sm:$0xff]
      %s8505 = scalar_lea.vmem [#allocation2], 137
      %v8506 = vld [vmem:[%s8505] ss:$2 sm:$0x3f]
      %v8507 = vmax.f32 %v8500, %v8504
      %v8508 = vmax.f32 %v8502, %v8506
      %8509 = vst.msk [vmem:[#allocation3 + $0x31] sm:$0xff] %vm280, %v8507
      %8510 = vst.msk [vmem:[#allocation3 + $0x39] sm:$0x3f] %vm8485, %v8508
      %s8511 = scalar_lea.vmem [#allocation2], 180
      %v8512 = vld [vmem:[%s8511] ss:$2 sm:$0xff]
      %s8513 = scalar_lea.vmem [#allocation2], 196
      %v8514 = vld [vmem:[%s8513] ss:$2 sm:$0x3f]
      %s8515 = scalar_lea.vmem [#allocation2], 181
      %v8516 = vld [vmem:[%s8515] ss:$2 sm:$0xff]
      %s8517 = scalar_lea.vmem [#allocation2], 197
      %v8518 = vld [vmem:[%s8517] ss:$2 sm:$0x3f]
      %v8519 = vmax.f32 %v8512, %v8516
      %v8520 = vmax.f32 %v8514, %v8518
      %8521 = vst.msk [vmem:[#allocation3 + $0x41] sm:$0xff] %vm280, %v8519
      %8522 = vst.msk [vmem:[#allocation3 + $0x49] sm:$0x3f] %vm8485, %v8520
      %s8523 = scalar_lea.vmem [#allocation2], 240
      %v8524 = vld [vmem:[%s8523] ss:$2 sm:$0xff]
      %s8525 = scalar_lea.vmem [#allocation2], 256
      %v8526 = vld [vmem:[%s8525] ss:$2 sm:$0x3f]
      %s8527 = scalar_lea.vmem [#allocation2], 241
      %v8528 = vld [vmem:[%s8527] ss:$2 sm:$0xff]
      %s8529 = scalar_lea.vmem [#allocation2], 257
      %v8530 = vld [vmem:[%s8529] ss:$2 sm:$0x3f]
      %v8531 = vmax.f32 %v8524, %v8528
      %v8532 = vmax.f32 %v8526, %v8530
      %8533 = vst.msk [vmem:[#allocation3 + $0x51] sm:$0xff] %vm280, %v8531
      %8534 = vst.msk [vmem:[#allocation3 + $0x59] sm:$0x3f] %vm8485, %v8532
      %s8535 = scalar_lea.vmem [#allocation2], 300
      %v8536 = vld [vmem:[%s8535] ss:$2 sm:$0xff]
      %s8537 = scalar_lea.vmem [#allocation2], 316
      %v8538 = vld [vmem:[%s8537] ss:$2 sm:$0x3f]
      %s8539 = scalar_lea.vmem [#allocation2], 301
      %v8540 = vld [vmem:[%s8539] ss:$2 sm:$0xff]
      %s8541 = scalar_lea.vmem [#allocation2], 317
      %v8542 = vld [vmem:[%s8541] ss:$2 sm:$0x3f]
      %v8543 = vmax.f32 %v8536, %v8540
      %v8544 = vmax.f32 %v8538, %v8542
      %8545 = vst.msk [vmem:[#allocation3 + $0x61] sm:$0xff] %vm280, %v8543
      %8546 = vst.msk [vmem:[#allocation3 + $0x69] sm:$0x3f] %vm8485, %v8544
      %s8547 = scalar_lea.vmem [#allocation2], 360
      %v8548 = vld [vmem:[%s8547] ss:$2 sm:$0xff]
      %s8549 = scalar_lea.vmem [#allocation2], 376
      %v8550 = vld [vmem:[%s8549] ss:$2 sm:$0x3f]
      %s8551 = scalar_lea.vmem [#allocation2], 361
      %v8552 = vld [vmem:[%s8551] ss:$2 sm:$0xff]
      %s8553 = scalar_lea.vmem [#allocation2], 377
      %v8554 = vld [vmem:[%s8553] ss:$2 sm:$0x3f]
      %v8555 = vmax.f32 %v8548, %v8552
      %v8556 = vmax.f32 %v8550, %v8554
      %8557 = vst.msk [vmem:[#allocation3 + $0x71] sm:$0xff] %vm280, %v8555
      %8558 = vst.msk [vmem:[#allocation3 + $0x79] sm:$0x3f] %vm8485, %v8556
      %s8559 = scalar_lea.vmem [#allocation2], 420
      %v8560 = vld [vmem:[%s8559] ss:$2 sm:$0xff]
      %s8561 = scalar_lea.vmem [#allocation2], 436
      %v8562 = vld [vmem:[%s8561] ss:$2 sm:$0x3f]
      %s8563 = scalar_lea.vmem [#allocation2], 421
      %v8564 = vld [vmem:[%s8563] ss:$2 sm:$0xff]
      %s8565 = scalar_lea.vmem [#allocation2], 437
      %v8566 = vld [vmem:[%s8565] ss:$2 sm:$0x3f]
      %v8567 = vmax.f32 %v8560, %v8564
      %v8568 = vmax.f32 %v8562, %v8566
      %8569 = vst.msk [vmem:[#allocation3 + $0x81] sm:$0xff] %vm280, %v8567
      %8570 = vst.msk [vmem:[#allocation3 + $0x89] sm:$0x3f] %vm8485, %v8568
      %s8571 = scalar_lea.vmem [#allocation2], 480
      %v8572 = vld [vmem:[%s8571] ss:$2 sm:$0xff]
      %s8573 = scalar_lea.vmem [#allocation2], 496
      %v8574 = vld [vmem:[%s8573] ss:$2 sm:$0x3f]
      %s8575 = scalar_lea.vmem [#allocation2], 481
      %v8576 = vld [vmem:[%s8575] ss:$2 sm:$0xff]
      %s8577 = scalar_lea.vmem [#allocation2], 497
      %v8578 = vld [vmem:[%s8577] ss:$2 sm:$0x3f]
      %v8579 = vmax.f32 %v8572, %v8576
      %v8580 = vmax.f32 %v8574, %v8578
      %8581 = vst.msk [vmem:[#allocation3 + $0x91] sm:$0xff] %vm280, %v8579
      %8582 = vst.msk [vmem:[#allocation3 + $0x99] sm:$0x3f] %vm8485, %v8580
      %s8583 = scalar_lea.vmem [#allocation2], 540
      %v8584 = vld [vmem:[%s8583] ss:$2 sm:$0xff]
      %s8585 = scalar_lea.vmem [#allocation2], 556
      %v8586 = vld [vmem:[%s8585] ss:$2 sm:$0x3f]
      %s8587 = scalar_lea.vmem [#allocation2], 541
      %v8588 = vld [vmem:[%s8587] ss:$2 sm:$0xff]
      %s8589 = scalar_lea.vmem [#allocation2], 557
      %v8590 = vld [vmem:[%s8589] ss:$2 sm:$0x3f]
      %v8591 = vmax.f32 %v8584, %v8588
      %v8592 = vmax.f32 %v8586, %v8590
      %8593 = vst.msk [vmem:[#allocation3 + $0xa1] sm:$0xff] %vm280, %v8591
      %8594 = vst.msk [vmem:[#allocation3 + $0xa9] sm:$0x3f] %vm8485, %v8592
      %s8595 = scalar_lea.vmem [#allocation2], 600
      %v8596 = vld [vmem:[%s8595] ss:$2 sm:$0xff]
      %s8597 = scalar_lea.vmem [#allocation2], 616
      %v8598 = vld [vmem:[%s8597] ss:$2 sm:$0x3f]
      %s8599 = scalar_lea.vmem [#allocation2], 601
      %v8600 = vld [vmem:[%s8599] ss:$2 sm:$0xff]
      %s8601 = scalar_lea.vmem [#allocation2], 617
      %v8602 = vld [vmem:[%s8601] ss:$2 sm:$0x3f]
      %v8603 = vmax.f32 %v8596, %v8600
      %v8604 = vmax.f32 %v8598, %v8602
      %8605 = vst.msk [vmem:[#allocation3 + $0xb1] sm:$0xff] %vm280, %v8603
      %8606 = vst.msk [vmem:[#allocation3 + $0xb9] sm:$0x3f] %vm8485, %v8604
      %s8607 = scalar_lea.vmem [#allocation2], 660
      %v8608 = vld [vmem:[%s8607] ss:$2 sm:$0xff]
      %s8609 = scalar_lea.vmem [#allocation2], 676
      %v8610 = vld [vmem:[%s8609] ss:$2 sm:$0x3f]
      %s8611 = scalar_lea.vmem [#allocation2], 661
      %v8612 = vld [vmem:[%s8611] ss:$2 sm:$0xff]
      %s8613 = scalar_lea.vmem [#allocation2], 677
      %v8614 = vld [vmem:[%s8613] ss:$2 sm:$0x3f]
      %v8615 = vmax.f32 %v8608, %v8612
      %v8616 = vmax.f32 %v8610, %v8614
      %8617 = vst.msk [vmem:[#allocation3 + $0xc1] sm:$0xff] %vm280, %v8615
      %8618 = vst.msk [vmem:[#allocation3 + $0xc9] sm:$0x3f] %vm8485, %v8616
      %s8619 = scalar_lea.vmem [#allocation2], 720
      %v8620 = vld [vmem:[%s8619] ss:$2 sm:$0xff]
      %s8621 = scalar_lea.vmem [#allocation2], 736
      %v8622 = vld [vmem:[%s8621] ss:$2 sm:$0x3f]
      %s8623 = scalar_lea.vmem [#allocation2], 721
      %v8624 = vld [vmem:[%s8623] ss:$2 sm:$0xff]
      %s8625 = scalar_lea.vmem [#allocation2], 737
      %v8626 = vld [vmem:[%s8625] ss:$2 sm:$0x3f]
      %v8627 = vmax.f32 %v8620, %v8624
      %v8628 = vmax.f32 %v8622, %v8626
      %8629 = vst.msk [vmem:[#allocation3 + $0xd1] sm:$0xff] %vm280, %v8627
      %8630 = vst.msk [vmem:[#allocation3 + $0xd9] sm:$0x3f] %vm8485, %v8628
      %s8631 = scalar_lea.vmem [#allocation2], 780
      %v8632 = vld [vmem:[%s8631] ss:$2 sm:$0xff]
      %s8633 = scalar_lea.vmem [#allocation2], 796
      %v8634 = vld [vmem:[%s8633] ss:$2 sm:$0x3f]
      %s8635 = scalar_lea.vmem [#allocation2], 781
      %v8636 = vld [vmem:[%s8635] ss:$2 sm:$0xff]
      %s8637 = scalar_lea.vmem [#allocation2], 797
      %v8638 = vld [vmem:[%s8637] ss:$2 sm:$0x3f]
      %v8639 = vmax.f32 %v8632, %v8636
      %v8640 = vmax.f32 %v8634, %v8638
      %8641 = vst.msk [vmem:[#allocation3 + $0xe1] sm:$0xff] %vm280, %v8639
      %8642 = vst.msk [vmem:[#allocation3 + $0xe9] sm:$0x3f] %vm8485, %v8640
      %v8643 = vld [vmem:[#allocation3] sm:$0xff]
      %v8644 = vld [vmem:[#allocation3 + $0x8] sm:$0xff]
      %v8645 = vld [vmem:[#allocation3 + $0x10] sm:$0xff]
      %v8646 = vld [vmem:[#allocation3 + $0x18] sm:$0xff]
      %v8647 = vld [vmem:[#allocation3 + $0x20] sm:$0xff]
      %v8648 = vld [vmem:[#allocation3 + $0x28] sm:$0xff]
      %v8649 = vld [vmem:[#allocation3 + $0x30] sm:$0xff]
      %v8650 = vld [vmem:[#allocation3 + $0x38] sm:$0xff]
      %v8651 = vld [vmem:[#allocation3 + $0x40] sm:$0xff]
      %v8652 = vld [vmem:[#allocation3 + $0x48] sm:$0xff]
      %v8653 = vld [vmem:[#allocation3 + $0x50] sm:$0xff]
      %v8654 = vld [vmem:[#allocation3 + $0x58] sm:$0xff]
      %v8655 = vld [vmem:[#allocation3 + $0x60] sm:$0xff]
      %v8656 = vld [vmem:[#allocation3 + $0x68] sm:$0xff]
      %v8657 = vld [vmem:[#allocation3 + $0x70] sm:$0xff]
      %v8658 = vld [vmem:[#allocation3 + $0x78] sm:$0xff]
      %v8659 = vld [vmem:[#allocation3 + $0x80] sm:$0xff]
      %v8660 = vld [vmem:[#allocation3 + $0x88] sm:$0xff]
      %v8661 = vld [vmem:[#allocation3 + $0x90] sm:$0xff]
      %v8662 = vld [vmem:[#allocation3 + $0x98] sm:$0xff]
      %v8663 = vld [vmem:[#allocation3 + $0xa0] sm:$0xff]
      %v8664 = vld [vmem:[#allocation3 + $0xa8] sm:$0xff]
      %v8665 = vld [vmem:[#allocation3 + $0xb0] sm:$0xff]
      %v8666 = vld [vmem:[#allocation3 + $0xb8] sm:$0xff]
      %v8667 = vld [vmem:[#allocation3 + $0xc0] sm:$0xff]
      %v8668 = vld [vmem:[#allocation3 + $0xc8] sm:$0xff]
      %v8669 = vld [vmem:[#allocation3 + $0xd0] sm:$0xff]
      %v8670 = vld [vmem:[#allocation3 + $0xd8] sm:$0x3f]
      %v8671 = vpack.c.bf16 %v8644, %v8643
      %v8672 = vpack.c.bf16 %v8646, %v8645
      %v8673 = vpack.c.bf16 %v8648, %v8647
      %v8674 = vpack.c.bf16 %v8650, %v8649
      %v8675 = vpack.c.bf16 %v8652, %v8651
      %v8676 = vpack.c.bf16 %v8654, %v8653
      %v8677 = vpack.c.bf16 %v8656, %v8655
      %v8678 = vpack.c.bf16 %v8658, %v8657
      %v8679 = vpack.c.bf16 %v8660, %v8659
      %v8680 = vpack.c.bf16 %v8662, %v8661
      %v8681 = vpack.c.bf16 %v8664, %v8663
      %v8682 = vpack.c.bf16 %v8666, %v8665
      %v8683 = vpack.c.bf16 %v8668, %v8667
      %v8684 = vpack.c.bf16 %v8670, %v8669
      %v8685 = vld [vmem:[#allocation3 + $0x1] sm:$0xff]
      %v8686 = vld [vmem:[#allocation3 + $0x9] sm:$0xff]
      %v8687 = vld [vmem:[#allocation3 + $0x11] sm:$0xff]
      %v8688 = vld [vmem:[#allocation3 + $0x19] sm:$0xff]
      %v8689 = vld [vmem:[#allocation3 + $0x21] sm:$0xff]
      %v8690 = vld [vmem:[#allocation3 + $0x29] sm:$0xff]
      %v8691 = vld [vmem:[#allocation3 + $0x31] sm:$0xff]
      %v8692 = vld [vmem:[#allocation3 + $0x39] sm:$0xff]
      %v8693 = vld [vmem:[#allocation3 + $0x41] sm:$0xff]
      %v8694 = vld [vmem:[#allocation3 + $0x49] sm:$0xff]
      %v8695 = vld [vmem:[#allocation3 + $0x51] sm:$0xff]
      %v8696 = vld [vmem:[#allocation3 + $0x59] sm:$0xff]
      %v8697 = vld [vmem:[#allocation3 + $0x61] sm:$0xff]
      %v8698 = vld [vmem:[#allocation3 + $0x69] sm:$0xff]
      %v8699 = vld [vmem:[#allocation3 + $0x71] sm:$0xff]
      %v8700 = vld [vmem:[#allocation3 + $0x79] sm:$0xff]
      %v8701 = vld [vmem:[#allocation3 + $0x81] sm:$0xff]
      %v8702 = vld [vmem:[#allocation3 + $0x89] sm:$0xff]
      %v8703 = vld [vmem:[#allocation3 + $0x91] sm:$0xff]
      %v8704 = vld [vmem:[#allocation3 + $0x99] sm:$0xff]
      %v8705 = vld [vmem:[#allocation3 + $0xa1] sm:$0xff]
      %v8706 = vld [vmem:[#allocation3 + $0xa9] sm:$0xff]
      %v8707 = vld [vmem:[#allocation3 + $0xb1] sm:$0xff]
      %v8708 = vld [vmem:[#allocation3 + $0xb9] sm:$0xff]
      %v8709 = vld [vmem:[#allocation3 + $0xc1] sm:$0xff]
      %v8710 = vld [vmem:[#allocation3 + $0xc9] sm:$0xff]
      %v8711 = vld [vmem:[#allocation3 + $0xd1] sm:$0xff]
      %v8712 = vld [vmem:[#allocation3 + $0xd9] sm:$0x3f]
      %v8713 = vpack.c.bf16 %v8686, %v8685
      %v8714 = vpack.c.bf16 %v8688, %v8687
      %v8715 = vpack.c.bf16 %v8690, %v8689
      %v8716 = vpack.c.bf16 %v8692, %v8691
      %v8717 = vpack.c.bf16 %v8694, %v8693
      %v8718 = vpack.c.bf16 %v8696, %v8695
      %v8719 = vpack.c.bf16 %v8698, %v8697
      %v8720 = vpack.c.bf16 %v8700, %v8699
      %v8721 = vpack.c.bf16 %v8702, %v8701
      %v8722 = vpack.c.bf16 %v8704, %v8703
      %v8723 = vpack.c.bf16 %v8706, %v8705
      %v8724 = vpack.c.bf16 %v8708, %v8707
      %v8725 = vpack.c.bf16 %v8710, %v8709
      %v8726 = vpack.c.bf16 %v8712, %v8711
      %v8727 = vld [vmem:[#allocation3 + $0x2] sm:$0xff]
      %v8728 = vld [vmem:[#allocation3 + $0xa] sm:$0xff]
      %v8729 = vld [vmem:[#allocation3 + $0x12] sm:$0xff]
      %v8730 = vld [vmem:[#allocation3 + $0x1a] sm:$0xff]
      %v8731 = vld [vmem:[#allocation3 + $0x22] sm:$0xff]
      %v8732 = vld [vmem:[#allocation3 + $0x2a] sm:$0xff]
      %v8733 = vld [vmem:[#allocation3 + $0x32] sm:$0xff]
      %v8734 = vld [vmem:[#allocation3 + $0x3a] sm:$0xff]
      %v8735 = vld [vmem:[#allocation3 + $0x42] sm:$0xff]
      %v8736 = vld [vmem:[#allocation3 + $0x4a] sm:$0xff]
      %v8737 = vld [vmem:[#allocation3 + $0x52] sm:$0xff]
      %v8738 = vld [vmem:[#allocation3 + $0x5a] sm:$0xff]
      %v8739 = vld [vmem:[#allocation3 + $0x62] sm:$0xff]
      %v8740 = vld [vmem:[#allocation3 + $0x6a] sm:$0xff]
      %v8741 = vld [vmem:[#allocation3 + $0x72] sm:$0xff]
      %v8742 = vld [vmem:[#allocation3 + $0x7a] sm:$0xff]
      %v8743 = vld [vmem:[#allocation3 + $0x82] sm:$0xff]
      %v8744 = vld [vmem:[#allocation3 + $0x8a] sm:$0xff]
      %v8745 = vld [vmem:[#allocation3 + $0x92] sm:$0xff]
      %v8746 = vld [vmem:[#allocation3 + $0x9a] sm:$0xff]
      %v8747 = vld [vmem:[#allocation3 + $0xa2] sm:$0xff]
      %v8748 = vld [vmem:[#allocation3 + $0xaa] sm:$0xff]
      %v8749 = vld [vmem:[#allocation3 + $0xb2] sm:$0xff]
      %v8750 = vld [vmem:[#allocation3 + $0xba] sm:$0xff]
      %v8751 = vld [vmem:[#allocation3 + $0xc2] sm:$0xff]
      %v8752 = vld [vmem:[#allocation3 + $0xca] sm:$0xff]
      %v8753 = vld [vmem:[#allocation3 + $0xd2] sm:$0xff]
      %v8754 = vld [vmem:[#allocation3 + $0xda] sm:$0x3f]
      %v8755 = vpack.c.bf16 %v8728, %v8727
      %v8756 = vpack.c.bf16 %v8730, %v8729
      %v8757 = vpack.c.bf16 %v8732, %v8731
      %v8758 = vpack.c.bf16 %v8734, %v8733
      %v8759 = vpack.c.bf16 %v8736, %v8735
      %v8760 = vpack.c.bf16 %v8738, %v8737
      %v8761 = vpack.c.bf16 %v8740, %v8739
      %v8762 = vpack.c.bf16 %v8742, %v8741
      %v8763 = vpack.c.bf16 %v8744, %v8743
      %v8764 = vpack.c.bf16 %v8746, %v8745
      %v8765 = vpack.c.bf16 %v8748, %v8747
      %v8766 = vpack.c.bf16 %v8750, %v8749
      %v8767 = vpack.c.bf16 %v8752, %v8751
      %v8768 = vpack.c.bf16 %v8754, %v8753
      %v8769 = vld [vmem:[#allocation3 + $0xd8] sm:$0xff]
      %v8770 = vld [vmem:[#allocation3 + $0xe0] sm:$0xff]
      %v8771 = vld [vmem:[#allocation3 + $0xe8] sm:$0x3f]
      %v8772 = vpack.c.bf16 %v8769, %v8669
      %v8773 = vpack.c.bf16 %v8771, %v8770
      %v8774 = vld [vmem:[#allocation3 + $0xd9] sm:$0xff]
      %v8775 = vld [vmem:[#allocation3 + $0xe1] sm:$0xff]
      %v8776 = vld [vmem:[#allocation3 + $0xe9] sm:$0x3f]
      %v8777 = vpack.c.bf16 %v8774, %v8711
      %v8778 = vpack.c.bf16 %v8776, %v8775
      %v8779 = vld [vmem:[#allocation3 + $0xda] sm:$0xff]
      %v8780 = vld [vmem:[#allocation3 + $0xe2] sm:$0xff]
      %v8781 = vld [vmem:[#allocation3 + $0xea] sm:$0x3f]
      %v8782 = vpack.c.bf16 %v8779, %v8753
      %v8783 = vpack.c.bf16 %v8781, %v8780
      %v8784 = vld [vmem:[#allocation3 + $0xe8] sm:$0xff]
      %v8785 = vld [vmem:[#allocation3 + $0xf0] sm:$0xff]
      %v8786 = vld [vmem:[#allocation3 + $0xf8] sm:$0x3f]
      %v8787 = vpack.c.bf16 %v8784, %v8770
      %v8788 = vpack.c.bf16 %v8786, %v8785
      %v8789 = vld [vmem:[#allocation3 + $0xe9] sm:$0xff]
      %v8790 = vld [vmem:[#allocation3 + $0xf1] sm:$0xff]
      %v8791 = vld [vmem:[#allocation3 + $0xf9] sm:$0x3f]
      %v8792 = vpack.c.bf16 %v8789, %v8775
      %v8793 = vpack.c.bf16 %v8791, %v8790
      %v8794 = vld [vmem:[#allocation3 + $0xea] sm:$0xff]
      %v8795 = vld [vmem:[#allocation3 + $0xf2] sm:$0xff]
      %v8796 = vld [vmem:[#allocation3 + $0xfa] sm:$0x3f]
      %v8797 = vpack.c.bf16 %v8794, %v8780
      %v8798 = vpack.c.bf16 %v8796, %v8795
      %8813 = vrot.lane.b32.xlu0 %v8713, 32
      %v8814 = vpop.permute.xlu0 %8813
      %8815 = vrot.lane.b32.xlu0 %v8714, 32
      %v8816 = vpop.permute.xlu0 %8815
      %8817 = vrot.lane.b32.xlu0 %v8715, 32
      %v8818 = vpop.permute.xlu0 %8817
      %8819 = vrot.lane.b32.xlu0 %v8716, 32
      %v8820 = vpop.permute.xlu0 %8819
      %8821 = vrot.lane.b32.xlu0 %v8717, 32
      %v8822 = vpop.permute.xlu0 %8821
      %8823 = vrot.lane.b32.xlu0 %v8718, 32
      %v8824 = vpop.permute.xlu0 %8823
      %8825 = vrot.lane.b32.xlu0 %v8719, 32
      %v8826 = vpop.permute.xlu0 %8825
      %8827 = vrot.lane.b32.xlu0 %v8720, 32
      %v8828 = vpop.permute.xlu0 %8827
      %8829 = vrot.lane.b32.xlu0 %v8721, 32
      %v8830 = vpop.permute.xlu0 %8829
      %8831 = vrot.lane.b32.xlu0 %v8722, 32
      %v8832 = vpop.permute.xlu0 %8831
      %8833 = vrot.lane.b32.xlu0 %v8723, 32
      %v8834 = vpop.permute.xlu0 %8833
      %8835 = vrot.lane.b32.xlu0 %v8724, 32
      %v8836 = vpop.permute.xlu0 %8835
      %8837 = vrot.lane.b32.xlu0 %v8725, 32
      %v8838 = vpop.permute.xlu0 %8837
      %8839 = vrot.lane.b32.xlu0 %v8726, 32
      %v8840 = vpop.permute.xlu0 %8839
      %8855 = vrot.lane.b32.xlu0 %v8755, 64
      %v8856 = vpop.permute.xlu0 %8855
      %8857 = vrot.lane.b32.xlu0 %v8756, 64
      %v8858 = vpop.permute.xlu0 %8857
      %8859 = vrot.lane.b32.xlu0 %v8757, 64
      %v8860 = vpop.permute.xlu0 %8859
      %8861 = vrot.lane.b32.xlu0 %v8758, 64
      %v8862 = vpop.permute.xlu0 %8861
      %8863 = vrot.lane.b32.xlu0 %v8759, 64
      %v8864 = vpop.permute.xlu0 %8863
      %8865 = vrot.lane.b32.xlu0 %v8760, 64
      %v8866 = vpop.permute.xlu0 %8865
      %8867 = vrot.lane.b32.xlu0 %v8761, 64
      %v8868 = vpop.permute.xlu0 %8867
      %8869 = vrot.lane.b32.xlu0 %v8762, 64
      %v8870 = vpop.permute.xlu0 %8869
      %8871 = vrot.lane.b32.xlu0 %v8763, 64
      %v8872 = vpop.permute.xlu0 %8871
      %8873 = vrot.lane.b32.xlu0 %v8764, 64
      %v8874 = vpop.permute.xlu0 %8873
      %8875 = vrot.lane.b32.xlu0 %v8765, 64
      %v8876 = vpop.permute.xlu0 %8875
      %8877 = vrot.lane.b32.xlu0 %v8766, 64
      %v8878 = vpop.permute.xlu0 %8877
      %8879 = vrot.lane.b32.xlu0 %v8767, 64
      %v8880 = vpop.permute.xlu0 %8879
      %8881 = vrot.lane.b32.xlu0 %v8768, 64
      %v8882 = vpop.permute.xlu0 %8881
      %8897 = vrot.lane.b32.xlu0 %v8672, 96
      %v8898 = vpop.permute.xlu0 %8897
      %8899 = vrot.lane.b32.xlu0 %v8673, 96
      %v8900 = vpop.permute.xlu0 %8899
      %8901 = vrot.lane.b32.xlu0 %v8674, 96
      %v8902 = vpop.permute.xlu0 %8901
      %8903 = vrot.lane.b32.xlu0 %v8675, 96
      %v8904 = vpop.permute.xlu0 %8903
      %8905 = vrot.lane.b32.xlu0 %v8676, 96
      %v8906 = vpop.permute.xlu0 %8905
      %8907 = vrot.lane.b32.xlu0 %v8677, 96
      %v8908 = vpop.permute.xlu0 %8907
      %8909 = vrot.lane.b32.xlu0 %v8678, 96
      %v8910 = vpop.permute.xlu0 %8909
      %8911 = vrot.lane.b32.xlu0 %v8679, 96
      %v8912 = vpop.permute.xlu0 %8911
      %8913 = vrot.lane.b32.xlu0 %v8680, 96
      %v8914 = vpop.permute.xlu0 %8913
      %8915 = vrot.lane.b32.xlu0 %v8681, 96
      %v8916 = vpop.permute.xlu0 %8915
      %8917 = vrot.lane.b32.xlu0 %v8682, 96
      %v8918 = vpop.permute.xlu0 %8917
      %8919 = vrot.lane.b32.xlu0 %v8683, 96
      %v8920 = vpop.permute.xlu0 %8919
      %8921 = vrot.lane.b32.xlu0 %v8772, 96
      %v8922 = vpop.permute.xlu0 %8921
      %8923 = vrot.lane.b32.xlu0 %v8773, 96
      %v8924 = vpop.permute.xlu0 %8923
      %8927 = vrot.lane.b32.xlu0 %v8756, 32
      %v8928 = vpop.permute.xlu0 %8927
      %8929 = vrot.lane.b32.xlu0 %v8757, 32
      %v8930 = vpop.permute.xlu0 %8929
      %8931 = vrot.lane.b32.xlu0 %v8758, 32
      %v8932 = vpop.permute.xlu0 %8931
      %8933 = vrot.lane.b32.xlu0 %v8759, 32
      %v8934 = vpop.permute.xlu0 %8933
      %8935 = vrot.lane.b32.xlu0 %v8760, 32
      %v8936 = vpop.permute.xlu0 %8935
      %8937 = vrot.lane.b32.xlu0 %v8761, 32
      %v8938 = vpop.permute.xlu0 %8937
      %8939 = vrot.lane.b32.xlu0 %v8762, 32
      %v8940 = vpop.permute.xlu0 %8939
      %8941 = vrot.lane.b32.xlu0 %v8763, 32
      %v8942 = vpop.permute.xlu0 %8941
      %8943 = vrot.lane.b32.xlu0 %v8764, 32
      %v8944 = vpop.permute.xlu0 %8943
      %8945 = vrot.lane.b32.xlu0 %v8765, 32
      %v8946 = vpop.permute.xlu0 %8945
      %8947 = vrot.lane.b32.xlu0 %v8766, 32
      %v8948 = vpop.permute.xlu0 %8947
      %8949 = vrot.lane.b32.xlu0 %v8767, 32
      %v8950 = vpop.permute.xlu0 %8949
      %8951 = vrot.lane.b32.xlu0 %v8782, 32
      %v8952 = vpop.permute.xlu0 %8951
      %8953 = vrot.lane.b32.xlu0 %v8783, 32
      %v8954 = vpop.permute.xlu0 %8953
      %8957 = vrot.lane.b32.xlu0 %v8673, 64
      %v8958 = vpop.permute.xlu0 %8957
      %8959 = vrot.lane.b32.xlu0 %v8674, 64
      %v8960 = vpop.permute.xlu0 %8959
      %8961 = vrot.lane.b32.xlu0 %v8675, 64
      %v8962 = vpop.permute.xlu0 %8961
      %8963 = vrot.lane.b32.xlu0 %v8676, 64
      %v8964 = vpop.permute.xlu0 %8963
      %8965 = vrot.lane.b32.xlu0 %v8677, 64
      %v8966 = vpop.permute.xlu0 %8965
      %8967 = vrot.lane.b32.xlu0 %v8678, 64
      %v8968 = vpop.permute.xlu0 %8967
      %8969 = vrot.lane.b32.xlu0 %v8679, 64
      %v8970 = vpop.permute.xlu0 %8969
      %8971 = vrot.lane.b32.xlu0 %v8680, 64
      %v8972 = vpop.permute.xlu0 %8971
      %8973 = vrot.lane.b32.xlu0 %v8681, 64
      %v8974 = vpop.permute.xlu0 %8973
      %8975 = vrot.lane.b32.xlu0 %v8682, 64
      %v8976 = vpop.permute.xlu0 %8975
      %8977 = vrot.lane.b32.xlu0 %v8683, 64
      %v8978 = vpop.permute.xlu0 %8977
      %8979 = vrot.lane.b32.xlu0 %v8772, 64
      %v8980 = vpop.permute.xlu0 %8979
      %8981 = vrot.lane.b32.xlu0 %v8787, 64
      %v8982 = vpop.permute.xlu0 %8981
      %8983 = vrot.lane.b32.xlu0 %v8788, 64
      %v8984 = vpop.permute.xlu0 %8983
      %8988 = vrot.lane.b32.xlu0 %v8715, 96
      %v8989 = vpop.permute.xlu0 %8988
      %8990 = vrot.lane.b32.xlu0 %v8716, 96
      %v8991 = vpop.permute.xlu0 %8990
      %8992 = vrot.lane.b32.xlu0 %v8717, 96
      %v8993 = vpop.permute.xlu0 %8992
      %8994 = vrot.lane.b32.xlu0 %v8718, 96
      %v8995 = vpop.permute.xlu0 %8994
      %8996 = vrot.lane.b32.xlu0 %v8719, 96
      %v8997 = vpop.permute.xlu0 %8996
      %8998 = vrot.lane.b32.xlu0 %v8720, 96
      %v8999 = vpop.permute.xlu0 %8998
      %9000 = vrot.lane.b32.xlu0 %v8721, 96
      %v9001 = vpop.permute.xlu0 %9000
      %9002 = vrot.lane.b32.xlu0 %v8722, 96
      %v9003 = vpop.permute.xlu0 %9002
      %9004 = vrot.lane.b32.xlu0 %v8723, 96
      %v9005 = vpop.permute.xlu0 %9004
      %9006 = vrot.lane.b32.xlu0 %v8724, 96
      %v9007 = vpop.permute.xlu0 %9006
      %9008 = vrot.lane.b32.xlu0 %v8725, 96
      %v9009 = vpop.permute.xlu0 %9008
      %9010 = vrot.lane.b32.xlu0 %v8777, 96
      %v9011 = vpop.permute.xlu0 %9010
      %9012 = vrot.lane.b32.xlu0 %v8792, 96
      %v9013 = vpop.permute.xlu0 %9012
      %9014 = vrot.lane.b32.xlu0 %v8793, 96
      %v9015 = vpop.permute.xlu0 %9014
      %v9018 = vsel %vm280, %v8671, %v8814
      %v9021 = vsel %vm280, %v8672, %v8816
      %v9024 = vsel %vm280, %v8673, %v8818
      %v9027 = vsel %vm280, %v8674, %v8820
      %v9030 = vsel %vm280, %v8675, %v8822
      %v9033 = vsel %vm280, %v8676, %v8824
      %v9036 = vsel %vm280, %v8677, %v8826
      %v9039 = vsel %vm280, %v8678, %v8828
      %v9042 = vsel %vm280, %v8679, %v8830
      %v9045 = vsel %vm280, %v8680, %v8832
      %v9048 = vsel %vm280, %v8681, %v8834
      %v9051 = vsel %vm280, %v8682, %v8836
      %v9054 = vsel %vm280, %v8683, %v8838
      %v9057 = vsel %vm280, %v8684, %v8840
      %v9059 = vsel %vm313, %v9018, %v8856
      %v9061 = vsel %vm313, %v9021, %v8858
      %v9063 = vsel %vm313, %v9024, %v8860
      %v9065 = vsel %vm313, %v9027, %v8862
      %v9067 = vsel %vm313, %v9030, %v8864
      %v9069 = vsel %vm313, %v9033, %v8866
      %v9071 = vsel %vm313, %v9036, %v8868
      %v9073 = vsel %vm313, %v9039, %v8870
      %v9075 = vsel %vm313, %v9042, %v8872
      %v9077 = vsel %vm313, %v9045, %v8874
      %v9079 = vsel %vm313, %v9048, %v8876
      %v9081 = vsel %vm313, %v9051, %v8878
      %v9083 = vsel %vm313, %v9054, %v8880
      %v9085 = vsel %vm313, %v9057, %v8882
      %vm9086 = vcmask 785408
      %v9088 = vsel %vm9086, %v9059, %v8898
      %v9091 = vsel %vm9086, %v9061, %v8900
      %v9094 = vsel %vm9086, %v9063, %v8902
      %v9097 = vsel %vm9086, %v9065, %v8904
      %v9100 = vsel %vm9086, %v9067, %v8906
      %v9103 = vsel %vm9086, %v9069, %v8908
      %v9106 = vsel %vm9086, %v9071, %v8910
      %v9109 = vsel %vm9086, %v9073, %v8912
      %v9112 = vsel %vm9086, %v9075, %v8914
      %v9115 = vsel %vm9086, %v9077, %v8916
      %v9118 = vsel %vm9086, %v9079, %v8918
      %v9121 = vsel %vm9086, %v9081, %v8920
      %v9124 = vsel %vm9086, %v9083, %v8922
      %v9127 = vsel %vm9086, %v9085, %v8924
      %v9131 = vsel %vm280, %v8714, %v8928
      %v9134 = vsel %vm280, %v8715, %v8930
      %v9137 = vsel %vm280, %v8716, %v8932
      %v9140 = vsel %vm280, %v8717, %v8934
      %v9143 = vsel %vm280, %v8718, %v8936
      %v9146 = vsel %vm280, %v8719, %v8938
      %v9149 = vsel %vm280, %v8720, %v8940
      %v9152 = vsel %vm280, %v8721, %v8942
      %v9155 = vsel %vm280, %v8722, %v8944
      %v9158 = vsel %vm280, %v8723, %v8946
      %v9161 = vsel %vm280, %v8724, %v8948
      %v9164 = vsel %vm280, %v8725, %v8950
      %v9167 = vsel %vm280, %v8777, %v8952
      %v9170 = vsel %vm280, %v8778, %v8954
      %v9172 = vsel %vm313, %v9131, %v8958
      %v9174 = vsel %vm313, %v9134, %v8960
      %v9176 = vsel %vm313, %v9137, %v8962
      %v9178 = vsel %vm313, %v9140, %v8964
      %v9180 = vsel %vm313, %v9143, %v8966
      %v9182 = vsel %vm313, %v9146, %v8968
      %v9184 = vsel %vm313, %v9149, %v8970
      %v9186 = vsel %vm313, %v9152, %v8972
      %v9188 = vsel %vm313, %v9155, %v8974
      %v9190 = vsel %vm313, %v9158, %v8976
      %v9192 = vsel %vm313, %v9161, %v8978
      %v9194 = vsel %vm313, %v9164, %v8980
      %v9196 = vsel %vm313, %v9167, %v8982
      %v9198 = vsel %vm313, %v9170, %v8984
      %v9200 = vsel %vm9086, %v9172, %v8989
      %v9203 = vsel %vm9086, %v9174, %v8991
      %v9206 = vsel %vm9086, %v9176, %v8993
      %v9209 = vsel %vm9086, %v9178, %v8995
      %v9212 = vsel %vm9086, %v9180, %v8997
      %v9215 = vsel %vm9086, %v9182, %v8999
      %v9218 = vsel %vm9086, %v9184, %v9001
      %v9221 = vsel %vm9086, %v9186, %v9003
      %v9224 = vsel %vm9086, %v9188, %v9005
      %v9227 = vsel %vm9086, %v9190, %v9007
      %v9230 = vsel %vm9086, %v9192, %v9009
      %v9233 = vsel %vm9086, %v9194, %v9011
      %v9236 = vsel %vm9086, %v9196, %v9013
      %v9239 = vsel %vm9086, %v9198, %v9015
      %v9241 = vld [vmem:[%s3] sm:$0xf]
      %v9242 = vld [vmem:[%s3 + $0x4] sm:$0xf]
      %v9243 = vld [vmem:[%s3 + $0x8] sm:$0xf]
      %v9244 = vld [vmem:[%s3 + $0xc] sm:$0xf]
      %v9245 = vld [vmem:[%s3 + $0x10] sm:$0xf]
      %v9246 = vld [vmem:[%s3 + $0x14] sm:$0xf]
      %v9247 = vld [vmem:[%s3 + $0x18] sm:$0xf]
      %v9248 = vld [vmem:[%s3 + $0x1c] sm:$0xf]
      %v9249 = vld [vmem:[%s3 + $0x20] sm:$0xf]
      %v9250 = vld [vmem:[%s3 + $0x24] sm:$0xf]
      %v9251 = vld [vmem:[%s3 + $0x28] sm:$0xf]
      %v9252 = vld [vmem:[%s3 + $0x2c] sm:$0xf]
      %v9253 = vld [vmem:[%s3 + $0x30] sm:$0xf]
      %v9254 = vld [vmem:[%s3 + $0x34] sm:$0xf]
      %v9255 = vld [vmem:[%s3 + $0x38] sm:$0xf]
      %v9256 = vld [vmem:[%s3 + $0x3c] sm:$0xf]
      %v9257 = vld [vmem:[%s3 + $0x40] sm:$0xf]
      %v9258 = vld [vmem:[%s3 + $0x44] sm:$0xf]
      %v9259 = vld [vmem:[%s3 + $0x48] sm:$0xf]
      %v9260 = vld [vmem:[%s3 + $0x4c] sm:$0xf]
      %v9261 = vld [vmem:[%s3 + $0x50] sm:$0xf]
      %v9262 = vld [vmem:[%s3 + $0x54] sm:$0xf]
      %v9263 = vld [vmem:[%s3 + $0x58] sm:$0xf]
      %v9264 = vld [vmem:[%s3 + $0x5c] sm:$0xf]
      %v9265 = vld [vmem:[%s3 + $0x60] sm:$0xf]
      %v9266 = vld [vmem:[%s3 + $0x64] sm:$0xf]
      %v9267 = vld [vmem:[%s3 + $0x68] sm:$0xf]
      %v9268 = vld [vmem:[%s3 + $0x6c] sm:$0xf]
      %v9269 = vld [vmem:[%s3 + $0x70] sm:$0xf]
      %v9270 = vld [vmem:[%s3 + $0x74] sm:$0xf]
      %v9271 = vld [vmem:[%s3 + $0x78] sm:$0xf]
      %v9272 = vld [vmem:[%s3 + $0x7c] sm:$0xf]
      %v9273 = vld [vmem:[%s3 + $0x80] sm:$0xf]
      %v9274 = vld [vmem:[%s3 + $0x84] sm:$0xf]
      %v9275 = vld [vmem:[%s3 + $0x88] sm:$0xf]
      %v9276 = vld [vmem:[%s3 + $0x8c] sm:$0xf]
      %v9278 = vlaneseq
      %v9279 = vshrl.u32 %v9278, 7
      %v9280 = vsub.s32 0, %v9279
      %v9281 = vrot.slane %v329, %v9280
      %v9319 = vunpack.c.l.b16 %v9241
      %v9320 = vunpack.c.l.b16 %v9242
      %v9321 = vunpack.c.l.b16 %v9243
      %v9322 = vunpack.c.l.b16 %v9244
      %v9323 = vunpack.c.l.b16 %v9245
      %v9324 = vunpack.c.l.b16 %v9246
      %v9325 = vunpack.c.l.b16 %v9247
      %v9326 = vunpack.c.l.b16 %v9248
      %v9327 = vunpack.c.l.b16 %v9249
      %v9328 = vunpack.c.l.b16 %v9250
      %v9329 = vunpack.c.l.b16 %v9251
      %v9330 = vunpack.c.l.b16 %v9252
      %v9331 = vunpack.c.l.b16 %v9253
      %v9332 = vunpack.c.l.b16 %v9254
      %v9333 = vunpack.c.l.b16 %v9255
      %v9334 = vunpack.c.l.b16 %v9256
      %v9335 = vunpack.c.l.b16 %v9257
      %v9336 = vunpack.c.l.b16 %v9258
      %v9337 = vunpack.c.l.b16 %v9259
      %v9338 = vunpack.c.l.b16 %v9260
      %v9339 = vunpack.c.l.b16 %v9261
      %v9340 = vunpack.c.l.b16 %v9262
      %v9341 = vunpack.c.l.b16 %v9263
      %v9342 = vunpack.c.l.b16 %v9264
      %v9343 = vunpack.c.l.b16 %v9265
      %v9344 = vunpack.c.l.b16 %v9266
      %v9345 = vunpack.c.l.b16 %v9267
      %v9346 = vunpack.c.l.b16 %v9268
      %v9347 = vunpack.c.l.b16 %v9269
      %v9348 = vunpack.c.l.b16 %v9270
      %v9349 = vunpack.c.l.b16 %v9271
      %v9350 = vunpack.c.l.b16 %v9272
      %v9351 = vunpack.c.l.b16 %v9273
      %v9352 = vunpack.c.l.b16 %v9274
      %v9353 = vunpack.c.l.b16 %v9275
      %v9354 = vunpack.c.l.b16 %v9276
      %v9355 = vpack.c.b16 %v9320, %v9319
      %v9356 = vpack.c.b16 %v9322, %v9321
      %v9357 = vpack.c.b16 %v9324, %v9323
      %v9358 = vpack.c.b16 %v9326, %v9325
      %v9359 = vpack.c.b16 %v9328, %v9327
      %v9360 = vpack.c.b16 %v9330, %v9329
      %v9361 = vpack.c.b16 %v9332, %v9331
      %v9362 = vpack.c.b16 %v9334, %v9333
      %v9363 = vpack.c.b16 %v9336, %v9335
      %v9364 = vpack.c.b16 %v9338, %v9337
      %v9365 = vpack.c.b16 %v9340, %v9339
      %v9366 = vpack.c.b16 %v9342, %v9341
      %v9367 = vpack.c.b16 %v9344, %v9343
      %v9368 = vpack.c.b16 %v9346, %v9345
      %v9369 = vpack.c.b16 %v9348, %v9347
      %v9370 = vpack.c.b16 %v9350, %v9349
      %v9371 = vpack.c.b16 %v9352, %v9351
      %v9372 = vpack.c.b16 %v9354, %v9353
      %v9392 = vsel %vm280, %v8757, 0
      %v9395 = vsel %vm280, %v8758, 0
      %v9398 = vsel %vm280, %v8759, 0
      %v9401 = vsel %vm280, %v8760, 0
      %v9404 = vsel %vm280, %v8761, 0
      %v9407 = vsel %vm280, %v8762, 0
      %v9410 = vsel %vm280, %v8763, 0
      %v9413 = vsel %vm280, %v8764, 0
      %v9416 = vsel %vm280, %v8765, 0
      %v9419 = vsel %vm280, %v8766, 0
      %v9422 = vsel %vm280, %v8767, 0
      %v9425 = vsel %vm280, %v8782, 0
      %v9428 = vsel %vm280, %v8797, 0
      %v9431 = vsel %vm280, %v8798, 0
      %9433 = vmatprep.subr.bf16.mxu0 0
      %9434 = vmatpush1.bf16.msra.mxu0 %v9362
      %9435 = vmatprep.subr.bf16.mxu0 0
      %9436 = vmatpush1.bf16.msra.mxu0 %v9361
      %9437 = vmatprep.subr.bf16.mxu0 0
      %9438 = vmatpush1.bf16.msra.mxu0 %v9360
      %9439 = vmatprep.subr.bf16.mxu0 0
      %9440 = vmatpush1.bf16.msra.mxu0 %v9359
      %9441 = vmatprep.subr.bf16.mxu0 0
      %9442 = vmatpush1.bf16.msra.mxu0 %v9358
      %9443 = vmatprep.subr.bf16.mxu0 0
      %9444 = vmatpush1.bf16.msra.mxu0 %v9357
      %9445 = vmatprep.subr.bf16.mxu0 0
      %9446 = vmatpush1.bf16.msra.mxu0 %v9356
      %9447 = vmatprep.subr.bf16.mxu0 0
      %9448 = vmatpush1.bf16.msra.mxu0 %v9355
      %9449 = vmatprep.subr.bf16.mxu0 0
      %9450 = vmatpush2.bf16.msra.mxu0 %v9370
      %9451 = vmatprep.subr.bf16.mxu0 0
      %9452 = vmatpush2.bf16.msra.mxu0 %v9369
      %9453 = vmatprep.subr.bf16.mxu0 0
      %9454 = vmatpush2.bf16.msra.mxu0 %v9368
      %9455 = vmatprep.subr.bf16.mxu0 0
      %9456 = vmatpush2.bf16.msra.mxu0 %v9367
      %9457 = vmatprep.subr.bf16.mxu0 0
      %9458 = vmatpush2.bf16.msra.mxu0 %v9366
      %9459 = vmatprep.subr.bf16.mxu0 0
      %9460 = vmatpush2.bf16.msra.mxu0 %v9365
      %9461 = vmatprep.subr.bf16.mxu0 0
      %9462 = vmatpush2.bf16.msra.mxu0 %v9364
      %9463 = vmatprep.subr.bf16.mxu0 0
      %9464 = vmatpush2.bf16.msra.mxu0 %v9363
      %9465 = vmatprep.mubr.bf16.mxu0 %v9200
      %9466 = vmatmul.mubr.bf16.gmra.mxu0 %v9088
      %v9467 = vpop.f32.mrf.mxu0
      %v9468 = vadd.f32 %v9281, %v9467
      %v9469 = vpop.f32.mrf.mxu0
      %v9470 = vpop.f32.mrf.mxu0
      %v9471 = vadd.f32 %v9281, %v9470
      %v9472 = vpop.f32.mrf.mxu0
      %9473 = vmatprep.mubr.bf16.mxu0 %v9203
      %9474 = vmatmul.mubr.bf16.gmra.mxu0 %v9091
      %v9475 = vpop.f32.mrf.mxu0
      %v9476 = vadd.f32 %v9281, %v9475
      %v9477 = vpop.f32.mrf.mxu0
      %v9478 = vpop.f32.mrf.mxu0
      %v9479 = vadd.f32 %v9281, %v9478
      %v9480 = vpop.f32.mrf.mxu0
      %9481 = vmatprep.mubr.bf16.mxu0 %v9206
      %9482 = vmatmul.mubr.bf16.gmra.mxu0 %v9094
      %v9483 = vpop.f32.mrf.mxu0
      %v9484 = vadd.f32 %v9281, %v9483
      %v9485 = vpop.f32.mrf.mxu0
      %v9486 = vpop.f32.mrf.mxu0
      %v9487 = vadd.f32 %v9281, %v9486
      %v9488 = vpop.f32.mrf.mxu0
      %9489 = vmatprep.mubr.bf16.mxu0 %v9209
      %9490 = vmatmul.mubr.bf16.gmra.mxu0 %v9097
      %v9491 = vpop.f32.mrf.mxu0
      %v9492 = vadd.f32 %v9281, %v9491
      %v9493 = vpop.f32.mrf.mxu0
      %v9494 = vpop.f32.mrf.mxu0
      %v9495 = vadd.f32 %v9281, %v9494
      %v9496 = vpop.f32.mrf.mxu0
      %9497 = vmatprep.mubr.bf16.mxu0 %v9212
      %9498 = vmatmul.mubr.bf16.gmra.mxu0 %v9100
      %v9499 = vpop.f32.mrf.mxu0
      %v9500 = vadd.f32 %v9281, %v9499
      %v9501 = vpop.f32.mrf.mxu0
      %v9502 = vpop.f32.mrf.mxu0
      %v9503 = vadd.f32 %v9281, %v9502
      %v9504 = vpop.f32.mrf.mxu0
      %9505 = vmatprep.mubr.bf16.mxu0 %v9215
      %9506 = vmatmul.mubr.bf16.gmra.mxu0 %v9103
      %v9507 = vpop.f32.mrf.mxu0
      %v9508 = vadd.f32 %v9281, %v9507
      %v9509 = vpop.f32.mrf.mxu0
      %v9510 = vpop.f32.mrf.mxu0
      %v9511 = vadd.f32 %v9281, %v9510
      %v9512 = vpop.f32.mrf.mxu0
      %9513 = vmatprep.mubr.bf16.mxu0 %v9218
      %9514 = vmatmul.mubr.bf16.gmra.mxu0 %v9106
      %v9515 = vpop.f32.mrf.mxu0
      %v9516 = vadd.f32 %v9281, %v9515
      %v9517 = vpop.f32.mrf.mxu0
      %v9518 = vpop.f32.mrf.mxu0
      %v9519 = vadd.f32 %v9281, %v9518
      %v9520 = vpop.f32.mrf.mxu0
      %9521 = vmatprep.mubr.bf16.mxu0 %v9221
      %9522 = vmatmul.mubr.bf16.gmra.mxu0 %v9109
      %v9523 = vpop.f32.mrf.mxu0
      %v9524 = vadd.f32 %v9281, %v9523
      %v9525 = vpop.f32.mrf.mxu0
      %v9526 = vpop.f32.mrf.mxu0
      %v9527 = vadd.f32 %v9281, %v9526
      %v9528 = vpop.f32.mrf.mxu0
      %9529 = vmatprep.mubr.bf16.mxu0 %v9224
      %9530 = vmatmul.mubr.bf16.gmra.mxu0 %v9112
      %v9531 = vpop.f32.mrf.mxu0
      %v9532 = vadd.f32 %v9281, %v9531
      %v9533 = vpop.f32.mrf.mxu0
      %v9534 = vpop.f32.mrf.mxu0
      %v9535 = vadd.f32 %v9281, %v9534
      %v9536 = vpop.f32.mrf.mxu0
      %9537 = vmatprep.mubr.bf16.mxu0 %v9227
      %9538 = vmatmul.mubr.bf16.gmra.mxu0 %v9115
      %v9539 = vpop.f32.mrf.mxu0
      %v9540 = vadd.f32 %v9281, %v9539
      %v9541 = vpop.f32.mrf.mxu0
      %v9542 = vpop.f32.mrf.mxu0
      %v9543 = vadd.f32 %v9281, %v9542
      %v9544 = vpop.f32.mrf.mxu0
      %9545 = vmatprep.mubr.bf16.mxu0 %v9230
      %9546 = vmatmul.mubr.bf16.gmra.mxu0 %v9118
      %v9547 = vpop.f32.mrf.mxu0
      %v9548 = vadd.f32 %v9281, %v9547
      %v9549 = vpop.f32.mrf.mxu0
      %v9550 = vpop.f32.mrf.mxu0
      %v9551 = vadd.f32 %v9281, %v9550
      %v9552 = vpop.f32.mrf.mxu0
      %9553 = vmatprep.mubr.bf16.mxu0 %v9233
      %9554 = vmatmul.mubr.bf16.gmra.mxu0 %v9121
      %v9555 = vpop.f32.mrf.mxu0
      %v9556 = vadd.f32 %v9281, %v9555
      %v9557 = vpop.f32.mrf.mxu0
      %v9558 = vpop.f32.mrf.mxu0
      %v9559 = vadd.f32 %v9281, %v9558
      %v9560 = vpop.f32.mrf.mxu0
      %9561 = vmatprep.mubr.bf16.mxu0 %v9236
      %9562 = vmatmul.mubr.bf16.gmra.mxu0 %v9124
      %v9563 = vpop.f32.mrf.mxu0
      %v9564 = vadd.f32 %v9281, %v9563
      %v9565 = vpop.f32.mrf.mxu0
      %v9566 = vpop.f32.mrf.mxu0
      %v9567 = vadd.f32 %v9281, %v9566
      %v9568 = vpop.f32.mrf.mxu0
      %9569 = vmatprep.mubr.bf16.mxu0 %v9239
      %9570 = vmatmul.mubr.bf16.gmra.mxu0 %v9127
      %v9571 = vpop.f32.mrf.mxu0
      %v9572 = vadd.f32 %v9281, %v9571
      %v9573 = vpop.f32.mrf.mxu0
      %v9574 = vpop.f32.mrf.mxu0
      %v9575 = vadd.f32 %v9281, %v9574
      %v9576 = vpop.f32.mrf.mxu0
      %9577 = vdwg.mxu0
      %9578 = vmatprep.subr.bf16.mxu0 0
      %9579 = vmatpush1.bf16.msra.mxu0 0
      %9580 = vmatprep.subr.bf16.mxu0 0
      %9581 = vmatpush1.bf16.msra.mxu0 0
      %9582 = vmatprep.subr.bf16.mxu0 0
      %9583 = vmatpush1.bf16.msra.mxu0 0
      %9584 = vmatprep.subr.bf16.mxu0 0
      %9585 = vmatpush1.bf16.msra.mxu0 0
      %9586 = vmatprep.subr.bf16.mxu0 0
      %9587 = vmatpush1.bf16.msra.mxu0 0
      %9588 = vmatprep.subr.bf16.mxu0 0
      %9589 = vmatpush1.bf16.msra.mxu0 0
      %9590 = vmatprep.subr.bf16.mxu0 0
      %9591 = vmatpush1.bf16.msra.mxu0 %v9372
      %9592 = vmatprep.subr.bf16.mxu0 0
      %9593 = vmatpush1.bf16.msra.mxu0 %v9371
      %9594 = vmatprep.subr.bf16.mxu0 0
      %9595 = vmatpush2.bf16.msra.mxu0 0
      %9596 = vmatprep.subr.bf16.mxu0 0
      %9597 = vmatpush2.bf16.msra.mxu0 0
      %9598 = vmatprep.subr.bf16.mxu0 0
      %9599 = vmatpush2.bf16.msra.mxu0 0
      %9600 = vmatprep.subr.bf16.mxu0 0
      %9601 = vmatpush2.bf16.msra.mxu0 0
      %9602 = vmatprep.subr.bf16.mxu0 0
      %9603 = vmatpush2.bf16.msra.mxu0 0
      %9604 = vmatprep.subr.bf16.mxu0 0
      %9605 = vmatpush2.bf16.msra.mxu0 0
      %9606 = vmatprep.subr.bf16.mxu0 0
      %9607 = vmatpush2.bf16.msra.mxu0 0
      %9608 = vmatprep.subr.bf16.mxu0 0
      %9609 = vmatpush2.bf16.msra.mxu0 0
      %9610 = vmatprep.mubr.bf16.mxu0 0
      %9611 = vmatmul.mubr.bf16.gmra.mxu0 %v9392
      %v9612 = vpop.f32.mrf.mxu0
      %v9613 = vadd.f32 %v9468, %v9612
      %v9614 = vpop.f32.mrf.mxu0
      %v9615 = vpop.f32.mrf.mxu0
      %v9616 = vadd.f32 %v9471, %v9615
      %v9617 = vpop.f32.mrf.mxu0
      %9618 = vmatprep.mubr.bf16.mxu0 0
      %9619 = vmatmul.mubr.bf16.gmra.mxu0 %v9395
      %v9620 = vpop.f32.mrf.mxu0
      %v9621 = vadd.f32 %v9476, %v9620
      %v9622 = vpop.f32.mrf.mxu0
      %v9623 = vpop.f32.mrf.mxu0
      %v9624 = vadd.f32 %v9479, %v9623
      %v9625 = vpop.f32.mrf.mxu0
      %9626 = vmatprep.mubr.bf16.mxu0 0
      %9627 = vmatmul.mubr.bf16.gmra.mxu0 %v9398
      %v9628 = vpop.f32.mrf.mxu0
      %v9629 = vadd.f32 %v9484, %v9628
      %v9630 = vpop.f32.mrf.mxu0
      %v9631 = vpop.f32.mrf.mxu0
      %v9632 = vadd.f32 %v9487, %v9631
      %v9633 = vpop.f32.mrf.mxu0
      %9634 = vmatprep.mubr.bf16.mxu0 0
      %9635 = vmatmul.mubr.bf16.gmra.mxu0 %v9401
      %v9636 = vpop.f32.mrf.mxu0
      %v9637 = vadd.f32 %v9492, %v9636
      %v9638 = vpop.f32.mrf.mxu0
      %v9639 = vpop.f32.mrf.mxu0
      %v9640 = vadd.f32 %v9495, %v9639
      %v9641 = vpop.f32.mrf.mxu0
      %9642 = vmatprep.mubr.bf16.mxu0 0
      %9643 = vmatmul.mubr.bf16.gmra.mxu0 %v9404
      %v9644 = vpop.f32.mrf.mxu0
      %v9645 = vadd.f32 %v9500, %v9644
      %v9646 = vpop.f32.mrf.mxu0
      %v9647 = vpop.f32.mrf.mxu0
      %v9648 = vadd.f32 %v9503, %v9647
      %v9649 = vpop.f32.mrf.mxu0
      %9650 = vmatprep.mubr.bf16.mxu0 0
      %9651 = vmatmul.mubr.bf16.gmra.mxu0 %v9407
      %v9652 = vpop.f32.mrf.mxu0
      %v9653 = vadd.f32 %v9508, %v9652
      %v9654 = vpop.f32.mrf.mxu0
      %v9655 = vpop.f32.mrf.mxu0
      %v9656 = vadd.f32 %v9511, %v9655
      %v9657 = vpop.f32.mrf.mxu0
      %9658 = vmatprep.mubr.bf16.mxu0 0
      %9659 = vmatmul.mubr.bf16.gmra.mxu0 %v9410
      %v9660 = vpop.f32.mrf.mxu0
      %v9661 = vadd.f32 %v9516, %v9660
      %v9662 = vpop.f32.mrf.mxu0
      %v9663 = vpop.f32.mrf.mxu0
      %v9664 = vadd.f32 %v9519, %v9663
      %v9665 = vpop.f32.mrf.mxu0
      %9666 = vmatprep.mubr.bf16.mxu0 0
      %9667 = vmatmul.mubr.bf16.gmra.mxu0 %v9413
      %v9668 = vpop.f32.mrf.mxu0
      %v9669 = vadd.f32 %v9524, %v9668
      %v9670 = vpop.f32.mrf.mxu0
      %v9671 = vpop.f32.mrf.mxu0
      %v9672 = vadd.f32 %v9527, %v9671
      %v9673 = vpop.f32.mrf.mxu0
      %9674 = vmatprep.mubr.bf16.mxu0 0
      %9675 = vmatmul.mubr.bf16.gmra.mxu0 %v9416
      %v9676 = vpop.f32.mrf.mxu0
      %v9677 = vadd.f32 %v9532, %v9676
      %v9678 = vpop.f32.mrf.mxu0
      %v9679 = vpop.f32.mrf.mxu0
      %v9680 = vadd.f32 %v9535, %v9679
      %v9681 = vpop.f32.mrf.mxu0
      %9682 = vmatprep.mubr.bf16.mxu0 0
      %9683 = vmatmul.mubr.bf16.gmra.mxu0 %v9419
      %v9684 = vpop.f32.mrf.mxu0
      %v9685 = vadd.f32 %v9540, %v9684
      %v9686 = vpop.f32.mrf.mxu0
      %v9687 = vpop.f32.mrf.mxu0
      %v9688 = vadd.f32 %v9543, %v9687
      %v9689 = vpop.f32.mrf.mxu0
      %9690 = vmatprep.mubr.bf16.mxu0 0
      %9691 = vmatmul.mubr.bf16.gmra.mxu0 %v9422
      %v9692 = vpop.f32.mrf.mxu0
      %v9693 = vadd.f32 %v9548, %v9692
      %v9694 = vpop.f32.mrf.mxu0
      %v9695 = vpop.f32.mrf.mxu0
      %v9696 = vadd.f32 %v9551, %v9695
      %v9697 = vpop.f32.mrf.mxu0
      %9698 = vmatprep.mubr.bf16.mxu0 0
      %9699 = vmatmul.mubr.bf16.gmra.mxu0 %v9425
      %v9700 = vpop.f32.mrf.mxu0
      %v9701 = vadd.f32 %v9556, %v9700
      %v9702 = vpop.f32.mrf.mxu0
      %v9703 = vpop.f32.mrf.mxu0
      %v9704 = vadd.f32 %v9559, %v9703
      %v9705 = vpop.f32.mrf.mxu0
      %9706 = vmatprep.mubr.bf16.mxu0 0
      %9707 = vmatmul.mubr.bf16.gmra.mxu0 %v9428
      %v9708 = vpop.f32.mrf.mxu0
      %v9709 = vadd.f32 %v9564, %v9708
      %v9710 = vpop.f32.mrf.mxu0
      %v9711 = vpop.f32.mrf.mxu0
      %v9712 = vadd.f32 %v9567, %v9711
      %v9713 = vpop.f32.mrf.mxu0
      %9714 = vmatprep.mubr.bf16.mxu0 0
      %9715 = vmatmul.mubr.bf16.gmra.mxu0 %v9431
      %v9716 = vpop.f32.mrf.mxu0
      %v9717 = vadd.f32 %v9572, %v9716
      %v9718 = vpop.f32.mrf.mxu0
      %v9719 = vpop.f32.mrf.mxu0
      %v9720 = vadd.f32 %v9575, %v9719
      %v9721 = vpop.f32.mrf.mxu0
      %9722 = vdwg.mxu0
      %v9723 = vmax.f32 %v9613, 0.0
      %v9724 = vmax.f32 %v9616, 0.0
      %v9725 = vmax.f32 %v9621, 0.0
      %v9726 = vmax.f32 %v9624, 0.0
      %v9727 = vmax.f32 %v9629, 0.0
      %v9728 = vmax.f32 %v9632, 0.0
      %v9729 = vmax.f32 %v9637, 0.0
      %v9730 = vmax.f32 %v9640, 0.0
      %v9731 = vmax.f32 %v9645, 0.0
      %v9732 = vmax.f32 %v9648, 0.0
      %v9733 = vmax.f32 %v9653, 0.0
      %v9734 = vmax.f32 %v9656, 0.0
      %v9735 = vmax.f32 %v9661, 0.0
      %v9736 = vmax.f32 %v9664, 0.0
      %v9737 = vmax.f32 %v9669, 0.0
      %v9738 = vmax.f32 %v9672, 0.0
      %v9739 = vmax.f32 %v9677, 0.0
      %v9740 = vmax.f32 %v9680, 0.0
      %v9741 = vmax.f32 %v9685, 0.0
      %v9742 = vmax.f32 %v9688, 0.0
      %v9743 = vmax.f32 %v9693, 0.0
      %v9744 = vmax.f32 %v9696, 0.0
      %v9745 = vmax.f32 %v9701, 0.0
      %v9746 = vmax.f32 %v9704, 0.0
      %v9747 = vmax.f32 %v9709, 0.0
      %v9748 = vmax.f32 %v9712, 0.0
      %v9749 = vmax.f32 %v9717, 0.0
      %v9750 = vmax.f32 %v9720, 0.0
      %v9751 = vmax.f32 %v9723, %v9725
      %v9752 = vmax.f32 %v9724, %v9726
      %v9753 = vmax.f32 %v9725, %v9727
      %v9754 = vmax.f32 %v9726, %v9728
      %v9755 = vmax.f32 %v9727, %v9729
      %v9756 = vmax.f32 %v9728, %v9730
      %v9757 = vmax.f32 %v9729, %v9731
      %v9758 = vmax.f32 %v9730, %v9732
      %v9759 = vmax.f32 %v9731, %v9733
      %v9760 = vmax.f32 %v9732, %v9734
      %v9761 = vmax.f32 %v9733, %v9735
      %v9762 = vmax.f32 %v9734, %v9736
      %v9763 = vmax.f32 %v9735, %v9737
      %v9764 = vmax.f32 %v9736, %v9738
      %v9765 = vmax.f32 %v9737, %v9739
      %v9766 = vmax.f32 %v9738, %v9740
      %v9767 = vmax.f32 %v9739, %v9741
      %v9768 = vmax.f32 %v9740, %v9742
      %v9769 = vmax.f32 %v9741, %v9743
      %v9770 = vmax.f32 %v9742, %v9744
      %v9771 = vmax.f32 %v9743, %v9745
      %v9772 = vmax.f32 %v9744, %v9746
      %v9773 = vmax.f32 %v9745, %v9747
      %v9774 = vmax.f32 %v9746, %v9748
      %v9775 = vmax.f32 %v9747, %v9749
      %v9776 = vmax.f32 %v9748, %v9750
      %9777 = vst.msk [vmem:[#allocation4] sm:$0xff] %vm313, %v9751
      %9778 = vst.msk [vmem:[#allocation4 + $0x8] sm:$0xff] %vm313, %v9752
      %9779 = vst.msk [vmem:[#allocation4 + $0x10] sm:$0xff] %vm313, %v9753
      %9780 = vst.msk [vmem:[#allocation4 + $0x18] sm:$0xff] %vm313, %v9754
      %9781 = vst.msk [vmem:[#allocation4 + $0x20] sm:$0xff] %vm313, %v9755
      %9782 = vst.msk [vmem:[#allocation4 + $0x28] sm:$0xff] %vm313, %v9756
      %9783 = vst.msk [vmem:[#allocation4 + $0x30] sm:$0xff] %vm313, %v9757
      %9784 = vst.msk [vmem:[#allocation4 + $0x38] sm:$0xff] %vm313, %v9758
      %9785 = vst.msk [vmem:[#allocation4 + $0x40] sm:$0xff] %vm313, %v9759
      %9786 = vst.msk [vmem:[#allocation4 + $0x48] sm:$0xff] %vm313, %v9760
      %9787 = vst.msk [vmem:[#allocation4 + $0x50] sm:$0xff] %vm313, %v9761
      %9788 = vst.msk [vmem:[#allocation4 + $0x58] sm:$0xff] %vm313, %v9762
      %9789 = vst.msk [vmem:[#allocation4 + $0x60] sm:$0xff] %vm313, %v9763
      %9790 = vst.msk [vmem:[#allocation4 + $0x68] sm:$0xff] %vm313, %v9764
      %9791 = vst.msk [vmem:[#allocation4 + $0x70] sm:$0xff] %vm313, %v9765
      %9792 = vst.msk [vmem:[#allocation4 + $0x78] sm:$0xff] %vm313, %v9766
      %9793 = vst.msk [vmem:[#allocation4 + $0x80] sm:$0xff] %vm313, %v9767
      %9794 = vst.msk [vmem:[#allocation4 + $0x88] sm:$0xff] %vm313, %v9768
      %9795 = vst.msk [vmem:[#allocation4 + $0x90] sm:$0xff] %vm313, %v9769
      %9796 = vst.msk [vmem:[#allocation4 + $0x98] sm:$0xff] %vm313, %v9770
      %9797 = vst.msk [vmem:[#allocation4 + $0xa0] sm:$0xff] %vm313, %v9771
      %9798 = vst.msk [vmem:[#allocation4 + $0xa8] sm:$0xff] %vm313, %v9772
      %9799 = vst.msk [vmem:[#allocation4 + $0xb0] sm:$0xff] %vm313, %v9773
      %9800 = vst.msk [vmem:[#allocation4 + $0xb8] sm:$0xff] %vm313, %v9774
      %9801 = vst.msk [vmem:[#allocation4 + $0xc0] sm:$0xff] %vm313, %v9775
      %vm9802 = vcmask 521216
      %9803 = vst.msk [vmem:[#allocation4 + $0xc8] sm:$0x3f] %vm9802, %v9776
      %v9804 = vld [vmem:[#allocation4] ss:$2 sm:$0x7f]
      %s9805 = scalar_lea.vmem [#allocation4], 1
      %v9806 = vld [vmem:[%s9805] ss:$2 sm:$0x7f]
      %v9807 = vmax.f32 %v9804, %v9806
      %vm9808 = vcmask 522240
      %9809 = vst.msk [vmem:[#allocation5 + $0xa] sm:$0x7f] %vm9808, %v9807
      %s9810 = scalar_lea.vmem [#allocation4], 32
      %v9811 = vld [vmem:[%s9810] ss:$2 sm:$0x7f]
      %s9812 = scalar_lea.vmem [#allocation4], 33
      %v9813 = vld [vmem:[%s9812] ss:$2 sm:$0x7f]
      %v9814 = vmax.f32 %v9811, %v9813
      %9815 = vst.msk [vmem:[#allocation5 + $0x13] sm:$0x7f] %vm9808, %v9814
      %s9816 = scalar_lea.vmem [#allocation4], 64
      %v9817 = vld [vmem:[%s9816] ss:$2 sm:$0x7f]
      %s9818 = scalar_lea.vmem [#allocation4], 65
      %v9819 = vld [vmem:[%s9818] ss:$2 sm:$0x7f]
      %v9820 = vmax.f32 %v9817, %v9819
      %9821 = vst.msk [vmem:[#allocation5 + $0x1c] sm:$0x7f] %vm9808, %v9820
      %s9822 = scalar_lea.vmem [#allocation4], 96
      %v9823 = vld [vmem:[%s9822] ss:$2 sm:$0x7f]
      %s9824 = scalar_lea.vmem [#allocation4], 97
      %v9825 = vld [vmem:[%s9824] ss:$2 sm:$0x7f]
      %v9826 = vmax.f32 %v9823, %v9825
      %9827 = vst.msk [vmem:[#allocation5 + $0x25] sm:$0x7f] %vm9808, %v9826
      %s9828 = scalar_lea.vmem [#allocation4], 128
      %v9829 = vld [vmem:[%s9828] ss:$2 sm:$0x7f]
      %s9830 = scalar_lea.vmem [#allocation4], 129
      %v9831 = vld [vmem:[%s9830] ss:$2 sm:$0x7f]
      %v9832 = vmax.f32 %v9829, %v9831
      %9833 = vst.msk [vmem:[#allocation5 + $0x2e] sm:$0x7f] %vm9808, %v9832
      %s9834 = scalar_lea.vmem [#allocation4], 160
      %v9835 = vld [vmem:[%s9834] ss:$2 sm:$0x7f]
      %s9836 = scalar_lea.vmem [#allocation4], 161
      %v9837 = vld [vmem:[%s9836] ss:$2 sm:$0x7f]
      %v9838 = vmax.f32 %v9835, %v9837
      %9839 = vst.msk [vmem:[#allocation5 + $0x37] sm:$0x7f] %vm9808, %v9838
      %s9840 = scalar_lea.vmem [#allocation4], 192
      %v9841 = vld [vmem:[%s9840] ss:$2 sm:$0x7f]
      %s9842 = scalar_lea.vmem [#allocation4], 193
      %v9843 = vld [vmem:[%s9842] ss:$2 sm:$0x7f]
      %v9844 = vmax.f32 %v9841, %v9843
      %9845 = vst.msk [vmem:[#allocation5 + $0x40] sm:$0x7f] %vm9808, %v9844
      %v9846 = vld [vmem:[#allocation5] sm:$0xff]
      %v9847 = vld [vmem:[#allocation5 + $0x8] sm:$0xff]
      %v9848 = vld [vmem:[#allocation5 + $0x10] sm:$0xff]
      %v9849 = vld [vmem:[#allocation5 + $0x18] sm:$0xff]
      %v9850 = vld [vmem:[#allocation5 + $0x20] sm:$0xff]
      %v9851 = vld [vmem:[#allocation5 + $0x28] sm:$0xff]
      %v9852 = vld [vmem:[#allocation5 + $0x30] sm:$0xff]
      %v9853 = vld [vmem:[#allocation5 + $0x38] sm:$0x1f]
      %v9854 = vpack.c.bf16 %v9847, %v9846
      %v9855 = vpack.c.bf16 %v9849, %v9848
      %v9856 = vpack.c.bf16 %v9851, %v9850
      %v9857 = vpack.c.bf16 %v9853, %v9852
      %v9858 = vld [vmem:[#allocation5 + $0x1] sm:$0xff]
      %v9859 = vld [vmem:[#allocation5 + $0x9] sm:$0xff]
      %v9860 = vld [vmem:[#allocation5 + $0x11] sm:$0xff]
      %v9861 = vld [vmem:[#allocation5 + $0x19] sm:$0xff]
      %v9862 = vld [vmem:[#allocation5 + $0x21] sm:$0xff]
      %v9863 = vld [vmem:[#allocation5 + $0x29] sm:$0xff]
      %v9864 = vld [vmem:[#allocation5 + $0x31] sm:$0xff]
      %v9865 = vld [vmem:[#allocation5 + $0x39] sm:$0x1f]
      %v9866 = vpack.c.bf16 %v9859, %v9858
      %v9867 = vpack.c.bf16 %v9861, %v9860
      %v9868 = vpack.c.bf16 %v9863, %v9862
      %v9869 = vpack.c.bf16 %v9865, %v9864
      %v9870 = vld [vmem:[#allocation5 + $0x2] sm:$0xff]
      %v9871 = vld [vmem:[#allocation5 + $0xa] sm:$0xff]
      %v9872 = vld [vmem:[#allocation5 + $0x12] sm:$0xff]
      %v9873 = vld [vmem:[#allocation5 + $0x1a] sm:$0xff]
      %v9874 = vld [vmem:[#allocation5 + $0x22] sm:$0xff]
      %v9875 = vld [vmem:[#allocation5 + $0x2a] sm:$0xff]
      %v9876 = vld [vmem:[#allocation5 + $0x32] sm:$0xff]
      %v9877 = vld [vmem:[#allocation5 + $0x3a] sm:$0x1f]
      %v9878 = vpack.c.bf16 %v9871, %v9870
      %v9879 = vpack.c.bf16 %v9873, %v9872
      %v9880 = vpack.c.bf16 %v9875, %v9874
      %v9881 = vpack.c.bf16 %v9877, %v9876
      %v9882 = vld [vmem:[#allocation5 + $0x39] sm:$0xff]
      %v9883 = vld [vmem:[#allocation5 + $0x41] sm:$0x1f]
      %v9884 = vpack.c.bf16 %v9860, %v9859
      %v9885 = vpack.c.bf16 %v9862, %v9861
      %v9886 = vpack.c.bf16 %v9864, %v9863
      %v9887 = vpack.c.bf16 %v9883, %v9882
      %v9888 = vld [vmem:[#allocation5 + $0x3a] sm:$0xff]
      %v9889 = vld [vmem:[#allocation5 + $0x42] sm:$0x1f]
      %v9890 = vpack.c.bf16 %v9872, %v9871
      %v9891 = vpack.c.bf16 %v9874, %v9873
      %v9892 = vpack.c.bf16 %v9876, %v9875
      %v9893 = vpack.c.bf16 %v9889, %v9888
      %v9894 = vld [vmem:[#allocation5 + $0xb] sm:$0xff]
      %v9895 = vld [vmem:[#allocation5 + $0x13] sm:$0xff]
      %v9896 = vld [vmem:[#allocation5 + $0x1b] sm:$0xff]
      %v9897 = vld [vmem:[#allocation5 + $0x23] sm:$0xff]
      %v9898 = vld [vmem:[#allocation5 + $0x2b] sm:$0xff]
      %v9899 = vld [vmem:[#allocation5 + $0x33] sm:$0xff]
      %v9900 = vld [vmem:[#allocation5 + $0x3b] sm:$0xff]
      %v9901 = vld [vmem:[#allocation5 + $0x43] sm:$0x1f]
      %v9902 = vpack.c.bf16 %v9895, %v9894
      %v9903 = vpack.c.bf16 %v9897, %v9896
      %v9904 = vpack.c.bf16 %v9899, %v9898
      %v9905 = vpack.c.bf16 %v9901, %v9900
      %v9906 = vld [vmem:[#allocation5 + $0x42] sm:$0xff]
      %v9907 = vld [vmem:[#allocation5 + $0x4a] sm:$0x1f]
      %v9908 = vpack.c.bf16 %v9888, %v9876
      %v9909 = vpack.c.bf16 %v9907, %v9906
      %v9910 = vld [vmem:[#allocation5 + $0x43] sm:$0xff]
      %v9911 = vld [vmem:[#allocation5 + $0x4b] sm:$0x1f]
      %v9912 = vpack.c.bf16 %v9896, %v9895
      %v9913 = vpack.c.bf16 %v9898, %v9897
      %v9914 = vpack.c.bf16 %v9900, %v9899
      %v9915 = vpack.c.bf16 %v9911, %v9910
      %v9916 = vld [vmem:[#allocation5 + $0x14] sm:$0xff]
      %v9917 = vld [vmem:[#allocation5 + $0x1c] sm:$0xff]
      %v9918 = vld [vmem:[#allocation5 + $0x24] sm:$0xff]
      %v9919 = vld [vmem:[#allocation5 + $0x2c] sm:$0xff]
      %v9920 = vld [vmem:[#allocation5 + $0x34] sm:$0xff]
      %v9921 = vld [vmem:[#allocation5 + $0x3c] sm:$0xff]
      %v9922 = vld [vmem:[#allocation5 + $0x44] sm:$0xff]
      %v9923 = vld [vmem:[#allocation5 + $0x4c] sm:$0x1f]
      %v9924 = vpack.c.bf16 %v9917, %v9916
      %v9925 = vpack.c.bf16 %v9919, %v9918
      %v9926 = vpack.c.bf16 %v9921, %v9920
      %v9927 = vpack.c.bf16 %v9923, %v9922
      %9932 = vrot.lane.b32.xlu0 %v9866, 64
      %v9933 = vpop.permute.xlu0 %9932
      %9934 = vrot.lane.b32.xlu0 %v9867, 64
      %v9935 = vpop.permute.xlu0 %9934
      %9936 = vrot.lane.b32.xlu0 %v9868, 64
      %v9937 = vpop.permute.xlu0 %9936
      %9938 = vrot.lane.b32.xlu0 %v9869, 64
      %v9939 = vpop.permute.xlu0 %9938
      %9944 = vrot.lane.b32.xlu0 %v9884, 64
      %v9945 = vpop.permute.xlu0 %9944
      %9946 = vrot.lane.b32.xlu0 %v9885, 64
      %v9947 = vpop.permute.xlu0 %9946
      %9948 = vrot.lane.b32.xlu0 %v9886, 64
      %v9949 = vpop.permute.xlu0 %9948
      %9950 = vrot.lane.b32.xlu0 %v9887, 64
      %v9951 = vpop.permute.xlu0 %9950
      %9956 = vrot.lane.b32.xlu0 %v9902, 64
      %v9957 = vpop.permute.xlu0 %9956
      %9958 = vrot.lane.b32.xlu0 %v9903, 64
      %v9959 = vpop.permute.xlu0 %9958
      %9960 = vrot.lane.b32.xlu0 %v9904, 64
      %v9961 = vpop.permute.xlu0 %9960
      %9962 = vrot.lane.b32.xlu0 %v9905, 64
      %v9963 = vpop.permute.xlu0 %9962
      %9968 = vrot.lane.b32.xlu0 %v9912, 64
      %v9969 = vpop.permute.xlu0 %9968
      %9970 = vrot.lane.b32.xlu0 %v9913, 64
      %v9971 = vpop.permute.xlu0 %9970
      %9972 = vrot.lane.b32.xlu0 %v9914, 64
      %v9973 = vpop.permute.xlu0 %9972
      %9974 = vrot.lane.b32.xlu0 %v9915, 64
      %v9975 = vpop.permute.xlu0 %9974
      %v9978 = vsel %vm313, %v9854, %v9933
      %v9982 = vsel %vm313, %v9855, %v9935
      %v9986 = vsel %vm313, %v9856, %v9937
      %v9990 = vsel %vm313, %v9857, %v9939
      %v9994 = vsel %vm313, %v9878, %v9945
      %v9998 = vsel %vm313, %v9879, %v9947
      %v10002 = vsel %vm313, %v9880, %v9949
      %v10006 = vsel %vm313, %v9881, %v9951
      %v10010 = vsel %vm313, %v9890, %v9957
      %v10014 = vsel %vm313, %v9891, %v9959
      %v10018 = vsel %vm313, %v9892, %v9961
      %v10022 = vsel %vm313, %v9893, %v9963
      %v10025 = vsel %vm313, %v9879, %v9969
      %v10028 = vsel %vm313, %v9880, %v9971
      %v10032 = vsel %vm313, %v9908, %v9973
      %v10036 = vsel %vm313, %v9909, %v9975
      %v10038 = vld [vmem:[%s5] sm:$0xf]
      %v10039 = vld [vmem:[%s5 + $0x4] sm:$0xf]
      %v10040 = vld [vmem:[%s5 + $0x8] sm:$0xf]
      %v10041 = vld [vmem:[%s5 + $0xc] sm:$0xf]
      %v10042 = vld [vmem:[%s5 + $0x10] sm:$0xf]
      %v10043 = vld [vmem:[%s5 + $0x14] sm:$0xf]
      %v10044 = vld [vmem:[%s5 + $0x18] sm:$0xf]
      %v10045 = vld [vmem:[%s5 + $0x1c] sm:$0xf]
      %v10046 = vld [vmem:[%s5 + $0x20] sm:$0xf]
      %v10047 = vld [vmem:[%s5 + $0x24] sm:$0xf]
      %v10048 = vld [vmem:[%s5 + $0x28] sm:$0xf]
      %v10049 = vld [vmem:[%s5 + $0x2c] sm:$0xf]
      %v10050 = vld [vmem:[%s5 + $0x30] sm:$0xf]
      %v10051 = vld [vmem:[%s5 + $0x34] sm:$0xf]
      %v10052 = vld [vmem:[%s5 + $0x38] sm:$0xf]
      %v10053 = vld [vmem:[%s5 + $0x3c] sm:$0xf]
      %v10054 = vld [vmem:[%s5 + $0x40] sm:$0xf]
      %v10055 = vld [vmem:[%s5 + $0x44] sm:$0xf]
      %v10056 = vld [vmem:[%s5 + $0x48] sm:$0xf]
      %v10057 = vld [vmem:[%s5 + $0x4c] sm:$0xf]
      %v10058 = vld [vmem:[%s5 + $0x50] sm:$0xf]
      %v10059 = vld [vmem:[%s5 + $0x54] sm:$0xf]
      %v10060 = vld [vmem:[%s5 + $0x58] sm:$0xf]
      %v10061 = vld [vmem:[%s5 + $0x5c] sm:$0xf]
      %v10062 = vld [vmem:[%s5 + $0x60] sm:$0xf]
      %v10063 = vld [vmem:[%s5 + $0x64] sm:$0xf]
      %v10064 = vld [vmem:[%s5 + $0x68] sm:$0xf]
      %v10065 = vld [vmem:[%s5 + $0x6c] sm:$0xf]
      %v10066 = vld [vmem:[%s5 + $0x70] sm:$0xf]
      %v10067 = vld [vmem:[%s5 + $0x74] sm:$0xf]
      %v10068 = vld [vmem:[%s5 + $0x78] sm:$0xf]
      %v10069 = vld [vmem:[%s5 + $0x7c] sm:$0xf]
      %v10070 = vld [vmem:[%s5 + $0x80] sm:$0xf]
      %v10071 = vld [vmem:[%s5 + $0x84] sm:$0xf]
      %v10072 = vld [vmem:[%s5 + $0x88] sm:$0xf]
      %v10073 = vld [vmem:[%s5 + $0x8c] sm:$0xf]
      %v10074 = vld [vmem:[%s5 + $0x90] sm:$0xf]
      %v10075 = vld [vmem:[%s5 + $0x94] sm:$0xf]
      %v10076 = vld [vmem:[%s5 + $0x98] sm:$0xf]
      %v10077 = vld [vmem:[%s5 + $0x9c] sm:$0xf]
      %v10078 = vld [vmem:[%s5 + $0xa0] sm:$0xf]
      %v10079 = vld [vmem:[%s5 + $0xa4] sm:$0xf]
      %v10080 = vld [vmem:[%s5 + $0xa8] sm:$0xf]
      %v10081 = vld [vmem:[%s5 + $0xac] sm:$0xf]
      %v10082 = vld [vmem:[%s5 + $0xb0] sm:$0xf]
      %v10083 = vld [vmem:[%s5 + $0xb4] sm:$0xf]
      %v10084 = vld [vmem:[%s5 + $0xb8] sm:$0xf]
      %v10085 = vld [vmem:[%s5 + $0xbc] sm:$0xf]
      %v10086 = vld [vmem:[%s5 + $0xc0] sm:$0xf]
      %v10087 = vld [vmem:[%s5 + $0xc4] sm:$0xf]
      %v10088 = vld [vmem:[%s5 + $0xc8] sm:$0xf]
      %v10089 = vld [vmem:[%s5 + $0xcc] sm:$0xf]
      %v10090 = vld [vmem:[%s5 + $0xd0] sm:$0xf]
      %v10091 = vld [vmem:[%s5 + $0xd4] sm:$0xf]
      %v10092 = vld [vmem:[%s5 + $0xd8] sm:$0xf]
      %v10093 = vld [vmem:[%s5 + $0xdc] sm:$0xf]
      %v10094 = vld [vmem:[%s5 + $0xe0] sm:$0xf]
      %v10095 = vld [vmem:[%s5 + $0xe4] sm:$0xf]
      %v10096 = vld [vmem:[%s5 + $0xe8] sm:$0xf]
      %v10097 = vld [vmem:[%s5 + $0xec] sm:$0xf]
      %v10098 = vld [vmem:[%s5 + $0xf0] sm:$0xf]
      %v10099 = vld [vmem:[%s5 + $0xf4] sm:$0xf]
      %v10100 = vld [vmem:[%s5 + $0xf8] sm:$0xf]
      %v10101 = vld [vmem:[%s5 + $0xfc] sm:$0xf]
      %v10102 = vld [vmem:[%s5 + $0x100] sm:$0xf]
      %v10103 = vld [vmem:[%s5 + $0x104] sm:$0xf]
      %v10104 = vld [vmem:[%s5 + $0x108] sm:$0xf]
      %v10105 = vld [vmem:[%s5 + $0x10c] sm:$0xf]
      %v10106 = vld [vmem:[%s5 + $0x110] sm:$0xf]
      %v10107 = vld [vmem:[%s5 + $0x114] sm:$0xf]
      %v10108 = vld [vmem:[%s5 + $0x118] sm:$0xf]
      %v10109 = vld [vmem:[%s5 + $0x11c] sm:$0xf]
      %v10111 = vlaneseq
      %v10112 = vshrl.u32 %v10111, 7
      %v10113 = vsub.s32 0, %v10112
      %v10114 = vrot.slane %v330, %v10113
      %v10188 = vunpack.c.l.b16 %v10038
      %v10189 = vunpack.c.l.b16 %v10039
      %v10190 = vunpack.c.l.b16 %v10040
      %v10191 = vunpack.c.l.b16 %v10041
      %v10192 = vunpack.c.l.b16 %v10042
      %v10193 = vunpack.c.l.b16 %v10043
      %v10194 = vunpack.c.l.b16 %v10044
      %v10195 = vunpack.c.l.b16 %v10045
      %v10196 = vunpack.c.l.b16 %v10046
      %v10197 = vunpack.c.l.b16 %v10047
      %v10198 = vunpack.c.l.b16 %v10048
      %v10199 = vunpack.c.l.b16 %v10049
      %v10200 = vunpack.c.l.b16 %v10050
      %v10201 = vunpack.c.l.b16 %v10051
      %v10202 = vunpack.c.l.b16 %v10052
      %v10203 = vunpack.c.l.b16 %v10053
      %v10204 = vunpack.c.l.b16 %v10054
      %v10205 = vunpack.c.l.b16 %v10055
      %v10206 = vunpack.c.l.b16 %v10056
      %v10207 = vunpack.c.l.b16 %v10057
      %v10208 = vunpack.c.l.b16 %v10058
      %v10209 = vunpack.c.l.b16 %v10059
      %v10210 = vunpack.c.l.b16 %v10060
      %v10211 = vunpack.c.l.b16 %v10061
      %v10212 = vunpack.c.l.b16 %v10062
      %v10213 = vunpack.c.l.b16 %v10063
      %v10214 = vunpack.c.l.b16 %v10064
      %v10215 = vunpack.c.l.b16 %v10065
      %v10216 = vunpack.c.l.b16 %v10066
      %v10217 = vunpack.c.l.b16 %v10067
      %v10218 = vunpack.c.l.b16 %v10068
      %v10219 = vunpack.c.l.b16 %v10069
      %v10220 = vunpack.c.l.b16 %v10070
      %v10221 = vunpack.c.l.b16 %v10071
      %v10222 = vunpack.c.l.b16 %v10072
      %v10223 = vunpack.c.l.b16 %v10073
      %v10224 = vunpack.c.l.b16 %v10074
      %v10225 = vunpack.c.l.b16 %v10075
      %v10226 = vunpack.c.l.b16 %v10076
      %v10227 = vunpack.c.l.b16 %v10077
      %v10228 = vunpack.c.l.b16 %v10078
      %v10229 = vunpack.c.l.b16 %v10079
      %v10230 = vunpack.c.l.b16 %v10080
      %v10231 = vunpack.c.l.b16 %v10081
      %v10232 = vunpack.c.l.b16 %v10082
      %v10233 = vunpack.c.l.b16 %v10083
      %v10234 = vunpack.c.l.b16 %v10084
      %v10235 = vunpack.c.l.b16 %v10085
      %v10236 = vunpack.c.l.b16 %v10086
      %v10237 = vunpack.c.l.b16 %v10087
      %v10238 = vunpack.c.l.b16 %v10088
      %v10239 = vunpack.c.l.b16 %v10089
      %v10240 = vunpack.c.l.b16 %v10090
      %v10241 = vunpack.c.l.b16 %v10091
      %v10242 = vunpack.c.l.b16 %v10092
      %v10243 = vunpack.c.l.b16 %v10093
      %v10244 = vunpack.c.l.b16 %v10094
      %v10245 = vunpack.c.l.b16 %v10095
      %v10246 = vunpack.c.l.b16 %v10096
      %v10247 = vunpack.c.l.b16 %v10097
      %v10248 = vunpack.c.l.b16 %v10098
      %v10249 = vunpack.c.l.b16 %v10099
      %v10250 = vunpack.c.l.b16 %v10100
      %v10251 = vunpack.c.l.b16 %v10101
      %v10252 = vunpack.c.l.b16 %v10102
      %v10253 = vunpack.c.l.b16 %v10103
      %v10254 = vunpack.c.l.b16 %v10104
      %v10255 = vunpack.c.l.b16 %v10105
      %v10256 = vunpack.c.l.b16 %v10106
      %v10257 = vunpack.c.l.b16 %v10107
      %v10258 = vunpack.c.l.b16 %v10108
      %v10259 = vunpack.c.l.b16 %v10109
      %v10260 = vpack.c.b16 %v10189, %v10188
      %v10261 = vpack.c.b16 %v10191, %v10190
      %v10262 = vpack.c.b16 %v10193, %v10192
      %v10263 = vpack.c.b16 %v10195, %v10194
      %v10264 = vpack.c.b16 %v10197, %v10196
      %v10265 = vpack.c.b16 %v10199, %v10198
      %v10266 = vpack.c.b16 %v10201, %v10200
      %v10267 = vpack.c.b16 %v10203, %v10202
      %v10268 = vpack.c.b16 %v10205, %v10204
      %v10269 = vpack.c.b16 %v10207, %v10206
      %v10270 = vpack.c.b16 %v10209, %v10208
      %v10271 = vpack.c.b16 %v10211, %v10210
      %v10272 = vpack.c.b16 %v10213, %v10212
      %v10273 = vpack.c.b16 %v10215, %v10214
      %v10274 = vpack.c.b16 %v10217, %v10216
      %v10275 = vpack.c.b16 %v10219, %v10218
      %v10276 = vpack.c.b16 %v10221, %v10220
      %v10277 = vpack.c.b16 %v10223, %v10222
      %v10278 = vpack.c.b16 %v10225, %v10224
      %v10279 = vpack.c.b16 %v10227, %v10226
      %v10280 = vpack.c.b16 %v10229, %v10228
      %v10281 = vpack.c.b16 %v10231, %v10230
      %v10282 = vpack.c.b16 %v10233, %v10232
      %v10283 = vpack.c.b16 %v10235, %v10234
      %v10284 = vpack.c.b16 %v10237, %v10236
      %v10285 = vpack.c.b16 %v10239, %v10238
      %v10286 = vpack.c.b16 %v10241, %v10240
      %v10287 = vpack.c.b16 %v10243, %v10242
      %v10288 = vpack.c.b16 %v10245, %v10244
      %v10289 = vpack.c.b16 %v10247, %v10246
      %v10290 = vpack.c.b16 %v10249, %v10248
      %v10291 = vpack.c.b16 %v10251, %v10250
      %v10292 = vpack.c.b16 %v10253, %v10252
      %v10293 = vpack.c.b16 %v10255, %v10254
      %v10294 = vpack.c.b16 %v10257, %v10256
      %v10295 = vpack.c.b16 %v10259, %v10258
      %v10333 = vsel %vm313, %v9924, 0
      %v10336 = vsel %vm313, %v9925, 0
      %v10339 = vsel %vm313, %v9926, 0
      %v10342 = vsel %vm313, %v9927, 0
      %10344 = vmatprep.subr.bf16.mxu0 0
      %10345 = vmatpush1.bf16.msra.mxu0 %v10267
      %10346 = vmatprep.subr.bf16.mxu0 0
      %10347 = vmatpush1.bf16.msra.mxu0 %v10266
      %10348 = vmatprep.subr.bf16.mxu0 0
      %10349 = vmatpush1.bf16.msra.mxu0 %v10265
      %10350 = vmatprep.subr.bf16.mxu0 0
      %10351 = vmatpush1.bf16.msra.mxu0 %v10264
      %10352 = vmatprep.subr.bf16.mxu0 0
      %10353 = vmatpush1.bf16.msra.mxu0 %v10263
      %10354 = vmatprep.subr.bf16.mxu0 0
      %10355 = vmatpush1.bf16.msra.mxu0 %v10262
      %10356 = vmatprep.subr.bf16.mxu0 0
      %10357 = vmatpush1.bf16.msra.mxu0 %v10261
      %10358 = vmatprep.subr.bf16.mxu0 0
      %10359 = vmatpush1.bf16.msra.mxu0 %v10260
      %10360 = vmatprep.subr.bf16.mxu0 0
      %10361 = vmatpush2.bf16.msra.mxu0 %v10275
      %10362 = vmatprep.subr.bf16.mxu0 0
      %10363 = vmatpush2.bf16.msra.mxu0 %v10274
      %10364 = vmatprep.subr.bf16.mxu0 0
      %10365 = vmatpush2.bf16.msra.mxu0 %v10273
      %10366 = vmatprep.subr.bf16.mxu0 0
      %10367 = vmatpush2.bf16.msra.mxu0 %v10272
      %10368 = vmatprep.subr.bf16.mxu0 0
      %10369 = vmatpush2.bf16.msra.mxu0 %v10271
      %10370 = vmatprep.subr.bf16.mxu0 0
      %10371 = vmatpush2.bf16.msra.mxu0 %v10270
      %10372 = vmatprep.subr.bf16.mxu0 0
      %10373 = vmatpush2.bf16.msra.mxu0 %v10269
      %10374 = vmatprep.subr.bf16.mxu0 0
      %10375 = vmatpush2.bf16.msra.mxu0 %v10268
      %10376 = vmatprep.mubr.bf16.mxu0 %v9994
      %10377 = vmatmul.mubr.bf16.gmra.mxu0 %v9978
      %v10378 = vpop.f32.mrf.mxu0
      %v10379 = vadd.f32 %v10114, %v10378
      %v10380 = vpop.f32.mrf.mxu0
      %v10381 = vpop.f32.mrf.mxu0
      %v10382 = vadd.f32 %v10114, %v10381
      %v10383 = vpop.f32.mrf.mxu0
      %10384 = vmatprep.mubr.bf16.mxu0 %v9998
      %10385 = vmatmul.mubr.bf16.gmra.mxu0 %v9982
      %v10386 = vpop.f32.mrf.mxu0
      %v10387 = vadd.f32 %v10114, %v10386
      %v10388 = vpop.f32.mrf.mxu0
      %v10389 = vpop.f32.mrf.mxu0
      %v10390 = vadd.f32 %v10114, %v10389
      %v10391 = vpop.f32.mrf.mxu0
      %10392 = vmatprep.mubr.bf16.mxu0 %v10002
      %10393 = vmatmul.mubr.bf16.gmra.mxu0 %v9986
      %v10394 = vpop.f32.mrf.mxu0
      %v10395 = vadd.f32 %v10114, %v10394
      %v10396 = vpop.f32.mrf.mxu0
      %v10397 = vpop.f32.mrf.mxu0
      %v10398 = vadd.f32 %v10114, %v10397
      %v10399 = vpop.f32.mrf.mxu0
      %10400 = vmatprep.mubr.bf16.mxu0 %v10006
      %10401 = vmatmul.mubr.bf16.gmra.mxu0 %v9990
      %v10402 = vpop.f32.mrf.mxu0
      %v10403 = vadd.f32 %v10114, %v10402
      %v10404 = vpop.f32.mrf.mxu0
      %v10405 = vpop.f32.mrf.mxu0
      %v10406 = vadd.f32 %v10114, %v10405
      %v10407 = vpop.f32.mrf.mxu0
      %10408 = vdwg.mxu0
      %10409 = vmatprep.subr.bf16.mxu0 0
      %10410 = vmatpush1.bf16.msra.mxu0 %v10283
      %10411 = vmatprep.subr.bf16.mxu0 0
      %10412 = vmatpush1.bf16.msra.mxu0 %v10282
      %10413 = vmatprep.subr.bf16.mxu0 0
      %10414 = vmatpush1.bf16.msra.mxu0 %v10281
      %10415 = vmatprep.subr.bf16.mxu0 0
      %10416 = vmatpush1.bf16.msra.mxu0 %v10280
      %10417 = vmatprep.subr.bf16.mxu0 0
      %10418 = vmatpush1.bf16.msra.mxu0 %v10279
      %10419 = vmatprep.subr.bf16.mxu0 0
      %10420 = vmatpush1.bf16.msra.mxu0 %v10278
      %10421 = vmatprep.subr.bf16.mxu0 0
      %10422 = vmatpush1.bf16.msra.mxu0 %v10277
      %10423 = vmatprep.subr.bf16.mxu0 0
      %10424 = vmatpush1.bf16.msra.mxu0 %v10276
      %10425 = vmatprep.subr.bf16.mxu0 0
      %10426 = vmatpush2.bf16.msra.mxu0 %v10291
      %10427 = vmatprep.subr.bf16.mxu0 0
      %10428 = vmatpush2.bf16.msra.mxu0 %v10290
      %10429 = vmatprep.subr.bf16.mxu0 0
      %10430 = vmatpush2.bf16.msra.mxu0 %v10289
      %10431 = vmatprep.subr.bf16.mxu0 0
      %10432 = vmatpush2.bf16.msra.mxu0 %v10288
      %10433 = vmatprep.subr.bf16.mxu0 0
      %10434 = vmatpush2.bf16.msra.mxu0 %v10287
      %10435 = vmatprep.subr.bf16.mxu0 0
      %10436 = vmatpush2.bf16.msra.mxu0 %v10286
      %10437 = vmatprep.subr.bf16.mxu0 0
      %10438 = vmatpush2.bf16.msra.mxu0 %v10285
      %10439 = vmatprep.subr.bf16.mxu0 0
      %10440 = vmatpush2.bf16.msra.mxu0 %v10284
      %10441 = vmatprep.mubr.bf16.mxu0 %v10025
      %10442 = vmatmul.mubr.bf16.gmra.mxu0 %v10010
      %v10443 = vpop.f32.mrf.mxu0
      %v10444 = vadd.f32 %v10379, %v10443
      %v10445 = vpop.f32.mrf.mxu0
      %v10446 = vpop.f32.mrf.mxu0
      %v10447 = vadd.f32 %v10382, %v10446
      %v10448 = vpop.f32.mrf.mxu0
      %10449 = vmatprep.mubr.bf16.mxu0 %v10028
      %10450 = vmatmul.mubr.bf16.gmra.mxu0 %v10014
      %v10451 = vpop.f32.mrf.mxu0
      %v10452 = vadd.f32 %v10387, %v10451
      %v10453 = vpop.f32.mrf.mxu0
      %v10454 = vpop.f32.mrf.mxu0
      %v10455 = vadd.f32 %v10390, %v10454
      %v10456 = vpop.f32.mrf.mxu0
      %10457 = vmatprep.mubr.bf16.mxu0 %v10032
      %10458 = vmatmul.mubr.bf16.gmra.mxu0 %v10018
      %v10459 = vpop.f32.mrf.mxu0
      %v10460 = vadd.f32 %v10395, %v10459
      %v10461 = vpop.f32.mrf.mxu0
      %v10462 = vpop.f32.mrf.mxu0
      %v10463 = vadd.f32 %v10398, %v10462
      %v10464 = vpop.f32.mrf.mxu0
      %10465 = vmatprep.mubr.bf16.mxu0 %v10036
      %10466 = vmatmul.mubr.bf16.gmra.mxu0 %v10022
      %v10467 = vpop.f32.mrf.mxu0
      %v10468 = vadd.f32 %v10403, %v10467
      %v10469 = vpop.f32.mrf.mxu0
      %v10470 = vpop.f32.mrf.mxu0
      %v10471 = vadd.f32 %v10406, %v10470
      %v10472 = vpop.f32.mrf.mxu0
      %10473 = vdwg.mxu0
      %10474 = vmatprep.subr.bf16.mxu0 0
      %10475 = vmatpush1.bf16.msra.mxu0 0
      %10476 = vmatprep.subr.bf16.mxu0 0
      %10477 = vmatpush1.bf16.msra.mxu0 0
      %10478 = vmatprep.subr.bf16.mxu0 0
      %10479 = vmatpush1.bf16.msra.mxu0 0
      %10480 = vmatprep.subr.bf16.mxu0 0
      %10481 = vmatpush1.bf16.msra.mxu0 0
      %10482 = vmatprep.subr.bf16.mxu0 0
      %10483 = vmatpush1.bf16.msra.mxu0 %v10295
      %10484 = vmatprep.subr.bf16.mxu0 0
      %10485 = vmatpush1.bf16.msra.mxu0 %v10294
      %10486 = vmatprep.subr.bf16.mxu0 0
      %10487 = vmatpush1.bf16.msra.mxu0 %v10293
      %10488 = vmatprep.subr.bf16.mxu0 0
      %10489 = vmatpush1.bf16.msra.mxu0 %v10292
      %10490 = vmatprep.subr.bf16.mxu0 0
      %10491 = vmatpush2.bf16.msra.mxu0 0
      %10492 = vmatprep.subr.bf16.mxu0 0
      %10493 = vmatpush2.bf16.msra.mxu0 0
      %10494 = vmatprep.subr.bf16.mxu0 0
      %10495 = vmatpush2.bf16.msra.mxu0 0
      %10496 = vmatprep.subr.bf16.mxu0 0
      %10497 = vmatpush2.bf16.msra.mxu0 0
      %10498 = vmatprep.subr.bf16.mxu0 0
      %10499 = vmatpush2.bf16.msra.mxu0 0
      %10500 = vmatprep.subr.bf16.mxu0 0
      %10501 = vmatpush2.bf16.msra.mxu0 0
      %10502 = vmatprep.subr.bf16.mxu0 0
      %10503 = vmatpush2.bf16.msra.mxu0 0
      %10504 = vmatprep.subr.bf16.mxu0 0
      %10505 = vmatpush2.bf16.msra.mxu0 0
      %10506 = vmatprep.mubr.bf16.mxu0 0
      %10507 = vmatmul.mubr.bf16.gmra.mxu0 %v10333
      %v10508 = vpop.f32.mrf.mxu0
      %v10509 = vadd.f32 %v10444, %v10508
      %v10510 = vpop.f32.mrf.mxu0
      %v10511 = vpop.f32.mrf.mxu0
      %v10512 = vadd.f32 %v10447, %v10511
      %v10513 = vpop.f32.mrf.mxu0
      %10514 = vmatprep.mubr.bf16.mxu0 0
      %10515 = vmatmul.mubr.bf16.gmra.mxu0 %v10336
      %v10516 = vpop.f32.mrf.mxu0
      %v10517 = vadd.f32 %v10452, %v10516
      %v10518 = vpop.f32.mrf.mxu0
      %v10519 = vpop.f32.mrf.mxu0
      %v10520 = vadd.f32 %v10455, %v10519
      %v10521 = vpop.f32.mrf.mxu0
      %10522 = vmatprep.mubr.bf16.mxu0 0
      %10523 = vmatmul.mubr.bf16.gmra.mxu0 %v10339
      %v10524 = vpop.f32.mrf.mxu0
      %v10525 = vadd.f32 %v10460, %v10524
      %v10526 = vpop.f32.mrf.mxu0
      %v10527 = vpop.f32.mrf.mxu0
      %v10528 = vadd.f32 %v10463, %v10527
      %v10529 = vpop.f32.mrf.mxu0
      %10530 = vmatprep.mubr.bf16.mxu0 0
      %10531 = vmatmul.mubr.bf16.gmra.mxu0 %v10342
      %v10532 = vpop.f32.mrf.mxu0
      %v10533 = vadd.f32 %v10468, %v10532
      %v10534 = vpop.f32.mrf.mxu0
      %v10535 = vpop.f32.mrf.mxu0
      %v10536 = vadd.f32 %v10471, %v10535
      %v10537 = vpop.f32.mrf.mxu0
      %10538 = vdwg.mxu0
      %v10539 = vmax.f32 %v10509, 0.0
      %v10540 = vmax.f32 %v10512, 0.0
      %v10541 = vmax.f32 %v10517, 0.0
      %v10542 = vmax.f32 %v10520, 0.0
      %v10543 = vmax.f32 %v10525, 0.0
      %v10544 = vmax.f32 %v10528, 0.0
      %v10545 = vmax.f32 %v10533, 0.0
      %v10546 = vmax.f32 %v10536, 0.0
      %v10547 = vlaneseq
      %v10548 = vshrl.u32 %v10547, 7
      %v10549 = vadd.s32 %v10548, 8
      %v10550 = vadd.s32 %v10548, 16
      %v10551 = vadd.s32 %v10548, 24
      %v10552 = vadd.s32 %v10548, 32
      %v10553 = vadd.s32 %v10548, 40
      %v10554 = vadd.s32 %v10548, 48
      %v10555 = vadd.s32 %v10548, 56
      %vm10556 = vcmp.lt.s32.totalorder %v10548, 0
      %v10557 = vsub.s32 0, %v10548
      %v10558 = vsel %vm10556, %v10557, %v10548
      %v10559 = vmul.u32.u64.compose %v10558, 3817748708
      %v10560 = vextract.low.u32 %v10559
      %v10561 = vextract.high.u32 %v10559
      %v10562 = vshrl.u32 %v10561, 3
      %v10563 = vmul.u32 %v10562, 9
      %v10564 = vsub.s32 %v10558, %v10563
      %v10565 = vsub.s32 0, %v10564
      %v10566 = vsel %vm10556, %v10565, %v10564
      %vm10567 = vcmp.lt.s32.totalorder %v10549, 0
      %v10568 = vsub.s32 0, %v10549
      %v10569 = vsel %vm10567, %v10568, %v10549
      %v10570 = vmul.u32.u64.compose %v10569, 3817748708
      %v10571 = vextract.low.u32 %v10570
      %v10572 = vextract.high.u32 %v10570
      %v10573 = vshrl.u32 %v10572, 3
      %v10574 = vmul.u32 %v10573, 9
      %v10575 = vsub.s32 %v10569, %v10574
      %v10576 = vsub.s32 0, %v10575
      %v10577 = vsel %vm10567, %v10576, %v10575
      %vm10578 = vcmp.lt.s32.totalorder %v10550, 0
      %v10579 = vsub.s32 0, %v10550
      %v10580 = vsel %vm10578, %v10579, %v10550
      %v10581 = vmul.u32.u64.compose %v10580, 3817748708
      %v10582 = vextract.low.u32 %v10581
      %v10583 = vextract.high.u32 %v10581
      %v10584 = vshrl.u32 %v10583, 3
      %v10585 = vmul.u32 %v10584, 9
      %v10586 = vsub.s32 %v10580, %v10585
      %v10587 = vsub.s32 0, %v10586
      %v10588 = vsel %vm10578, %v10587, %v10586
      %vm10589 = vcmp.lt.s32.totalorder %v10551, 0
      %v10590 = vsub.s32 0, %v10551
      %v10591 = vsel %vm10589, %v10590, %v10551
      %v10592 = vmul.u32.u64.compose %v10591, 3817748708
      %v10593 = vextract.low.u32 %v10592
      %v10594 = vextract.high.u32 %v10592
      %v10595 = vshrl.u32 %v10594, 3
      %v10596 = vmul.u32 %v10595, 9
      %v10597 = vsub.s32 %v10591, %v10596
      %v10598 = vsub.s32 0, %v10597
      %v10599 = vsel %vm10589, %v10598, %v10597
      %vm10600 = vcmp.lt.s32.totalorder %v10552, 0
      %v10601 = vsub.s32 0, %v10552
      %v10602 = vsel %vm10600, %v10601, %v10552
      %v10603 = vmul.u32.u64.compose %v10602, 3817748708
      %v10604 = vextract.low.u32 %v10603
      %v10605 = vextract.high.u32 %v10603
      %v10606 = vshrl.u32 %v10605, 3
      %v10607 = vmul.u32 %v10606, 9
      %v10608 = vsub.s32 %v10602, %v10607
      %v10609 = vsub.s32 0, %v10608
      %v10610 = vsel %vm10600, %v10609, %v10608
      %vm10611 = vcmp.lt.s32.totalorder %v10553, 0
      %v10612 = vsub.s32 0, %v10553
      %v10613 = vsel %vm10611, %v10612, %v10553
      %v10614 = vmul.u32.u64.compose %v10613, 3817748708
      %v10615 = vextract.low.u32 %v10614
      %v10616 = vextract.high.u32 %v10614
      %v10617 = vshrl.u32 %v10616, 3
      %v10618 = vmul.u32 %v10617, 9
      %v10619 = vsub.s32 %v10613, %v10618
      %v10620 = vsub.s32 0, %v10619
      %v10621 = vsel %vm10611, %v10620, %v10619
      %vm10622 = vcmp.lt.s32.totalorder %v10554, 0
      %v10623 = vsub.s32 0, %v10554
      %v10624 = vsel %vm10622, %v10623, %v10554
      %v10625 = vmul.u32.u64.compose %v10624, 3817748708
      %v10626 = vextract.low.u32 %v10625
      %v10627 = vextract.high.u32 %v10625
      %v10628 = vshrl.u32 %v10627, 3
      %v10629 = vmul.u32 %v10628, 9
      %v10630 = vsub.s32 %v10624, %v10629
      %v10631 = vsub.s32 0, %v10630
      %v10632 = vsel %vm10622, %v10631, %v10630
      %vm10633 = vcmp.lt.s32.totalorder %v10555, 0
      %v10634 = vsub.s32 0, %v10555
      %v10635 = vsel %vm10633, %v10634, %v10555
      %v10636 = vmul.u32.u64.compose %v10635, 3817748708
      %v10637 = vextract.low.u32 %v10636
      %v10638 = vextract.high.u32 %v10636
      %v10639 = vshrl.u32 %v10638, 3
      %v10640 = vmul.u32 %v10639, 9
      %v10641 = vsub.s32 %v10635, %v10640
      %v10642 = vsub.s32 0, %v10641
      %v10643 = vsel %vm10633, %v10642, %v10641
      %vm10644 = vcmp.ne.s32.totalorder %v10566, 0
      %vm10645 = vcmp.ne.s32.totalorder %v10577, 0
      %vm10646 = vcmp.ne.s32.totalorder %v10588, 0
      %vm10647 = vcmp.ne.s32.totalorder %v10599, 0
      %vm10648 = vcmp.ne.s32.totalorder %v10610, 0
      %vm10649 = vcmp.ne.s32.totalorder %v10621, 0
      %vm10650 = vcmp.ne.s32.totalorder %v10632, 0
      %vm10651 = vcmp.ne.s32.totalorder %v10643, 0
      %vm10652 = vcmp.lt.s32.totalorder %v10566, 0
      %vm10653 = vcmp.lt.s32.totalorder %v10577, 0
      %vm10654 = vcmp.lt.s32.totalorder %v10588, 0
      %vm10655 = vcmp.lt.s32.totalorder %v10599, 0
      %vm10656 = vcmp.lt.s32.totalorder %v10610, 0
      %vm10657 = vcmp.lt.s32.totalorder %v10621, 0
      %vm10658 = vcmp.lt.s32.totalorder %v10632, 0
      %vm10659 = vcmp.lt.s32.totalorder %v10643, 0
      %vm10660 = vmand %vm10652, %vm10644
      %vm10661 = vmand %vm10653, %vm10645
      %vm10662 = vmand %vm10654, %vm10646
      %vm10663 = vmand %vm10655, %vm10647
      %vm10664 = vmand %vm10656, %vm10648
      %vm10665 = vmand %vm10657, %vm10649
      %vm10666 = vmand %vm10658, %vm10650
      %vm10667 = vmand %vm10659, %vm10651
      %v10668 = vadd.s32 %v10566, 9
      %v10669 = vadd.s32 %v10577, 9
      %v10670 = vadd.s32 %v10588, 9
      %v10671 = vadd.s32 %v10599, 9
      %v10672 = vadd.s32 %v10610, 9
      %v10673 = vadd.s32 %v10621, 9
      %v10674 = vadd.s32 %v10632, 9
      %v10675 = vadd.s32 %v10643, 9
      %v10676 = vsel %vm10660, %v10668, %v10566
      %v10677 = vsel %vm10661, %v10669, %v10577
      %v10678 = vsel %vm10662, %v10670, %v10588
      %v10679 = vsel %vm10663, %v10671, %v10599
      %v10680 = vsel %vm10664, %v10672, %v10610
      %v10681 = vsel %vm10665, %v10673, %v10621
      %v10682 = vsel %vm10666, %v10674, %v10632
      %v10683 = vsel %vm10667, %v10675, %v10643
      %vm10684 = vcmp.lt.s32.totalorder %v10676, 7
      %vm10685 = vcmp.lt.s32.totalorder %v10677, 7
      %vm10686 = vcmp.lt.s32.totalorder %v10678, 7
      %vm10687 = vcmp.lt.s32.totalorder %v10679, 7
      %vm10688 = vcmp.lt.s32.totalorder %v10680, 7
      %vm10689 = vcmp.lt.s32.totalorder %v10681, 7
      %vm10690 = vcmp.lt.s32.totalorder %v10682, 7
      %vm10691 = vcmp.lt.s32.totalorder %v10683, 7
      %v10692 = vsel %vm10684, 1, 0
      %v10693 = vsel %vm10685, 1, 0
      %v10694 = vsel %vm10686, 1, 0
      %v10695 = vsel %vm10687, 1, 0
      %v10696 = vsel %vm10688, 1, 0
      %v10697 = vsel %vm10689, 1, 0
      %v10698 = vsel %vm10690, 1, 0
      %v10699 = vsel %vm10691, 1, 0
      %vm10700 = vcmp.eq.s32.totalorder %v10692, 1
      %vm10701 = vcmp.eq.s32.totalorder %v10693, 1
      %vm10702 = vcmp.eq.s32.totalorder %v10694, 1
      %vm10703 = vcmp.eq.s32.totalorder %v10695, 1
      %vm10704 = vcmp.eq.s32.totalorder %v10696, 1
      %vm10705 = vcmp.eq.s32.totalorder %v10697, 1
      %vm10706 = vcmp.eq.s32.totalorder %v10698, 1
      %vm10707 = vcmp.eq.s32.totalorder %v10699, 1
      %v10708 = vsel %vm10700, %v10539, 0.0
      %v10709 = vsel %vm10701, %v10540, 0.0
      %v10710 = vsel %vm10702, %v10541, 0.0
      %v10711 = vsel %vm10703, %v10542, 0.0
      %v10712 = vsel %vm10704, %v10543, 0.0
      %v10713 = vsel %vm10705, %v10544, 0.0
      %v10714 = vsel %vm10706, %v10545, 0.0
      %v10715 = vsel %vm10707, %v10546, 0.0
      %10716 = vst [vmem:[#allocation6 + $0x10] sm:$0xff] %v10708
      %10717 = vst [vmem:[#allocation6 + $0x18] sm:$0xff] %v10709
      %10718 = vst [vmem:[#allocation6 + $0x20] sm:$0xff] %v10710
      %10719 = vst [vmem:[#allocation6 + $0x28] sm:$0xff] %v10711
      %10720 = vst [vmem:[#allocation6 + $0x30] sm:$0xff] %v10712
      %10721 = vst [vmem:[#allocation6 + $0x38] sm:$0xff] %v10713
      %10722 = vst [vmem:[#allocation6 + $0x40] sm:$0xff] %v10714
      %10723 = vst [vmem:[#allocation6 + $0x48] sm:$0x1f] %v10715
      %v10724 = vld [vmem:[#allocation6 + $0x7] sm:$0xff]
      %v10725 = vld [vmem:[#allocation6 + $0xf] sm:$0xff]
      %v10726 = vld [vmem:[#allocation6 + $0x17] sm:$0xff]
      %v10727 = vld [vmem:[#allocation6 + $0x1f] sm:$0xff]
      %v10728 = vld [vmem:[#allocation6 + $0x27] sm:$0xff]
      %v10729 = vld [vmem:[#allocation6 + $0x2f] sm:$0xff]
      %v10730 = vld [vmem:[#allocation6 + $0x37] sm:$0xff]
      %v10731 = vld [vmem:[#allocation6 + $0x3f] sm:$0x1f]
      %v10732 = vld [vmem:[#allocation6 + $0x10] sm:$0xff]
      %v10733 = vld [vmem:[#allocation6 + $0x18] sm:$0xff]
      %v10734 = vld [vmem:[#allocation6 + $0x20] sm:$0xff]
      %v10735 = vld [vmem:[#allocation6 + $0x28] sm:$0xff]
      %v10736 = vld [vmem:[#allocation6 + $0x30] sm:$0xff]
      %v10737 = vld [vmem:[#allocation6 + $0x38] sm:$0xff]
      %v10738 = vld [vmem:[#allocation6 + $0x40] sm:$0xff]
      %v10739 = vld [vmem:[#allocation6 + $0x48] sm:$0x1f]
      %v10740 = vmax.f32 %v10724, %v10732
      %v10741 = vmax.f32 %v10725, %v10733
      %v10742 = vmax.f32 %v10726, %v10734
      %v10743 = vmax.f32 %v10727, %v10735
      %v10744 = vmax.f32 %v10728, %v10736
      %v10745 = vmax.f32 %v10729, %v10737
      %v10746 = vmax.f32 %v10730, %v10738
      %v10747 = vmax.f32 %v10731, %v10739
      %10748 = vst [vmem:[#allocation6 + $0x10] sm:$0xff] %v10740
      %10749 = vst [vmem:[#allocation6 + $0x18] sm:$0xff] %v10741
      %10750 = vst [vmem:[#allocation6 + $0x20] sm:$0xff] %v10742
      %10751 = vst [vmem:[#allocation6 + $0x28] sm:$0xff] %v10743
      %10752 = vst [vmem:[#allocation6 + $0x30] sm:$0xff] %v10744
      %10753 = vst [vmem:[#allocation6 + $0x38] sm:$0xff] %v10745
      %10754 = vst [vmem:[#allocation6 + $0x40] sm:$0xff] %v10746
      %10755 = vst [vmem:[#allocation6 + $0x48] sm:$0x1f] %v10747
      %s10756 = scalar_lea.vmem [#allocation6], 15
      %v10757 = vld [vmem:[%s10756] ss:$2 sm:$0xf]
      %s10758 = scalar_lea.vmem [#allocation6], 16
      %v10759 = vld [vmem:[%s10758] ss:$2 sm:$0xf]
      %v10760 = vmax.f32 %v10757, %v10759
      %10761 = vst [vmem:[%s278] sm:$0xf] %v10760
      %s10762 = scalar_lea.vmem [#allocation6], 33
      %v10763 = vld [vmem:[%s10762] ss:$2 sm:$0xf]
      %s10764 = scalar_lea.vmem [#allocation6], 34
      %v10765 = vld [vmem:[%s10764] ss:$2 sm:$0xf]
      %v10766 = vmax.f32 %v10763, %v10765
      %10767 = vst [vmem:[%s278 + $0x4] sm:$0xf] %v10766
      %s10768 = scalar_lea.vmem [#allocation6], 51
      %v10769 = vld [vmem:[%s10768] ss:$2 sm:$0xf]
      %s10770 = scalar_lea.vmem [#allocation6], 52
      %v10771 = vld [vmem:[%s10770] ss:$2 sm:$0xf]
      %v10772 = vmax.f32 %v10769, %v10771
      %10773 = vst [vmem:[%s278 + $0x8] sm:$0xf] %v10772
      %s10774 = scalar_lea.vmem [#allocation6], 69
      %v10775 = vld [vmem:[%s10774] ss:$2 sm:$0xf]
      %s10776 = scalar_lea.vmem [#allocation6], 70
      %v10777 = vld [vmem:[%s10776] ss:$2 sm:$0xf]
      %v10778 = vmax.f32 %v10775, %v10777
      %10779 = vst [vmem:[%s278 + $0xc] sm:$0xf] %v10778
      %p10780 = scmp.lt.s32.totalorder %s18, 1
      %s10781 = scalar_select %p10780, %s18, 1
      %s10782 = smul.addr %s10781, 2
      %s10783 = smul.addr %s10782, 8
      %s10784 = scalar_lea.vmem %s7, %s10783
      // Predicated region
      $region49: #{encoder_forward.1} parent=47 // pred_check
        %p10785 = pneg %p188
      $region50: #{encoder_forward.1} parent=47 // pred_check_branch
        %10787 = sbr.rel (%p10785) target = $region52
      $region51: #{encoder_forward.1} parent=47 // pred_region
        _
      $region52: #{encoder_forward.1} parent=47 // pred_fallthru
        _
    $region48: #{encoder_forward.1} parent=5 // pred_fallthru
      _
    %p10788 = scmp.le.s32.totalorder 2, %s13
    // Predicated region
    $region53: #{encoder_forward.1} parent=5 // pred_check
      %p10789 = pneg %p10788
    $region54: #{encoder_forward.1} parent=5 // pred_check_branch
      %10791 = sbr.rel (%p10789) target = $region56
    $region55: #{encoder_forward.1} parent=5 // pred_region
      %s10792 = ssub.s32 %s13, 2
      // Predicated region
      $region57: #{encoder_forward.1} parent=55 // pred_check
        %p10793 = pneg %p194
      $region58: #{encoder_forward.1} parent=55 // pred_check_branch
        %10795 = sbr.rel (%p10793) target = $region60
      $region59: #{encoder_forward.1} parent=55 // pred_region
        %p10796 = scmp.lt.s32.totalorder %s19, 1
        %s10797 = scalar_select %p10796, %s19, 1
        %s10798 = smul.addr %s10797, 2
        %s10799 = smul.addr %s10798, 8
        %s10800 = scalar_lea.vmem %s7, %s10799
      $region60: #{encoder_forward.1} parent=55 // pred_fallthru
        _
    $region56: #{encoder_forward.1} parent=5 // pred_fallthru
      _
  $region6: #{encoder_forward.1} parent=0 // loop_footer
    %s17 = sadd.s32 1, %s13
  $region7: #{encoder_forward.1} parent=0 // loop_footer_branch
    %12 = sbr.rel target = $region3
  $region8: #{encoder_forward.1} parent=0 // loop_exit
    _

</llo_original>
